<compile_context>
chip_gen: v7x
topology: tpu7x:2x2x1
jax: 0.10.0
libtpu: 0.0.40
codegen_flags: <defaults>
</compile_context>

<pallas_src>
import jax
import jax.numpy as jnp
from jax import lax
from jax.experimental import pallas as pl
from jax.experimental.pallas import tpu as pltpu

# ----------------------------- configuration -------------------------------
CHANNELS = 4          # `channels`
HIDDEN = 32           # `hidden_channels`
KERNEL_SIZE = 3       # `kernel_size`
DILATION_RATE = 2     # `dilation_rate`
N_LAYERS = 3          # `n_layers` (WN depth)
N_FLOWS = 4           # `n_flows`
BATCH = 2
TIME = 64
HALF = CHANNELS // 2

_KP_ORDER = ("pre_w", "pre_b", "in_w", "in_b", "rs_w", "rs_b",
             "rs_wl", "rs_bl", "post_w", "post_b")


def _conv_shifts():
    """All non-zero tap offsets of the dilated WN convs."""
    return sorted({j * (DILATION_RATE ** i)
                   - ((DILATION_RATE ** i) * (KERNEL_SIZE - 1)) // 2
                   for i in range(N_LAYERS) for j in range(KERNEL_SIZE)} - {0})


# ------------------------------- kernel ------------------------------------
def _make_block_kernel(reverse, tp):
    """All N_FLOWS ResidualCouplingLayers + Flips for one batch row."""
    H, K = HIDDEN, KERNEL_SIZE

    def mdot(w, x):
        # bf16 x bf16 MXU matmul with f32 accumulation (default MXU precision
        # truncates operands to bf16 anyway, so this is numerically neutral).
        return jnp.dot(w, x.astype(jnp.bfloat16),
                       preferred_element_type=jnp.float32)

    def kernel(x_ref, mask_ref,
               pre_w_ref, pre_b_ref, in_w_ref, in_b_ref,
               rs_w_ref, rs_b_ref, rs_wl_ref, rs_bl_ref,
               post_w_ref, post_b_ref,
               out_ref):
        mask = mask_ref[0]                 # (1, tp)
        x = x_ref[0]                       # (CHANNELS, tp)
        a0 = x[:HALF, :]                   # (HALF, tp)
        a1 = x[HALF:, :]                   # (HALF, tp)

        # Boundary-validity masks: pltpu.roll is circular, so zero the |s|
        # lanes that wrap across the sequence edge (== zero-padded conv).
        lane = lax.broadcasted_iota(jnp.int32, (1, tp), 1)
        bmask = {s: ((lane + s >= 0) & (lane + s < tp)).astype(jnp.float32)
                 for s in _conv_shifts()}

        def tap(h, s):
            # taps[:, c] = h[:, c + s], zero outside [0, tp) -- exact, on XLU.
            if s == 0:
                return h
            return pltpu.roll(h, (-s) % tp, axis=1) * bmask[s]

        for f in range(N_FLOWS):
            if reverse:
                a0, a1 = a1, a0            # modules.Flip folded: swap halves

            # pre: 1x1 conv (HALF -> H), masked
            h = (mdot(pre_w_ref[f], a0) + pre_b_ref[f]) * mask     # (H, tp)

            skip = jnp.zeros((H, tp), jnp.float32)
            for i in range(N_LAYERS):
                d = DILATION_RATE ** i
                p = (d * (K - 1)) // 2
                li = f * N_LAYERS + i
                # dilated conv = K accumulated per-tap matmuls on rolled h
                x_in = in_b_ref[li]                                # (2H, 1)
                for j in range(K):
                    x_in = x_in + mdot(in_w_ref[li * K + j], tap(h, j * d - p))
                # gated activation (g == 0)
                acts = jnp.tanh(x_in[:H, :]) * jax.nn.sigmoid(x_in[H:, :])
                if i < N_LAYERS - 1:
                    ri = f * (N_LAYERS - 1) + i
                    rs = mdot(rs_w_ref[ri], acts) + rs_b_ref[ri]   # (2H, tp)
                    h = (h + rs[:H, :]) * mask
                    skip = skip + rs[H:, :]
                else:
                    skip = skip + mdot(rs_wl_ref[f], acts) + rs_bl_ref[f]

            # post: 1x1 conv (H -> HALF) => m ; mean_only => logs == 0
            m = (mdot(post_w_ref[f], skip) + post_b_ref[f]) * mask
            if not reverse:
                a1 = m + a1 * mask         # x1 = m + x1 * exp(0) * mask
                a0, a1 = a1, a0            # modules.Flip folded: swap halves
            else:
                a1 = (a1 - m) * mask       # x1 = (x1 - m) * exp(-0) * mask

        out_ref[0] = jnp.concatenate([a0, a1], axis=0)

    return kernel


# ------------------------------ wrappers ------------------------------------
def _stack_kernel_params(flow_params, reverse):
    """Stack per-flow weights in processing order; Flip folded in as a
    within-half channel reversal on pre (columns) / post (rows) of odd flows.
    Matmul weights cast to bf16 (MXU-native), biases kept f32."""
    order = list(reversed(range(N_FLOWS))) if reverse else list(range(N_FLOWS))
    cols = {k: [] for k in _KP_ORDER}
    for f in order:
        p = flow_params[f]
        fold = ((N_FLOWS - f) % 2 == 1) if reverse else (f % 2 == 1)
        pre_w = p["pre_w"][:, ::-1] if fold else p["pre_w"]
        post_w = p["post_w"][::-1, :] if fold else p["post_w"]
        post_b = p["post_b"][::-1] if fold else p["post_b"]
        cols["pre_w"].append(pre_w.astype(jnp.bfloat16))
        cols["pre_b"].append(p["pre_b"][:, None])
        cols["post_w"].append(post_w.astype(jnp.bfloat16))
        cols["post_b"].append(post_b[:, None])
        for i in range(N_LAYERS):
            w = p["in_w"][i]                                   # (2H, H, K) OIH
            for j in range(KERNEL_SIZE):
                cols["in_w"].append(w[:, :, j].astype(jnp.bfloat16))
            cols["in_b"].append(p["in_b"][i][:, None])
            if i < N_LAYERS - 1:
                cols["rs_w"].append(p["rs_w"][i].astype(jnp.bfloat16))
                cols["rs_b"].append(p["rs_b"][i][:, None])
        cols["rs_wl"].append(p["rs_w_last"].astype(jnp.bfloat16))
        cols["rs_bl"].append(p["rs_b_last"][:, None])
    if not cols["rs_w"]:                                       # n_layers == 1
        cols["rs_w"].append(jnp.zeros((2 * HIDDEN, HIDDEN), jnp.bfloat16))
        cols["rs_b"].append(jnp.zeros((2 * HIDDEN, 1), jnp.float32))
    return {k: jnp.stack(v, axis=0) for k, v in cols.items()}


def _cost_estimate(B, tp, weight_bytes):
    per_t = (HIDDEN * HALF
             + N_LAYERS * KERNEL_SIZE * 2 * HIDDEN * HIDDEN
             + (N_LAYERS - 1) * 2 * HIDDEN * HIDDEN
             + HIDDEN * HIDDEN
             + HALF * HIDDEN)
    flops = 2 * B * tp * N_FLOWS * per_t
    transc = 2 * B * tp * N_FLOWS * N_LAYERS * HIDDEN
    io_bytes = 4 * (2 * B * CHANNELS * tp + B * tp)
    return pl.CostEstimate(flops=flops, transcendentals=transc,
                           bytes_accessed=io_bytes + weight_bytes)


def residual_coupling_block_forward(x, x_mask, flow_params, reverse=False):
    """Matches ResidualCouplingBlock.forward: n_flows x [coupling (mean_only), Flip].
    All flows run in ONE pallas_call; grid = (batch,), 'parallel' for v7x."""
    B, C, T = x.shape
    assert C == CHANNELS
    tp = max(128, ((T + 127) // 128) * 128)        # lane-dense time extent
    if tp != T:
        x = jnp.pad(x, ((0, 0), (0, 0), (0, tp - T)))
        x_mask = jnp.pad(x_mask, ((0, 0), (0, 0), (0, tp - T)))

    kp = _stack_kernel_params(flow_params, reverse)
    kernel = _make_block_kernel(reverse, tp)
    weight_bytes = int(sum(int(v.size) * v.dtype.itemsize for v in kp.values()))

    def _full(arr):
        nd = arr.ndim
        return pl.BlockSpec(arr.shape, lambda b, _nd=nd: (0,) * _nd)

    xio_spec = pl.BlockSpec((1, CHANNELS, tp), lambda b: (b, 0, 0))
    out = pl.pallas_call(
        kernel,
        out_shape=jax.ShapeDtypeStruct((B, CHANNELS, tp), jnp.float32),
        grid_spec=pltpu.PrefetchScalarGridSpec(
            num_scalar_prefetch=0,
            grid=(B,),
            in_specs=[xio_spec,                                      # x (both halves)
                      pl.BlockSpec((1, 1, tp), lambda b: (b, 0, 0))  # mask
                      ] + [_full(kp[k]) for k in _KP_ORDER],
            out_specs=xio_spec,
        ),
        compiler_params=pltpu.CompilerParams(
            dimension_semantics=("parallel",)),
        cost_estimate=_cost_estimate(B, tp, weight_bytes),
    )(x, x_mask, *[kp[k] for k in _KP_ORDER])

    out = out[:, :, :T]
    if N_FLOWS % 2 == 1:
        # odd flow count leaves a residual within-half channel reversal
        out = jnp.concatenate([out[:, :HALF][:, ::-1],
                               out[:, HALF:][:, ::-1]], axis=1)
    return out


# --------------------------- parameter init ---------------------------------
def init_params(key):
    flows = []
    s = 0.1
    for _ in range(N_FLOWS):
        key, *ks = jax.random.split(key, 11)
        flows.append(dict(
            pre_w=s * jax.random.normal(ks[0], (HIDDEN, HALF), jnp.float32),
            pre_b=s * jax.random.normal(ks[1], (HIDDEN,), jnp.float32),
            in_w=s * jax.random.normal(
                ks[2], (N_LAYERS, 2 * HIDDEN, HIDDEN, KERNEL_SIZE), jnp.float32),
            in_b=s * jax.random.normal(ks[3], (N_LAYERS, 2 * HIDDEN), jnp.float32),
            rs_w=s * jax.random.normal(
                ks[4], (max(N_LAYERS - 1, 1), 2 * HIDDEN, HIDDEN), jnp.float32),
            rs_b=s * jax.random.normal(
                ks[5], (max(N_LAYERS - 1, 1), 2 * HIDDEN), jnp.float32),
            rs_w_last=s * jax.random.normal(ks[6], (HIDDEN, HIDDEN), jnp.float32),
            rs_b_last=s * jax.random.normal(ks[7], (HIDDEN,), jnp.float32),
            # NOTE: PyTorch zero-inits `post`; small random weights are used so
            # the full compute path is exercised (synthetic init, same shapes).
            post_w=s * jax.random.normal(ks[8], (HALF, HIDDEN), jnp.float32),
            post_b=s * jax.random.normal(ks[9], (HALF,), jnp.float32),
        ))
    return flows


# --------------------------- pure-JAX reference ------------------------------
def _ref_coupling_forward(x, x_mask, p):
    x0, x1 = x[:, :HALF], x[:, HALF:]
    h = (jnp.einsum("oc,bct->bot", p["pre_w"], x0)
         + p["pre_b"][None, :, None]) * x_mask
    output = jnp.zeros((x.shape[0], HIDDEN, x.shape[-1]), jnp.float32)
    for i in range(N_LAYERS):
        d = DILATION_RATE ** i
        pad = (d * (KERNEL_SIZE - 1)) // 2
        x_in = lax.conv_general_dilated(
            h, p["in_w"][i], window_strides=(1,), padding=[(pad, pad)],
            rhs_dilation=(d,), dimension_numbers=("NCH", "OIH", "NCH"))
        x_in = x_in + p["in_b"][i][None, :, None]
        acts = jnp.tanh(x_in[:, :HIDDEN]) * jax.nn.sigmoid(x_in[:, HIDDEN:])
        if i < N_LAYERS - 1:
            rs = (jnp.einsum("oc,bct->bot", p["rs_w"][i], acts)
                  + p["rs_b"][i][None, :, None])
            h = (h + rs[:, :HIDDEN]) * x_mask
            output = output + rs[:, HIDDEN:]
        else:
            rs = (jnp.einsum("oc,bct->bot", p["rs_w_last"], acts)
                  + p["rs_b_last"][None, :, None])
            output = output + rs
    output = output * x_mask
    m = (jnp.einsum("oc,bct->bot", p["post_w"], output)
         + p["post_b"][None, :, None]) * x_mask
    x1n = m + x1 * x_mask
    return jnp.concatenate([x0, x1n], axis=1)


def _ref_block_forward(x, x_mask, flow_params):
    for p in flow_params:
        x = _ref_coupling_forward(x, x_mask, p)
        x = jnp.flip(x, axis=1)                     # modules.Flip
    return x


# --------------------------------- main --------------------------------------
if __name__ == "__main__":
    key = jax.random.PRNGKey(0)
    k_x, k_p = jax.random.split(key)
    x = jax.random.normal(k_x, (BATCH, CHANNELS, TIME), jnp.float32)
    lengths = jnp.array([TIME, TIME - 17])
    x_mask = (jnp.arange(TIME)[None, None, :]
              < lengths[:, None, None]).astype(jnp.float32)
    flow_params = init_params(k_p)

    fwd = jax.jit(lambda a, m, ps: residual_coupling_block_forward(a, m, ps, reverse=False))
    rev = jax.jit(lambda a, m, ps: residual_coupling_block_forward(a, m, ps, reverse=True))

    y = jax.block_until_ready(fwd(x, x_mask, flow_params))
    assert y.shape == x.shape and y.dtype == x.dtype

    # correctness vs pure-JAX reference (lax.conv based)
    y_ref = _ref_block_forward(x, x_mask, flow_params)
    err = float(jnp.max(jnp.abs(y - y_ref)))
    if not err < 3e-3:
        raise AssertionError(f"forward mismatch vs reference: max abs err {err}")

    # flow invertibility (up to masking): reverse(forward(x)) == x on valid steps
    x_rt = jax.block_until_ready(rev(y, x_mask, flow_params))
    inv_err = float(jnp.max(jnp.abs((x_rt - x) * x_mask)))
    if not inv_err < 1e-2:
        raise AssertionError(f"reverse pass does not invert forward: {inv_err}")

    print("KERNEL_OK")
</pallas_src>

<mosaic_0001>
module attributes {stable_mosaic.version = 11 : i64} {
  func.func @kernel(%arg0: i32, %arg1: memref<1x4x128xf32, #tpu.memory_space<vmem>>, %arg2: memref<1x1x128xf32, #tpu.memory_space<vmem>>, %arg3: memref<4x32x2xbf16, #tpu.memory_space<vmem>>, %arg4: memref<4x32x1xf32, #tpu.memory_space<vmem>>, %arg5: memref<36x64x32xbf16, #tpu.memory_space<vmem>>, %arg6: memref<12x64x1xf32, #tpu.memory_space<vmem>>, %arg7: memref<8x64x32xbf16, #tpu.memory_space<vmem>>, %arg8: memref<8x64x1xf32, #tpu.memory_space<vmem>>, %arg9: memref<4x32x32xbf16, #tpu.memory_space<vmem>>, %arg10: memref<4x32x1xf32, #tpu.memory_space<vmem>>, %arg11: memref<4x2x32xbf16, #tpu.memory_space<vmem>>, %arg12: memref<4x2x1xf32, #tpu.memory_space<vmem>>, %arg13: memref<1x4x128xf32, #tpu.memory_space<vmem>>) attributes {dimension_semantics = [#tpu.dimension_semantics<parallel>], iteration_bounds = array<i64: 2>, scalar_prefetch = 0 : i64, scratch_operands = 0 : i64, tpu.core_type = #tpu.core_type<tc>, window_params = [{transform_indices = @transform_0, window_bounds = array<i64: 1, 4, 128>}, {transform_indices = @transform_1, window_bounds = array<i64: 1, 1, 128>}, {pipeline_mode = #tpu.pipeline_mode<synchronous>, transform_indices = @transform_2, window_bounds = array<i64: 4, 32, 2>}, {pipeline_mode = #tpu.pipeline_mode<synchronous>, transform_indices = @transform_3, window_bounds = array<i64: 4, 32, 1>}, {pipeline_mode = #tpu.pipeline_mode<synchronous>, transform_indices = @transform_4, window_bounds = array<i64: 36, 64, 32>}, {pipeline_mode = #tpu.pipeline_mode<synchronous>, transform_indices = @transform_5, window_bounds = array<i64: 12, 64, 1>}, {pipeline_mode = #tpu.pipeline_mode<synchronous>, transform_indices = @transform_6, window_bounds = array<i64: 8, 64, 32>}, {pipeline_mode = #tpu.pipeline_mode<synchronous>, transform_indices = @transform_7, window_bounds = array<i64: 8, 64, 1>}, {pipeline_mode = #tpu.pipeline_mode<synchronous>, transform_indices = @transform_8, window_bounds = array<i64: 4, 32, 32>}, {pipeline_mode = #tpu.pipeline_mode<synchronous>, transform_indices = @transform_9, window_bounds = array<i64: 4, 32, 1>}, {pipeline_mode = #tpu.pipeline_mode<synchronous>, transform_indices = @transform_10, window_bounds = array<i64: 4, 2, 32>}, {pipeline_mode = #tpu.pipeline_mode<synchronous>, transform_indices = @transform_11, window_bounds = array<i64: 4, 2, 1>}, {transform_indices = @transform_12, window_bounds = array<i64: 1, 4, 128>}]} {
    %c0 = arith.constant 0 : index
    %c0_0 = arith.constant 0 : index
    %c0_1 = arith.constant 0 : index
    %0 = vector.load %arg2[%c0, %c0_0, %c0_1] : memref<1x1x128xf32, #tpu.memory_space<vmem>>, vector<1x1x128xf32>
    %1 = vector.shape_cast %0 : vector<1x1x128xf32> to vector<1x128xf32>
    %c0_2 = arith.constant 0 : index
    %c0_3 = arith.constant 0 : index
    %c0_4 = arith.constant 0 : index
    %2 = vector.load %arg1[%c0_2, %c0_3, %c0_4] : memref<1x4x128xf32, #tpu.memory_space<vmem>>, vector<1x4x128xf32>
    %3 = vector.shape_cast %2 : vector<1x4x128xf32> to vector<4x128xf32>
    %4 = vector.extract_strided_slice %3 {offsets = [0, 0], sizes = [2, 128], strides = [1, 1]} : vector<4x128xf32> to vector<2x128xf32>
    %5 = vector.extract_strided_slice %3 {offsets = [2, 0], sizes = [2, 128], strides = [1, 1]} : vector<4x128xf32> to vector<2x128xf32>
    %6 = tpu.iota {dimensions = array<i32: 1>} : vector<1x128xi32>
    %c-4_i32 = arith.constant -4 : i32
    %7 = vector.broadcast %c-4_i32 : i32 to vector<1x128xi32>
    %8 = arith.addi %6, %7 : vector<1x128xi32>
    %c0_i32 = arith.constant 0 : i32
    %9 = vector.broadcast %c0_i32 : i32 to vector<1x128xi32>
    %10 = arith.cmpi sge, %8, %9 : vector<1x128xi32>
    %c-4_i32_5 = arith.constant -4 : i32
    %11 = vector.broadcast %c-4_i32_5 : i32 to vector<1x128xi32>
    %12 = arith.addi %6, %11 : vector<1x128xi32>
    %c128_i32 = arith.constant 128 : i32
    %13 = vector.broadcast %c128_i32 : i32 to vector<1x128xi32>
    %14 = arith.cmpi slt, %12, %13 : vector<1x128xi32>
    %15 = arith.andi %10, %14 : vector<1x128xi1>
    %16 = arith.extui %15 : vector<1x128xi1> to vector<1x128xi32>
    %17 = arith.sitofp %16 : vector<1x128xi32> to vector<1x128xf32>
    %c-2_i32 = arith.constant -2 : i32
    %18 = vector.broadcast %c-2_i32 : i32 to vector<1x128xi32>
    %19 = arith.addi %6, %18 : vector<1x128xi32>
    %c0_i32_6 = arith.constant 0 : i32
    %20 = vector.broadcast %c0_i32_6 : i32 to vector<1x128xi32>
    %21 = arith.cmpi sge, %19, %20 : vector<1x128xi32>
    %c-2_i32_7 = arith.constant -2 : i32
    %22 = vector.broadcast %c-2_i32_7 : i32 to vector<1x128xi32>
    %23 = arith.addi %6, %22 : vector<1x128xi32>
    %c128_i32_8 = arith.constant 128 : i32
    %24 = vector.broadcast %c128_i32_8 : i32 to vector<1x128xi32>
    %25 = arith.cmpi slt, %23, %24 : vector<1x128xi32>
    %26 = arith.andi %21, %25 : vector<1x128xi1>
    %27 = arith.extui %26 : vector<1x128xi1> to vector<1x128xi32>
    %28 = arith.sitofp %27 : vector<1x128xi32> to vector<1x128xf32>
    %c-1_i32 = arith.constant -1 : i32
    %29 = vector.broadcast %c-1_i32 : i32 to vector<1x128xi32>
    %30 = arith.addi %6, %29 : vector<1x128xi32>
    %c0_i32_9 = arith.constant 0 : i32
    %31 = vector.broadcast %c0_i32_9 : i32 to vector<1x128xi32>
    %32 = arith.cmpi sge, %30, %31 : vector<1x128xi32>
    %c-1_i32_10 = arith.constant -1 : i32
    %33 = vector.broadcast %c-1_i32_10 : i32 to vector<1x128xi32>
    %34 = arith.addi %6, %33 : vector<1x128xi32>
    %c128_i32_11 = arith.constant 128 : i32
    %35 = vector.broadcast %c128_i32_11 : i32 to vector<1x128xi32>
    %36 = arith.cmpi slt, %34, %35 : vector<1x128xi32>
    %37 = arith.andi %32, %36 : vector<1x128xi1>
    %38 = arith.extui %37 : vector<1x128xi1> to vector<1x128xi32>
    %39 = arith.sitofp %38 : vector<1x128xi32> to vector<1x128xf32>
    %c1_i32 = arith.constant 1 : i32
    %40 = vector.broadcast %c1_i32 : i32 to vector<1x128xi32>
    %41 = arith.addi %6, %40 : vector<1x128xi32>
    %c0_i32_12 = arith.constant 0 : i32
    %42 = vector.broadcast %c0_i32_12 : i32 to vector<1x128xi32>
    %43 = arith.cmpi sge, %41, %42 : vector<1x128xi32>
    %c1_i32_13 = arith.constant 1 : i32
    %44 = vector.broadcast %c1_i32_13 : i32 to vector<1x128xi32>
    %45 = arith.addi %6, %44 : vector<1x128xi32>
    %c128_i32_14 = arith.constant 128 : i32
    %46 = vector.broadcast %c128_i32_14 : i32 to vector<1x128xi32>
    %47 = arith.cmpi slt, %45, %46 : vector<1x128xi32>
    %48 = arith.andi %43, %47 : vector<1x128xi1>
    %49 = arith.extui %48 : vector<1x128xi1> to vector<1x128xi32>
    %50 = arith.sitofp %49 : vector<1x128xi32> to vector<1x128xf32>
    %c2_i32 = arith.constant 2 : i32
    %51 = vector.broadcast %c2_i32 : i32 to vector<1x128xi32>
    %52 = arith.addi %6, %51 : vector<1x128xi32>
    %c0_i32_15 = arith.constant 0 : i32
    %53 = vector.broadcast %c0_i32_15 : i32 to vector<1x128xi32>
    %54 = arith.cmpi sge, %52, %53 : vector<1x128xi32>
    %c2_i32_16 = arith.constant 2 : i32
    %55 = vector.broadcast %c2_i32_16 : i32 to vector<1x128xi32>
    %56 = arith.addi %6, %55 : vector<1x128xi32>
    %c128_i32_17 = arith.constant 128 : i32
    %57 = vector.broadcast %c128_i32_17 : i32 to vector<1x128xi32>
    %58 = arith.cmpi slt, %56, %57 : vector<1x128xi32>
    %59 = arith.andi %54, %58 : vector<1x128xi1>
    %60 = arith.extui %59 : vector<1x128xi1> to vector<1x128xi32>
    %61 = arith.sitofp %60 : vector<1x128xi32> to vector<1x128xf32>
    %c4_i32 = arith.constant 4 : i32
    %62 = vector.broadcast %c4_i32 : i32 to vector<1x128xi32>
    %63 = arith.addi %6, %62 : vector<1x128xi32>
    %c0_i32_18 = arith.constant 0 : i32
    %64 = vector.broadcast %c0_i32_18 : i32 to vector<1x128xi32>
    %65 = arith.cmpi sge, %63, %64 : vector<1x128xi32>
    %c4_i32_19 = arith.constant 4 : i32
    %66 = vector.broadcast %c4_i32_19 : i32 to vector<1x128xi32>
    %67 = arith.addi %6, %66 : vector<1x128xi32>
    %c128_i32_20 = arith.constant 128 : i32
    %68 = vector.broadcast %c128_i32_20 : i32 to vector<1x128xi32>
    %69 = arith.cmpi slt, %67, %68 : vector<1x128xi32>
    %70 = arith.andi %65, %69 : vector<1x128xi1>
    %71 = arith.extui %70 : vector<1x128xi1> to vector<1x128xi32>
    %72 = arith.sitofp %71 : vector<1x128xi32> to vector<1x128xf32>
    %c0_21 = arith.constant 0 : index
    %c0_22 = arith.constant 0 : index
    %c0_23 = arith.constant 0 : index
    %73 = vector.load %arg3[%c0_21, %c0_22, %c0_23] : memref<4x32x2xbf16, #tpu.memory_space<vmem>>, vector<1x32x2xbf16>
    %74 = vector.shape_cast %73 : vector<1x32x2xbf16> to vector<32x2xbf16>
    %75 = arith.truncf %4 : vector<2x128xf32> to vector<2x128xbf16>
    %cst = arith.constant dense<0.000000e+00> : vector<32x128xf32>
    %76 = tpu.matmul %74, %75, %cst {dimension_numbers = #tpu.dot_dimension_numbers<[1], [0], [0], [1], [0, 0, 1, 1], [], []>} : vector<32x2xbf16>, vector<2x128xbf16>, vector<32x128xf32> -> vector<32x128xf32>
    %c0_24 = arith.constant 0 : index
    %c0_25 = arith.constant 0 : index
    %c0_26 = arith.constant 0 : index
    %77 = vector.load %arg4[%c0_24, %c0_25, %c0_26] : memref<4x32x1xf32, #tpu.memory_space<vmem>>, vector<1x32x1xf32>
    %78 = vector.shape_cast %77 : vector<1x32x1xf32> to vector<32x1xf32>
    %79 = vector.broadcast %78 : vector<32x1xf32> to vector<32x128xf32>
    %80 = arith.addf %76, %79 : vector<32x128xf32>
    %81 = vector.broadcast %1 : vector<1x128xf32> to vector<32x128xf32>
    %82 = arith.mulf %80, %81 : vector<32x128xf32>
    %cst_27 = arith.constant 0.000000e+00 : f32
    %83 = vector.broadcast %cst_27 : f32 to vector<32x128xf32>
    %c0_28 = arith.constant 0 : index
    %c0_29 = arith.constant 0 : index
    %c0_30 = arith.constant 0 : index
    %84 = vector.load %arg6[%c0_28, %c0_29, %c0_30] : memref<12x64x1xf32, #tpu.memory_space<vmem>>, vector<1x64x1xf32>
    %85 = vector.shape_cast %84 : vector<1x64x1xf32> to vector<64x1xf32>
    %c0_31 = arith.constant 0 : index
    %c0_32 = arith.constant 0 : index
    %c0_33 = arith.constant 0 : index
    %86 = vector.load %arg5[%c0_31, %c0_32, %c0_33] : memref<36x64x32xbf16, #tpu.memory_space<vmem>>, vector<1x64x32xbf16>
    %87 = vector.shape_cast %86 : vector<1x64x32xbf16> to vector<64x32xbf16>
    %c1_i32_34 = arith.constant 1 : i32
    %88 = tpu.dynamic_rotate %82 by %c1_i32_34 dim 1 : vector<32x128xf32>, i32 -> vector<32x128xf32>
    %89 = vector.broadcast %39 : vector<1x128xf32> to vector<32x128xf32>
    %90 = arith.mulf %88, %89 : vector<32x128xf32>
    %91 = arith.truncf %90 : vector<32x128xf32> to vector<32x128xbf16>
    %cst_35 = arith.constant dense<0.000000e+00> : vector<64x128xf32>
    %92 = tpu.matmul %87, %91, %cst_35 {dimension_numbers = #tpu.dot_dimension_numbers<[1], [0], [0], [1], [0, 0, 1, 1], [], []>} : vector<64x32xbf16>, vector<32x128xbf16>, vector<64x128xf32> -> vector<64x128xf32>
    %93 = vector.broadcast %85 : vector<64x1xf32> to vector<64x128xf32>
    %94 = arith.addf %93, %92 : vector<64x128xf32>
    %c1 = arith.constant 1 : index
    %c0_36 = arith.constant 0 : index
    %c0_37 = arith.constant 0 : index
    %95 = vector.load %arg5[%c1, %c0_36, %c0_37] : memref<36x64x32xbf16, #tpu.memory_space<vmem>>, vector<1x64x32xbf16>
    %96 = vector.shape_cast %95 : vector<1x64x32xbf16> to vector<64x32xbf16>
    %97 = arith.truncf %82 : vector<32x128xf32> to vector<32x128xbf16>
    %cst_38 = arith.constant dense<0.000000e+00> : vector<64x128xf32>
    %98 = tpu.matmul %96, %97, %cst_38 {dimension_numbers = #tpu.dot_dimension_numbers<[1], [0], [0], [1], [0, 0, 1, 1], [], []>} : vector<64x32xbf16>, vector<32x128xbf16>, vector<64x128xf32> -> vector<64x128xf32>
    %99 = arith.addf %94, %98 : vector<64x128xf32>
    %c2 = arith.constant 2 : index
    %c0_39 = arith.constant 0 : index
    %c0_40 = arith.constant 0 : index
    %100 = vector.load %arg5[%c2, %c0_39, %c0_40] : memref<36x64x32xbf16, #tpu.memory_space<vmem>>, vector<1x64x32xbf16>
    %101 = vector.shape_cast %100 : vector<1x64x32xbf16> to vector<64x32xbf16>
    %c127_i32 = arith.constant 127 : i32
    %102 = tpu.dynamic_rotate %82 by %c127_i32 dim 1 : vector<32x128xf32>, i32 -> vector<32x128xf32>
    %103 = vector.broadcast %50 : vector<1x128xf32> to vector<32x128xf32>
    %104 = arith.mulf %102, %103 : vector<32x128xf32>
    %105 = arith.truncf %104 : vector<32x128xf32> to vector<32x128xbf16>
    %cst_41 = arith.constant dense<0.000000e+00> : vector<64x128xf32>
    %106 = tpu.matmul %101, %105, %cst_41 {dimension_numbers = #tpu.dot_dimension_numbers<[1], [0], [0], [1], [0, 0, 1, 1], [], []>} : vector<64x32xbf16>, vector<32x128xbf16>, vector<64x128xf32> -> vector<64x128xf32>
    %107 = arith.addf %99, %106 : vector<64x128xf32>
    %108 = vector.extract_strided_slice %107 {offsets = [0, 0], sizes = [32, 128], strides = [1, 1]} : vector<64x128xf32> to vector<32x128xf32>
    %109 = math.tanh %108 : vector<32x128xf32>
    %110 = vector.extract_strided_slice %107 {offsets = [32, 0], sizes = [32, 128], strides = [1, 1]} : vector<64x128xf32> to vector<32x128xf32>
    %111 = arith.negf %110 : vector<32x128xf32>
    %112 = math.exp %111 : vector<32x128xf32>
    %cst_42 = arith.constant 1.000000e+00 : f32
    %113 = vector.broadcast %cst_42 : f32 to vector<32x128xf32>
    %114 = arith.addf %113, %112 : vector<32x128xf32>
    %115 = arith.divf %113, %114 : vector<32x128xf32>
    %116 = arith.mulf %109, %115 : vector<32x128xf32>
    %c0_43 = arith.constant 0 : index
    %c0_44 = arith.constant 0 : index
    %c0_45 = arith.constant 0 : index
    %117 = vector.load %arg7[%c0_43, %c0_44, %c0_45] : memref<8x64x32xbf16, #tpu.memory_space<vmem>>, vector<1x64x32xbf16>
    %118 = vector.shape_cast %117 : vector<1x64x32xbf16> to vector<64x32xbf16>
    %119 = arith.truncf %116 : vector<32x128xf32> to vector<32x128xbf16>
    %cst_46 = arith.constant dense<0.000000e+00> : vector<64x128xf32>
    %120 = tpu.matmul %118, %119, %cst_46 {dimension_numbers = #tpu.dot_dimension_numbers<[1], [0], [0], [1], [0, 0, 1, 1], [], []>} : vector<64x32xbf16>, vector<32x128xbf16>, vector<64x128xf32> -> vector<64x128xf32>
    %c0_47 = arith.constant 0 : index
    %c0_48 = arith.constant 0 : index
    %c0_49 = arith.constant 0 : index
    %121 = vector.load %arg8[%c0_47, %c0_48, %c0_49] : memref<8x64x1xf32, #tpu.memory_space<vmem>>, vector<1x64x1xf32>
    %122 = vector.shape_cast %121 : vector<1x64x1xf32> to vector<64x1xf32>
    %123 = vector.broadcast %122 : vector<64x1xf32> to vector<64x128xf32>
    %124 = arith.addf %120, %123 : vector<64x128xf32>
    %125 = vector.extract_strided_slice %124 {offsets = [0, 0], sizes = [32, 128], strides = [1, 1]} : vector<64x128xf32> to vector<32x128xf32>
    %126 = arith.addf %82, %125 : vector<32x128xf32>
    %127 = vector.broadcast %1 : vector<1x128xf32> to vector<32x128xf32>
    %128 = arith.mulf %126, %127 : vector<32x128xf32>
    %129 = vector.extract_strided_slice %124 {offsets = [32, 0], sizes = [32, 128], strides = [1, 1]} : vector<64x128xf32> to vector<32x128xf32>
    %130 = arith.addf %83, %129 : vector<32x128xf32>
    %c1_50 = arith.constant 1 : index
    %c0_51 = arith.constant 0 : index
    %c0_52 = arith.constant 0 : index
    %131 = vector.load %arg6[%c1_50, %c0_51, %c0_52] : memref<12x64x1xf32, #tpu.memory_space<vmem>>, vector<1x64x1xf32>
    %132 = vector.shape_cast %131 : vector<1x64x1xf32> to vector<64x1xf32>
    %c3 = arith.constant 3 : index
    %c0_53 = arith.constant 0 : index
    %c0_54 = arith.constant 0 : index
    %133 = vector.load %arg5[%c3, %c0_53, %c0_54] : memref<36x64x32xbf16, #tpu.memory_space<vmem>>, vector<1x64x32xbf16>
    %134 = vector.shape_cast %133 : vector<1x64x32xbf16> to vector<64x32xbf16>
    %c2_i32_55 = arith.constant 2 : i32
    %135 = tpu.dynamic_rotate %128 by %c2_i32_55 dim 1 : vector<32x128xf32>, i32 -> vector<32x128xf32>
    %136 = vector.broadcast %28 : vector<1x128xf32> to vector<32x128xf32>
    %137 = arith.mulf %135, %136 : vector<32x128xf32>
    %138 = arith.truncf %137 : vector<32x128xf32> to vector<32x128xbf16>
    %cst_56 = arith.constant dense<0.000000e+00> : vector<64x128xf32>
    %139 = tpu.matmul %134, %138, %cst_56 {dimension_numbers = #tpu.dot_dimension_numbers<[1], [0], [0], [1], [0, 0, 1, 1], [], []>} : vector<64x32xbf16>, vector<32x128xbf16>, vector<64x128xf32> -> vector<64x128xf32>
    %140 = vector.broadcast %132 : vector<64x1xf32> to vector<64x128xf32>
    %141 = arith.addf %140, %139 : vector<64x128xf32>
    %c4 = arith.constant 4 : index
    %c0_57 = arith.constant 0 : index
    %c0_58 = arith.constant 0 : index
    %142 = vector.load %arg5[%c4, %c0_57, %c0_58] : memref<36x64x32xbf16, #tpu.memory_space<vmem>>, vector<1x64x32xbf16>
    %143 = vector.shape_cast %142 : vector<1x64x32xbf16> to vector<64x32xbf16>
    %144 = arith.truncf %128 : vector<32x128xf32> to vector<32x128xbf16>
    %cst_59 = arith.constant dense<0.000000e+00> : vector<64x128xf32>
    %145 = tpu.matmul %143, %144, %cst_59 {dimension_numbers = #tpu.dot_dimension_numbers<[1], [0], [0], [1], [0, 0, 1, 1], [], []>} : vector<64x32xbf16>, vector<32x128xbf16>, vector<64x128xf32> -> vector<64x128xf32>
    %146 = arith.addf %141, %145 : vector<64x128xf32>
    %c5 = arith.constant 5 : index
    %c0_60 = arith.constant 0 : index
    %c0_61 = arith.constant 0 : index
    %147 = vector.load %arg5[%c5, %c0_60, %c0_61] : memref<36x64x32xbf16, #tpu.memory_space<vmem>>, vector<1x64x32xbf16>
    %148 = vector.shape_cast %147 : vector<1x64x32xbf16> to vector<64x32xbf16>
    %c126_i32 = arith.constant 126 : i32
    %149 = tpu.dynamic_rotate %128 by %c126_i32 dim 1 : vector<32x128xf32>, i32 -> vector<32x128xf32>
    %150 = vector.broadcast %61 : vector<1x128xf32> to vector<32x128xf32>
    %151 = arith.mulf %149, %150 : vector<32x128xf32>
    %152 = arith.truncf %151 : vector<32x128xf32> to vector<32x128xbf16>
    %cst_62 = arith.constant dense<0.000000e+00> : vector<64x128xf32>
    %153 = tpu.matmul %148, %152, %cst_62 {dimension_numbers = #tpu.dot_dimension_numbers<[1], [0], [0], [1], [0, 0, 1, 1], [], []>} : vector<64x32xbf16>, vector<32x128xbf16>, vector<64x128xf32> -> vector<64x128xf32>
    %154 = arith.addf %146, %153 : vector<64x128xf32>
    %155 = vector.extract_strided_slice %154 {offsets = [0, 0], sizes = [32, 128], strides = [1, 1]} : vector<64x128xf32> to vector<32x128xf32>
    %156 = math.tanh %155 : vector<32x128xf32>
    %157 = vector.extract_strided_slice %154 {offsets = [32, 0], sizes = [32, 128], strides = [1, 1]} : vector<64x128xf32> to vector<32x128xf32>
    %158 = arith.negf %157 : vector<32x128xf32>
    %159 = math.exp %158 : vector<32x128xf32>
    %cst_63 = arith.constant 1.000000e+00 : f32
    %160 = vector.broadcast %cst_63 : f32 to vector<32x128xf32>
    %161 = arith.addf %160, %159 : vector<32x128xf32>
    %162 = arith.divf %160, %161 : vector<32x128xf32>
    %163 = arith.mulf %156, %162 : vector<32x128xf32>
    %c1_64 = arith.constant 1 : index
    %c0_65 = arith.constant 0 : index
    %c0_66 = arith.constant 0 : index
    %164 = vector.load %arg7[%c1_64, %c0_65, %c0_66] : memref<8x64x32xbf16, #tpu.memory_space<vmem>>, vector<1x64x32xbf16>
    %165 = vector.shape_cast %164 : vector<1x64x32xbf16> to vector<64x32xbf16>
    %166 = arith.truncf %163 : vector<32x128xf32> to vector<32x128xbf16>
    %cst_67 = arith.constant dense<0.000000e+00> : vector<64x128xf32>
    %167 = tpu.matmul %165, %166, %cst_67 {dimension_numbers = #tpu.dot_dimension_numbers<[1], [0], [0], [1], [0, 0, 1, 1], [], []>} : vector<64x32xbf16>, vector<32x128xbf16>, vector<64x128xf32> -> vector<64x128xf32>
    %c1_68 = arith.constant 1 : index
    %c0_69 = arith.constant 0 : index
    %c0_70 = arith.constant 0 : index
    %168 = vector.load %arg8[%c1_68, %c0_69, %c0_70] : memref<8x64x1xf32, #tpu.memory_space<vmem>>, vector<1x64x1xf32>
    %169 = vector.shape_cast %168 : vector<1x64x1xf32> to vector<64x1xf32>
    %170 = vector.broadcast %169 : vector<64x1xf32> to vector<64x128xf32>
    %171 = arith.addf %167, %170 : vector<64x128xf32>
    %172 = vector.extract_strided_slice %171 {offsets = [0, 0], sizes = [32, 128], strides = [1, 1]} : vector<64x128xf32> to vector<32x128xf32>
    %173 = arith.addf %128, %172 : vector<32x128xf32>
    %174 = vector.broadcast %1 : vector<1x128xf32> to vector<32x128xf32>
    %175 = arith.mulf %173, %174 : vector<32x128xf32>
    %176 = vector.extract_strided_slice %171 {offsets = [32, 0], sizes = [32, 128], strides = [1, 1]} : vector<64x128xf32> to vector<32x128xf32>
    %177 = arith.addf %130, %176 : vector<32x128xf32>
    %c2_71 = arith.constant 2 : index
    %c0_72 = arith.constant 0 : index
    %c0_73 = arith.constant 0 : index
    %178 = vector.load %arg6[%c2_71, %c0_72, %c0_73] : memref<12x64x1xf32, #tpu.memory_space<vmem>>, vector<1x64x1xf32>
    %179 = vector.shape_cast %178 : vector<1x64x1xf32> to vector<64x1xf32>
    %c6 = arith.constant 6 : index
    %c0_74 = arith.constant 0 : index
    %c0_75 = arith.constant 0 : index
    %180 = vector.load %arg5[%c6, %c0_74, %c0_75] : memref<36x64x32xbf16, #tpu.memory_space<vmem>>, vector<1x64x32xbf16>
    %181 = vector.shape_cast %180 : vector<1x64x32xbf16> to vector<64x32xbf16>
    %c4_i32_76 = arith.constant 4 : i32
    %182 = tpu.dynamic_rotate %175 by %c4_i32_76 dim 1 : vector<32x128xf32>, i32 -> vector<32x128xf32>
    %183 = vector.broadcast %17 : vector<1x128xf32> to vector<32x128xf32>
    %184 = arith.mulf %182, %183 : vector<32x128xf32>
    %185 = arith.truncf %184 : vector<32x128xf32> to vector<32x128xbf16>
    %cst_77 = arith.constant dense<0.000000e+00> : vector<64x128xf32>
    %186 = tpu.matmul %181, %185, %cst_77 {dimension_numbers = #tpu.dot_dimension_numbers<[1], [0], [0], [1], [0, 0, 1, 1], [], []>} : vector<64x32xbf16>, vector<32x128xbf16>, vector<64x128xf32> -> vector<64x128xf32>
    %187 = vector.broadcast %179 : vector<64x1xf32> to vector<64x128xf32>
    %188 = arith.addf %187, %186 : vector<64x128xf32>
    %c7 = arith.constant 7 : index
    %c0_78 = arith.constant 0 : index
    %c0_79 = arith.constant 0 : index
    %189 = vector.load %arg5[%c7, %c0_78, %c0_79] : memref<36x64x32xbf16, #tpu.memory_space<vmem>>, vector<1x64x32xbf16>
    %190 = vector.shape_cast %189 : vector<1x64x32xbf16> to vector<64x32xbf16>
    %191 = arith.truncf %175 : vector<32x128xf32> to vector<32x128xbf16>
    %cst_80 = arith.constant dense<0.000000e+00> : vector<64x128xf32>
    %192 = tpu.matmul %190, %191, %cst_80 {dimension_numbers = #tpu.dot_dimension_numbers<[1], [0], [0], [1], [0, 0, 1, 1], [], []>} : vector<64x32xbf16>, vector<32x128xbf16>, vector<64x128xf32> -> vector<64x128xf32>
    %193 = arith.addf %188, %192 : vector<64x128xf32>
    %c8 = arith.constant 8 : index
    %c0_81 = arith.constant 0 : index
    %c0_82 = arith.constant 0 : index
    %194 = vector.load %arg5[%c8, %c0_81, %c0_82] : memref<36x64x32xbf16, #tpu.memory_space<vmem>>, vector<1x64x32xbf16>
    %195 = vector.shape_cast %194 : vector<1x64x32xbf16> to vector<64x32xbf16>
    %c124_i32 = arith.constant 124 : i32
    %196 = tpu.dynamic_rotate %175 by %c124_i32 dim 1 : vector<32x128xf32>, i32 -> vector<32x128xf32>
    %197 = vector.broadcast %72 : vector<1x128xf32> to vector<32x128xf32>
    %198 = arith.mulf %196, %197 : vector<32x128xf32>
    %199 = arith.truncf %198 : vector<32x128xf32> to vector<32x128xbf16>
    %cst_83 = arith.constant dense<0.000000e+00> : vector<64x128xf32>
    %200 = tpu.matmul %195, %199, %cst_83 {dimension_numbers = #tpu.dot_dimension_numbers<[1], [0], [0], [1], [0, 0, 1, 1], [], []>} : vector<64x32xbf16>, vector<32x128xbf16>, vector<64x128xf32> -> vector<64x128xf32>
    %201 = arith.addf %193, %200 : vector<64x128xf32>
    %202 = vector.extract_strided_slice %201 {offsets = [0, 0], sizes = [32, 128], strides = [1, 1]} : vector<64x128xf32> to vector<32x128xf32>
    %203 = math.tanh %202 : vector<32x128xf32>
    %204 = vector.extract_strided_slice %201 {offsets = [32, 0], sizes = [32, 128], strides = [1, 1]} : vector<64x128xf32> to vector<32x128xf32>
    %205 = arith.negf %204 : vector<32x128xf32>
    %206 = math.exp %205 : vector<32x128xf32>
    %cst_84 = arith.constant 1.000000e+00 : f32
    %207 = vector.broadcast %cst_84 : f32 to vector<32x128xf32>
    %208 = arith.addf %207, %206 : vector<32x128xf32>
    %209 = arith.divf %207, %208 : vector<32x128xf32>
    %210 = arith.mulf %203, %209 : vector<32x128xf32>
    %c0_85 = arith.constant 0 : index
    %c0_86 = arith.constant 0 : index
    %c0_87 = arith.constant 0 : index
    %211 = vector.load %arg9[%c0_85, %c0_86, %c0_87] : memref<4x32x32xbf16, #tpu.memory_space<vmem>>, vector<1x32x32xbf16>
    %212 = vector.shape_cast %211 : vector<1x32x32xbf16> to vector<32x32xbf16>
    %213 = arith.truncf %210 : vector<32x128xf32> to vector<32x128xbf16>
    %cst_88 = arith.constant dense<0.000000e+00> : vector<32x128xf32>
    %214 = tpu.matmul %212, %213, %cst_88 {dimension_numbers = #tpu.dot_dimension_numbers<[1], [0], [0], [1], [0, 0, 1, 1], [], []>} : vector<32x32xbf16>, vector<32x128xbf16>, vector<32x128xf32> -> vector<32x128xf32>
    %215 = arith.addf %177, %214 : vector<32x128xf32>
    %c0_89 = arith.constant 0 : index
    %c0_90 = arith.constant 0 : index
    %c0_91 = arith.constant 0 : index
    %216 = vector.load %arg10[%c0_89, %c0_90, %c0_91] : memref<4x32x1xf32, #tpu.memory_space<vmem>>, vector<1x32x1xf32>
    %217 = vector.shape_cast %216 : vector<1x32x1xf32> to vector<32x1xf32>
    %218 = vector.broadcast %217 : vector<32x1xf32> to vector<32x128xf32>
    %219 = arith.addf %215, %218 : vector<32x128xf32>
    %c0_92 = arith.constant 0 : index
    %c0_93 = arith.constant 0 : index
    %c0_94 = arith.constant 0 : index
    %220 = vector.load %arg11[%c0_92, %c0_93, %c0_94] : memref<4x2x32xbf16, #tpu.memory_space<vmem>>, vector<1x2x32xbf16>
    %221 = vector.shape_cast %220 : vector<1x2x32xbf16> to vector<2x32xbf16>
    %222 = arith.truncf %219 : vector<32x128xf32> to vector<32x128xbf16>
    %cst_95 = arith.constant dense<0.000000e+00> : vector<2x128xf32>
    %223 = tpu.matmul %221, %222, %cst_95 {dimension_numbers = #tpu.dot_dimension_numbers<[1], [0], [0], [1], [0, 0, 1, 1], [], []>} : vector<2x32xbf16>, vector<32x128xbf16>, vector<2x128xf32> -> vector<2x128xf32>
    %c0_96 = arith.constant 0 : index
    %c0_97 = arith.constant 0 : index
    %c0_98 = arith.constant 0 : index
    %224 = vector.load %arg12[%c0_96, %c0_97, %c0_98] : memref<4x2x1xf32, #tpu.memory_space<vmem>>, vector<1x2x1xf32>
    %225 = vector.shape_cast %224 : vector<1x2x1xf32> to vector<2x1xf32>
    %226 = vector.broadcast %225 : vector<2x1xf32> to vector<2x128xf32>
    %227 = arith.addf %223, %226 : vector<2x128xf32>
    %228 = vector.broadcast %1 : vector<1x128xf32> to vector<2x128xf32>
    %229 = arith.mulf %227, %228 : vector<2x128xf32>
    %230 = vector.broadcast %1 : vector<1x128xf32> to vector<2x128xf32>
    %231 = arith.mulf %5, %230 : vector<2x128xf32>
    %232 = arith.addf %229, %231 : vector<2x128xf32>
    %c1_99 = arith.constant 1 : index
    %c0_100 = arith.constant 0 : index
    %c0_101 = arith.constant 0 : index
    %233 = vector.load %arg3[%c1_99, %c0_100, %c0_101] : memref<4x32x2xbf16, #tpu.memory_space<vmem>>, vector<1x32x2xbf16>
    %234 = vector.shape_cast %233 : vector<1x32x2xbf16> to vector<32x2xbf16>
    %235 = arith.truncf %232 : vector<2x128xf32> to vector<2x128xbf16>
    %cst_102 = arith.constant dense<0.000000e+00> : vector<32x128xf32>
    %236 = tpu.matmul %234, %235, %cst_102 {dimension_numbers = #tpu.dot_dimension_numbers<[1], [0], [0], [1], [0, 0, 1, 1], [], []>} : vector<32x2xbf16>, vector<2x128xbf16>, vector<32x128xf32> -> vector<32x128xf32>
    %c1_103 = arith.constant 1 : index
    %c0_104 = arith.constant 0 : index
    %c0_105 = arith.constant 0 : index
    %237 = vector.load %arg4[%c1_103, %c0_104, %c0_105] : memref<4x32x1xf32, #tpu.memory_space<vmem>>, vector<1x32x1xf32>
    %238 = vector.shape_cast %237 : vector<1x32x1xf32> to vector<32x1xf32>
    %239 = vector.broadcast %238 : vector<32x1xf32> to vector<32x128xf32>
    %240 = arith.addf %236, %239 : vector<32x128xf32>
    %241 = vector.broadcast %1 : vector<1x128xf32> to vector<32x128xf32>
    %242 = arith.mulf %240, %241 : vector<32x128xf32>
    %cst_106 = arith.constant 0.000000e+00 : f32
    %243 = vector.broadcast %cst_106 : f32 to vector<32x128xf32>
    %c3_107 = arith.constant 3 : index
    %c0_108 = arith.constant 0 : index
    %c0_109 = arith.constant 0 : index
    %244 = vector.load %arg6[%c3_107, %c0_108, %c0_109] : memref<12x64x1xf32, #tpu.memory_space<vmem>>, vector<1x64x1xf32>
    %245 = vector.shape_cast %244 : vector<1x64x1xf32> to vector<64x1xf32>
    %c9 = arith.constant 9 : index
    %c0_110 = arith.constant 0 : index
    %c0_111 = arith.constant 0 : index
    %246 = vector.load %arg5[%c9, %c0_110, %c0_111] : memref<36x64x32xbf16, #tpu.memory_space<vmem>>, vector<1x64x32xbf16>
    %247 = vector.shape_cast %246 : vector<1x64x32xbf16> to vector<64x32xbf16>
    %c1_i32_112 = arith.constant 1 : i32
    %248 = tpu.dynamic_rotate %242 by %c1_i32_112 dim 1 : vector<32x128xf32>, i32 -> vector<32x128xf32>
    %249 = vector.broadcast %39 : vector<1x128xf32> to vector<32x128xf32>
    %250 = arith.mulf %248, %249 : vector<32x128xf32>
    %251 = arith.truncf %250 : vector<32x128xf32> to vector<32x128xbf16>
    %cst_113 = arith.constant dense<0.000000e+00> : vector<64x128xf32>
    %252 = tpu.matmul %247, %251, %cst_113 {dimension_numbers = #tpu.dot_dimension_numbers<[1], [0], [0], [1], [0, 0, 1, 1], [], []>} : vector<64x32xbf16>, vector<32x128xbf16>, vector<64x128xf32> -> vector<64x128xf32>
    %253 = vector.broadcast %245 : vector<64x1xf32> to vector<64x128xf32>
    %254 = arith.addf %253, %252 : vector<64x128xf32>
    %c10 = arith.constant 10 : index
    %c0_114 = arith.constant 0 : index
    %c0_115 = arith.constant 0 : index
    %255 = vector.load %arg5[%c10, %c0_114, %c0_115] : memref<36x64x32xbf16, #tpu.memory_space<vmem>>, vector<1x64x32xbf16>
    %256 = vector.shape_cast %255 : vector<1x64x32xbf16> to vector<64x32xbf16>
    %257 = arith.truncf %242 : vector<32x128xf32> to vector<32x128xbf16>
    %cst_116 = arith.constant dense<0.000000e+00> : vector<64x128xf32>
    %258 = tpu.matmul %256, %257, %cst_116 {dimension_numbers = #tpu.dot_dimension_numbers<[1], [0], [0], [1], [0, 0, 1, 1], [], []>} : vector<64x32xbf16>, vector<32x128xbf16>, vector<64x128xf32> -> vector<64x128xf32>
    %259 = arith.addf %254, %258 : vector<64x128xf32>
    %c11 = arith.constant 11 : index
    %c0_117 = arith.constant 0 : index
    %c0_118 = arith.constant 0 : index
    %260 = vector.load %arg5[%c11, %c0_117, %c0_118] : memref<36x64x32xbf16, #tpu.memory_space<vmem>>, vector<1x64x32xbf16>
    %261 = vector.shape_cast %260 : vector<1x64x32xbf16> to vector<64x32xbf16>
    %c127_i32_119 = arith.constant 127 : i32
    %262 = tpu.dynamic_rotate %242 by %c127_i32_119 dim 1 : vector<32x128xf32>, i32 -> vector<32x128xf32>
    %263 = vector.broadcast %50 : vector<1x128xf32> to vector<32x128xf32>
    %264 = arith.mulf %262, %263 : vector<32x128xf32>
    %265 = arith.truncf %264 : vector<32x128xf32> to vector<32x128xbf16>
    %cst_120 = arith.constant dense<0.000000e+00> : vector<64x128xf32>
    %266 = tpu.matmul %261, %265, %cst_120 {dimension_numbers = #tpu.dot_dimension_numbers<[1], [0], [0], [1], [0, 0, 1, 1], [], []>} : vector<64x32xbf16>, vector<32x128xbf16>, vector<64x128xf32> -> vector<64x128xf32>
    %267 = arith.addf %259, %266 : vector<64x128xf32>
    %268 = vector.extract_strided_slice %267 {offsets = [0, 0], sizes = [32, 128], strides = [1, 1]} : vector<64x128xf32> to vector<32x128xf32>
    %269 = math.tanh %268 : vector<32x128xf32>
    %270 = vector.extract_strided_slice %267 {offsets = [32, 0], sizes = [32, 128], strides = [1, 1]} : vector<64x128xf32> to vector<32x128xf32>
    %271 = arith.negf %270 : vector<32x128xf32>
    %272 = math.exp %271 : vector<32x128xf32>
    %cst_121 = arith.constant 1.000000e+00 : f32
    %273 = vector.broadcast %cst_121 : f32 to vector<32x128xf32>
    %274 = arith.addf %273, %272 : vector<32x128xf32>
    %275 = arith.divf %273, %274 : vector<32x128xf32>
    %276 = arith.mulf %269, %275 : vector<32x128xf32>
    %c2_122 = arith.constant 2 : index
    %c0_123 = arith.constant 0 : index
    %c0_124 = arith.constant 0 : index
    %277 = vector.load %arg7[%c2_122, %c0_123, %c0_124] : memref<8x64x32xbf16, #tpu.memory_space<vmem>>, vector<1x64x32xbf16>
    %278 = vector.shape_cast %277 : vector<1x64x32xbf16> to vector<64x32xbf16>
    %279 = arith.truncf %276 : vector<32x128xf32> to vector<32x128xbf16>
    %cst_125 = arith.constant dense<0.000000e+00> : vector<64x128xf32>
    %280 = tpu.matmul %278, %279, %cst_125 {dimension_numbers = #tpu.dot_dimension_numbers<[1], [0], [0], [1], [0, 0, 1, 1], [], []>} : vector<64x32xbf16>, vector<32x128xbf16>, vector<64x128xf32> -> vector<64x128xf32>
    %c2_126 = arith.constant 2 : index
    %c0_127 = arith.constant 0 : index
    %c0_128 = arith.constant 0 : index
    %281 = vector.load %arg8[%c2_126, %c0_127, %c0_128] : memref<8x64x1xf32, #tpu.memory_space<vmem>>, vector<1x64x1xf32>
    %282 = vector.shape_cast %281 : vector<1x64x1xf32> to vector<64x1xf32>
    %283 = vector.broadcast %282 : vector<64x1xf32> to vector<64x128xf32>
    %284 = arith.addf %280, %283 : vector<64x128xf32>
    %285 = vector.extract_strided_slice %284 {offsets = [0, 0], sizes = [32, 128], strides = [1, 1]} : vector<64x128xf32> to vector<32x128xf32>
    %286 = arith.addf %242, %285 : vector<32x128xf32>
    %287 = vector.broadcast %1 : vector<1x128xf32> to vector<32x128xf32>
    %288 = arith.mulf %286, %287 : vector<32x128xf32>
    %289 = vector.extract_strided_slice %284 {offsets = [32, 0], sizes = [32, 128], strides = [1, 1]} : vector<64x128xf32> to vector<32x128xf32>
    %290 = arith.addf %243, %289 : vector<32x128xf32>
    %c4_129 = arith.constant 4 : index
    %c0_130 = arith.constant 0 : index
    %c0_131 = arith.constant 0 : index
    %291 = vector.load %arg6[%c4_129, %c0_130, %c0_131] : memref<12x64x1xf32, #tpu.memory_space<vmem>>, vector<1x64x1xf32>
    %292 = vector.shape_cast %291 : vector<1x64x1xf32> to vector<64x1xf32>
    %c12 = arith.constant 12 : index
    %c0_132 = arith.constant 0 : index
    %c0_133 = arith.constant 0 : index
    %293 = vector.load %arg5[%c12, %c0_132, %c0_133] : memref<36x64x32xbf16, #tpu.memory_space<vmem>>, vector<1x64x32xbf16>
    %294 = vector.shape_cast %293 : vector<1x64x32xbf16> to vector<64x32xbf16>
    %c2_i32_134 = arith.constant 2 : i32
    %295 = tpu.dynamic_rotate %288 by %c2_i32_134 dim 1 : vector<32x128xf32>, i32 -> vector<32x128xf32>
    %296 = vector.broadcast %28 : vector<1x128xf32> to vector<32x128xf32>
    %297 = arith.mulf %295, %296 : vector<32x128xf32>
    %298 = arith.truncf %297 : vector<32x128xf32> to vector<32x128xbf16>
    %cst_135 = arith.constant dense<0.000000e+00> : vector<64x128xf32>
    %299 = tpu.matmul %294, %298, %cst_135 {dimension_numbers = #tpu.dot_dimension_numbers<[1], [0], [0], [1], [0, 0, 1, 1], [], []>} : vector<64x32xbf16>, vector<32x128xbf16>, vector<64x128xf32> -> vector<64x128xf32>
    %300 = vector.broadcast %292 : vector<64x1xf32> to vector<64x128xf32>
    %301 = arith.addf %300, %299 : vector<64x128xf32>
    %c13 = arith.constant 13 : index
    %c0_136 = arith.constant 0 : index
    %c0_137 = arith.constant 0 : index
    %302 = vector.load %arg5[%c13, %c0_136, %c0_137] : memref<36x64x32xbf16, #tpu.memory_space<vmem>>, vector<1x64x32xbf16>
    %303 = vector.shape_cast %302 : vector<1x64x32xbf16> to vector<64x32xbf16>
    %304 = arith.truncf %288 : vector<32x128xf32> to vector<32x128xbf16>
    %cst_138 = arith.constant dense<0.000000e+00> : vector<64x128xf32>
    %305 = tpu.matmul %303, %304, %cst_138 {dimension_numbers = #tpu.dot_dimension_numbers<[1], [0], [0], [1], [0, 0, 1, 1], [], []>} : vector<64x32xbf16>, vector<32x128xbf16>, vector<64x128xf32> -> vector<64x128xf32>
    %306 = arith.addf %301, %305 : vector<64x128xf32>
    %c14 = arith.constant 14 : index
    %c0_139 = arith.constant 0 : index
    %c0_140 = arith.constant 0 : index
    %307 = vector.load %arg5[%c14, %c0_139, %c0_140] : memref<36x64x32xbf16, #tpu.memory_space<vmem>>, vector<1x64x32xbf16>
    %308 = vector.shape_cast %307 : vector<1x64x32xbf16> to vector<64x32xbf16>
    %c126_i32_141 = arith.constant 126 : i32
    %309 = tpu.dynamic_rotate %288 by %c126_i32_141 dim 1 : vector<32x128xf32>, i32 -> vector<32x128xf32>
    %310 = vector.broadcast %61 : vector<1x128xf32> to vector<32x128xf32>
    %311 = arith.mulf %309, %310 : vector<32x128xf32>
    %312 = arith.truncf %311 : vector<32x128xf32> to vector<32x128xbf16>
    %cst_142 = arith.constant dense<0.000000e+00> : vector<64x128xf32>
    %313 = tpu.matmul %308, %312, %cst_142 {dimension_numbers = #tpu.dot_dimension_numbers<[1], [0], [0], [1], [0, 0, 1, 1], [], []>} : vector<64x32xbf16>, vector<32x128xbf16>, vector<64x128xf32> -> vector<64x128xf32>
    %314 = arith.addf %306, %313 : vector<64x128xf32>
    %315 = vector.extract_strided_slice %314 {offsets = [0, 0], sizes = [32, 128], strides = [1, 1]} : vector<64x128xf32> to vector<32x128xf32>
    %316 = math.tanh %315 : vector<32x128xf32>
    %317 = vector.extract_strided_slice %314 {offsets = [32, 0], sizes = [32, 128], strides = [1, 1]} : vector<64x128xf32> to vector<32x128xf32>
    %318 = arith.negf %317 : vector<32x128xf32>
    %319 = math.exp %318 : vector<32x128xf32>
    %cst_143 = arith.constant 1.000000e+00 : f32
    %320 = vector.broadcast %cst_143 : f32 to vector<32x128xf32>
    %321 = arith.addf %320, %319 : vector<32x128xf32>
    %322 = arith.divf %320, %321 : vector<32x128xf32>
    %323 = arith.mulf %316, %322 : vector<32x128xf32>
    %c3_144 = arith.constant 3 : index
    %c0_145 = arith.constant 0 : index
    %c0_146 = arith.constant 0 : index
    %324 = vector.load %arg7[%c3_144, %c0_145, %c0_146] : memref<8x64x32xbf16, #tpu.memory_space<vmem>>, vector<1x64x32xbf16>
    %325 = vector.shape_cast %324 : vector<1x64x32xbf16> to vector<64x32xbf16>
    %326 = arith.truncf %323 : vector<32x128xf32> to vector<32x128xbf16>
    %cst_147 = arith.constant dense<0.000000e+00> : vector<64x128xf32>
    %327 = tpu.matmul %325, %326, %cst_147 {dimension_numbers = #tpu.dot_dimension_numbers<[1], [0], [0], [1], [0, 0, 1, 1], [], []>} : vector<64x32xbf16>, vector<32x128xbf16>, vector<64x128xf32> -> vector<64x128xf32>
    %c3_148 = arith.constant 3 : index
    %c0_149 = arith.constant 0 : index
    %c0_150 = arith.constant 0 : index
    %328 = vector.load %arg8[%c3_148, %c0_149, %c0_150] : memref<8x64x1xf32, #tpu.memory_space<vmem>>, vector<1x64x1xf32>
    %329 = vector.shape_cast %328 : vector<1x64x1xf32> to vector<64x1xf32>
    %330 = vector.broadcast %329 : vector<64x1xf32> to vector<64x128xf32>
    %331 = arith.addf %327, %330 : vector<64x128xf32>
    %332 = vector.extract_strided_slice %331 {offsets = [0, 0], sizes = [32, 128], strides = [1, 1]} : vector<64x128xf32> to vector<32x128xf32>
    %333 = arith.addf %288, %332 : vector<32x128xf32>
    %334 = vector.broadcast %1 : vector<1x128xf32> to vector<32x128xf32>
    %335 = arith.mulf %333, %334 : vector<32x128xf32>
    %336 = vector.extract_strided_slice %331 {offsets = [32, 0], sizes = [32, 128], strides = [1, 1]} : vector<64x128xf32> to vector<32x128xf32>
    %337 = arith.addf %290, %336 : vector<32x128xf32>
    %c5_151 = arith.constant 5 : index
    %c0_152 = arith.constant 0 : index
    %c0_153 = arith.constant 0 : index
    %338 = vector.load %arg6[%c5_151, %c0_152, %c0_153] : memref<12x64x1xf32, #tpu.memory_space<vmem>>, vector<1x64x1xf32>
    %339 = vector.shape_cast %338 : vector<1x64x1xf32> to vector<64x1xf32>
    %c15 = arith.constant 15 : index
    %c0_154 = arith.constant 0 : index
    %c0_155 = arith.constant 0 : index
    %340 = vector.load %arg5[%c15, %c0_154, %c0_155] : memref<36x64x32xbf16, #tpu.memory_space<vmem>>, vector<1x64x32xbf16>
    %341 = vector.shape_cast %340 : vector<1x64x32xbf16> to vector<64x32xbf16>
    %c4_i32_156 = arith.constant 4 : i32
    %342 = tpu.dynamic_rotate %335 by %c4_i32_156 dim 1 : vector<32x128xf32>, i32 -> vector<32x128xf32>
    %343 = vector.broadcast %17 : vector<1x128xf32> to vector<32x128xf32>
    %344 = arith.mulf %342, %343 : vector<32x128xf32>
    %345 = arith.truncf %344 : vector<32x128xf32> to vector<32x128xbf16>
    %cst_157 = arith.constant dense<0.000000e+00> : vector<64x128xf32>
    %346 = tpu.matmul %341, %345, %cst_157 {dimension_numbers = #tpu.dot_dimension_numbers<[1], [0], [0], [1], [0, 0, 1, 1], [], []>} : vector<64x32xbf16>, vector<32x128xbf16>, vector<64x128xf32> -> vector<64x128xf32>
    %347 = vector.broadcast %339 : vector<64x1xf32> to vector<64x128xf32>
    %348 = arith.addf %347, %346 : vector<64x128xf32>
    %c16 = arith.constant 16 : index
    %c0_158 = arith.constant 0 : index
    %c0_159 = arith.constant 0 : index
    %349 = vector.load %arg5[%c16, %c0_158, %c0_159] : memref<36x64x32xbf16, #tpu.memory_space<vmem>>, vector<1x64x32xbf16>
    %350 = vector.shape_cast %349 : vector<1x64x32xbf16> to vector<64x32xbf16>
    %351 = arith.truncf %335 : vector<32x128xf32> to vector<32x128xbf16>
    %cst_160 = arith.constant dense<0.000000e+00> : vector<64x128xf32>
    %352 = tpu.matmul %350, %351, %cst_160 {dimension_numbers = #tpu.dot_dimension_numbers<[1], [0], [0], [1], [0, 0, 1, 1], [], []>} : vector<64x32xbf16>, vector<32x128xbf16>, vector<64x128xf32> -> vector<64x128xf32>
    %353 = arith.addf %348, %352 : vector<64x128xf32>
    %c17 = arith.constant 17 : index
    %c0_161 = arith.constant 0 : index
    %c0_162 = arith.constant 0 : index
    %354 = vector.load %arg5[%c17, %c0_161, %c0_162] : memref<36x64x32xbf16, #tpu.memory_space<vmem>>, vector<1x64x32xbf16>
    %355 = vector.shape_cast %354 : vector<1x64x32xbf16> to vector<64x32xbf16>
    %c124_i32_163 = arith.constant 124 : i32
    %356 = tpu.dynamic_rotate %335 by %c124_i32_163 dim 1 : vector<32x128xf32>, i32 -> vector<32x128xf32>
    %357 = vector.broadcast %72 : vector<1x128xf32> to vector<32x128xf32>
    %358 = arith.mulf %356, %357 : vector<32x128xf32>
    %359 = arith.truncf %358 : vector<32x128xf32> to vector<32x128xbf16>
    %cst_164 = arith.constant dense<0.000000e+00> : vector<64x128xf32>
    %360 = tpu.matmul %355, %359, %cst_164 {dimension_numbers = #tpu.dot_dimension_numbers<[1], [0], [0], [1], [0, 0, 1, 1], [], []>} : vector<64x32xbf16>, vector<32x128xbf16>, vector<64x128xf32> -> vector<64x128xf32>
    %361 = arith.addf %353, %360 : vector<64x128xf32>
    %362 = vector.extract_strided_slice %361 {offsets = [0, 0], sizes = [32, 128], strides = [1, 1]} : vector<64x128xf32> to vector<32x128xf32>
    %363 = math.tanh %362 : vector<32x128xf32>
    %364 = vector.extract_strided_slice %361 {offsets = [32, 0], sizes = [32, 128], strides = [1, 1]} : vector<64x128xf32> to vector<32x128xf32>
    %365 = arith.negf %364 : vector<32x128xf32>
    %366 = math.exp %365 : vector<32x128xf32>
    %cst_165 = arith.constant 1.000000e+00 : f32
    %367 = vector.broadcast %cst_165 : f32 to vector<32x128xf32>
    %368 = arith.addf %367, %366 : vector<32x128xf32>
    %369 = arith.divf %367, %368 : vector<32x128xf32>
    %370 = arith.mulf %363, %369 : vector<32x128xf32>
    %c1_166 = arith.constant 1 : index
    %c0_167 = arith.constant 0 : index
    %c0_168 = arith.constant 0 : index
    %371 = vector.load %arg9[%c1_166, %c0_167, %c0_168] : memref<4x32x32xbf16, #tpu.memory_space<vmem>>, vector<1x32x32xbf16>
    %372 = vector.shape_cast %371 : vector<1x32x32xbf16> to vector<32x32xbf16>
    %373 = arith.truncf %370 : vector<32x128xf32> to vector<32x128xbf16>
    %cst_169 = arith.constant dense<0.000000e+00> : vector<32x128xf32>
    %374 = tpu.matmul %372, %373, %cst_169 {dimension_numbers = #tpu.dot_dimension_numbers<[1], [0], [0], [1], [0, 0, 1, 1], [], []>} : vector<32x32xbf16>, vector<32x128xbf16>, vector<32x128xf32> -> vector<32x128xf32>
    %375 = arith.addf %337, %374 : vector<32x128xf32>
    %c1_170 = arith.constant 1 : index
    %c0_171 = arith.constant 0 : index
    %c0_172 = arith.constant 0 : index
    %376 = vector.load %arg10[%c1_170, %c0_171, %c0_172] : memref<4x32x1xf32, #tpu.memory_space<vmem>>, vector<1x32x1xf32>
    %377 = vector.shape_cast %376 : vector<1x32x1xf32> to vector<32x1xf32>
    %378 = vector.broadcast %377 : vector<32x1xf32> to vector<32x128xf32>
    %379 = arith.addf %375, %378 : vector<32x128xf32>
    %c1_173 = arith.constant 1 : index
    %c0_174 = arith.constant 0 : index
    %c0_175 = arith.constant 0 : index
    %380 = vector.load %arg11[%c1_173, %c0_174, %c0_175] : memref<4x2x32xbf16, #tpu.memory_space<vmem>>, vector<1x2x32xbf16>
    %381 = vector.shape_cast %380 : vector<1x2x32xbf16> to vector<2x32xbf16>
    %382 = arith.truncf %379 : vector<32x128xf32> to vector<32x128xbf16>
    %cst_176 = arith.constant dense<0.000000e+00> : vector<2x128xf32>
    %383 = tpu.matmul %381, %382, %cst_176 {dimension_numbers = #tpu.dot_dimension_numbers<[1], [0], [0], [1], [0, 0, 1, 1], [], []>} : vector<2x32xbf16>, vector<32x128xbf16>, vector<2x128xf32> -> vector<2x128xf32>
    %c1_177 = arith.constant 1 : index
    %c0_178 = arith.constant 0 : index
    %c0_179 = arith.constant 0 : index
    %384 = vector.load %arg12[%c1_177, %c0_178, %c0_179] : memref<4x2x1xf32, #tpu.memory_space<vmem>>, vector<1x2x1xf32>
    %385 = vector.shape_cast %384 : vector<1x2x1xf32> to vector<2x1xf32>
    %386 = vector.broadcast %385 : vector<2x1xf32> to vector<2x128xf32>
    %387 = arith.addf %383, %386 : vector<2x128xf32>
    %388 = vector.broadcast %1 : vector<1x128xf32> to vector<2x128xf32>
    %389 = arith.mulf %387, %388 : vector<2x128xf32>
    %390 = vector.broadcast %1 : vector<1x128xf32> to vector<2x128xf32>
    %391 = arith.mulf %4, %390 : vector<2x128xf32>
    %392 = arith.addf %389, %391 : vector<2x128xf32>
    %c2_180 = arith.constant 2 : index
    %c0_181 = arith.constant 0 : index
    %c0_182 = arith.constant 0 : index
    %393 = vector.load %arg3[%c2_180, %c0_181, %c0_182] : memref<4x32x2xbf16, #tpu.memory_space<vmem>>, vector<1x32x2xbf16>
    %394 = vector.shape_cast %393 : vector<1x32x2xbf16> to vector<32x2xbf16>
    %395 = arith.truncf %392 : vector<2x128xf32> to vector<2x128xbf16>
    %cst_183 = arith.constant dense<0.000000e+00> : vector<32x128xf32>
    %396 = tpu.matmul %394, %395, %cst_183 {dimension_numbers = #tpu.dot_dimension_numbers<[1], [0], [0], [1], [0, 0, 1, 1], [], []>} : vector<32x2xbf16>, vector<2x128xbf16>, vector<32x128xf32> -> vector<32x128xf32>
    %c2_184 = arith.constant 2 : index
    %c0_185 = arith.constant 0 : index
    %c0_186 = arith.constant 0 : index
    %397 = vector.load %arg4[%c2_184, %c0_185, %c0_186] : memref<4x32x1xf32, #tpu.memory_space<vmem>>, vector<1x32x1xf32>
    %398 = vector.shape_cast %397 : vector<1x32x1xf32> to vector<32x1xf32>
    %399 = vector.broadcast %398 : vector<32x1xf32> to vector<32x128xf32>
    %400 = arith.addf %396, %399 : vector<32x128xf32>
    %401 = vector.broadcast %1 : vector<1x128xf32> to vector<32x128xf32>
    %402 = arith.mulf %400, %401 : vector<32x128xf32>
    %cst_187 = arith.constant 0.000000e+00 : f32
    %403 = vector.broadcast %cst_187 : f32 to vector<32x128xf32>
    %c6_188 = arith.constant 6 : index
    %c0_189 = arith.constant 0 : index
    %c0_190 = arith.constant 0 : index
    %404 = vector.load %arg6[%c6_188, %c0_189, %c0_190] : memref<12x64x1xf32, #tpu.memory_space<vmem>>, vector<1x64x1xf32>
    %405 = vector.shape_cast %404 : vector<1x64x1xf32> to vector<64x1xf32>
    %c18 = arith.constant 18 : index
    %c0_191 = arith.constant 0 : index
    %c0_192 = arith.constant 0 : index
    %406 = vector.load %arg5[%c18, %c0_191, %c0_192] : memref<36x64x32xbf16, #tpu.memory_space<vmem>>, vector<1x64x32xbf16>
    %407 = vector.shape_cast %406 : vector<1x64x32xbf16> to vector<64x32xbf16>
    %c1_i32_193 = arith.constant 1 : i32
    %408 = tpu.dynamic_rotate %402 by %c1_i32_193 dim 1 : vector<32x128xf32>, i32 -> vector<32x128xf32>
    %409 = vector.broadcast %39 : vector<1x128xf32> to vector<32x128xf32>
    %410 = arith.mulf %408, %409 : vector<32x128xf32>
    %411 = arith.truncf %410 : vector<32x128xf32> to vector<32x128xbf16>
    %cst_194 = arith.constant dense<0.000000e+00> : vector<64x128xf32>
    %412 = tpu.matmul %407, %411, %cst_194 {dimension_numbers = #tpu.dot_dimension_numbers<[1], [0], [0], [1], [0, 0, 1, 1], [], []>} : vector<64x32xbf16>, vector<32x128xbf16>, vector<64x128xf32> -> vector<64x128xf32>
    %413 = vector.broadcast %405 : vector<64x1xf32> to vector<64x128xf32>
    %414 = arith.addf %413, %412 : vector<64x128xf32>
    %c19 = arith.constant 19 : index
    %c0_195 = arith.constant 0 : index
    %c0_196 = arith.constant 0 : index
    %415 = vector.load %arg5[%c19, %c0_195, %c0_196] : memref<36x64x32xbf16, #tpu.memory_space<vmem>>, vector<1x64x32xbf16>
    %416 = vector.shape_cast %415 : vector<1x64x32xbf16> to vector<64x32xbf16>
    %417 = arith.truncf %402 : vector<32x128xf32> to vector<32x128xbf16>
    %cst_197 = arith.constant dense<0.000000e+00> : vector<64x128xf32>
    %418 = tpu.matmul %416, %417, %cst_197 {dimension_numbers = #tpu.dot_dimension_numbers<[1], [0], [0], [1], [0, 0, 1, 1], [], []>} : vector<64x32xbf16>, vector<32x128xbf16>, vector<64x128xf32> -> vector<64x128xf32>
    %419 = arith.addf %414, %418 : vector<64x128xf32>
    %c20 = arith.constant 20 : index
    %c0_198 = arith.constant 0 : index
    %c0_199 = arith.constant 0 : index
    %420 = vector.load %arg5[%c20, %c0_198, %c0_199] : memref<36x64x32xbf16, #tpu.memory_space<vmem>>, vector<1x64x32xbf16>
    %421 = vector.shape_cast %420 : vector<1x64x32xbf16> to vector<64x32xbf16>
    %c127_i32_200 = arith.constant 127 : i32
    %422 = tpu.dynamic_rotate %402 by %c127_i32_200 dim 1 : vector<32x128xf32>, i32 -> vector<32x128xf32>
    %423 = vector.broadcast %50 : vector<1x128xf32> to vector<32x128xf32>
    %424 = arith.mulf %422, %423 : vector<32x128xf32>
    %425 = arith.truncf %424 : vector<32x128xf32> to vector<32x128xbf16>
    %cst_201 = arith.constant dense<0.000000e+00> : vector<64x128xf32>
    %426 = tpu.matmul %421, %425, %cst_201 {dimension_numbers = #tpu.dot_dimension_numbers<[1], [0], [0], [1], [0, 0, 1, 1], [], []>} : vector<64x32xbf16>, vector<32x128xbf16>, vector<64x128xf32> -> vector<64x128xf32>
    %427 = arith.addf %419, %426 : vector<64x128xf32>
    %428 = vector.extract_strided_slice %427 {offsets = [0, 0], sizes = [32, 128], strides = [1, 1]} : vector<64x128xf32> to vector<32x128xf32>
    %429 = math.tanh %428 : vector<32x128xf32>
    %430 = vector.extract_strided_slice %427 {offsets = [32, 0], sizes = [32, 128], strides = [1, 1]} : vector<64x128xf32> to vector<32x128xf32>
    %431 = arith.negf %430 : vector<32x128xf32>
    %432 = math.exp %431 : vector<32x128xf32>
    %cst_202 = arith.constant 1.000000e+00 : f32
    %433 = vector.broadcast %cst_202 : f32 to vector<32x128xf32>
    %434 = arith.addf %433, %432 : vector<32x128xf32>
    %435 = arith.divf %433, %434 : vector<32x128xf32>
    %436 = arith.mulf %429, %435 : vector<32x128xf32>
    %c4_203 = arith.constant 4 : index
    %c0_204 = arith.constant 0 : index
    %c0_205 = arith.constant 0 : index
    %437 = vector.load %arg7[%c4_203, %c0_204, %c0_205] : memref<8x64x32xbf16, #tpu.memory_space<vmem>>, vector<1x64x32xbf16>
    %438 = vector.shape_cast %437 : vector<1x64x32xbf16> to vector<64x32xbf16>
    %439 = arith.truncf %436 : vector<32x128xf32> to vector<32x128xbf16>
    %cst_206 = arith.constant dense<0.000000e+00> : vector<64x128xf32>
    %440 = tpu.matmul %438, %439, %cst_206 {dimension_numbers = #tpu.dot_dimension_numbers<[1], [0], [0], [1], [0, 0, 1, 1], [], []>} : vector<64x32xbf16>, vector<32x128xbf16>, vector<64x128xf32> -> vector<64x128xf32>
    %c4_207 = arith.constant 4 : index
    %c0_208 = arith.constant 0 : index
    %c0_209 = arith.constant 0 : index
    %441 = vector.load %arg8[%c4_207, %c0_208, %c0_209] : memref<8x64x1xf32, #tpu.memory_space<vmem>>, vector<1x64x1xf32>
    %442 = vector.shape_cast %441 : vector<1x64x1xf32> to vector<64x1xf32>
    %443 = vector.broadcast %442 : vector<64x1xf32> to vector<64x128xf32>
    %444 = arith.addf %440, %443 : vector<64x128xf32>
    %445 = vector.extract_strided_slice %444 {offsets = [0, 0], sizes = [32, 128], strides = [1, 1]} : vector<64x128xf32> to vector<32x128xf32>
    %446 = arith.addf %402, %445 : vector<32x128xf32>
    %447 = vector.broadcast %1 : vector<1x128xf32> to vector<32x128xf32>
    %448 = arith.mulf %446, %447 : vector<32x128xf32>
    %449 = vector.extract_strided_slice %444 {offsets = [32, 0], sizes = [32, 128], strides = [1, 1]} : vector<64x128xf32> to vector<32x128xf32>
    %450 = arith.addf %403, %449 : vector<32x128xf32>
    %c7_210 = arith.constant 7 : index
    %c0_211 = arith.constant 0 : index
    %c0_212 = arith.constant 0 : index
    %451 = vector.load %arg6[%c7_210, %c0_211, %c0_212] : memref<12x64x1xf32, #tpu.memory_space<vmem>>, vector<1x64x1xf32>
    %452 = vector.shape_cast %451 : vector<1x64x1xf32> to vector<64x1xf32>
    %c21 = arith.constant 21 : index
    %c0_213 = arith.constant 0 : index
    %c0_214 = arith.constant 0 : index
    %453 = vector.load %arg5[%c21, %c0_213, %c0_214] : memref<36x64x32xbf16, #tpu.memory_space<vmem>>, vector<1x64x32xbf16>
    %454 = vector.shape_cast %453 : vector<1x64x32xbf16> to vector<64x32xbf16>
    %c2_i32_215 = arith.constant 2 : i32
    %455 = tpu.dynamic_rotate %448 by %c2_i32_215 dim 1 : vector<32x128xf32>, i32 -> vector<32x128xf32>
    %456 = vector.broadcast %28 : vector<1x128xf32> to vector<32x128xf32>
    %457 = arith.mulf %455, %456 : vector<32x128xf32>
    %458 = arith.truncf %457 : vector<32x128xf32> to vector<32x128xbf16>
    %cst_216 = arith.constant dense<0.000000e+00> : vector<64x128xf32>
    %459 = tpu.matmul %454, %458, %cst_216 {dimension_numbers = #tpu.dot_dimension_numbers<[1], [0], [0], [1], [0, 0, 1, 1], [], []>} : vector<64x32xbf16>, vector<32x128xbf16>, vector<64x128xf32> -> vector<64x128xf32>
    %460 = vector.broadcast %452 : vector<64x1xf32> to vector<64x128xf32>
    %461 = arith.addf %460, %459 : vector<64x128xf32>
    %c22 = arith.constant 22 : index
    %c0_217 = arith.constant 0 : index
    %c0_218 = arith.constant 0 : index
    %462 = vector.load %arg5[%c22, %c0_217, %c0_218] : memref<36x64x32xbf16, #tpu.memory_space<vmem>>, vector<1x64x32xbf16>
    %463 = vector.shape_cast %462 : vector<1x64x32xbf16> to vector<64x32xbf16>
    %464 = arith.truncf %448 : vector<32x128xf32> to vector<32x128xbf16>
    %cst_219 = arith.constant dense<0.000000e+00> : vector<64x128xf32>
    %465 = tpu.matmul %463, %464, %cst_219 {dimension_numbers = #tpu.dot_dimension_numbers<[1], [0], [0], [1], [0, 0, 1, 1], [], []>} : vector<64x32xbf16>, vector<32x128xbf16>, vector<64x128xf32> -> vector<64x128xf32>
    %466 = arith.addf %461, %465 : vector<64x128xf32>
    %c23 = arith.constant 23 : index
    %c0_220 = arith.constant 0 : index
    %c0_221 = arith.constant 0 : index
    %467 = vector.load %arg5[%c23, %c0_220, %c0_221] : memref<36x64x32xbf16, #tpu.memory_space<vmem>>, vector<1x64x32xbf16>
    %468 = vector.shape_cast %467 : vector<1x64x32xbf16> to vector<64x32xbf16>
    %c126_i32_222 = arith.constant 126 : i32
    %469 = tpu.dynamic_rotate %448 by %c126_i32_222 dim 1 : vector<32x128xf32>, i32 -> vector<32x128xf32>
    %470 = vector.broadcast %61 : vector<1x128xf32> to vector<32x128xf32>
    %471 = arith.mulf %469, %470 : vector<32x128xf32>
    %472 = arith.truncf %471 : vector<32x128xf32> to vector<32x128xbf16>
    %cst_223 = arith.constant dense<0.000000e+00> : vector<64x128xf32>
    %473 = tpu.matmul %468, %472, %cst_223 {dimension_numbers = #tpu.dot_dimension_numbers<[1], [0], [0], [1], [0, 0, 1, 1], [], []>} : vector<64x32xbf16>, vector<32x128xbf16>, vector<64x128xf32> -> vector<64x128xf32>
    %474 = arith.addf %466, %473 : vector<64x128xf32>
    %475 = vector.extract_strided_slice %474 {offsets = [0, 0], sizes = [32, 128], strides = [1, 1]} : vector<64x128xf32> to vector<32x128xf32>
    %476 = math.tanh %475 : vector<32x128xf32>
    %477 = vector.extract_strided_slice %474 {offsets = [32, 0], sizes = [32, 128], strides = [1, 1]} : vector<64x128xf32> to vector<32x128xf32>
    %478 = arith.negf %477 : vector<32x128xf32>
    %479 = math.exp %478 : vector<32x128xf32>
    %cst_224 = arith.constant 1.000000e+00 : f32
    %480 = vector.broadcast %cst_224 : f32 to vector<32x128xf32>
    %481 = arith.addf %480, %479 : vector<32x128xf32>
    %482 = arith.divf %480, %481 : vector<32x128xf32>
    %483 = arith.mulf %476, %482 : vector<32x128xf32>
    %c5_225 = arith.constant 5 : index
    %c0_226 = arith.constant 0 : index
    %c0_227 = arith.constant 0 : index
    %484 = vector.load %arg7[%c5_225, %c0_226, %c0_227] : memref<8x64x32xbf16, #tpu.memory_space<vmem>>, vector<1x64x32xbf16>
    %485 = vector.shape_cast %484 : vector<1x64x32xbf16> to vector<64x32xbf16>
    %486 = arith.truncf %483 : vector<32x128xf32> to vector<32x128xbf16>
    %cst_228 = arith.constant dense<0.000000e+00> : vector<64x128xf32>
    %487 = tpu.matmul %485, %486, %cst_228 {dimension_numbers = #tpu.dot_dimension_numbers<[1], [0], [0], [1], [0, 0, 1, 1], [], []>} : vector<64x32xbf16>, vector<32x128xbf16>, vector<64x128xf32> -> vector<64x128xf32>
    %c5_229 = arith.constant 5 : index
    %c0_230 = arith.constant 0 : index
    %c0_231 = arith.constant 0 : index
    %488 = vector.load %arg8[%c5_229, %c0_230, %c0_231] : memref<8x64x1xf32, #tpu.memory_space<vmem>>, vector<1x64x1xf32>
    %489 = vector.shape_cast %488 : vector<1x64x1xf32> to vector<64x1xf32>
    %490 = vector.broadcast %489 : vector<64x1xf32> to vector<64x128xf32>
    %491 = arith.addf %487, %490 : vector<64x128xf32>
    %492 = vector.extract_strided_slice %491 {offsets = [0, 0], sizes = [32, 128], strides = [1, 1]} : vector<64x128xf32> to vector<32x128xf32>
    %493 = arith.addf %448, %492 : vector<32x128xf32>
    %494 = vector.broadcast %1 : vector<1x128xf32> to vector<32x128xf32>
    %495 = arith.mulf %493, %494 : vector<32x128xf32>
    %496 = vector.extract_strided_slice %491 {offsets = [32, 0], sizes = [32, 128], strides = [1, 1]} : vector<64x128xf32> to vector<32x128xf32>
    %497 = arith.addf %450, %496 : vector<32x128xf32>
    %c8_232 = arith.constant 8 : index
    %c0_233 = arith.constant 0 : index
    %c0_234 = arith.constant 0 : index
    %498 = vector.load %arg6[%c8_232, %c0_233, %c0_234] : memref<12x64x1xf32, #tpu.memory_space<vmem>>, vector<1x64x1xf32>
    %499 = vector.shape_cast %498 : vector<1x64x1xf32> to vector<64x1xf32>
    %c24 = arith.constant 24 : index
    %c0_235 = arith.constant 0 : index
    %c0_236 = arith.constant 0 : index
    %500 = vector.load %arg5[%c24, %c0_235, %c0_236] : memref<36x64x32xbf16, #tpu.memory_space<vmem>>, vector<1x64x32xbf16>
    %501 = vector.shape_cast %500 : vector<1x64x32xbf16> to vector<64x32xbf16>
    %c4_i32_237 = arith.constant 4 : i32
    %502 = tpu.dynamic_rotate %495 by %c4_i32_237 dim 1 : vector<32x128xf32>, i32 -> vector<32x128xf32>
    %503 = vector.broadcast %17 : vector<1x128xf32> to vector<32x128xf32>
    %504 = arith.mulf %502, %503 : vector<32x128xf32>
    %505 = arith.truncf %504 : vector<32x128xf32> to vector<32x128xbf16>
    %cst_238 = arith.constant dense<0.000000e+00> : vector<64x128xf32>
    %506 = tpu.matmul %501, %505, %cst_238 {dimension_numbers = #tpu.dot_dimension_numbers<[1], [0], [0], [1], [0, 0, 1, 1], [], []>} : vector<64x32xbf16>, vector<32x128xbf16>, vector<64x128xf32> -> vector<64x128xf32>
    %507 = vector.broadcast %499 : vector<64x1xf32> to vector<64x128xf32>
    %508 = arith.addf %507, %506 : vector<64x128xf32>
    %c25 = arith.constant 25 : index
    %c0_239 = arith.constant 0 : index
    %c0_240 = arith.constant 0 : index
    %509 = vector.load %arg5[%c25, %c0_239, %c0_240] : memref<36x64x32xbf16, #tpu.memory_space<vmem>>, vector<1x64x32xbf16>
    %510 = vector.shape_cast %509 : vector<1x64x32xbf16> to vector<64x32xbf16>
    %511 = arith.truncf %495 : vector<32x128xf32> to vector<32x128xbf16>
    %cst_241 = arith.constant dense<0.000000e+00> : vector<64x128xf32>
    %512 = tpu.matmul %510, %511, %cst_241 {dimension_numbers = #tpu.dot_dimension_numbers<[1], [0], [0], [1], [0, 0, 1, 1], [], []>} : vector<64x32xbf16>, vector<32x128xbf16>, vector<64x128xf32> -> vector<64x128xf32>
    %513 = arith.addf %508, %512 : vector<64x128xf32>
    %c26 = arith.constant 26 : index
    %c0_242 = arith.constant 0 : index
    %c0_243 = arith.constant 0 : index
    %514 = vector.load %arg5[%c26, %c0_242, %c0_243] : memref<36x64x32xbf16, #tpu.memory_space<vmem>>, vector<1x64x32xbf16>
    %515 = vector.shape_cast %514 : vector<1x64x32xbf16> to vector<64x32xbf16>
    %c124_i32_244 = arith.constant 124 : i32
    %516 = tpu.dynamic_rotate %495 by %c124_i32_244 dim 1 : vector<32x128xf32>, i32 -> vector<32x128xf32>
    %517 = vector.broadcast %72 : vector<1x128xf32> to vector<32x128xf32>
    %518 = arith.mulf %516, %517 : vector<32x128xf32>
    %519 = arith.truncf %518 : vector<32x128xf32> to vector<32x128xbf16>
    %cst_245 = arith.constant dense<0.000000e+00> : vector<64x128xf32>
    %520 = tpu.matmul %515, %519, %cst_245 {dimension_numbers = #tpu.dot_dimension_numbers<[1], [0], [0], [1], [0, 0, 1, 1], [], []>} : vector<64x32xbf16>, vector<32x128xbf16>, vector<64x128xf32> -> vector<64x128xf32>
    %521 = arith.addf %513, %520 : vector<64x128xf32>
    %522 = vector.extract_strided_slice %521 {offsets = [0, 0], sizes = [32, 128], strides = [1, 1]} : vector<64x128xf32> to vector<32x128xf32>
    %523 = math.tanh %522 : vector<32x128xf32>
    %524 = vector.extract_strided_slice %521 {offsets = [32, 0], sizes = [32, 128], strides = [1, 1]} : vector<64x128xf32> to vector<32x128xf32>
    %525 = arith.negf %524 : vector<32x128xf32>
    %526 = math.exp %525 : vector<32x128xf32>
    %cst_246 = arith.constant 1.000000e+00 : f32
    %527 = vector.broadcast %cst_246 : f32 to vector<32x128xf32>
    %528 = arith.addf %527, %526 : vector<32x128xf32>
    %529 = arith.divf %527, %528 : vector<32x128xf32>
    %530 = arith.mulf %523, %529 : vector<32x128xf32>
    %c2_247 = arith.constant 2 : index
    %c0_248 = arith.constant 0 : index
    %c0_249 = arith.constant 0 : index
    %531 = vector.load %arg9[%c2_247, %c0_248, %c0_249] : memref<4x32x32xbf16, #tpu.memory_space<vmem>>, vector<1x32x32xbf16>
    %532 = vector.shape_cast %531 : vector<1x32x32xbf16> to vector<32x32xbf16>
    %533 = arith.truncf %530 : vector<32x128xf32> to vector<32x128xbf16>
    %cst_250 = arith.constant dense<0.000000e+00> : vector<32x128xf32>
    %534 = tpu.matmul %532, %533, %cst_250 {dimension_numbers = #tpu.dot_dimension_numbers<[1], [0], [0], [1], [0, 0, 1, 1], [], []>} : vector<32x32xbf16>, vector<32x128xbf16>, vector<32x128xf32> -> vector<32x128xf32>
    %535 = arith.addf %497, %534 : vector<32x128xf32>
    %c2_251 = arith.constant 2 : index
    %c0_252 = arith.constant 0 : index
    %c0_253 = arith.constant 0 : index
    %536 = vector.load %arg10[%c2_251, %c0_252, %c0_253] : memref<4x32x1xf32, #tpu.memory_space<vmem>>, vector<1x32x1xf32>
    %537 = vector.shape_cast %536 : vector<1x32x1xf32> to vector<32x1xf32>
    %538 = vector.broadcast %537 : vector<32x1xf32> to vector<32x128xf32>
    %539 = arith.addf %535, %538 : vector<32x128xf32>
    %c2_254 = arith.constant 2 : index
    %c0_255 = arith.constant 0 : index
    %c0_256 = arith.constant 0 : index
    %540 = vector.load %arg11[%c2_254, %c0_255, %c0_256] : memref<4x2x32xbf16, #tpu.memory_space<vmem>>, vector<1x2x32xbf16>
    %541 = vector.shape_cast %540 : vector<1x2x32xbf16> to vector<2x32xbf16>
    %542 = arith.truncf %539 : vector<32x128xf32> to vector<32x128xbf16>
    %cst_257 = arith.constant dense<0.000000e+00> : vector<2x128xf32>
    %543 = tpu.matmul %541, %542, %cst_257 {dimension_numbers = #tpu.dot_dimension_numbers<[1], [0], [0], [1], [0, 0, 1, 1], [], []>} : vector<2x32xbf16>, vector<32x128xbf16>, vector<2x128xf32> -> vector<2x128xf32>
    %c2_258 = arith.constant 2 : index
    %c0_259 = arith.constant 0 : index
    %c0_260 = arith.constant 0 : index
    %544 = vector.load %arg12[%c2_258, %c0_259, %c0_260] : memref<4x2x1xf32, #tpu.memory_space<vmem>>, vector<1x2x1xf32>
    %545 = vector.shape_cast %544 : vector<1x2x1xf32> to vector<2x1xf32>
    %546 = vector.broadcast %545 : vector<2x1xf32> to vector<2x128xf32>
    %547 = arith.addf %543, %546 : vector<2x128xf32>
    %548 = vector.broadcast %1 : vector<1x128xf32> to vector<2x128xf32>
    %549 = arith.mulf %547, %548 : vector<2x128xf32>
    %550 = vector.broadcast %1 : vector<1x128xf32> to vector<2x128xf32>
    %551 = arith.mulf %232, %550 : vector<2x128xf32>
    %552 = arith.addf %549, %551 : vector<2x128xf32>
    %c3_261 = arith.constant 3 : index
    %c0_262 = arith.constant 0 : index
    %c0_263 = arith.constant 0 : index
    %553 = vector.load %arg3[%c3_261, %c0_262, %c0_263] : memref<4x32x2xbf16, #tpu.memory_space<vmem>>, vector<1x32x2xbf16>
    %554 = vector.shape_cast %553 : vector<1x32x2xbf16> to vector<32x2xbf16>
    %555 = arith.truncf %552 : vector<2x128xf32> to vector<2x128xbf16>
    %cst_264 = arith.constant dense<0.000000e+00> : vector<32x128xf32>
    %556 = tpu.matmul %554, %555, %cst_264 {dimension_numbers = #tpu.dot_dimension_numbers<[1], [0], [0], [1], [0, 0, 1, 1], [], []>} : vector<32x2xbf16>, vector<2x128xbf16>, vector<32x128xf32> -> vector<32x128xf32>
    %c3_265 = arith.constant 3 : index
    %c0_266 = arith.constant 0 : index
    %c0_267 = arith.constant 0 : index
    %557 = vector.load %arg4[%c3_265, %c0_266, %c0_267] : memref<4x32x1xf32, #tpu.memory_space<vmem>>, vector<1x32x1xf32>
    %558 = vector.shape_cast %557 : vector<1x32x1xf32> to vector<32x1xf32>
    %559 = vector.broadcast %558 : vector<32x1xf32> to vector<32x128xf32>
    %560 = arith.addf %556, %559 : vector<32x128xf32>
    %561 = vector.broadcast %1 : vector<1x128xf32> to vector<32x128xf32>
    %562 = arith.mulf %560, %561 : vector<32x128xf32>
    %cst_268 = arith.constant 0.000000e+00 : f32
    %563 = vector.broadcast %cst_268 : f32 to vector<32x128xf32>
    %c9_269 = arith.constant 9 : index
    %c0_270 = arith.constant 0 : index
    %c0_271 = arith.constant 0 : index
    %564 = vector.load %arg6[%c9_269, %c0_270, %c0_271] : memref<12x64x1xf32, #tpu.memory_space<vmem>>, vector<1x64x1xf32>
    %565 = vector.shape_cast %564 : vector<1x64x1xf32> to vector<64x1xf32>
    %c27 = arith.constant 27 : index
    %c0_272 = arith.constant 0 : index
    %c0_273 = arith.constant 0 : index
    %566 = vector.load %arg5[%c27, %c0_272, %c0_273] : memref<36x64x32xbf16, #tpu.memory_space<vmem>>, vector<1x64x32xbf16>
    %567 = vector.shape_cast %566 : vector<1x64x32xbf16> to vector<64x32xbf16>
    %c1_i32_274 = arith.constant 1 : i32
    %568 = tpu.dynamic_rotate %562 by %c1_i32_274 dim 1 : vector<32x128xf32>, i32 -> vector<32x128xf32>
    %569 = vector.broadcast %39 : vector<1x128xf32> to vector<32x128xf32>
    %570 = arith.mulf %568, %569 : vector<32x128xf32>
    %571 = arith.truncf %570 : vector<32x128xf32> to vector<32x128xbf16>
    %cst_275 = arith.constant dense<0.000000e+00> : vector<64x128xf32>
    %572 = tpu.matmul %567, %571, %cst_275 {dimension_numbers = #tpu.dot_dimension_numbers<[1], [0], [0], [1], [0, 0, 1, 1], [], []>} : vector<64x32xbf16>, vector<32x128xbf16>, vector<64x128xf32> -> vector<64x128xf32>
    %573 = vector.broadcast %565 : vector<64x1xf32> to vector<64x128xf32>
    %574 = arith.addf %573, %572 : vector<64x128xf32>
    %c28 = arith.constant 28 : index
    %c0_276 = arith.constant 0 : index
    %c0_277 = arith.constant 0 : index
    %575 = vector.load %arg5[%c28, %c0_276, %c0_277] : memref<36x64x32xbf16, #tpu.memory_space<vmem>>, vector<1x64x32xbf16>
    %576 = vector.shape_cast %575 : vector<1x64x32xbf16> to vector<64x32xbf16>
    %577 = arith.truncf %562 : vector<32x128xf32> to vector<32x128xbf16>
    %cst_278 = arith.constant dense<0.000000e+00> : vector<64x128xf32>
    %578 = tpu.matmul %576, %577, %cst_278 {dimension_numbers = #tpu.dot_dimension_numbers<[1], [0], [0], [1], [0, 0, 1, 1], [], []>} : vector<64x32xbf16>, vector<32x128xbf16>, vector<64x128xf32> -> vector<64x128xf32>
    %579 = arith.addf %574, %578 : vector<64x128xf32>
    %c29 = arith.constant 29 : index
    %c0_279 = arith.constant 0 : index
    %c0_280 = arith.constant 0 : index
    %580 = vector.load %arg5[%c29, %c0_279, %c0_280] : memref<36x64x32xbf16, #tpu.memory_space<vmem>>, vector<1x64x32xbf16>
    %581 = vector.shape_cast %580 : vector<1x64x32xbf16> to vector<64x32xbf16>
    %c127_i32_281 = arith.constant 127 : i32
    %582 = tpu.dynamic_rotate %562 by %c127_i32_281 dim 1 : vector<32x128xf32>, i32 -> vector<32x128xf32>
    %583 = vector.broadcast %50 : vector<1x128xf32> to vector<32x128xf32>
    %584 = arith.mulf %582, %583 : vector<32x128xf32>
    %585 = arith.truncf %584 : vector<32x128xf32> to vector<32x128xbf16>
    %cst_282 = arith.constant dense<0.000000e+00> : vector<64x128xf32>
    %586 = tpu.matmul %581, %585, %cst_282 {dimension_numbers = #tpu.dot_dimension_numbers<[1], [0], [0], [1], [0, 0, 1, 1], [], []>} : vector<64x32xbf16>, vector<32x128xbf16>, vector<64x128xf32> -> vector<64x128xf32>
    %587 = arith.addf %579, %586 : vector<64x128xf32>
    %588 = vector.extract_strided_slice %587 {offsets = [0, 0], sizes = [32, 128], strides = [1, 1]} : vector<64x128xf32> to vector<32x128xf32>
    %589 = math.tanh %588 : vector<32x128xf32>
    %590 = vector.extract_strided_slice %587 {offsets = [32, 0], sizes = [32, 128], strides = [1, 1]} : vector<64x128xf32> to vector<32x128xf32>
    %591 = arith.negf %590 : vector<32x128xf32>
    %592 = math.exp %591 : vector<32x128xf32>
    %cst_283 = arith.constant 1.000000e+00 : f32
    %593 = vector.broadcast %cst_283 : f32 to vector<32x128xf32>
    %594 = arith.addf %593, %592 : vector<32x128xf32>
    %595 = arith.divf %593, %594 : vector<32x128xf32>
    %596 = arith.mulf %589, %595 : vector<32x128xf32>
    %c6_284 = arith.constant 6 : index
    %c0_285 = arith.constant 0 : index
    %c0_286 = arith.constant 0 : index
    %597 = vector.load %arg7[%c6_284, %c0_285, %c0_286] : memref<8x64x32xbf16, #tpu.memory_space<vmem>>, vector<1x64x32xbf16>
    %598 = vector.shape_cast %597 : vector<1x64x32xbf16> to vector<64x32xbf16>
    %599 = arith.truncf %596 : vector<32x128xf32> to vector<32x128xbf16>
    %cst_287 = arith.constant dense<0.000000e+00> : vector<64x128xf32>
    %600 = tpu.matmul %598, %599, %cst_287 {dimension_numbers = #tpu.dot_dimension_numbers<[1], [0], [0], [1], [0, 0, 1, 1], [], []>} : vector<64x32xbf16>, vector<32x128xbf16>, vector<64x128xf32> -> vector<64x128xf32>
    %c6_288 = arith.constant 6 : index
    %c0_289 = arith.constant 0 : index
    %c0_290 = arith.constant 0 : index
    %601 = vector.load %arg8[%c6_288, %c0_289, %c0_290] : memref<8x64x1xf32, #tpu.memory_space<vmem>>, vector<1x64x1xf32>
    %602 = vector.shape_cast %601 : vector<1x64x1xf32> to vector<64x1xf32>
    %603 = vector.broadcast %602 : vector<64x1xf32> to vector<64x128xf32>
    %604 = arith.addf %600, %603 : vector<64x128xf32>
    %605 = vector.extract_strided_slice %604 {offsets = [0, 0], sizes = [32, 128], strides = [1, 1]} : vector<64x128xf32> to vector<32x128xf32>
    %606 = arith.addf %562, %605 : vector<32x128xf32>
    %607 = vector.broadcast %1 : vector<1x128xf32> to vector<32x128xf32>
    %608 = arith.mulf %606, %607 : vector<32x128xf32>
    %609 = vector.extract_strided_slice %604 {offsets = [32, 0], sizes = [32, 128], strides = [1, 1]} : vector<64x128xf32> to vector<32x128xf32>
    %610 = arith.addf %563, %609 : vector<32x128xf32>
    %c10_291 = arith.constant 10 : index
    %c0_292 = arith.constant 0 : index
    %c0_293 = arith.constant 0 : index
    %611 = vector.load %arg6[%c10_291, %c0_292, %c0_293] : memref<12x64x1xf32, #tpu.memory_space<vmem>>, vector<1x64x1xf32>
    %612 = vector.shape_cast %611 : vector<1x64x1xf32> to vector<64x1xf32>
    %c30 = arith.constant 30 : index
    %c0_294 = arith.constant 0 : index
    %c0_295 = arith.constant 0 : index
    %613 = vector.load %arg5[%c30, %c0_294, %c0_295] : memref<36x64x32xbf16, #tpu.memory_space<vmem>>, vector<1x64x32xbf16>
    %614 = vector.shape_cast %613 : vector<1x64x32xbf16> to vector<64x32xbf16>
    %c2_i32_296 = arith.constant 2 : i32
    %615 = tpu.dynamic_rotate %608 by %c2_i32_296 dim 1 : vector<32x128xf32>, i32 -> vector<32x128xf32>
    %616 = vector.broadcast %28 : vector<1x128xf32> to vector<32x128xf32>
    %617 = arith.mulf %615, %616 : vector<32x128xf32>
    %618 = arith.truncf %617 : vector<32x128xf32> to vector<32x128xbf16>
    %cst_297 = arith.constant dense<0.000000e+00> : vector<64x128xf32>
    %619 = tpu.matmul %614, %618, %cst_297 {dimension_numbers = #tpu.dot_dimension_numbers<[1], [0], [0], [1], [0, 0, 1, 1], [], []>} : vector<64x32xbf16>, vector<32x128xbf16>, vector<64x128xf32> -> vector<64x128xf32>
    %620 = vector.broadcast %612 : vector<64x1xf32> to vector<64x128xf32>
    %621 = arith.addf %620, %619 : vector<64x128xf32>
    %c31 = arith.constant 31 : index
    %c0_298 = arith.constant 0 : index
    %c0_299 = arith.constant 0 : index
    %622 = vector.load %arg5[%c31, %c0_298, %c0_299] : memref<36x64x32xbf16, #tpu.memory_space<vmem>>, vector<1x64x32xbf16>
    %623 = vector.shape_cast %622 : vector<1x64x32xbf16> to vector<64x32xbf16>
    %624 = arith.truncf %608 : vector<32x128xf32> to vector<32x128xbf16>
    %cst_300 = arith.constant dense<0.000000e+00> : vector<64x128xf32>
    %625 = tpu.matmul %623, %624, %cst_300 {dimension_numbers = #tpu.dot_dimension_numbers<[1], [0], [0], [1], [0, 0, 1, 1], [], []>} : vector<64x32xbf16>, vector<32x128xbf16>, vector<64x128xf32> -> vector<64x128xf32>
    %626 = arith.addf %621, %625 : vector<64x128xf32>
    %c32 = arith.constant 32 : index
    %c0_301 = arith.constant 0 : index
    %c0_302 = arith.constant 0 : index
    %627 = vector.load %arg5[%c32, %c0_301, %c0_302] : memref<36x64x32xbf16, #tpu.memory_space<vmem>>, vector<1x64x32xbf16>
    %628 = vector.shape_cast %627 : vector<1x64x32xbf16> to vector<64x32xbf16>
    %c126_i32_303 = arith.constant 126 : i32
    %629 = tpu.dynamic_rotate %608 by %c126_i32_303 dim 1 : vector<32x128xf32>, i32 -> vector<32x128xf32>
    %630 = vector.broadcast %61 : vector<1x128xf32> to vector<32x128xf32>
    %631 = arith.mulf %629, %630 : vector<32x128xf32>
    %632 = arith.truncf %631 : vector<32x128xf32> to vector<32x128xbf16>
    %cst_304 = arith.constant dense<0.000000e+00> : vector<64x128xf32>
    %633 = tpu.matmul %628, %632, %cst_304 {dimension_numbers = #tpu.dot_dimension_numbers<[1], [0], [0], [1], [0, 0, 1, 1], [], []>} : vector<64x32xbf16>, vector<32x128xbf16>, vector<64x128xf32> -> vector<64x128xf32>
    %634 = arith.addf %626, %633 : vector<64x128xf32>
    %635 = vector.extract_strided_slice %634 {offsets = [0, 0], sizes = [32, 128], strides = [1, 1]} : vector<64x128xf32> to vector<32x128xf32>
    %636 = math.tanh %635 : vector<32x128xf32>
    %637 = vector.extract_strided_slice %634 {offsets = [32, 0], sizes = [32, 128], strides = [1, 1]} : vector<64x128xf32> to vector<32x128xf32>
    %638 = arith.negf %637 : vector<32x128xf32>
    %639 = math.exp %638 : vector<32x128xf32>
    %cst_305 = arith.constant 1.000000e+00 : f32
    %640 = vector.broadcast %cst_305 : f32 to vector<32x128xf32>
    %641 = arith.addf %640, %639 : vector<32x128xf32>
    %642 = arith.divf %640, %641 : vector<32x128xf32>
    %643 = arith.mulf %636, %642 : vector<32x128xf32>
    %c7_306 = arith.constant 7 : index
    %c0_307 = arith.constant 0 : index
    %c0_308 = arith.constant 0 : index
    %644 = vector.load %arg7[%c7_306, %c0_307, %c0_308] : memref<8x64x32xbf16, #tpu.memory_space<vmem>>, vector<1x64x32xbf16>
    %645 = vector.shape_cast %644 : vector<1x64x32xbf16> to vector<64x32xbf16>
    %646 = arith.truncf %643 : vector<32x128xf32> to vector<32x128xbf16>
    %cst_309 = arith.constant dense<0.000000e+00> : vector<64x128xf32>
    %647 = tpu.matmul %645, %646, %cst_309 {dimension_numbers = #tpu.dot_dimension_numbers<[1], [0], [0], [1], [0, 0, 1, 1], [], []>} : vector<64x32xbf16>, vector<32x128xbf16>, vector<64x128xf32> -> vector<64x128xf32>
    %c7_310 = arith.constant 7 : index
    %c0_311 = arith.constant 0 : index
    %c0_312 = arith.constant 0 : index
    %648 = vector.load %arg8[%c7_310, %c0_311, %c0_312] : memref<8x64x1xf32, #tpu.memory_space<vmem>>, vector<1x64x1xf32>
    %649 = vector.shape_cast %648 : vector<1x64x1xf32> to vector<64x1xf32>
    %650 = vector.broadcast %649 : vector<64x1xf32> to vector<64x128xf32>
    %651 = arith.addf %647, %650 : vector<64x128xf32>
    %652 = vector.extract_strided_slice %651 {offsets = [0, 0], sizes = [32, 128], strides = [1, 1]} : vector<64x128xf32> to vector<32x128xf32>
    %653 = arith.addf %608, %652 : vector<32x128xf32>
    %654 = vector.broadcast %1 : vector<1x128xf32> to vector<32x128xf32>
    %655 = arith.mulf %653, %654 : vector<32x128xf32>
    %656 = vector.extract_strided_slice %651 {offsets = [32, 0], sizes = [32, 128], strides = [1, 1]} : vector<64x128xf32> to vector<32x128xf32>
    %657 = arith.addf %610, %656 : vector<32x128xf32>
    %c11_313 = arith.constant 11 : index
    %c0_314 = arith.constant 0 : index
    %c0_315 = arith.constant 0 : index
    %658 = vector.load %arg6[%c11_313, %c0_314, %c0_315] : memref<12x64x1xf32, #tpu.memory_space<vmem>>, vector<1x64x1xf32>
    %659 = vector.shape_cast %658 : vector<1x64x1xf32> to vector<64x1xf32>
    %c33 = arith.constant 33 : index
    %c0_316 = arith.constant 0 : index
    %c0_317 = arith.constant 0 : index
    %660 = vector.load %arg5[%c33, %c0_316, %c0_317] : memref<36x64x32xbf16, #tpu.memory_space<vmem>>, vector<1x64x32xbf16>
    %661 = vector.shape_cast %660 : vector<1x64x32xbf16> to vector<64x32xbf16>
    %c4_i32_318 = arith.constant 4 : i32
    %662 = tpu.dynamic_rotate %655 by %c4_i32_318 dim 1 : vector<32x128xf32>, i32 -> vector<32x128xf32>
    %663 = vector.broadcast %17 : vector<1x128xf32> to vector<32x128xf32>
    %664 = arith.mulf %662, %663 : vector<32x128xf32>
    %665 = arith.truncf %664 : vector<32x128xf32> to vector<32x128xbf16>
    %cst_319 = arith.constant dense<0.000000e+00> : vector<64x128xf32>
    %666 = tpu.matmul %661, %665, %cst_319 {dimension_numbers = #tpu.dot_dimension_numbers<[1], [0], [0], [1], [0, 0, 1, 1], [], []>} : vector<64x32xbf16>, vector<32x128xbf16>, vector<64x128xf32> -> vector<64x128xf32>
    %667 = vector.broadcast %659 : vector<64x1xf32> to vector<64x128xf32>
    %668 = arith.addf %667, %666 : vector<64x128xf32>
    %c34 = arith.constant 34 : index
    %c0_320 = arith.constant 0 : index
    %c0_321 = arith.constant 0 : index
    %669 = vector.load %arg5[%c34, %c0_320, %c0_321] : memref<36x64x32xbf16, #tpu.memory_space<vmem>>, vector<1x64x32xbf16>
    %670 = vector.shape_cast %669 : vector<1x64x32xbf16> to vector<64x32xbf16>
    %671 = arith.truncf %655 : vector<32x128xf32> to vector<32x128xbf16>
    %cst_322 = arith.constant dense<0.000000e+00> : vector<64x128xf32>
    %672 = tpu.matmul %670, %671, %cst_322 {dimension_numbers = #tpu.dot_dimension_numbers<[1], [0], [0], [1], [0, 0, 1, 1], [], []>} : vector<64x32xbf16>, vector<32x128xbf16>, vector<64x128xf32> -> vector<64x128xf32>
    %673 = arith.addf %668, %672 : vector<64x128xf32>
    %c35 = arith.constant 35 : index
    %c0_323 = arith.constant 0 : index
    %c0_324 = arith.constant 0 : index
    %674 = vector.load %arg5[%c35, %c0_323, %c0_324] : memref<36x64x32xbf16, #tpu.memory_space<vmem>>, vector<1x64x32xbf16>
    %675 = vector.shape_cast %674 : vector<1x64x32xbf16> to vector<64x32xbf16>
    %c124_i32_325 = arith.constant 124 : i32
    %676 = tpu.dynamic_rotate %655 by %c124_i32_325 dim 1 : vector<32x128xf32>, i32 -> vector<32x128xf32>
    %677 = vector.broadcast %72 : vector<1x128xf32> to vector<32x128xf32>
    %678 = arith.mulf %676, %677 : vector<32x128xf32>
    %679 = arith.truncf %678 : vector<32x128xf32> to vector<32x128xbf16>
    %cst_326 = arith.constant dense<0.000000e+00> : vector<64x128xf32>
    %680 = tpu.matmul %675, %679, %cst_326 {dimension_numbers = #tpu.dot_dimension_numbers<[1], [0], [0], [1], [0, 0, 1, 1], [], []>} : vector<64x32xbf16>, vector<32x128xbf16>, vector<64x128xf32> -> vector<64x128xf32>
    %681 = arith.addf %673, %680 : vector<64x128xf32>
    %682 = vector.extract_strided_slice %681 {offsets = [0, 0], sizes = [32, 128], strides = [1, 1]} : vector<64x128xf32> to vector<32x128xf32>
    %683 = math.tanh %682 : vector<32x128xf32>
    %684 = vector.extract_strided_slice %681 {offsets = [32, 0], sizes = [32, 128], strides = [1, 1]} : vector<64x128xf32> to vector<32x128xf32>
    %685 = arith.negf %684 : vector<32x128xf32>
    %686 = math.exp %685 : vector<32x128xf32>
    %cst_327 = arith.constant 1.000000e+00 : f32
    %687 = vector.broadcast %cst_327 : f32 to vector<32x128xf32>
    %688 = arith.addf %687, %686 : vector<32x128xf32>
    %689 = arith.divf %687, %688 : vector<32x128xf32>
    %690 = arith.mulf %683, %689 : vector<32x128xf32>
    %c3_328 = arith.constant 3 : index
    %c0_329 = arith.constant 0 : index
    %c0_330 = arith.constant 0 : index
    %691 = vector.load %arg9[%c3_328, %c0_329, %c0_330] : memref<4x32x32xbf16, #tpu.memory_space<vmem>>, vector<1x32x32xbf16>
    %692 = vector.shape_cast %691 : vector<1x32x32xbf16> to vector<32x32xbf16>
    %693 = arith.truncf %690 : vector<32x128xf32> to vector<32x128xbf16>
    %cst_331 = arith.constant dense<0.000000e+00> : vector<32x128xf32>
    %694 = tpu.matmul %692, %693, %cst_331 {dimension_numbers = #tpu.dot_dimension_numbers<[1], [0], [0], [1], [0, 0, 1, 1], [], []>} : vector<32x32xbf16>, vector<32x128xbf16>, vector<32x128xf32> -> vector<32x128xf32>
    %695 = arith.addf %657, %694 : vector<32x128xf32>
    %c3_332 = arith.constant 3 : index
    %c0_333 = arith.constant 0 : index
    %c0_334 = arith.constant 0 : index
    %696 = vector.load %arg10[%c3_332, %c0_333, %c0_334] : memref<4x32x1xf32, #tpu.memory_space<vmem>>, vector<1x32x1xf32>
    %697 = vector.shape_cast %696 : vector<1x32x1xf32> to vector<32x1xf32>
    %698 = vector.broadcast %697 : vector<32x1xf32> to vector<32x128xf32>
    %699 = arith.addf %695, %698 : vector<32x128xf32>
    %c3_335 = arith.constant 3 : index
    %c0_336 = arith.constant 0 : index
    %c0_337 = arith.constant 0 : index
    %700 = vector.load %arg11[%c3_335, %c0_336, %c0_337] : memref<4x2x32xbf16, #tpu.memory_space<vmem>>, vector<1x2x32xbf16>
    %701 = vector.shape_cast %700 : vector<1x2x32xbf16> to vector<2x32xbf16>
    %702 = arith.truncf %699 : vector<32x128xf32> to vector<32x128xbf16>
    %cst_338 = arith.constant dense<0.000000e+00> : vector<2x128xf32>
    %703 = tpu.matmul %701, %702, %cst_338 {dimension_numbers = #tpu.dot_dimension_numbers<[1], [0], [0], [1], [0, 0, 1, 1], [], []>} : vector<2x32xbf16>, vector<32x128xbf16>, vector<2x128xf32> -> vector<2x128xf32>
    %c3_339 = arith.constant 3 : index
    %c0_340 = arith.constant 0 : index
    %c0_341 = arith.constant 0 : index
    %704 = vector.load %arg12[%c3_339, %c0_340, %c0_341] : memref<4x2x1xf32, #tpu.memory_space<vmem>>, vector<1x2x1xf32>
    %705 = vector.shape_cast %704 : vector<1x2x1xf32> to vector<2x1xf32>
    %706 = vector.broadcast %705 : vector<2x1xf32> to vector<2x128xf32>
    %707 = arith.addf %703, %706 : vector<2x128xf32>
    %708 = vector.broadcast %1 : vector<1x128xf32> to vector<2x128xf32>
    %709 = arith.mulf %707, %708 : vector<2x128xf32>
    %710 = vector.broadcast %1 : vector<1x128xf32> to vector<2x128xf32>
    %711 = arith.mulf %392, %710 : vector<2x128xf32>
    %712 = arith.addf %709, %711 : vector<2x128xf32>
    %713 = tpu.concatenate %712, %552 in 0 : vector<2x128xf32>, vector<2x128xf32> -> vector<4x128xf32>
    %c0_342 = arith.constant 0 : index
    %c0_343 = arith.constant 0 : index
    %c0_344 = arith.constant 0 : index
    %714 = vector.load %arg13[%c0_342, %c0_343, %c0_344] : memref<1x4x128xf32, #tpu.memory_space<vmem>>, vector<1x4x128xf32>
    %715 = vector.shape_cast %714 : vector<1x4x128xf32> to vector<4x128xf32>
    %716 = vector.shape_cast %713 : vector<4x128xf32> to vector<1x4x128xf32>
    tpu.vector_store %arg13[%c0_342, %c0_343, %c0_344], %716 {strides = array<i32>} : memref<1x4x128xf32, #tpu.memory_space<vmem>>, vector<1x4x128xf32>,
    return
  }
  func.func @transform_0(%arg0: i32) -> (i32, i32, i32) {
    %c0_i32 = arith.constant 0 : i32
    %c0_i32_0 = arith.constant 0 : i32
    %c0_i32_1 = arith.constant 0 : i32
    return %arg0, %c0_i32, %c0_i32_0 : i32, i32, i32
  }
  func.func @transform_1(%arg0: i32) -> (i32, i32, i32) {
    %c0_i32 = arith.constant 0 : i32
    %c0_i32_0 = arith.constant 0 : i32
    %c0_i32_1 = arith.constant 0 : i32
    return %arg0, %c0_i32, %c0_i32_0 : i32, i32, i32
  }
  func.func @transform_2(%arg0: i32) -> (i32, i32, i32) {
    %c0_i32 = arith.constant 0 : i32
    %c0_i32_0 = arith.constant 0 : i32
    %c0_i32_1 = arith.constant 0 : i32
    %c0_i32_2 = arith.constant 0 : i32
    return %c0_i32, %c0_i32_0, %c0_i32_1 : i32, i32, i32
  }
  func.func @transform_3(%arg0: i32) -> (i32, i32, i32) {
    %c0_i32 = arith.constant 0 : i32
    %c0_i32_0 = arith.constant 0 : i32
    %c0_i32_1 = arith.constant 0 : i32
    %c0_i32_2 = arith.constant 0 : i32
    return %c0_i32, %c0_i32_0, %c0_i32_1 : i32, i32, i32
  }
  func.func @transform_4(%arg0: i32) -> (i32, i32, i32) {
    %c0_i32 = arith.constant 0 : i32
    %c0_i32_0 = arith.constant 0 : i32
    %c0_i32_1 = arith.constant 0 : i32
    %c0_i32_2 = arith.constant 0 : i32
    return %c0_i32, %c0_i32_0, %c0_i32_1 : i32, i32, i32
  }
  func.func @transform_5(%arg0: i32) -> (i32, i32, i32) {
    %c0_i32 = arith.constant 0 : i32
    %c0_i32_0 = arith.constant 0 : i32
    %c0_i32_1 = arith.constant 0 : i32
    %c0_i32_2 = arith.constant 0 : i32
    return %c0_i32, %c0_i32_0, %c0_i32_1 : i32, i32, i32
  }
  func.func @transform_6(%arg0: i32) -> (i32, i32, i32) {
    %c0_i32 = arith.constant 0 : i32
    %c0_i32_0 = arith.constant 0 : i32
    %c0_i32_1 = arith.constant 0 : i32
    %c0_i32_2 = arith.constant 0 : i32
    return %c0_i32, %c0_i32_0, %c0_i32_1 : i32, i32, i32
  }
  func.func @transform_7(%arg0: i32) -> (i32, i32, i32) {
    %c0_i32 = arith.constant 0 : i32
    %c0_i32_0 = arith.constant 0 : i32
    %c0_i32_1 = arith.constant 0 : i32
    %c0_i32_2 = arith.constant 0 : i32
    return %c0_i32, %c0_i32_0, %c0_i32_1 : i32, i32, i32
  }
  func.func @transform_8(%arg0: i32) -> (i32, i32, i32) {
    %c0_i32 = arith.constant 0 : i32
    %c0_i32_0 = arith.constant 0 : i32
    %c0_i32_1 = arith.constant 0 : i32
    %c0_i32_2 = arith.constant 0 : i32
    return %c0_i32, %c0_i32_0, %c0_i32_1 : i32, i32, i32
  }
  func.func @transform_9(%arg0: i32) -> (i32, i32, i32) {
    %c0_i32 = arith.constant 0 : i32
    %c0_i32_0 = arith.constant 0 : i32
    %c0_i32_1 = arith.constant 0 : i32
    %c0_i32_2 = arith.constant 0 : i32
    return %c0_i32, %c0_i32_0, %c0_i32_1 : i32, i32, i32
  }
  func.func @transform_10(%arg0: i32) -> (i32, i32, i32) {
    %c0_i32 = arith.constant 0 : i32
    %c0_i32_0 = arith.constant 0 : i32
    %c0_i32_1 = arith.constant 0 : i32
    %c0_i32_2 = arith.constant 0 : i32
    return %c0_i32, %c0_i32_0, %c0_i32_1 : i32, i32, i32
  }
  func.func @transform_11(%arg0: i32) -> (i32, i32, i32) {
    %c0_i32 = arith.constant 0 : i32
    %c0_i32_0 = arith.constant 0 : i32
    %c0_i32_1 = arith.constant 0 : i32
    %c0_i32_2 = arith.constant 0 : i32
    return %c0_i32, %c0_i32_0, %c0_i32_1 : i32, i32, i32
  }
  func.func @transform_12(%arg0: i32) -> (i32, i32, i32) {
    %c0_i32 = arith.constant 0 : i32
    %c0_i32_0 = arith.constant 0 : i32
    %c0_i32_1 = arith.constant 0 : i32
    return %arg0, %c0_i32, %c0_i32_0 : i32, i32, i32
  }
}

</mosaic_0001>

<llo_original>
// kernel: _lambda_.1
$region0: #{_lambda_.1}
  #allocation0 [shape = 'u32[]', space=smem, size = 0x4, offset = 0x4, fixed_abs, tag = 'smem constant byte address 0x4 - core index']
  #allocation1 [shape = 'u32[144,128]{1,0:T(1,128)}', space=vmem, size = 0x12000, scoped, tag = 'internal scratch']
  %s0 = inlined_call_operand.vmem [shape: f32[2,4,128], index: 0, kind: input, shape index: {}]
  %s1 = inlined_call_operand.vmem [shape: f32[2,1,128], index: 1, kind: input, shape index: {}]
  %s2 = inlined_call_operand.vmem [shape: bf16[4,32,2], index: 2, kind: input, shape index: {}]
  %s3 = inlined_call_operand.vmem [shape: f32[4,32,1], index: 3, kind: input, shape index: {}]
  %s4 = inlined_call_operand.vmem [shape: bf16[36,64,32], index: 4, kind: input, shape index: {}]
  %s5 = inlined_call_operand.vmem [shape: f32[12,64,1], index: 5, kind: input, shape index: {}]
  %s6 = inlined_call_operand.vmem [shape: bf16[8,64,32], index: 6, kind: input, shape index: {}]
  %s7 = inlined_call_operand.vmem [shape: f32[8,64,1], index: 7, kind: input, shape index: {}]
  %s8 = inlined_call_operand.vmem [shape: bf16[4,32,32], index: 8, kind: input, shape index: {}]
  %s9 = inlined_call_operand.vmem [shape: f32[4,32,1], index: 9, kind: input, shape index: {}]
  %s10 = inlined_call_operand.vmem [shape: bf16[4,2,32], index: 10, kind: input, shape index: {}]
  %s11 = inlined_call_operand.vmem [shape: f32[4,2,1], index: 11, kind: input, shape index: {}]
  %s12 = inlined_call_operand.hbm [shape: f32[2,4,128], index: 12, kind: output, shape index: {}]
  %s13 = sld [smem:[#allocation0]]
  $region81: #{_lambda_.1} parent=0
    _
  %s15 = ssub.s32 1, %s13
  %s16 = scalar_select 0, %s15, %s13
  $region1: #{_lambda_.1} parent=0
    #allocation2 [shape = 'u8[4096]{0}', space=vmem, size = 0x1000, scoped, tag = 'output window, operand 0']
    #allocation3 [shape = 's32[2]{0}', space=sflag, size = 0x8, scoped, tag = 'scoped memory for _lambda_.1']
    %17 = vsyncpa [#allocation3], 0
    %s18 = scalar_lea.sflag [#allocation3], 1
    %19 = vsyncpa %s18, 0
    loop: start=0, step=1, limit=4
    $region2: #{_lambda_.1} parent=1 // loop_pre_header
      _
    $region3: #{_lambda_.1} parent=1 // loop_header
      %s21 = sphi 0, %s25
      %p22 = scmp.ge.s32.totalorder %s21, 4
      %s31 = sphi 0, %s33
      %s34 = sphi 0, %s31
      %s35 = sphi 0, %s34
      %s51 = sphi 0, %s35
      %s57 = sphi 0, %s59
      %s60 = sphi 0, %s57
      %s61 = sphi 0, %s60
      %s77 = sphi 0, %s61
      %s81 = sphi 0, %s81
      %s83 = sphi 0, %s81
      %s84 = sphi 0, %s83
      %s98 = sphi 0, %s84
      %s102 = sphi 0, %s102
      %s104 = sphi 0, %s102
      %s105 = sphi 0, %s104
      %s119 = sphi 0, %s105
      %s123 = sphi 0, %s123
      %s125 = sphi 0, %s123
      %s126 = sphi 0, %s125
      %s140 = sphi 0, %s126
      %s144 = sphi 0, %s144
      %s146 = sphi 0, %s144
      %s147 = sphi 0, %s146
      %s161 = sphi 0, %s147
      %s165 = sphi 0, %s165
      %s167 = sphi 0, %s165
      %s168 = sphi 0, %s167
      %s182 = sphi 0, %s168
      %s186 = sphi 0, %s186
      %s188 = sphi 0, %s186
      %s189 = sphi 0, %s188
      %s203 = sphi 0, %s189
      %s207 = sphi 0, %s207
      %s209 = sphi 0, %s207
      %s210 = sphi 0, %s209
      %s224 = sphi 0, %s210
      %s228 = sphi 0, %s228
      %s230 = sphi 0, %s228
      %s231 = sphi 0, %s230
      %s245 = sphi 0, %s231
      %s249 = sphi 0, %s249
      %s251 = sphi 0, %s249
      %s252 = sphi 0, %s251
      %s266 = sphi 0, %s252
      %s270 = sphi 0, %s270
      %s272 = sphi 0, %s270
      %s273 = sphi 0, %s272
      %s287 = sphi 0, %s273
      %s293 = sphi 0, %s295
      %s296 = sphi 0, %s293
      %s297 = sphi 0, %s296
      %s313 = sphi 0, %s297
    $region4: #{_lambda_.1} parent=1 // loop_header_branch
      %24 = sbr.rel (%p22) target = $region8
    $region5: #{_lambda_.1} parent=1 // loop_body
      %s26 = ssub.s32 %s21, 1
      %s27 = ssub.s32 %s21, 2
      %s28 = sadd.s32 %s21, 1
      %s29 = ssub.s32 %s21, %s28
      %p30 = scmp.eq.s32.totalorder %s29, 0
      %s32 = sadd.s32 %s31, 1
      %s33 = scalar_select %p30, %s31, %s32
      %p36 = pneg %p30
      %p37 = scmp.eq.s32.totalorder %s21, 1
      %p38 = por %p36, %p37
      %p39 = scmp.ne.s32.totalorder %s31, %s34
      %p40 = scmp.eq.s32.totalorder %s21, 0
      %p41 = por %p39, %p40
      %p42 = scmp.ne.s32.totalorder %s31, %s34
      %p43 = scmp.eq.s32.totalorder %s26, 1
      %p44 = por %p42, %p43
      %p45 = scmp.ne.s32.totalorder %s34, %s35
      %p46 = scmp.eq.s32.totalorder %s26, 0
      %p47 = por %p45, %p46
      %p48 = scmp.ne.s32.totalorder %s34, %s35
      %p49 = scmp.eq.s32.totalorder %s27, 1
      %p50 = por %p48, %p49
      %p52 = scmp.ne.s32.totalorder %s35, %s51
      %p53 = scmp.eq.s32.totalorder %s27, 0
      %p54 = por %p52, %p53
      %s55 = ssub.s32 %s21, %s28
      %p56 = scmp.eq.s32.totalorder %s55, 0
      %s58 = sadd.s32 %s57, 1
      %s59 = scalar_select %p56, %s57, %s58
      %p62 = pneg %p56
      %p63 = scmp.eq.s32.totalorder %s21, 1
      %p64 = por %p62, %p63
      %p65 = scmp.ne.s32.totalorder %s57, %s60
      %p66 = scmp.eq.s32.totalorder %s21, 0
      %p67 = por %p65, %p66
      %p68 = scmp.ne.s32.totalorder %s57, %s60
      %p69 = scmp.eq.s32.totalorder %s26, 1
      %p70 = por %p68, %p69
      %p71 = scmp.ne.s32.totalorder %s60, %s61
      %p72 = scmp.eq.s32.totalorder %s26, 0
      %p73 = por %p71, %p72
      %p74 = scmp.ne.s32.totalorder %s60, %s61
      %p75 = scmp.eq.s32.totalorder %s27, 1
      %p76 = por %p74, %p75
      %p78 = scmp.ne.s32.totalorder %s61, %s77
      %p79 = scmp.eq.s32.totalorder %s27, 0
      %p80 = por %p78, %p79
      %s82 = sadd.s32 %s81, 1
      %p85 = scmp.eq.s32.totalorder %s21, 1
      %p86 = scmp.ne.s32.totalorder %s81, %s83
      %p87 = scmp.eq.s32.totalorder %s21, 0
      %p88 = por %p86, %p87
      %p89 = scmp.ne.s32.totalorder %s81, %s83
      %p90 = scmp.eq.s32.totalorder %s26, 1
      %p91 = por %p89, %p90
      %p92 = scmp.ne.s32.totalorder %s83, %s84
      %p93 = scmp.eq.s32.totalorder %s26, 0
      %p94 = por %p92, %p93
      %p95 = scmp.ne.s32.totalorder %s83, %s84
      %p96 = scmp.eq.s32.totalorder %s27, 1
      %p97 = por %p95, %p96
      %p99 = scmp.ne.s32.totalorder %s84, %s98
      %p100 = scmp.eq.s32.totalorder %s27, 0
      %p101 = por %p99, %p100
      %s103 = sadd.s32 %s102, 1
      %p106 = scmp.eq.s32.totalorder %s21, 1
      %p107 = scmp.ne.s32.totalorder %s102, %s104
      %p108 = scmp.eq.s32.totalorder %s21, 0
      %p109 = por %p107, %p108
      %p110 = scmp.ne.s32.totalorder %s102, %s104
      %p111 = scmp.eq.s32.totalorder %s26, 1
      %p112 = por %p110, %p111
      %p113 = scmp.ne.s32.totalorder %s104, %s105
      %p114 = scmp.eq.s32.totalorder %s26, 0
      %p115 = por %p113, %p114
      %p116 = scmp.ne.s32.totalorder %s104, %s105
      %p117 = scmp.eq.s32.totalorder %s27, 1
      %p118 = por %p116, %p117
      %p120 = scmp.ne.s32.totalorder %s105, %s119
      %p121 = scmp.eq.s32.totalorder %s27, 0
      %p122 = por %p120, %p121
      %s124 = sadd.s32 %s123, 1
      %p127 = scmp.eq.s32.totalorder %s21, 1
      %p128 = scmp.ne.s32.totalorder %s123, %s125
      %p129 = scmp.eq.s32.totalorder %s21, 0
      %p130 = por %p128, %p129
      %p131 = scmp.ne.s32.totalorder %s123, %s125
      %p132 = scmp.eq.s32.totalorder %s26, 1
      %p133 = por %p131, %p132
      %p134 = scmp.ne.s32.totalorder %s125, %s126
      %p135 = scmp.eq.s32.totalorder %s26, 0
      %p136 = por %p134, %p135
      %p137 = scmp.ne.s32.totalorder %s125, %s126
      %p138 = scmp.eq.s32.totalorder %s27, 1
      %p139 = por %p137, %p138
      %p141 = scmp.ne.s32.totalorder %s126, %s140
      %p142 = scmp.eq.s32.totalorder %s27, 0
      %p143 = por %p141, %p142
      %s145 = sadd.s32 %s144, 1
      %p148 = scmp.eq.s32.totalorder %s21, 1
      %p149 = scmp.ne.s32.totalorder %s144, %s146
      %p150 = scmp.eq.s32.totalorder %s21, 0
      %p151 = por %p149, %p150
      %p152 = scmp.ne.s32.totalorder %s144, %s146
      %p153 = scmp.eq.s32.totalorder %s26, 1
      %p154 = por %p152, %p153
      %p155 = scmp.ne.s32.totalorder %s146, %s147
      %p156 = scmp.eq.s32.totalorder %s26, 0
      %p157 = por %p155, %p156
      %p158 = scmp.ne.s32.totalorder %s146, %s147
      %p159 = scmp.eq.s32.totalorder %s27, 1
      %p160 = por %p158, %p159
      %p162 = scmp.ne.s32.totalorder %s147, %s161
      %p163 = scmp.eq.s32.totalorder %s27, 0
      %p164 = por %p162, %p163
      %s166 = sadd.s32 %s165, 1
      %p169 = scmp.eq.s32.totalorder %s21, 1
      %p170 = scmp.ne.s32.totalorder %s165, %s167
      %p171 = scmp.eq.s32.totalorder %s21, 0
      %p172 = por %p170, %p171
      %p173 = scmp.ne.s32.totalorder %s165, %s167
      %p174 = scmp.eq.s32.totalorder %s26, 1
      %p175 = por %p173, %p174
      %p176 = scmp.ne.s32.totalorder %s167, %s168
      %p177 = scmp.eq.s32.totalorder %s26, 0
      %p178 = por %p176, %p177
      %p179 = scmp.ne.s32.totalorder %s167, %s168
      %p180 = scmp.eq.s32.totalorder %s27, 1
      %p181 = por %p179, %p180
      %p183 = scmp.ne.s32.totalorder %s168, %s182
      %p184 = scmp.eq.s32.totalorder %s27, 0
      %p185 = por %p183, %p184
      %s187 = sadd.s32 %s186, 1
      %p190 = scmp.eq.s32.totalorder %s21, 1
      %p191 = scmp.ne.s32.totalorder %s186, %s188
      %p192 = scmp.eq.s32.totalorder %s21, 0
      %p193 = por %p191, %p192
      %p194 = scmp.ne.s32.totalorder %s186, %s188
      %p195 = scmp.eq.s32.totalorder %s26, 1
      %p196 = por %p194, %p195
      %p197 = scmp.ne.s32.totalorder %s188, %s189
      %p198 = scmp.eq.s32.totalorder %s26, 0
      %p199 = por %p197, %p198
      %p200 = scmp.ne.s32.totalorder %s188, %s189
      %p201 = scmp.eq.s32.totalorder %s27, 1
      %p202 = por %p200, %p201
      %p204 = scmp.ne.s32.totalorder %s189, %s203
      %p205 = scmp.eq.s32.totalorder %s27, 0
      %p206 = por %p204, %p205
      %s208 = sadd.s32 %s207, 1
      %p211 = scmp.eq.s32.totalorder %s21, 1
      %p212 = scmp.ne.s32.totalorder %s207, %s209
      %p213 = scmp.eq.s32.totalorder %s21, 0
      %p214 = por %p212, %p213
      %p215 = scmp.ne.s32.totalorder %s207, %s209
      %p216 = scmp.eq.s32.totalorder %s26, 1
      %p217 = por %p215, %p216
      %p218 = scmp.ne.s32.totalorder %s209, %s210
      %p219 = scmp.eq.s32.totalorder %s26, 0
      %p220 = por %p218, %p219
      %p221 = scmp.ne.s32.totalorder %s209, %s210
      %p222 = scmp.eq.s32.totalorder %s27, 1
      %p223 = por %p221, %p222
      %p225 = scmp.ne.s32.totalorder %s210, %s224
      %p226 = scmp.eq.s32.totalorder %s27, 0
      %p227 = por %p225, %p226
      %s229 = sadd.s32 %s228, 1
      %p232 = scmp.eq.s32.totalorder %s21, 1
      %p233 = scmp.ne.s32.totalorder %s228, %s230
      %p234 = scmp.eq.s32.totalorder %s21, 0
      %p235 = por %p233, %p234
      %p236 = scmp.ne.s32.totalorder %s228, %s230
      %p237 = scmp.eq.s32.totalorder %s26, 1
      %p238 = por %p236, %p237
      %p239 = scmp.ne.s32.totalorder %s230, %s231
      %p240 = scmp.eq.s32.totalorder %s26, 0
      %p241 = por %p239, %p240
      %p242 = scmp.ne.s32.totalorder %s230, %s231
      %p243 = scmp.eq.s32.totalorder %s27, 1
      %p244 = por %p242, %p243
      %p246 = scmp.ne.s32.totalorder %s231, %s245
      %p247 = scmp.eq.s32.totalorder %s27, 0
      %p248 = por %p246, %p247
      %s250 = sadd.s32 %s249, 1
      %p253 = scmp.eq.s32.totalorder %s21, 1
      %p254 = scmp.ne.s32.totalorder %s249, %s251
      %p255 = scmp.eq.s32.totalorder %s21, 0
      %p256 = por %p254, %p255
      %p257 = scmp.ne.s32.totalorder %s249, %s251
      %p258 = scmp.eq.s32.totalorder %s26, 1
      %p259 = por %p257, %p258
      %p260 = scmp.ne.s32.totalorder %s251, %s252
      %p261 = scmp.eq.s32.totalorder %s26, 0
      %p262 = por %p260, %p261
      %p263 = scmp.ne.s32.totalorder %s251, %s252
      %p264 = scmp.eq.s32.totalorder %s27, 1
      %p265 = por %p263, %p264
      %p267 = scmp.ne.s32.totalorder %s252, %s266
      %p268 = scmp.eq.s32.totalorder %s27, 0
      %p269 = por %p267, %p268
      %s271 = sadd.s32 %s270, 1
      %p274 = scmp.eq.s32.totalorder %s21, 1
      %p275 = scmp.ne.s32.totalorder %s270, %s272
      %p276 = scmp.eq.s32.totalorder %s21, 0
      %p277 = por %p275, %p276
      %p278 = scmp.ne.s32.totalorder %s270, %s272
      %p279 = scmp.eq.s32.totalorder %s26, 1
      %p280 = por %p278, %p279
      %p281 = scmp.ne.s32.totalorder %s272, %s273
      %p282 = scmp.eq.s32.totalorder %s26, 0
      %p283 = por %p281, %p282
      %p284 = scmp.ne.s32.totalorder %s272, %s273
      %p285 = scmp.eq.s32.totalorder %s27, 1
      %p286 = por %p284, %p285
      %p288 = scmp.ne.s32.totalorder %s273, %s287
      %p289 = scmp.eq.s32.totalorder %s27, 0
      %p290 = por %p288, %p289
      %s291 = ssub.s32 %s21, %s28
      %p292 = scmp.eq.s32.totalorder %s291, 0
      %s294 = sadd.s32 %s293, 1
      %s295 = scalar_select %p292, %s293, %s294
      %p298 = pneg %p292
      %p299 = scmp.eq.s32.totalorder %s21, 1
      %p300 = por %p298, %p299
      %p301 = scmp.ne.s32.totalorder %s293, %s296
      %p302 = scmp.eq.s32.totalorder %s21, 0
      %p303 = por %p301, %p302
      %p304 = scmp.ne.s32.totalorder %s293, %s296
      %p305 = scmp.eq.s32.totalorder %s26, 1
      %p306 = por %p304, %p305
      %p307 = scmp.ne.s32.totalorder %s296, %s297
      %p308 = scmp.eq.s32.totalorder %s26, 0
      %p309 = por %p307, %p308
      %p310 = scmp.ne.s32.totalorder %s296, %s297
      %p311 = scmp.eq.s32.totalorder %s27, 1
      %p312 = por %p310, %p311
      %p314 = scmp.ne.s32.totalorder %s297, %s313
      %p315 = scmp.eq.s32.totalorder %s27, 0
      %p316 = por %p314, %p315
      %p317 = scmp.le.s32.totalorder 1, %s21
      %p318 = scmp.lt.s32.totalorder %s21, 3
      %p319 = pnand %p317, %p318
      %p320 = pneg %p319
      // Predicated region
      $region9: #{_lambda_.1} parent=5 // pred_check
        _
      $region10: #{_lambda_.1} parent=5 // pred_check_branch
        %322 = sbr.rel (%p319) target = $region12
      $region11: #{_lambda_.1} parent=5 // pred_region
        %s323 = ssub.s32 %s21, 1
        // Predicated region
        $region13: #{_lambda_.1} parent=11 // pred_check
          %p324 = pneg %p94
        $region14: #{_lambda_.1} parent=11 // pred_check_branch
          %326 = sbr.rel (%p324) target = $region16
        $region15: #{_lambda_.1} parent=11 // pred_region
          _
        $region16: #{_lambda_.1} parent=11 // pred_fallthru
          _
        // Predicated region
        $region17: #{_lambda_.1} parent=11 // pred_check
          %p327 = pneg %p115
        $region18: #{_lambda_.1} parent=11 // pred_check_branch
          %329 = sbr.rel (%p327) target = $region20
        $region19: #{_lambda_.1} parent=11 // pred_region
          _
        $region20: #{_lambda_.1} parent=11 // pred_fallthru
          _
        // Predicated region
        $region21: #{_lambda_.1} parent=11 // pred_check
          %p330 = pneg %p136
        $region22: #{_lambda_.1} parent=11 // pred_check_branch
          %332 = sbr.rel (%p330) target = $region24
        $region23: #{_lambda_.1} parent=11 // pred_region
          _
        $region24: #{_lambda_.1} parent=11 // pred_fallthru
          _
        // Predicated region
        $region25: #{_lambda_.1} parent=11 // pred_check
          %p333 = pneg %p157
        $region26: #{_lambda_.1} parent=11 // pred_check_branch
          %335 = sbr.rel (%p333) target = $region28
        $region27: #{_lambda_.1} parent=11 // pred_region
          _
        $region28: #{_lambda_.1} parent=11 // pred_fallthru
          _
        // Predicated region
        $region29: #{_lambda_.1} parent=11 // pred_check
          %p336 = pneg %p178
        $region30: #{_lambda_.1} parent=11 // pred_check_branch
          %338 = sbr.rel (%p336) target = $region32
        $region31: #{_lambda_.1} parent=11 // pred_region
          _
        $region32: #{_lambda_.1} parent=11 // pred_fallthru
          _
        // Predicated region
        $region33: #{_lambda_.1} parent=11 // pred_check
          %p339 = pneg %p199
        $region34: #{_lambda_.1} parent=11 // pred_check_branch
          %341 = sbr.rel (%p339) target = $region36
        $region35: #{_lambda_.1} parent=11 // pred_region
          _
        $region36: #{_lambda_.1} parent=11 // pred_fallthru
          _
        // Predicated region
        $region37: #{_lambda_.1} parent=11 // pred_check
          %p342 = pneg %p220
        $region38: #{_lambda_.1} parent=11 // pred_check_branch
          %344 = sbr.rel (%p342) target = $region40
        $region39: #{_lambda_.1} parent=11 // pred_region
          _
        $region40: #{_lambda_.1} parent=11 // pred_fallthru
          _
        // Predicated region
        $region41: #{_lambda_.1} parent=11 // pred_check
          %p345 = pneg %p241
        $region42: #{_lambda_.1} parent=11 // pred_check_branch
          %347 = sbr.rel (%p345) target = $region44
        $region43: #{_lambda_.1} parent=11 // pred_region
          _
        $region44: #{_lambda_.1} parent=11 // pred_fallthru
          _
        // Predicated region
        $region45: #{_lambda_.1} parent=11 // pred_check
          %p348 = pneg %p262
        $region46: #{_lambda_.1} parent=11 // pred_check_branch
          %350 = sbr.rel (%p348) target = $region48
        $region47: #{_lambda_.1} parent=11 // pred_region
          _
        $region48: #{_lambda_.1} parent=11 // pred_fallthru
          _
        // Predicated region
        $region49: #{_lambda_.1} parent=11 // pred_check
          %p351 = pneg %p283
        $region50: #{_lambda_.1} parent=11 // pred_check_branch
          %353 = sbr.rel (%p351) target = $region52
        $region51: #{_lambda_.1} parent=11 // pred_region
          _
        $region52: #{_lambda_.1} parent=11 // pred_fallthru
          _
      $region12: #{_lambda_.1} parent=5 // pred_fallthru
        _
      %p354 = scmp.lt.s32.totalorder %s21, 2
      // Predicated region
      $region53: #{_lambda_.1} parent=5 // pred_check
        %p355 = pneg %p354
      $region54: #{_lambda_.1} parent=5 // pred_check_branch
        %357 = sbr.rel (%p355) target = $region56
      $region55: #{_lambda_.1} parent=5 // pred_region
        // Predicated region
        $region57: #{_lambda_.1} parent=55 // pred_check
          %p358 = pneg %p41
        $region58: #{_lambda_.1} parent=55 // pred_check_branch
          %360 = sbr.rel (%p358) target = $region60
        $region59: #{_lambda_.1} parent=55 // pred_region
          %p361 = scmp.lt.s32.totalorder %s21, 1
          %s362 = scalar_select %p361, %s21, 1
          %s363 = smul.addr %s362, 4
          %s364 = scalar_lea.vmem %s0, %s363
        $region60: #{_lambda_.1} parent=55 // pred_fallthru
          _
        // Predicated region
        $region61: #{_lambda_.1} parent=55 // pred_check
          %p365 = pneg %p67
        $region62: #{_lambda_.1} parent=55 // pred_check_branch
          %367 = sbr.rel (%p365) target = $region64
        $region63: #{_lambda_.1} parent=55 // pred_region
          %p368 = scmp.lt.s32.totalorder %s21, 1
          %s369 = scalar_select %p368, %s21, 1
          %s370 = scalar_lea.vmem %s1, %s369
        $region64: #{_lambda_.1} parent=55 // pred_fallthru
          _
      $region56: #{_lambda_.1} parent=5 // pred_fallthru
        _
      %p371 = scmp.le.s32.totalorder 1, %s21
      %p372 = scmp.lt.s32.totalorder %s21, 3
      %p373 = pnand %p371, %p372
      %p374 = pneg %p373
      // Predicated region
      $region65: #{_lambda_.1} parent=5 // pred_check
        _
      $region66: #{_lambda_.1} parent=5 // pred_check_branch
        %376 = sbr.rel (%p373) target = $region68
      $region67: #{_lambda_.1} parent=5 // pred_region
        %s377 = ssub.s32 %s21, 1
        %p378 = scmp.lt.s32.totalorder %s26, 1
        %s379 = scalar_select %p378, %s26, 1
        %s380 = smul.addr %s379, 4
        %s381 = scalar_lea.vmem %s0, %s380
        %p382 = pneg %p47
        %p383 = pneg %p44
        %p384 = scmp.lt.s32.totalorder %s26, 1
        %s385 = scalar_select %p384, %s26, 1
        %s386 = scalar_lea.vmem %s1, %s385
        %p387 = pneg %p73
        %p388 = pneg %p70
        %p389 = pneg %p94
        %p390 = pneg %p91
        %p391 = pneg %p115
        %p392 = pneg %p112
        %p393 = pneg %p136
        %p394 = pneg %p133
        %p395 = pneg %p157
        %p396 = pneg %p154
        %p397 = pneg %p178
        %p398 = pneg %p175
        %p399 = pneg %p199
        %p400 = pneg %p196
        %p401 = pneg %p220
        %p402 = pneg %p217
        %p403 = pneg %p241
        %p404 = pneg %p238
        %p405 = pneg %p262
        %p406 = pneg %p259
        %p407 = pneg %p283
        %p408 = pneg %p280
        %p409 = pneg %p309
        %p410 = pneg %p306
        %s411 = sand.u32 %s296, 1
        %s412 = scalar_lea.sflag [#allocation3], %s411
        %s413 = sand.u32 %s296, 1
        %s414 = smul.addr %s413, 4
        %s415 = scalar_lea.vmem [#allocation2], %s414
        %p416 = scmp.lt.s32.totalorder %s26, 1
        %s417 = scalar_select %p416, %s26, 1
        %s418 = smul.addr %s417, 4
        %s419 = scalar_lea.vmem %s0, %s418
        %p420 = scmp.lt.s32.totalorder %s26, 1
        %s421 = scalar_select %p420, %s26, 1
        %s422 = scalar_lea.vmem %s1, %s421
        %v424 = vld [vmem:[%s422] sm:$0x1]
        %v425 = vld [vmem:[%s419] sm:$0xf]
        %v426 = vlaneseq
        %v427 = vand.u32 %v426, 127
        %v428 = vadd.s32 %v427, 4294967292
        %vm429 = vcmp.ge.s32.totalorder %v428, 0
        %vm430 = vcmp.lt.s32.totalorder %v428, 128
        %vm431 = vmand %vm429, %vm430
        %v432 = vsel %vm431, 1, 0
        %v433 = vcvt.s32.f32 %v432
        %v434 = vadd.s32 %v427, 4294967294
        %vm435 = vcmp.ge.s32.totalorder %v434, 0
        %vm436 = vcmp.lt.s32.totalorder %v434, 128
        %vm437 = vmand %vm435, %vm436
        %v438 = vsel %vm437, 1, 0
        %v439 = vcvt.s32.f32 %v438
        %v440 = vadd.s32 %v427, 4294967295
        %vm441 = vcmp.ge.s32.totalorder %v440, 0
        %vm442 = vcmp.lt.s32.totalorder %v440, 128
        %vm443 = vmand %vm441, %vm442
        %v444 = vsel %vm443, 1, 0
        %v445 = vcvt.s32.f32 %v444
        %v446 = vadd.s32 %v427, 1
        %vm447 = vcmp.ge.s32.totalorder %v446, 0
        %vm448 = vcmp.lt.s32.totalorder %v446, 128
        %vm449 = vmand %vm447, %vm448
        %v450 = vsel %vm449, 1, 0
        %v451 = vcvt.s32.f32 %v450
        %v452 = vadd.s32 %v427, 2
        %vm453 = vcmp.ge.s32.totalorder %v452, 0
        %vm454 = vcmp.lt.s32.totalorder %v452, 128
        %vm455 = vmand %vm453, %vm454
        %v456 = vsel %vm455, 1, 0
        %v457 = vcvt.s32.f32 %v456
        %v458 = vadd.s32 %v427, 4
        %vm459 = vcmp.ge.s32.totalorder %v458, 0
        %vm460 = vcmp.lt.s32.totalorder %v458, 128
        %vm461 = vmand %vm459, %vm460
        %v462 = vsel %vm461, 1, 0
        %v463 = vcvt.s32.f32 %v462
        %v464 = vld [vmem:[%s2] sm:$0xf]
        %v465 = vld [vmem:[%s2 + $0x4] sm:$0xf]
        %v466 = vld [vmem:[%s2 + $0x8] sm:$0xf]
        %v467 = vld [vmem:[%s2 + $0xc] sm:$0xf]
        %v468 = vpack.c.bf16 %v425, %v425
        %v469 = vld [vmem:[%s3] sm:$0xff]
        %v470 = vld [vmem:[%s3 + $0x8] sm:$0xff]
        %v471 = vld [vmem:[%s3 + $0x10] sm:$0xff]
        %v472 = vld [vmem:[%s3 + $0x18] sm:$0xff]
        %474 = vset.pattern.permute.xlu0 0
        %475 = vperm.xlu0 %474, %v469
        %v476 = vpop.permute.xlu0 %475
        %479 = vset.pattern.permute.xlu0 0
        %480 = vperm.xlu0 %479, %v470
        %v481 = vpop.permute.xlu0 %480
        %484 = vset.pattern.permute.xlu0 0
        %485 = vperm.xlu0 %484, %v471
        %v486 = vpop.permute.xlu0 %485
        %489 = vset.pattern.permute.xlu0 0
        %490 = vperm.xlu0 %489, %v472
        %v491 = vpop.permute.xlu0 %490
        %v497 = vunpack.c.l.b16 %v464
        %v498 = vunpack.c.l.b16 %v465
        %v499 = vunpack.c.l.b16 %v466
        %v500 = vunpack.c.l.b16 %v467
        %v501 = vpack.c.b16 %v498, %v497
        %v502 = vpack.c.b16 %v500, %v499
        %vm503 = vcmask 15360
        %v505 = vsel %vm503, %v501, 0
        %v508 = vsel %vm503, %v502, 0
        %vm510 = vcmask 1040384
        %v512 = vsel %vm510, %v468, 0
        %514 = vmatprep.subr.bf16.mxu0 0
        %515 = vmatpush1.bf16.msra.mxu0 %v512
        %516 = vmatprep.subr.bf16.mxu0 0
        %517 = vmatpush1.bf16.msra.mxu0 0
        %518 = vmatprep.subr.bf16.mxu0 0
        %519 = vmatpush1.bf16.msra.mxu0 0
        %520 = vmatprep.subr.bf16.mxu0 0
        %521 = vmatpush1.bf16.msra.mxu0 0
        %522 = vmatprep.subr.bf16.mxu0 0
        %523 = vmatpush1.bf16.msra.mxu0 0
        %524 = vmatprep.subr.bf16.mxu0 0
        %525 = vmatpush1.bf16.msra.mxu0 0
        %526 = vmatprep.subr.bf16.mxu0 0
        %527 = vmatpush1.bf16.msra.mxu0 0
        %528 = vmatprep.subr.bf16.mxu0 0
        %529 = vmatpush1.bf16.msra.mxu0 0
        %530 = vmatprep.subr.bf16.mxu0 0
        %531 = vmatpush1.bf16.msra.mxu0 0
        %532 = vmatprep.subr.bf16.mxu0 0
        %533 = vmatpush1.bf16.msra.mxu0 0
        %534 = vmatprep.subr.bf16.mxu0 0
        %535 = vmatpush1.bf16.msra.mxu0 0
        %536 = vmatprep.subr.bf16.mxu0 0
        %537 = vmatpush1.bf16.msra.mxu0 0
        %538 = vmatprep.subr.bf16.mxu0 0
        %539 = vmatpush1.bf16.msra.mxu0 0
        %540 = vmatprep.subr.bf16.mxu0 0
        %541 = vmatpush1.bf16.msra.mxu0 0
        %542 = vmatprep.subr.bf16.mxu0 0
        %543 = vmatpush1.bf16.msra.mxu0 0
        %544 = vmatprep.subr.bf16.mxu0 0
        %545 = vmatpush1.bf16.msra.mxu0 0
        %546 = vmatprep.mubr.bf16.mxu0 0
        %547 = vmatmul.mubr.bf16.gmra.mrb[0].mxu0 %v505
        %v548 = vpop.f32.mrb[0].mxu0
        %v549 = vadd.f32 %v476, %v548
        %v550 = vpop.f32.mrb[0].mxu0
        %v551 = vpop.f32.mrb[0].mxu0
        %v552 = vadd.f32 %v481, %v551
        %v553 = vpop.f32.mrb[0].mxu0
        %554 = vmatprep.mubr.bf16.mxu0 0
        %555 = vmatmul.mubr.bf16.gmra.mrb[0].mxu0 %v508
        %v556 = vpop.f32.mrb[0].mxu0
        %v557 = vadd.f32 %v486, %v556
        %v558 = vpop.f32.mrb[0].mxu0
        %v559 = vpop.f32.mrb[0].mxu0
        %v560 = vadd.f32 %v491, %v559
        %v561 = vpop.f32.mrb[0].mxu0
        %562 = vdwg.mxu0
        %v564 = vlaneseq
        %v565 = vshrl.u32 %v564, 7
        %v566 = vsub.s32 0, %v565
        %v567 = vrot.slane %v424, %v566
        %v569 = vmul.f32 %v549, %v567
        %v570 = vmul.f32 %v552, %v567
        %v571 = vmul.f32 %v557, %v567
        %v572 = vmul.f32 %v560, %v567
        %v573 = vld [vmem:[%s5] sm:$0xff]
        %v574 = vld [vmem:[%s5 + $0x8] sm:$0xff]
        %v575 = vld [vmem:[%s5 + $0x10] sm:$0xff]
        %v576 = vld [vmem:[%s5 + $0x18] sm:$0xff]
        %v577 = vld [vmem:[%s5 + $0x20] sm:$0xff]
        %v578 = vld [vmem:[%s5 + $0x28] sm:$0xff]
        %v579 = vld [vmem:[%s5 + $0x30] sm:$0xff]
        %v580 = vld [vmem:[%s5 + $0x38] sm:$0xff]
        %v581 = vld [vmem:[%s4] sm:$0xf]
        %v582 = vld [vmem:[%s4 + $0x4] sm:$0xf]
        %v583 = vld [vmem:[%s4 + $0x8] sm:$0xf]
        %v584 = vld [vmem:[%s4 + $0xc] sm:$0xf]
        %v585 = vld [vmem:[%s4 + $0x10] sm:$0xf]
        %v586 = vld [vmem:[%s4 + $0x14] sm:$0xf]
        %v587 = vld [vmem:[%s4 + $0x18] sm:$0xf]
        %v588 = vld [vmem:[%s4 + $0x1c] sm:$0xf]
        %589 = vrot.lane.b32.xlu0 %v569, 1
        %v590 = vpop.permute.xlu0 %589
        %591 = vrot.lane.b32.xlu0 %v570, 1
        %v592 = vpop.permute.xlu0 %591
        %593 = vrot.lane.b32.xlu0 %v571, 1
        %v594 = vpop.permute.xlu0 %593
        %595 = vrot.lane.b32.xlu0 %v572, 1
        %v596 = vpop.permute.xlu0 %595
        %v597 = vmul.f32 %v590, %v445
        %v598 = vmul.f32 %v592, %v445
        %v599 = vmul.f32 %v594, %v445
        %v600 = vmul.f32 %v596, %v445
        %v601 = vpack.c.bf16 %v598, %v597
        %v602 = vpack.c.bf16 %v600, %v599
        %v611 = vunpack.c.l.b16 %v581
        %v612 = vunpack.c.l.b16 %v582
        %v613 = vunpack.c.l.b16 %v583
        %v614 = vunpack.c.l.b16 %v584
        %v615 = vunpack.c.l.b16 %v585
        %v616 = vunpack.c.l.b16 %v586
        %v617 = vunpack.c.l.b16 %v587
        %v618 = vunpack.c.l.b16 %v588
        %v619 = vpack.c.b16 %v612, %v611
        %v620 = vpack.c.b16 %v614, %v613
        %v621 = vpack.c.b16 %v616, %v615
        %v622 = vpack.c.b16 %v618, %v617
        %vm623 = vcmask 261120
        %v625 = vsel %vm623, %v619, 0
        %v628 = vsel %vm623, %v620, 0
        %v631 = vsel %vm623, %v621, 0
        %v634 = vsel %vm623, %v622, 0
        %636 = vmatprep.subr.bf16.mxu0 0
        %637 = vmatpush1.bf16.msra.mxu0 %v601
        %638 = vmatprep.subr.bf16.mxu0 0
        %639 = vmatpush1.bf16.msra.mxu0 %v602
        %640 = vmatprep.subr.bf16.mxu0 0
        %641 = vmatpush1.bf16.msra.mxu0 0
        %642 = vmatprep.subr.bf16.mxu0 0
        %643 = vmatpush1.bf16.msra.mxu0 0
        %644 = vmatprep.subr.bf16.mxu0 0
        %645 = vmatpush1.bf16.msra.mxu0 0
        %646 = vmatprep.subr.bf16.mxu0 0
        %647 = vmatpush1.bf16.msra.mxu0 0
        %648 = vmatprep.subr.bf16.mxu0 0
        %649 = vmatpush1.bf16.msra.mxu0 0
        %650 = vmatprep.subr.bf16.mxu0 0
        %651 = vmatpush1.bf16.msra.mxu0 0
        %652 = vmatprep.subr.bf16.mxu0 0
        %653 = vmatpush1.bf16.msra.mxu0 0
        %654 = vmatprep.subr.bf16.mxu0 0
        %655 = vmatpush1.bf16.msra.mxu0 0
        %656 = vmatprep.subr.bf16.mxu0 0
        %657 = vmatpush1.bf16.msra.mxu0 0
        %658 = vmatprep.subr.bf16.mxu0 0
        %659 = vmatpush1.bf16.msra.mxu0 0
        %660 = vmatprep.subr.bf16.mxu0 0
        %661 = vmatpush1.bf16.msra.mxu0 0
        %662 = vmatprep.subr.bf16.mxu0 0
        %663 = vmatpush1.bf16.msra.mxu0 0
        %664 = vmatprep.subr.bf16.mxu0 0
        %665 = vmatpush1.bf16.msra.mxu0 0
        %666 = vmatprep.subr.bf16.mxu0 0
        %667 = vmatpush1.bf16.msra.mxu0 0
        %668 = vmatprep.mubr.bf16.mxu0 0
        %669 = vmatmul.mubr.bf16.gmra.mrb[0].mxu0 %v625
        %v670 = vpop.f32.mrb[0].mxu0
        %v671 = vadd.f32 0.0, %v670
        %v672 = vpop.f32.mrb[0].mxu0
        %v673 = vpop.f32.mrb[0].mxu0
        %v674 = vadd.f32 0.0, %v673
        %v675 = vpop.f32.mrb[0].mxu0
        %676 = vmatprep.mubr.bf16.mxu0 0
        %677 = vmatmul.mubr.bf16.gmra.mrb[0].mxu0 %v628
        %v678 = vpop.f32.mrb[0].mxu0
        %v679 = vadd.f32 0.0, %v678
        %v680 = vpop.f32.mrb[0].mxu0
        %v681 = vpop.f32.mrb[0].mxu0
        %v682 = vadd.f32 0.0, %v681
        %v683 = vpop.f32.mrb[0].mxu0
        %684 = vmatprep.mubr.bf16.mxu0 0
        %685 = vmatmul.mubr.bf16.gmra.mrb[0].mxu0 %v631
        %v686 = vpop.f32.mrb[0].mxu0
        %v687 = vadd.f32 0.0, %v686
        %v688 = vpop.f32.mrb[0].mxu0
        %v689 = vpop.f32.mrb[0].mxu0
        %v690 = vadd.f32 0.0, %v689
        %v691 = vpop.f32.mrb[0].mxu0
        %692 = vmatprep.mubr.bf16.mxu0 0
        %693 = vmatmul.mubr.bf16.gmra.mrb[0].mxu0 %v634
        %v694 = vpop.f32.mrb[0].mxu0
        %v695 = vadd.f32 0.0, %v694
        %v696 = vpop.f32.mrb[0].mxu0
        %v697 = vpop.f32.mrb[0].mxu0
        %v698 = vadd.f32 0.0, %v697
        %v699 = vpop.f32.mrb[0].mxu0
        %700 = vdwg.mxu0
        %702 = vset.pattern.permute.xlu0 0
        %703 = vperm.xlu0 %702, %v573
        %v704 = vpop.permute.xlu0 %703
        %707 = vset.pattern.permute.xlu0 0
        %708 = vperm.xlu0 %707, %v574
        %v709 = vpop.permute.xlu0 %708
        %712 = vset.pattern.permute.xlu0 0
        %713 = vperm.xlu0 %712, %v575
        %v714 = vpop.permute.xlu0 %713
        %717 = vset.pattern.permute.xlu0 0
        %718 = vperm.xlu0 %717, %v576
        %v719 = vpop.permute.xlu0 %718
        %722 = vset.pattern.permute.xlu0 0
        %723 = vperm.xlu0 %722, %v577
        %v724 = vpop.permute.xlu0 %723
        %727 = vset.pattern.permute.xlu0 0
        %728 = vperm.xlu0 %727, %v578
        %v729 = vpop.permute.xlu0 %728
        %732 = vset.pattern.permute.xlu0 0
        %733 = vperm.xlu0 %732, %v579
        %v734 = vpop.permute.xlu0 %733
        %737 = vset.pattern.permute.xlu0 0
        %738 = vperm.xlu0 %737, %v580
        %v739 = vpop.permute.xlu0 %738
        %v741 = vadd.f32 %v704, %v671
        %v742 = vadd.f32 %v709, %v674
        %v743 = vadd.f32 %v714, %v679
        %v744 = vadd.f32 %v719, %v682
        %v745 = vadd.f32 %v724, %v687
        %v746 = vadd.f32 %v729, %v690
        %v747 = vadd.f32 %v734, %v695
        %v748 = vadd.f32 %v739, %v698
        %s749 = scalar_lea.vmem %s4, 32
        %v750 = vld [vmem:[%s749] sm:$0xf]
        %v751 = vld [vmem:[%s749 + $0x4] sm:$0xf]
        %v752 = vld [vmem:[%s749 + $0x8] sm:$0xf]
        %v753 = vld [vmem:[%s749 + $0xc] sm:$0xf]
        %v754 = vld [vmem:[%s749 + $0x10] sm:$0xf]
        %v755 = vld [vmem:[%s749 + $0x14] sm:$0xf]
        %v756 = vld [vmem:[%s749 + $0x18] sm:$0xf]
        %v757 = vld [vmem:[%s749 + $0x1c] sm:$0xf]
        %v758 = vpack.c.bf16 %v570, %v569
        %v759 = vpack.c.bf16 %v572, %v571
        %v768 = vunpack.c.l.b16 %v750
        %v769 = vunpack.c.l.b16 %v751
        %v770 = vunpack.c.l.b16 %v752
        %v771 = vunpack.c.l.b16 %v753
        %v772 = vunpack.c.l.b16 %v754
        %v773 = vunpack.c.l.b16 %v755
        %v774 = vunpack.c.l.b16 %v756
        %v775 = vunpack.c.l.b16 %v757
        %v776 = vpack.c.b16 %v769, %v768
        %v777 = vpack.c.b16 %v771, %v770
        %v778 = vpack.c.b16 %v773, %v772
        %v779 = vpack.c.b16 %v775, %v774
        %v781 = vsel %vm623, %v776, 0
        %v784 = vsel %vm623, %v777, 0
        %v787 = vsel %vm623, %v778, 0
        %v790 = vsel %vm623, %v779, 0
        %792 = vmatprep.subr.bf16.mxu0 0
        %793 = vmatpush1.bf16.msra.mxu0 %v758
        %794 = vmatprep.subr.bf16.mxu0 0
        %795 = vmatpush1.bf16.msra.mxu0 %v759
        %796 = vmatprep.subr.bf16.mxu0 0
        %797 = vmatpush1.bf16.msra.mxu0 0
        %798 = vmatprep.subr.bf16.mxu0 0
        %799 = vmatpush1.bf16.msra.mxu0 0
        %800 = vmatprep.subr.bf16.mxu0 0
        %801 = vmatpush1.bf16.msra.mxu0 0
        %802 = vmatprep.subr.bf16.mxu0 0
        %803 = vmatpush1.bf16.msra.mxu0 0
        %804 = vmatprep.subr.bf16.mxu0 0
        %805 = vmatpush1.bf16.msra.mxu0 0
        %806 = vmatprep.subr.bf16.mxu0 0
        %807 = vmatpush1.bf16.msra.mxu0 0
        %808 = vmatprep.subr.bf16.mxu0 0
        %809 = vmatpush1.bf16.msra.mxu0 0
        %810 = vmatprep.subr.bf16.mxu0 0
        %811 = vmatpush1.bf16.msra.mxu0 0
        %812 = vmatprep.subr.bf16.mxu0 0
        %813 = vmatpush1.bf16.msra.mxu0 0
        %814 = vmatprep.subr.bf16.mxu0 0
        %815 = vmatpush1.bf16.msra.mxu0 0
        %816 = vmatprep.subr.bf16.mxu0 0
        %817 = vmatpush1.bf16.msra.mxu0 0
        %818 = vmatprep.subr.bf16.mxu0 0
        %819 = vmatpush1.bf16.msra.mxu0 0
        %820 = vmatprep.subr.bf16.mxu0 0
        %821 = vmatpush1.bf16.msra.mxu0 0
        %822 = vmatprep.subr.bf16.mxu0 0
        %823 = vmatpush1.bf16.msra.mxu0 0
        %824 = vmatprep.mubr.bf16.mxu0 0
        %825 = vmatmul.mubr.bf16.gmra.mrb[0].mxu0 %v781
        %v826 = vpop.f32.mrb[0].mxu0
        %v827 = vadd.f32 0.0, %v826
        %v828 = vpop.f32.mrb[0].mxu0
        %v829 = vpop.f32.mrb[0].mxu0
        %v830 = vadd.f32 0.0, %v829
        %v831 = vpop.f32.mrb[0].mxu0
        %832 = vmatprep.mubr.bf16.mxu0 0
        %833 = vmatmul.mubr.bf16.gmra.mrb[0].mxu0 %v784
        %v834 = vpop.f32.mrb[0].mxu0
        %v835 = vadd.f32 0.0, %v834
        %v836 = vpop.f32.mrb[0].mxu0
        %v837 = vpop.f32.mrb[0].mxu0
        %v838 = vadd.f32 0.0, %v837
        %v839 = vpop.f32.mrb[0].mxu0
        %840 = vmatprep.mubr.bf16.mxu0 0
        %841 = vmatmul.mubr.bf16.gmra.mrb[0].mxu0 %v787
        %v842 = vpop.f32.mrb[0].mxu0
        %v843 = vadd.f32 0.0, %v842
        %v844 = vpop.f32.mrb[0].mxu0
        %v845 = vpop.f32.mrb[0].mxu0
        %v846 = vadd.f32 0.0, %v845
        %v847 = vpop.f32.mrb[0].mxu0
        %848 = vmatprep.mubr.bf16.mxu0 0
        %849 = vmatmul.mubr.bf16.gmra.mrb[0].mxu0 %v790
        %v850 = vpop.f32.mrb[0].mxu0
        %v851 = vadd.f32 0.0, %v850
        %v852 = vpop.f32.mrb[0].mxu0
        %v853 = vpop.f32.mrb[0].mxu0
        %v854 = vadd.f32 0.0, %v853
        %v855 = vpop.f32.mrb[0].mxu0
        %856 = vdwg.mxu0
        %v857 = vadd.f32 %v741, %v827
        %v858 = vadd.f32 %v742, %v830
        %v859 = vadd.f32 %v743, %v835
        %v860 = vadd.f32 %v744, %v838
        %v861 = vadd.f32 %v745, %v843
        %v862 = vadd.f32 %v746, %v846
        %v863 = vadd.f32 %v747, %v851
        %v864 = vadd.f32 %v748, %v854
        %s865 = scalar_lea.vmem %s4, 64
        %v866 = vld [vmem:[%s865] sm:$0xf]
        %v867 = vld [vmem:[%s865 + $0x4] sm:$0xf]
        %v868 = vld [vmem:[%s865 + $0x8] sm:$0xf]
        %v869 = vld [vmem:[%s865 + $0xc] sm:$0xf]
        %v870 = vld [vmem:[%s865 + $0x10] sm:$0xf]
        %v871 = vld [vmem:[%s865 + $0x14] sm:$0xf]
        %v872 = vld [vmem:[%s865 + $0x18] sm:$0xf]
        %v873 = vld [vmem:[%s865 + $0x1c] sm:$0xf]
        %874 = vrot.lane.b32.xlu0 %v569, 127
        %v875 = vpop.permute.xlu0 %874
        %876 = vrot.lane.b32.xlu0 %v570, 127
        %v877 = vpop.permute.xlu0 %876
        %878 = vrot.lane.b32.xlu0 %v571, 127
        %v879 = vpop.permute.xlu0 %878
        %880 = vrot.lane.b32.xlu0 %v572, 127
        %v881 = vpop.permute.xlu0 %880
        %v882 = vmul.f32 %v875, %v451
        %v883 = vmul.f32 %v877, %v451
        %v884 = vmul.f32 %v879, %v451
        %v885 = vmul.f32 %v881, %v451
        %v886 = vpack.c.bf16 %v883, %v882
        %v887 = vpack.c.bf16 %v885, %v884
        %v896 = vunpack.c.l.b16 %v866
        %v897 = vunpack.c.l.b16 %v867
        %v898 = vunpack.c.l.b16 %v868
        %v899 = vunpack.c.l.b16 %v869
        %v900 = vunpack.c.l.b16 %v870
        %v901 = vunpack.c.l.b16 %v871
        %v902 = vunpack.c.l.b16 %v872
        %v903 = vunpack.c.l.b16 %v873
        %v904 = vpack.c.b16 %v897, %v896
        %v905 = vpack.c.b16 %v899, %v898
        %v906 = vpack.c.b16 %v901, %v900
        %v907 = vpack.c.b16 %v903, %v902
        %v909 = vsel %vm623, %v904, 0
        %v912 = vsel %vm623, %v905, 0
        %v915 = vsel %vm623, %v906, 0
        %v918 = vsel %vm623, %v907, 0
        %920 = vmatprep.subr.bf16.mxu0 0
        %921 = vmatpush1.bf16.msra.mxu0 %v886
        %922 = vmatprep.subr.bf16.mxu0 0
        %923 = vmatpush1.bf16.msra.mxu0 %v887
        %924 = vmatprep.subr.bf16.mxu0 0
        %925 = vmatpush1.bf16.msra.mxu0 0
        %926 = vmatprep.subr.bf16.mxu0 0
        %927 = vmatpush1.bf16.msra.mxu0 0
        %928 = vmatprep.subr.bf16.mxu0 0
        %929 = vmatpush1.bf16.msra.mxu0 0
        %930 = vmatprep.subr.bf16.mxu0 0
        %931 = vmatpush1.bf16.msra.mxu0 0
        %932 = vmatprep.subr.bf16.mxu0 0
        %933 = vmatpush1.bf16.msra.mxu0 0
        %934 = vmatprep.subr.bf16.mxu0 0
        %935 = vmatpush1.bf16.msra.mxu0 0
        %936 = vmatprep.subr.bf16.mxu0 0
        %937 = vmatpush1.bf16.msra.mxu0 0
        %938 = vmatprep.subr.bf16.mxu0 0
        %939 = vmatpush1.bf16.msra.mxu0 0
        %940 = vmatprep.subr.bf16.mxu0 0
        %941 = vmatpush1.bf16.msra.mxu0 0
        %942 = vmatprep.subr.bf16.mxu0 0
        %943 = vmatpush1.bf16.msra.mxu0 0
        %944 = vmatprep.subr.bf16.mxu0 0
        %945 = vmatpush1.bf16.msra.mxu0 0
        %946 = vmatprep.subr.bf16.mxu0 0
        %947 = vmatpush1.bf16.msra.mxu0 0
        %948 = vmatprep.subr.bf16.mxu0 0
        %949 = vmatpush1.bf16.msra.mxu0 0
        %950 = vmatprep.subr.bf16.mxu0 0
        %951 = vmatpush1.bf16.msra.mxu0 0
        %952 = vmatprep.mubr.bf16.mxu0 0
        %953 = vmatmul.mubr.bf16.gmra.mrb[0].mxu0 %v909
        %v954 = vpop.f32.mrb[0].mxu0
        %v955 = vadd.f32 0.0, %v954
        %v956 = vpop.f32.mrb[0].mxu0
        %v957 = vpop.f32.mrb[0].mxu0
        %v958 = vadd.f32 0.0, %v957
        %v959 = vpop.f32.mrb[0].mxu0
        %960 = vmatprep.mubr.bf16.mxu0 0
        %961 = vmatmul.mubr.bf16.gmra.mrb[0].mxu0 %v912
        %v962 = vpop.f32.mrb[0].mxu0
        %v963 = vadd.f32 0.0, %v962
        %v964 = vpop.f32.mrb[0].mxu0
        %v965 = vpop.f32.mrb[0].mxu0
        %v966 = vadd.f32 0.0, %v965
        %v967 = vpop.f32.mrb[0].mxu0
        %968 = vmatprep.mubr.bf16.mxu0 0
        %969 = vmatmul.mubr.bf16.gmra.mrb[0].mxu0 %v915
        %v970 = vpop.f32.mrb[0].mxu0
        %v971 = vadd.f32 0.0, %v970
        %v972 = vpop.f32.mrb[0].mxu0
        %v973 = vpop.f32.mrb[0].mxu0
        %v974 = vadd.f32 0.0, %v973
        %v975 = vpop.f32.mrb[0].mxu0
        %976 = vmatprep.mubr.bf16.mxu0 0
        %977 = vmatmul.mubr.bf16.gmra.mrb[0].mxu0 %v918
        %v978 = vpop.f32.mrb[0].mxu0
        %v979 = vadd.f32 0.0, %v978
        %v980 = vpop.f32.mrb[0].mxu0
        %v981 = vpop.f32.mrb[0].mxu0
        %v982 = vadd.f32 0.0, %v981
        %v983 = vpop.f32.mrb[0].mxu0
        %984 = vdwg.mxu0
        %v985 = vadd.f32 %v857, %v955
        %v986 = vadd.f32 %v858, %v958
        %v987 = vadd.f32 %v859, %v963
        %v988 = vadd.f32 %v860, %v966
        %v989 = vadd.f32 %v861, %v971
        %v990 = vadd.f32 %v862, %v974
        %v991 = vadd.f32 %v863, %v979
        %v992 = vadd.f32 %v864, %v982
        %v993 = vtanh.pop %v985
        %v994 = vtanh.pop %v986
        %v995 = vtanh.pop %v987
        %v996 = vtanh.pop %v988
        %v997 = vxor.u32 %v989, 2147483648
        %v998 = vxor.u32 %v990, 2147483648
        %v999 = vxor.u32 %v991, 2147483648
        %v1000 = vxor.u32 %v992, 2147483648
        %v1001 = vmul.f32 %v997, 1.442695
        %v1002 = vpow.pop %v1001
        %v1003 = vmul.f32 %v998, 1.442695
        %v1004 = vpow.pop %v1003
        %v1005 = vmul.f32 %v999, 1.442695
        %v1006 = vpow.pop %v1005
        %v1007 = vmul.f32 %v1000, 1.442695
        %v1008 = vpow.pop %v1007
        %v1009 = vadd.f32 %v1002, 1.0
        %v1010 = vadd.f32 %v1004, 1.0
        %v1011 = vadd.f32 %v1006, 1.0
        %v1012 = vadd.f32 %v1008, 1.0
        %v1013 = vrcp.pop %v1009
        %v1014 = vmul.f32 1.0, %v1013
        %v1015 = vrcp.pop %v1010
        %v1016 = vmul.f32 1.0, %v1015
        %v1017 = vrcp.pop %v1011
        %v1018 = vmul.f32 1.0, %v1017
        %v1019 = vrcp.pop %v1012
        %v1020 = vmul.f32 1.0, %v1019
        %v1021 = vmul.f32 %v993, %v1014
        %v1022 = vmul.f32 %v994, %v1016
        %v1023 = vmul.f32 %v995, %v1018
        %v1024 = vmul.f32 %v996, %v1020
        %v1025 = vld [vmem:[%s6] sm:$0xf]
        %v1026 = vld [vmem:[%s6 + $0x4] sm:$0xf]
        %v1027 = vld [vmem:[%s6 + $0x8] sm:$0xf]
        %v1028 = vld [vmem:[%s6 + $0xc] sm:$0xf]
        %v1029 = vld [vmem:[%s6 + $0x10] sm:$0xf]
        %v1030 = vld [vmem:[%s6 + $0x14] sm:$0xf]
        %v1031 = vld [vmem:[%s6 + $0x18] sm:$0xf]
        %v1032 = vld [vmem:[%s6 + $0x1c] sm:$0xf]
        %v1033 = vpack.c.bf16 %v1022, %v1021
        %v1034 = vpack.c.bf16 %v1024, %v1023
        %v1035 = vld [vmem:[%s7] sm:$0xff]
        %v1036 = vld [vmem:[%s7 + $0x8] sm:$0xff]
        %v1037 = vld [vmem:[%s7 + $0x10] sm:$0xff]
        %v1038 = vld [vmem:[%s7 + $0x18] sm:$0xff]
        %v1039 = vld [vmem:[%s7 + $0x20] sm:$0xff]
        %v1040 = vld [vmem:[%s7 + $0x28] sm:$0xff]
        %v1041 = vld [vmem:[%s7 + $0x30] sm:$0xff]
        %v1042 = vld [vmem:[%s7 + $0x38] sm:$0xff]
        %1044 = vset.pattern.permute.xlu0 0
        %1045 = vperm.xlu0 %1044, %v1035
        %v1046 = vpop.permute.xlu0 %1045
        %1049 = vset.pattern.permute.xlu0 0
        %1050 = vperm.xlu0 %1049, %v1036
        %v1051 = vpop.permute.xlu0 %1050
        %1054 = vset.pattern.permute.xlu0 0
        %1055 = vperm.xlu0 %1054, %v1037
        %v1056 = vpop.permute.xlu0 %1055
        %1059 = vset.pattern.permute.xlu0 0
        %1060 = vperm.xlu0 %1059, %v1038
        %v1061 = vpop.permute.xlu0 %1060
        %1064 = vset.pattern.permute.xlu0 0
        %1065 = vperm.xlu0 %1064, %v1039
        %v1066 = vpop.permute.xlu0 %1065
        %1069 = vset.pattern.permute.xlu0 0
        %1070 = vperm.xlu0 %1069, %v1040
        %v1071 = vpop.permute.xlu0 %1070
        %1074 = vset.pattern.permute.xlu0 0
        %1075 = vperm.xlu0 %1074, %v1041
        %v1076 = vpop.permute.xlu0 %1075
        %1079 = vset.pattern.permute.xlu0 0
        %1080 = vperm.xlu0 %1079, %v1042
        %v1081 = vpop.permute.xlu0 %1080
        %v1091 = vunpack.c.l.b16 %v1025
        %v1092 = vunpack.c.l.b16 %v1026
        %v1093 = vunpack.c.l.b16 %v1027
        %v1094 = vunpack.c.l.b16 %v1028
        %v1095 = vunpack.c.l.b16 %v1029
        %v1096 = vunpack.c.l.b16 %v1030
        %v1097 = vunpack.c.l.b16 %v1031
        %v1098 = vunpack.c.l.b16 %v1032
        %v1099 = vpack.c.b16 %v1092, %v1091
        %v1100 = vpack.c.b16 %v1094, %v1093
        %v1101 = vpack.c.b16 %v1096, %v1095
        %v1102 = vpack.c.b16 %v1098, %v1097
        %v1104 = vsel %vm623, %v1099, 0
        %v1107 = vsel %vm623, %v1100, 0
        %v1110 = vsel %vm623, %v1101, 0
        %v1113 = vsel %vm623, %v1102, 0
        %1115 = vmatprep.subr.bf16.mxu0 0
        %1116 = vmatpush1.bf16.msra.mxu0 %v1033
        %1117 = vmatprep.subr.bf16.mxu0 0
        %1118 = vmatpush1.bf16.msra.mxu0 %v1034
        %1119 = vmatprep.subr.bf16.mxu0 0
        %1120 = vmatpush1.bf16.msra.mxu0 0
        %1121 = vmatprep.subr.bf16.mxu0 0
        %1122 = vmatpush1.bf16.msra.mxu0 0
        %1123 = vmatprep.subr.bf16.mxu0 0
        %1124 = vmatpush1.bf16.msra.mxu0 0
        %1125 = vmatprep.subr.bf16.mxu0 0
        %1126 = vmatpush1.bf16.msra.mxu0 0
        %1127 = vmatprep.subr.bf16.mxu0 0
        %1128 = vmatpush1.bf16.msra.mxu0 0
        %1129 = vmatprep.subr.bf16.mxu0 0
        %1130 = vmatpush1.bf16.msra.mxu0 0
        %1131 = vmatprep.subr.bf16.mxu0 0
        %1132 = vmatpush1.bf16.msra.mxu0 0
        %1133 = vmatprep.subr.bf16.mxu0 0
        %1134 = vmatpush1.bf16.msra.mxu0 0
        %1135 = vmatprep.subr.bf16.mxu0 0
        %1136 = vmatpush1.bf16.msra.mxu0 0
        %1137 = vmatprep.subr.bf16.mxu0 0
        %1138 = vmatpush1.bf16.msra.mxu0 0
        %1139 = vmatprep.subr.bf16.mxu0 0
        %1140 = vmatpush1.bf16.msra.mxu0 0
        %1141 = vmatprep.subr.bf16.mxu0 0
        %1142 = vmatpush1.bf16.msra.mxu0 0
        %1143 = vmatprep.subr.bf16.mxu0 0
        %1144 = vmatpush1.bf16.msra.mxu0 0
        %1145 = vmatprep.subr.bf16.mxu0 0
        %1146 = vmatpush1.bf16.msra.mxu0 0
        %1147 = vmatprep.mubr.bf16.mxu0 0
        %1148 = vmatmul.mubr.bf16.gmra.mrb[0].mxu0 %v1104
        %v1149 = vpop.f32.mrb[0].mxu0
        %v1150 = vadd.f32 %v1046, %v1149
        %v1151 = vpop.f32.mrb[0].mxu0
        %v1152 = vpop.f32.mrb[0].mxu0
        %v1153 = vadd.f32 %v1051, %v1152
        %v1154 = vpop.f32.mrb[0].mxu0
        %1155 = vmatprep.mubr.bf16.mxu0 0
        %1156 = vmatmul.mubr.bf16.gmra.mrb[0].mxu0 %v1107
        %v1157 = vpop.f32.mrb[0].mxu0
        %v1158 = vadd.f32 %v1056, %v1157
        %v1159 = vpop.f32.mrb[0].mxu0
        %v1160 = vpop.f32.mrb[0].mxu0
        %v1161 = vadd.f32 %v1061, %v1160
        %v1162 = vpop.f32.mrb[0].mxu0
        %1163 = vmatprep.mubr.bf16.mxu0 0
        %1164 = vmatmul.mubr.bf16.gmra.mrb[0].mxu0 %v1110
        %v1165 = vpop.f32.mrb[0].mxu0
        %v1166 = vadd.f32 %v1066, %v1165
        %v1167 = vpop.f32.mrb[0].mxu0
        %v1168 = vpop.f32.mrb[0].mxu0
        %v1169 = vadd.f32 %v1071, %v1168
        %v1170 = vpop.f32.mrb[0].mxu0
        %1171 = vmatprep.mubr.bf16.mxu0 0
        %1172 = vmatmul.mubr.bf16.gmra.mrb[0].mxu0 %v1113
        %v1173 = vpop.f32.mrb[0].mxu0
        %v1174 = vadd.f32 %v1076, %v1173
        %v1175 = vpop.f32.mrb[0].mxu0
        %v1176 = vpop.f32.mrb[0].mxu0
        %v1177 = vadd.f32 %v1081, %v1176
        %v1178 = vpop.f32.mrb[0].mxu0
        %1179 = vdwg.mxu0
        %v1180 = vadd.f32 %v569, %v1150
        %v1181 = vadd.f32 %v570, %v1153
        %v1182 = vadd.f32 %v571, %v1158
        %v1183 = vadd.f32 %v572, %v1161
        %v1184 = vmul.f32 %v1180, %v567
        %v1185 = vmul.f32 %v1181, %v567
        %v1186 = vmul.f32 %v1182, %v567
        %v1187 = vmul.f32 %v1183, %v567
        %v1188 = vadd.f32 %v1166, 0.0
        %v1189 = vadd.f32 %v1169, 0.0
        %v1190 = vadd.f32 %v1174, 0.0
        %v1191 = vadd.f32 %v1177, 0.0
        %s1192 = scalar_lea.vmem %s5, 64
        %v1193 = vld [vmem:[%s1192] sm:$0xff]
        %v1194 = vld [vmem:[%s1192 + $0x8] sm:$0xff]
        %v1195 = vld [vmem:[%s1192 + $0x10] sm:$0xff]
        %v1196 = vld [vmem:[%s1192 + $0x18] sm:$0xff]
        %v1197 = vld [vmem:[%s1192 + $0x20] sm:$0xff]
        %v1198 = vld [vmem:[%s1192 + $0x28] sm:$0xff]
        %v1199 = vld [vmem:[%s1192 + $0x30] sm:$0xff]
        %v1200 = vld [vmem:[%s1192 + $0x38] sm:$0xff]
        %s1201 = scalar_lea.vmem %s4, 96
        %v1202 = vld [vmem:[%s1201] sm:$0xf]
        %v1203 = vld [vmem:[%s1201 + $0x4] sm:$0xf]
        %v1204 = vld [vmem:[%s1201 + $0x8] sm:$0xf]
        %v1205 = vld [vmem:[%s1201 + $0xc] sm:$0xf]
        %v1206 = vld [vmem:[%s1201 + $0x10] sm:$0xf]
        %v1207 = vld [vmem:[%s1201 + $0x14] sm:$0xf]
        %v1208 = vld [vmem:[%s1201 + $0x18] sm:$0xf]
        %v1209 = vld [vmem:[%s1201 + $0x1c] sm:$0xf]
        %1210 = vrot.lane.b32.xlu0 %v1184, 2
        %v1211 = vpop.permute.xlu0 %1210
        %1212 = vrot.lane.b32.xlu0 %v1185, 2
        %v1213 = vpop.permute.xlu0 %1212
        %1214 = vrot.lane.b32.xlu0 %v1186, 2
        %v1215 = vpop.permute.xlu0 %1214
        %1216 = vrot.lane.b32.xlu0 %v1187, 2
        %v1217 = vpop.permute.xlu0 %1216
        %v1218 = vmul.f32 %v1211, %v439
        %v1219 = vmul.f32 %v1213, %v439
        %v1220 = vmul.f32 %v1215, %v439
        %v1221 = vmul.f32 %v1217, %v439
        %v1222 = vpack.c.bf16 %v1219, %v1218
        %v1223 = vpack.c.bf16 %v1221, %v1220
        %v1232 = vunpack.c.l.b16 %v1202
        %v1233 = vunpack.c.l.b16 %v1203
        %v1234 = vunpack.c.l.b16 %v1204
        %v1235 = vunpack.c.l.b16 %v1205
        %v1236 = vunpack.c.l.b16 %v1206
        %v1237 = vunpack.c.l.b16 %v1207
        %v1238 = vunpack.c.l.b16 %v1208
        %v1239 = vunpack.c.l.b16 %v1209
        %v1240 = vpack.c.b16 %v1233, %v1232
        %v1241 = vpack.c.b16 %v1235, %v1234
        %v1242 = vpack.c.b16 %v1237, %v1236
        %v1243 = vpack.c.b16 %v1239, %v1238
        %v1245 = vsel %vm623, %v1240, 0
        %v1248 = vsel %vm623, %v1241, 0
        %v1251 = vsel %vm623, %v1242, 0
        %v1254 = vsel %vm623, %v1243, 0
        %1256 = vmatprep.subr.bf16.mxu0 0
        %1257 = vmatpush1.bf16.msra.mxu0 %v1222
        %1258 = vmatprep.subr.bf16.mxu0 0
        %1259 = vmatpush1.bf16.msra.mxu0 %v1223
        %1260 = vmatprep.subr.bf16.mxu0 0
        %1261 = vmatpush1.bf16.msra.mxu0 0
        %1262 = vmatprep.subr.bf16.mxu0 0
        %1263 = vmatpush1.bf16.msra.mxu0 0
        %1264 = vmatprep.subr.bf16.mxu0 0
        %1265 = vmatpush1.bf16.msra.mxu0 0
        %1266 = vmatprep.subr.bf16.mxu0 0
        %1267 = vmatpush1.bf16.msra.mxu0 0
        %1268 = vmatprep.subr.bf16.mxu0 0
        %1269 = vmatpush1.bf16.msra.mxu0 0
        %1270 = vmatprep.subr.bf16.mxu0 0
        %1271 = vmatpush1.bf16.msra.mxu0 0
        %1272 = vmatprep.subr.bf16.mxu0 0
        %1273 = vmatpush1.bf16.msra.mxu0 0
        %1274 = vmatprep.subr.bf16.mxu0 0
        %1275 = vmatpush1.bf16.msra.mxu0 0
        %1276 = vmatprep.subr.bf16.mxu0 0
        %1277 = vmatpush1.bf16.msra.mxu0 0
        %1278 = vmatprep.subr.bf16.mxu0 0
        %1279 = vmatpush1.bf16.msra.mxu0 0
        %1280 = vmatprep.subr.bf16.mxu0 0
        %1281 = vmatpush1.bf16.msra.mxu0 0
        %1282 = vmatprep.subr.bf16.mxu0 0
        %1283 = vmatpush1.bf16.msra.mxu0 0
        %1284 = vmatprep.subr.bf16.mxu0 0
        %1285 = vmatpush1.bf16.msra.mxu0 0
        %1286 = vmatprep.subr.bf16.mxu0 0
        %1287 = vmatpush1.bf16.msra.mxu0 0
        %1288 = vmatprep.mubr.bf16.mxu0 0
        %1289 = vmatmul.mubr.bf16.gmra.mrb[0].mxu0 %v1245
        %v1290 = vpop.f32.mrb[0].mxu0
        %v1291 = vadd.f32 0.0, %v1290
        %v1292 = vpop.f32.mrb[0].mxu0
        %v1293 = vpop.f32.mrb[0].mxu0
        %v1294 = vadd.f32 0.0, %v1293
        %v1295 = vpop.f32.mrb[0].mxu0
        %1296 = vmatprep.mubr.bf16.mxu0 0
        %1297 = vmatmul.mubr.bf16.gmra.mrb[0].mxu0 %v1248
        %v1298 = vpop.f32.mrb[0].mxu0
        %v1299 = vadd.f32 0.0, %v1298
        %v1300 = vpop.f32.mrb[0].mxu0
        %v1301 = vpop.f32.mrb[0].mxu0
        %v1302 = vadd.f32 0.0, %v1301
        %v1303 = vpop.f32.mrb[0].mxu0
        %1304 = vmatprep.mubr.bf16.mxu0 0
        %1305 = vmatmul.mubr.bf16.gmra.mrb[0].mxu0 %v1251
        %v1306 = vpop.f32.mrb[0].mxu0
        %v1307 = vadd.f32 0.0, %v1306
        %v1308 = vpop.f32.mrb[0].mxu0
        %v1309 = vpop.f32.mrb[0].mxu0
        %v1310 = vadd.f32 0.0, %v1309
        %v1311 = vpop.f32.mrb[0].mxu0
        %1312 = vmatprep.mubr.bf16.mxu0 0
        %1313 = vmatmul.mubr.bf16.gmra.mrb[0].mxu0 %v1254
        %v1314 = vpop.f32.mrb[0].mxu0
        %v1315 = vadd.f32 0.0, %v1314
        %v1316 = vpop.f32.mrb[0].mxu0
        %v1317 = vpop.f32.mrb[0].mxu0
        %v1318 = vadd.f32 0.0, %v1317
        %v1319 = vpop.f32.mrb[0].mxu0
        %1320 = vdwg.mxu0
        %1322 = vset.pattern.permute.xlu0 0
        %1323 = vperm.xlu0 %1322, %v1193
        %v1324 = vpop.permute.xlu0 %1323
        %1327 = vset.pattern.permute.xlu0 0
        %1328 = vperm.xlu0 %1327, %v1194
        %v1329 = vpop.permute.xlu0 %1328
        %1332 = vset.pattern.permute.xlu0 0
        %1333 = vperm.xlu0 %1332, %v1195
        %v1334 = vpop.permute.xlu0 %1333
        %1337 = vset.pattern.permute.xlu0 0
        %1338 = vperm.xlu0 %1337, %v1196
        %v1339 = vpop.permute.xlu0 %1338
        %1342 = vset.pattern.permute.xlu0 0
        %1343 = vperm.xlu0 %1342, %v1197
        %v1344 = vpop.permute.xlu0 %1343
        %1347 = vset.pattern.permute.xlu0 0
        %1348 = vperm.xlu0 %1347, %v1198
        %v1349 = vpop.permute.xlu0 %1348
        %1352 = vset.pattern.permute.xlu0 0
        %1353 = vperm.xlu0 %1352, %v1199
        %v1354 = vpop.permute.xlu0 %1353
        %1357 = vset.pattern.permute.xlu0 0
        %1358 = vperm.xlu0 %1357, %v1200
        %v1359 = vpop.permute.xlu0 %1358
        %v1361 = vadd.f32 %v1324, %v1291
        %v1362 = vadd.f32 %v1329, %v1294
        %v1363 = vadd.f32 %v1334, %v1299
        %v1364 = vadd.f32 %v1339, %v1302
        %v1365 = vadd.f32 %v1344, %v1307
        %v1366 = vadd.f32 %v1349, %v1310
        %v1367 = vadd.f32 %v1354, %v1315
        %v1368 = vadd.f32 %v1359, %v1318
        %s1369 = scalar_lea.vmem %s4, 128
        %v1370 = vld [vmem:[%s1369] sm:$0xf]
        %v1371 = vld [vmem:[%s1369 + $0x4] sm:$0xf]
        %v1372 = vld [vmem:[%s1369 + $0x8] sm:$0xf]
        %v1373 = vld [vmem:[%s1369 + $0xc] sm:$0xf]
        %v1374 = vld [vmem:[%s1369 + $0x10] sm:$0xf]
        %v1375 = vld [vmem:[%s1369 + $0x14] sm:$0xf]
        %v1376 = vld [vmem:[%s1369 + $0x18] sm:$0xf]
        %v1377 = vld [vmem:[%s1369 + $0x1c] sm:$0xf]
        %v1378 = vpack.c.bf16 %v1185, %v1184
        %v1379 = vpack.c.bf16 %v1187, %v1186
        %v1388 = vunpack.c.l.b16 %v1370
        %v1389 = vunpack.c.l.b16 %v1371
        %v1390 = vunpack.c.l.b16 %v1372
        %v1391 = vunpack.c.l.b16 %v1373
        %v1392 = vunpack.c.l.b16 %v1374
        %v1393 = vunpack.c.l.b16 %v1375
        %v1394 = vunpack.c.l.b16 %v1376
        %v1395 = vunpack.c.l.b16 %v1377
        %v1396 = vpack.c.b16 %v1389, %v1388
        %v1397 = vpack.c.b16 %v1391, %v1390
        %v1398 = vpack.c.b16 %v1393, %v1392
        %v1399 = vpack.c.b16 %v1395, %v1394
        %v1401 = vsel %vm623, %v1396, 0
        %v1404 = vsel %vm623, %v1397, 0
        %v1407 = vsel %vm623, %v1398, 0
        %v1410 = vsel %vm623, %v1399, 0
        %1412 = vmatprep.subr.bf16.mxu0 0
        %1413 = vmatpush1.bf16.msra.mxu0 %v1378
        %1414 = vmatprep.subr.bf16.mxu0 0
        %1415 = vmatpush1.bf16.msra.mxu0 %v1379
        %1416 = vmatprep.subr.bf16.mxu0 0
        %1417 = vmatpush1.bf16.msra.mxu0 0
        %1418 = vmatprep.subr.bf16.mxu0 0
        %1419 = vmatpush1.bf16.msra.mxu0 0
        %1420 = vmatprep.subr.bf16.mxu0 0
        %1421 = vmatpush1.bf16.msra.mxu0 0
        %1422 = vmatprep.subr.bf16.mxu0 0
        %1423 = vmatpush1.bf16.msra.mxu0 0
        %1424 = vmatprep.subr.bf16.mxu0 0
        %1425 = vmatpush1.bf16.msra.mxu0 0
        %1426 = vmatprep.subr.bf16.mxu0 0
        %1427 = vmatpush1.bf16.msra.mxu0 0
        %1428 = vmatprep.subr.bf16.mxu0 0
        %1429 = vmatpush1.bf16.msra.mxu0 0
        %1430 = vmatprep.subr.bf16.mxu0 0
        %1431 = vmatpush1.bf16.msra.mxu0 0
        %1432 = vmatprep.subr.bf16.mxu0 0
        %1433 = vmatpush1.bf16.msra.mxu0 0
        %1434 = vmatprep.subr.bf16.mxu0 0
        %1435 = vmatpush1.bf16.msra.mxu0 0
        %1436 = vmatprep.subr.bf16.mxu0 0
        %1437 = vmatpush1.bf16.msra.mxu0 0
        %1438 = vmatprep.subr.bf16.mxu0 0
        %1439 = vmatpush1.bf16.msra.mxu0 0
        %1440 = vmatprep.subr.bf16.mxu0 0
        %1441 = vmatpush1.bf16.msra.mxu0 0
        %1442 = vmatprep.subr.bf16.mxu0 0
        %1443 = vmatpush1.bf16.msra.mxu0 0
        %1444 = vmatprep.mubr.bf16.mxu0 0
        %1445 = vmatmul.mubr.bf16.gmra.mrb[0].mxu0 %v1401
        %v1446 = vpop.f32.mrb[0].mxu0
        %v1447 = vadd.f32 0.0, %v1446
        %v1448 = vpop.f32.mrb[0].mxu0
        %v1449 = vpop.f32.mrb[0].mxu0
        %v1450 = vadd.f32 0.0, %v1449
        %v1451 = vpop.f32.mrb[0].mxu0
        %1452 = vmatprep.mubr.bf16.mxu0 0
        %1453 = vmatmul.mubr.bf16.gmra.mrb[0].mxu0 %v1404
        %v1454 = vpop.f32.mrb[0].mxu0
        %v1455 = vadd.f32 0.0, %v1454
        %v1456 = vpop.f32.mrb[0].mxu0
        %v1457 = vpop.f32.mrb[0].mxu0
        %v1458 = vadd.f32 0.0, %v1457
        %v1459 = vpop.f32.mrb[0].mxu0
        %1460 = vmatprep.mubr.bf16.mxu0 0
        %1461 = vmatmul.mubr.bf16.gmra.mrb[0].mxu0 %v1407
        %v1462 = vpop.f32.mrb[0].mxu0
        %v1463 = vadd.f32 0.0, %v1462
        %v1464 = vpop.f32.mrb[0].mxu0
        %v1465 = vpop.f32.mrb[0].mxu0
        %v1466 = vadd.f32 0.0, %v1465
        %v1467 = vpop.f32.mrb[0].mxu0
        %1468 = vmatprep.mubr.bf16.mxu0 0
        %1469 = vmatmul.mubr.bf16.gmra.mrb[0].mxu0 %v1410
        %v1470 = vpop.f32.mrb[0].mxu0
        %v1471 = vadd.f32 0.0, %v1470
        %v1472 = vpop.f32.mrb[0].mxu0
        %v1473 = vpop.f32.mrb[0].mxu0
        %v1474 = vadd.f32 0.0, %v1473
        %v1475 = vpop.f32.mrb[0].mxu0
        %1476 = vdwg.mxu0
        %v1477 = vadd.f32 %v1361, %v1447
        %v1478 = vadd.f32 %v1362, %v1450
        %v1479 = vadd.f32 %v1363, %v1455
        %v1480 = vadd.f32 %v1364, %v1458
        %v1481 = vadd.f32 %v1365, %v1463
        %v1482 = vadd.f32 %v1366, %v1466
        %v1483 = vadd.f32 %v1367, %v1471
        %v1484 = vadd.f32 %v1368, %v1474
        %s1485 = scalar_lea.vmem %s4, 160
        %v1486 = vld [vmem:[%s1485] sm:$0xf]
        %v1487 = vld [vmem:[%s1485 + $0x4] sm:$0xf]
        %v1488 = vld [vmem:[%s1485 + $0x8] sm:$0xf]
        %v1489 = vld [vmem:[%s1485 + $0xc] sm:$0xf]
        %v1490 = vld [vmem:[%s1485 + $0x10] sm:$0xf]
        %v1491 = vld [vmem:[%s1485 + $0x14] sm:$0xf]
        %v1492 = vld [vmem:[%s1485 + $0x18] sm:$0xf]
        %v1493 = vld [vmem:[%s1485 + $0x1c] sm:$0xf]
        %1494 = vrot.lane.b32.xlu0 %v1184, 126
        %v1495 = vpop.permute.xlu0 %1494
        %1496 = vrot.lane.b32.xlu0 %v1185, 126
        %v1497 = vpop.permute.xlu0 %1496
        %1498 = vrot.lane.b32.xlu0 %v1186, 126
        %v1499 = vpop.permute.xlu0 %1498
        %1500 = vrot.lane.b32.xlu0 %v1187, 126
        %v1501 = vpop.permute.xlu0 %1500
        %v1502 = vmul.f32 %v1495, %v457
        %v1503 = vmul.f32 %v1497, %v457
        %v1504 = vmul.f32 %v1499, %v457
        %v1505 = vmul.f32 %v1501, %v457
        %v1506 = vpack.c.bf16 %v1503, %v1502
        %v1507 = vpack.c.bf16 %v1505, %v1504
        %v1516 = vunpack.c.l.b16 %v1486
        %v1517 = vunpack.c.l.b16 %v1487
        %v1518 = vunpack.c.l.b16 %v1488
        %v1519 = vunpack.c.l.b16 %v1489
        %v1520 = vunpack.c.l.b16 %v1490
        %v1521 = vunpack.c.l.b16 %v1491
        %v1522 = vunpack.c.l.b16 %v1492
        %v1523 = vunpack.c.l.b16 %v1493
        %v1524 = vpack.c.b16 %v1517, %v1516
        %v1525 = vpack.c.b16 %v1519, %v1518
        %v1526 = vpack.c.b16 %v1521, %v1520
        %v1527 = vpack.c.b16 %v1523, %v1522
        %v1529 = vsel %vm623, %v1524, 0
        %v1532 = vsel %vm623, %v1525, 0
        %v1535 = vsel %vm623, %v1526, 0
        %v1538 = vsel %vm623, %v1527, 0
        %1540 = vmatprep.subr.bf16.mxu0 0
        %1541 = vmatpush1.bf16.msra.mxu0 %v1506
        %1542 = vmatprep.subr.bf16.mxu0 0
        %1543 = vmatpush1.bf16.msra.mxu0 %v1507
        %1544 = vmatprep.subr.bf16.mxu0 0
        %1545 = vmatpush1.bf16.msra.mxu0 0
        %1546 = vmatprep.subr.bf16.mxu0 0
        %1547 = vmatpush1.bf16.msra.mxu0 0
        %1548 = vmatprep.subr.bf16.mxu0 0
        %1549 = vmatpush1.bf16.msra.mxu0 0
        %1550 = vmatprep.subr.bf16.mxu0 0
        %1551 = vmatpush1.bf16.msra.mxu0 0
        %1552 = vmatprep.subr.bf16.mxu0 0
        %1553 = vmatpush1.bf16.msra.mxu0 0
        %1554 = vmatprep.subr.bf16.mxu0 0
        %1555 = vmatpush1.bf16.msra.mxu0 0
        %1556 = vmatprep.subr.bf16.mxu0 0
        %1557 = vmatpush1.bf16.msra.mxu0 0
        %1558 = vmatprep.subr.bf16.mxu0 0
        %1559 = vmatpush1.bf16.msra.mxu0 0
        %1560 = vmatprep.subr.bf16.mxu0 0
        %1561 = vmatpush1.bf16.msra.mxu0 0
        %1562 = vmatprep.subr.bf16.mxu0 0
        %1563 = vmatpush1.bf16.msra.mxu0 0
        %1564 = vmatprep.subr.bf16.mxu0 0
        %1565 = vmatpush1.bf16.msra.mxu0 0
        %1566 = vmatprep.subr.bf16.mxu0 0
        %1567 = vmatpush1.bf16.msra.mxu0 0
        %1568 = vmatprep.subr.bf16.mxu0 0
        %1569 = vmatpush1.bf16.msra.mxu0 0
        %1570 = vmatprep.subr.bf16.mxu0 0
        %1571 = vmatpush1.bf16.msra.mxu0 0
        %1572 = vmatprep.mubr.bf16.mxu0 0
        %1573 = vmatmul.mubr.bf16.gmra.mrb[0].mxu0 %v1529
        %v1574 = vpop.f32.mrb[0].mxu0
        %v1575 = vadd.f32 0.0, %v1574
        %v1576 = vpop.f32.mrb[0].mxu0
        %v1577 = vpop.f32.mrb[0].mxu0
        %v1578 = vadd.f32 0.0, %v1577
        %v1579 = vpop.f32.mrb[0].mxu0
        %1580 = vmatprep.mubr.bf16.mxu0 0
        %1581 = vmatmul.mubr.bf16.gmra.mrb[0].mxu0 %v1532
        %v1582 = vpop.f32.mrb[0].mxu0
        %v1583 = vadd.f32 0.0, %v1582
        %v1584 = vpop.f32.mrb[0].mxu0
        %v1585 = vpop.f32.mrb[0].mxu0
        %v1586 = vadd.f32 0.0, %v1585
        %v1587 = vpop.f32.mrb[0].mxu0
        %1588 = vmatprep.mubr.bf16.mxu0 0
        %1589 = vmatmul.mubr.bf16.gmra.mrb[0].mxu0 %v1535
        %v1590 = vpop.f32.mrb[0].mxu0
        %v1591 = vadd.f32 0.0, %v1590
        %v1592 = vpop.f32.mrb[0].mxu0
        %v1593 = vpop.f32.mrb[0].mxu0
        %v1594 = vadd.f32 0.0, %v1593
        %v1595 = vpop.f32.mrb[0].mxu0
        %1596 = vmatprep.mubr.bf16.mxu0 0
        %1597 = vmatmul.mubr.bf16.gmra.mrb[0].mxu0 %v1538
        %v1598 = vpop.f32.mrb[0].mxu0
        %v1599 = vadd.f32 0.0, %v1598
        %v1600 = vpop.f32.mrb[0].mxu0
        %v1601 = vpop.f32.mrb[0].mxu0
        %v1602 = vadd.f32 0.0, %v1601
        %v1603 = vpop.f32.mrb[0].mxu0
        %1604 = vdwg.mxu0
        %v1605 = vadd.f32 %v1477, %v1575
        %v1606 = vadd.f32 %v1478, %v1578
        %v1607 = vadd.f32 %v1479, %v1583
        %v1608 = vadd.f32 %v1480, %v1586
        %v1609 = vadd.f32 %v1481, %v1591
        %v1610 = vadd.f32 %v1482, %v1594
        %v1611 = vadd.f32 %v1483, %v1599
        %v1612 = vadd.f32 %v1484, %v1602
        %v1613 = vtanh.pop %v1605
        %v1614 = vtanh.pop %v1606
        %v1615 = vtanh.pop %v1607
        %v1616 = vtanh.pop %v1608
        %v1617 = vxor.u32 %v1609, 2147483648
        %v1618 = vxor.u32 %v1610, 2147483648
        %v1619 = vxor.u32 %v1611, 2147483648
        %v1620 = vxor.u32 %v1612, 2147483648
        %v1621 = vmul.f32 %v1617, 1.442695
        %v1622 = vpow.pop %v1621
        %v1623 = vmul.f32 %v1618, 1.442695
        %v1624 = vpow.pop %v1623
        %v1625 = vmul.f32 %v1619, 1.442695
        %v1626 = vpow.pop %v1625
        %v1627 = vmul.f32 %v1620, 1.442695
        %v1628 = vpow.pop %v1627
        %v1629 = vadd.f32 %v1622, 1.0
        %v1630 = vadd.f32 %v1624, 1.0
        %v1631 = vadd.f32 %v1626, 1.0
        %v1632 = vadd.f32 %v1628, 1.0
        %v1633 = vrcp.pop %v1629
        %v1634 = vmul.f32 1.0, %v1633
        %v1635 = vrcp.pop %v1630
        %v1636 = vmul.f32 1.0, %v1635
        %v1637 = vrcp.pop %v1631
        %v1638 = vmul.f32 1.0, %v1637
        %v1639 = vrcp.pop %v1632
        %v1640 = vmul.f32 1.0, %v1639
        %v1641 = vmul.f32 %v1613, %v1634
        %v1642 = vmul.f32 %v1614, %v1636
        %v1643 = vmul.f32 %v1615, %v1638
        %v1644 = vmul.f32 %v1616, %v1640
        %s1645 = scalar_lea.vmem %s6, 32
        %v1646 = vld [vmem:[%s1645] sm:$0xf]
        %v1647 = vld [vmem:[%s1645 + $0x4] sm:$0xf]
        %v1648 = vld [vmem:[%s1645 + $0x8] sm:$0xf]
        %v1649 = vld [vmem:[%s1645 + $0xc] sm:$0xf]
        %v1650 = vld [vmem:[%s1645 + $0x10] sm:$0xf]
        %v1651 = vld [vmem:[%s1645 + $0x14] sm:$0xf]
        %v1652 = vld [vmem:[%s1645 + $0x18] sm:$0xf]
        %v1653 = vld [vmem:[%s1645 + $0x1c] sm:$0xf]
        %v1654 = vpack.c.bf16 %v1642, %v1641
        %v1655 = vpack.c.bf16 %v1644, %v1643
        %s1656 = scalar_lea.vmem %s7, 64
        %v1657 = vld [vmem:[%s1656] sm:$0xff]
        %v1658 = vld [vmem:[%s1656 + $0x8] sm:$0xff]
        %v1659 = vld [vmem:[%s1656 + $0x10] sm:$0xff]
        %v1660 = vld [vmem:[%s1656 + $0x18] sm:$0xff]
        %v1661 = vld [vmem:[%s1656 + $0x20] sm:$0xff]
        %v1662 = vld [vmem:[%s1656 + $0x28] sm:$0xff]
        %v1663 = vld [vmem:[%s1656 + $0x30] sm:$0xff]
        %v1664 = vld [vmem:[%s1656 + $0x38] sm:$0xff]
        %1666 = vset.pattern.permute.xlu0 0
        %1667 = vperm.xlu0 %1666, %v1657
        %v1668 = vpop.permute.xlu0 %1667
        %1671 = vset.pattern.permute.xlu0 0
        %1672 = vperm.xlu0 %1671, %v1658
        %v1673 = vpop.permute.xlu0 %1672
        %1676 = vset.pattern.permute.xlu0 0
        %1677 = vperm.xlu0 %1676, %v1659
        %v1678 = vpop.permute.xlu0 %1677
        %1681 = vset.pattern.permute.xlu0 0
        %1682 = vperm.xlu0 %1681, %v1660
        %v1683 = vpop.permute.xlu0 %1682
        %1686 = vset.pattern.permute.xlu0 0
        %1687 = vperm.xlu0 %1686, %v1661
        %v1688 = vpop.permute.xlu0 %1687
        %1691 = vset.pattern.permute.xlu0 0
        %1692 = vperm.xlu0 %1691, %v1662
        %v1693 = vpop.permute.xlu0 %1692
        %1696 = vset.pattern.permute.xlu0 0
        %1697 = vperm.xlu0 %1696, %v1663
        %v1698 = vpop.permute.xlu0 %1697
        %1701 = vset.pattern.permute.xlu0 0
        %1702 = vperm.xlu0 %1701, %v1664
        %v1703 = vpop.permute.xlu0 %1702
        %v1713 = vunpack.c.l.b16 %v1646
        %v1714 = vunpack.c.l.b16 %v1647
        %v1715 = vunpack.c.l.b16 %v1648
        %v1716 = vunpack.c.l.b16 %v1649
        %v1717 = vunpack.c.l.b16 %v1650
        %v1718 = vunpack.c.l.b16 %v1651
        %v1719 = vunpack.c.l.b16 %v1652
        %v1720 = vunpack.c.l.b16 %v1653
        %v1721 = vpack.c.b16 %v1714, %v1713
        %v1722 = vpack.c.b16 %v1716, %v1715
        %v1723 = vpack.c.b16 %v1718, %v1717
        %v1724 = vpack.c.b16 %v1720, %v1719
        %v1726 = vsel %vm623, %v1721, 0
        %v1729 = vsel %vm623, %v1722, 0
        %v1732 = vsel %vm623, %v1723, 0
        %v1735 = vsel %vm623, %v1724, 0
        %1737 = vmatprep.subr.bf16.mxu0 0
        %1738 = vmatpush1.bf16.msra.mxu0 %v1654
        %1739 = vmatprep.subr.bf16.mxu0 0
        %1740 = vmatpush1.bf16.msra.mxu0 %v1655
        %1741 = vmatprep.subr.bf16.mxu0 0
        %1742 = vmatpush1.bf16.msra.mxu0 0
        %1743 = vmatprep.subr.bf16.mxu0 0
        %1744 = vmatpush1.bf16.msra.mxu0 0
        %1745 = vmatprep.subr.bf16.mxu0 0
        %1746 = vmatpush1.bf16.msra.mxu0 0
        %1747 = vmatprep.subr.bf16.mxu0 0
        %1748 = vmatpush1.bf16.msra.mxu0 0
        %1749 = vmatprep.subr.bf16.mxu0 0
        %1750 = vmatpush1.bf16.msra.mxu0 0
        %1751 = vmatprep.subr.bf16.mxu0 0
        %1752 = vmatpush1.bf16.msra.mxu0 0
        %1753 = vmatprep.subr.bf16.mxu0 0
        %1754 = vmatpush1.bf16.msra.mxu0 0
        %1755 = vmatprep.subr.bf16.mxu0 0
        %1756 = vmatpush1.bf16.msra.mxu0 0
        %1757 = vmatprep.subr.bf16.mxu0 0
        %1758 = vmatpush1.bf16.msra.mxu0 0
        %1759 = vmatprep.subr.bf16.mxu0 0
        %1760 = vmatpush1.bf16.msra.mxu0 0
        %1761 = vmatprep.subr.bf16.mxu0 0
        %1762 = vmatpush1.bf16.msra.mxu0 0
        %1763 = vmatprep.subr.bf16.mxu0 0
        %1764 = vmatpush1.bf16.msra.mxu0 0
        %1765 = vmatprep.subr.bf16.mxu0 0
        %1766 = vmatpush1.bf16.msra.mxu0 0
        %1767 = vmatprep.subr.bf16.mxu0 0
        %1768 = vmatpush1.bf16.msra.mxu0 0
        %1769 = vmatprep.mubr.bf16.mxu0 0
        %1770 = vmatmul.mubr.bf16.gmra.mrb[0].mxu0 %v1726
        %v1771 = vpop.f32.mrb[0].mxu0
        %v1772 = vadd.f32 %v1668, %v1771
        %v1773 = vpop.f32.mrb[0].mxu0
        %v1774 = vpop.f32.mrb[0].mxu0
        %v1775 = vadd.f32 %v1673, %v1774
        %v1776 = vpop.f32.mrb[0].mxu0
        %1777 = vmatprep.mubr.bf16.mxu0 0
        %1778 = vmatmul.mubr.bf16.gmra.mrb[0].mxu0 %v1729
        %v1779 = vpop.f32.mrb[0].mxu0
        %v1780 = vadd.f32 %v1678, %v1779
        %v1781 = vpop.f32.mrb[0].mxu0
        %v1782 = vpop.f32.mrb[0].mxu0
        %v1783 = vadd.f32 %v1683, %v1782
        %v1784 = vpop.f32.mrb[0].mxu0
        %1785 = vmatprep.mubr.bf16.mxu0 0
        %1786 = vmatmul.mubr.bf16.gmra.mrb[0].mxu0 %v1732
        %v1787 = vpop.f32.mrb[0].mxu0
        %v1788 = vadd.f32 %v1688, %v1787
        %v1789 = vpop.f32.mrb[0].mxu0
        %v1790 = vpop.f32.mrb[0].mxu0
        %v1791 = vadd.f32 %v1693, %v1790
        %v1792 = vpop.f32.mrb[0].mxu0
        %1793 = vmatprep.mubr.bf16.mxu0 0
        %1794 = vmatmul.mubr.bf16.gmra.mrb[0].mxu0 %v1735
        %v1795 = vpop.f32.mrb[0].mxu0
        %v1796 = vadd.f32 %v1698, %v1795
        %v1797 = vpop.f32.mrb[0].mxu0
        %v1798 = vpop.f32.mrb[0].mxu0
        %v1799 = vadd.f32 %v1703, %v1798
        %v1800 = vpop.f32.mrb[0].mxu0
        %1801 = vdwg.mxu0
        %v1802 = vadd.f32 %v1184, %v1772
        %v1803 = vadd.f32 %v1185, %v1775
        %v1804 = vadd.f32 %v1186, %v1780
        %v1805 = vadd.f32 %v1187, %v1783
        %v1806 = vmul.f32 %v1802, %v567
        %v1807 = vmul.f32 %v1803, %v567
        %v1808 = vmul.f32 %v1804, %v567
        %v1809 = vmul.f32 %v1805, %v567
        %v1810 = vadd.f32 %v1188, %v1788
        %v1811 = vadd.f32 %v1189, %v1791
        %v1812 = vadd.f32 %v1190, %v1796
        %v1813 = vadd.f32 %v1191, %v1799
        %s1814 = scalar_lea.vmem %s5, 128
        %v1815 = vld [vmem:[%s1814] sm:$0xff]
        %v1816 = vld [vmem:[%s1814 + $0x8] sm:$0xff]
        %v1817 = vld [vmem:[%s1814 + $0x10] sm:$0xff]
        %v1818 = vld [vmem:[%s1814 + $0x18] sm:$0xff]
        %v1819 = vld [vmem:[%s1814 + $0x20] sm:$0xff]
        %v1820 = vld [vmem:[%s1814 + $0x28] sm:$0xff]
        %v1821 = vld [vmem:[%s1814 + $0x30] sm:$0xff]
        %v1822 = vld [vmem:[%s1814 + $0x38] sm:$0xff]
        %s1823 = scalar_lea.vmem %s4, 192
        %v1824 = vld [vmem:[%s1823] sm:$0xf]
        %v1825 = vld [vmem:[%s1823 + $0x4] sm:$0xf]
        %v1826 = vld [vmem:[%s1823 + $0x8] sm:$0xf]
        %v1827 = vld [vmem:[%s1823 + $0xc] sm:$0xf]
        %v1828 = vld [vmem:[%s1823 + $0x10] sm:$0xf]
        %v1829 = vld [vmem:[%s1823 + $0x14] sm:$0xf]
        %v1830 = vld [vmem:[%s1823 + $0x18] sm:$0xf]
        %v1831 = vld [vmem:[%s1823 + $0x1c] sm:$0xf]
        %1832 = vrot.lane.b32.xlu0 %v1806, 4
        %v1833 = vpop.permute.xlu0 %1832
        %1834 = vrot.lane.b32.xlu0 %v1807, 4
        %v1835 = vpop.permute.xlu0 %1834
        %1836 = vrot.lane.b32.xlu0 %v1808, 4
        %v1837 = vpop.permute.xlu0 %1836
        %1838 = vrot.lane.b32.xlu0 %v1809, 4
        %v1839 = vpop.permute.xlu0 %1838
        %v1840 = vmul.f32 %v1833, %v433
        %v1841 = vmul.f32 %v1835, %v433
        %v1842 = vmul.f32 %v1837, %v433
        %v1843 = vmul.f32 %v1839, %v433
        %v1844 = vpack.c.bf16 %v1841, %v1840
        %v1845 = vpack.c.bf16 %v1843, %v1842
        %v1854 = vunpack.c.l.b16 %v1824
        %v1855 = vunpack.c.l.b16 %v1825
        %v1856 = vunpack.c.l.b16 %v1826
        %v1857 = vunpack.c.l.b16 %v1827
        %v1858 = vunpack.c.l.b16 %v1828
        %v1859 = vunpack.c.l.b16 %v1829
        %v1860 = vunpack.c.l.b16 %v1830
        %v1861 = vunpack.c.l.b16 %v1831
        %v1862 = vpack.c.b16 %v1855, %v1854
        %v1863 = vpack.c.b16 %v1857, %v1856
        %v1864 = vpack.c.b16 %v1859, %v1858
        %v1865 = vpack.c.b16 %v1861, %v1860
        %v1867 = vsel %vm623, %v1862, 0
        %v1870 = vsel %vm623, %v1863, 0
        %v1873 = vsel %vm623, %v1864, 0
        %v1876 = vsel %vm623, %v1865, 0
        %1878 = vmatprep.subr.bf16.mxu0 0
        %1879 = vmatpush1.bf16.msra.mxu0 %v1844
        %1880 = vmatprep.subr.bf16.mxu0 0
        %1881 = vmatpush1.bf16.msra.mxu0 %v1845
        %1882 = vmatprep.subr.bf16.mxu0 0
        %1883 = vmatpush1.bf16.msra.mxu0 0
        %1884 = vmatprep.subr.bf16.mxu0 0
        %1885 = vmatpush1.bf16.msra.mxu0 0
        %1886 = vmatprep.subr.bf16.mxu0 0
        %1887 = vmatpush1.bf16.msra.mxu0 0
        %1888 = vmatprep.subr.bf16.mxu0 0
        %1889 = vmatpush1.bf16.msra.mxu0 0
        %1890 = vmatprep.subr.bf16.mxu0 0
        %1891 = vmatpush1.bf16.msra.mxu0 0
        %1892 = vmatprep.subr.bf16.mxu0 0
        %1893 = vmatpush1.bf16.msra.mxu0 0
        %1894 = vmatprep.subr.bf16.mxu0 0
        %1895 = vmatpush1.bf16.msra.mxu0 0
        %1896 = vmatprep.subr.bf16.mxu0 0
        %1897 = vmatpush1.bf16.msra.mxu0 0
        %1898 = vmatprep.subr.bf16.mxu0 0
        %1899 = vmatpush1.bf16.msra.mxu0 0
        %1900 = vmatprep.subr.bf16.mxu0 0
        %1901 = vmatpush1.bf16.msra.mxu0 0
        %1902 = vmatprep.subr.bf16.mxu0 0
        %1903 = vmatpush1.bf16.msra.mxu0 0
        %1904 = vmatprep.subr.bf16.mxu0 0
        %1905 = vmatpush1.bf16.msra.mxu0 0
        %1906 = vmatprep.subr.bf16.mxu0 0
        %1907 = vmatpush1.bf16.msra.mxu0 0
        %1908 = vmatprep.subr.bf16.mxu0 0
        %1909 = vmatpush1.bf16.msra.mxu0 0
        %1910 = vmatprep.mubr.bf16.mxu0 0
        %1911 = vmatmul.mubr.bf16.gmra.mrb[0].mxu0 %v1867
        %v1912 = vpop.f32.mrb[0].mxu0
        %v1913 = vadd.f32 0.0, %v1912
        %v1914 = vpop.f32.mrb[0].mxu0
        %v1915 = vpop.f32.mrb[0].mxu0
        %v1916 = vadd.f32 0.0, %v1915
        %v1917 = vpop.f32.mrb[0].mxu0
        %1918 = vmatprep.mubr.bf16.mxu0 0
        %1919 = vmatmul.mubr.bf16.gmra.mrb[0].mxu0 %v1870
        %v1920 = vpop.f32.mrb[0].mxu0
        %v1921 = vadd.f32 0.0, %v1920
        %v1922 = vpop.f32.mrb[0].mxu0
        %v1923 = vpop.f32.mrb[0].mxu0
        %v1924 = vadd.f32 0.0, %v1923
        %v1925 = vpop.f32.mrb[0].mxu0
        %1926 = vmatprep.mubr.bf16.mxu0 0
        %1927 = vmatmul.mubr.bf16.gmra.mrb[0].mxu0 %v1873
        %v1928 = vpop.f32.mrb[0].mxu0
        %v1929 = vadd.f32 0.0, %v1928
        %v1930 = vpop.f32.mrb[0].mxu0
        %v1931 = vpop.f32.mrb[0].mxu0
        %v1932 = vadd.f32 0.0, %v1931
        %v1933 = vpop.f32.mrb[0].mxu0
        %1934 = vmatprep.mubr.bf16.mxu0 0
        %1935 = vmatmul.mubr.bf16.gmra.mrb[0].mxu0 %v1876
        %v1936 = vpop.f32.mrb[0].mxu0
        %v1937 = vadd.f32 0.0, %v1936
        %v1938 = vpop.f32.mrb[0].mxu0
        %v1939 = vpop.f32.mrb[0].mxu0
        %v1940 = vadd.f32 0.0, %v1939
        %v1941 = vpop.f32.mrb[0].mxu0
        %1942 = vdwg.mxu0
        %1944 = vset.pattern.permute.xlu0 0
        %1945 = vperm.xlu0 %1944, %v1815
        %v1946 = vpop.permute.xlu0 %1945
        %1949 = vset.pattern.permute.xlu0 0
        %1950 = vperm.xlu0 %1949, %v1816
        %v1951 = vpop.permute.xlu0 %1950
        %1954 = vset.pattern.permute.xlu0 0
        %1955 = vperm.xlu0 %1954, %v1817
        %v1956 = vpop.permute.xlu0 %1955
        %1959 = vset.pattern.permute.xlu0 0
        %1960 = vperm.xlu0 %1959, %v1818
        %v1961 = vpop.permute.xlu0 %1960
        %1964 = vset.pattern.permute.xlu0 0
        %1965 = vperm.xlu0 %1964, %v1819
        %v1966 = vpop.permute.xlu0 %1965
        %1969 = vset.pattern.permute.xlu0 0
        %1970 = vperm.xlu0 %1969, %v1820
        %v1971 = vpop.permute.xlu0 %1970
        %1974 = vset.pattern.permute.xlu0 0
        %1975 = vperm.xlu0 %1974, %v1821
        %v1976 = vpop.permute.xlu0 %1975
        %1979 = vset.pattern.permute.xlu0 0
        %1980 = vperm.xlu0 %1979, %v1822
        %v1981 = vpop.permute.xlu0 %1980
        %v1983 = vadd.f32 %v1946, %v1913
        %v1984 = vadd.f32 %v1951, %v1916
        %v1985 = vadd.f32 %v1956, %v1921
        %v1986 = vadd.f32 %v1961, %v1924
        %v1987 = vadd.f32 %v1966, %v1929
        %v1988 = vadd.f32 %v1971, %v1932
        %v1989 = vadd.f32 %v1976, %v1937
        %v1990 = vadd.f32 %v1981, %v1940
        %s1991 = scalar_lea.vmem %s4, 224
        %v1992 = vld [vmem:[%s1991] sm:$0xf]
        %v1993 = vld [vmem:[%s1991 + $0x4] sm:$0xf]
        %v1994 = vld [vmem:[%s1991 + $0x8] sm:$0xf]
        %v1995 = vld [vmem:[%s1991 + $0xc] sm:$0xf]
        %v1996 = vld [vmem:[%s1991 + $0x10] sm:$0xf]
        %v1997 = vld [vmem:[%s1991 + $0x14] sm:$0xf]
        %v1998 = vld [vmem:[%s1991 + $0x18] sm:$0xf]
        %v1999 = vld [vmem:[%s1991 + $0x1c] sm:$0xf]
        %v2000 = vpack.c.bf16 %v1807, %v1806
        %v2001 = vpack.c.bf16 %v1809, %v1808
        %v2010 = vunpack.c.l.b16 %v1992
        %v2011 = vunpack.c.l.b16 %v1993
        %v2012 = vunpack.c.l.b16 %v1994
        %v2013 = vunpack.c.l.b16 %v1995
        %v2014 = vunpack.c.l.b16 %v1996
        %v2015 = vunpack.c.l.b16 %v1997
        %v2016 = vunpack.c.l.b16 %v1998
        %v2017 = vunpack.c.l.b16 %v1999
        %v2018 = vpack.c.b16 %v2011, %v2010
        %v2019 = vpack.c.b16 %v2013, %v2012
        %v2020 = vpack.c.b16 %v2015, %v2014
        %v2021 = vpack.c.b16 %v2017, %v2016
        %v2023 = vsel %vm623, %v2018, 0
        %v2026 = vsel %vm623, %v2019, 0
        %v2029 = vsel %vm623, %v2020, 0
        %v2032 = vsel %vm623, %v2021, 0
        %2034 = vmatprep.subr.bf16.mxu0 0
        %2035 = vmatpush1.bf16.msra.mxu0 %v2000
        %2036 = vmatprep.subr.bf16.mxu0 0
        %2037 = vmatpush1.bf16.msra.mxu0 %v2001
        %2038 = vmatprep.subr.bf16.mxu0 0
        %2039 = vmatpush1.bf16.msra.mxu0 0
        %2040 = vmatprep.subr.bf16.mxu0 0
        %2041 = vmatpush1.bf16.msra.mxu0 0
        %2042 = vmatprep.subr.bf16.mxu0 0
        %2043 = vmatpush1.bf16.msra.mxu0 0
        %2044 = vmatprep.subr.bf16.mxu0 0
        %2045 = vmatpush1.bf16.msra.mxu0 0
        %2046 = vmatprep.subr.bf16.mxu0 0
        %2047 = vmatpush1.bf16.msra.mxu0 0
        %2048 = vmatprep.subr.bf16.mxu0 0
        %2049 = vmatpush1.bf16.msra.mxu0 0
        %2050 = vmatprep.subr.bf16.mxu0 0
        %2051 = vmatpush1.bf16.msra.mxu0 0
        %2052 = vmatprep.subr.bf16.mxu0 0
        %2053 = vmatpush1.bf16.msra.mxu0 0
        %2054 = vmatprep.subr.bf16.mxu0 0
        %2055 = vmatpush1.bf16.msra.mxu0 0
        %2056 = vmatprep.subr.bf16.mxu0 0
        %2057 = vmatpush1.bf16.msra.mxu0 0
        %2058 = vmatprep.subr.bf16.mxu0 0
        %2059 = vmatpush1.bf16.msra.mxu0 0
        %2060 = vmatprep.subr.bf16.mxu0 0
        %2061 = vmatpush1.bf16.msra.mxu0 0
        %2062 = vmatprep.subr.bf16.mxu0 0
        %2063 = vmatpush1.bf16.msra.mxu0 0
        %2064 = vmatprep.subr.bf16.mxu0 0
        %2065 = vmatpush1.bf16.msra.mxu0 0
        %2066 = vmatprep.mubr.bf16.mxu0 0
        %2067 = vmatmul.mubr.bf16.gmra.mrb[0].mxu0 %v2023
        %v2068 = vpop.f32.mrb[0].mxu0
        %v2069 = vadd.f32 0.0, %v2068
        %v2070 = vpop.f32.mrb[0].mxu0
        %v2071 = vpop.f32.mrb[0].mxu0
        %v2072 = vadd.f32 0.0, %v2071
        %v2073 = vpop.f32.mrb[0].mxu0
        %2074 = vmatprep.mubr.bf16.mxu0 0
        %2075 = vmatmul.mubr.bf16.gmra.mrb[0].mxu0 %v2026
        %v2076 = vpop.f32.mrb[0].mxu0
        %v2077 = vadd.f32 0.0, %v2076
        %v2078 = vpop.f32.mrb[0].mxu0
        %v2079 = vpop.f32.mrb[0].mxu0
        %v2080 = vadd.f32 0.0, %v2079
        %v2081 = vpop.f32.mrb[0].mxu0
        %2082 = vmatprep.mubr.bf16.mxu0 0
        %2083 = vmatmul.mubr.bf16.gmra.mrb[0].mxu0 %v2029
        %v2084 = vpop.f32.mrb[0].mxu0
        %v2085 = vadd.f32 0.0, %v2084
        %v2086 = vpop.f32.mrb[0].mxu0
        %v2087 = vpop.f32.mrb[0].mxu0
        %v2088 = vadd.f32 0.0, %v2087
        %v2089 = vpop.f32.mrb[0].mxu0
        %2090 = vmatprep.mubr.bf16.mxu0 0
        %2091 = vmatmul.mubr.bf16.gmra.mrb[0].mxu0 %v2032
        %v2092 = vpop.f32.mrb[0].mxu0
        %v2093 = vadd.f32 0.0, %v2092
        %v2094 = vpop.f32.mrb[0].mxu0
        %v2095 = vpop.f32.mrb[0].mxu0
        %v2096 = vadd.f32 0.0, %v2095
        %v2097 = vpop.f32.mrb[0].mxu0
        %2098 = vdwg.mxu0
        %v2099 = vadd.f32 %v1983, %v2069
        %v2100 = vadd.f32 %v1984, %v2072
        %v2101 = vadd.f32 %v1985, %v2077
        %v2102 = vadd.f32 %v1986, %v2080
        %v2103 = vadd.f32 %v1987, %v2085
        %v2104 = vadd.f32 %v1988, %v2088
        %v2105 = vadd.f32 %v1989, %v2093
        %v2106 = vadd.f32 %v1990, %v2096
        %s2107 = scalar_lea.vmem %s4, 256
        %v2108 = vld [vmem:[%s2107] sm:$0xf]
        %v2109 = vld [vmem:[%s2107 + $0x4] sm:$0xf]
        %v2110 = vld [vmem:[%s2107 + $0x8] sm:$0xf]
        %v2111 = vld [vmem:[%s2107 + $0xc] sm:$0xf]
        %v2112 = vld [vmem:[%s2107 + $0x10] sm:$0xf]
        %v2113 = vld [vmem:[%s2107 + $0x14] sm:$0xf]
        %v2114 = vld [vmem:[%s2107 + $0x18] sm:$0xf]
        %v2115 = vld [vmem:[%s2107 + $0x1c] sm:$0xf]
        %2116 = vrot.lane.b32.xlu0 %v1806, 124
        %v2117 = vpop.permute.xlu0 %2116
        %2118 = vrot.lane.b32.xlu0 %v1807, 124
        %v2119 = vpop.permute.xlu0 %2118
        %2120 = vrot.lane.b32.xlu0 %v1808, 124
        %v2121 = vpop.permute.xlu0 %2120
        %2122 = vrot.lane.b32.xlu0 %v1809, 124
        %v2123 = vpop.permute.xlu0 %2122
        %v2124 = vmul.f32 %v2117, %v463
        %v2125 = vmul.f32 %v2119, %v463
        %v2126 = vmul.f32 %v2121, %v463
        %v2127 = vmul.f32 %v2123, %v463
        %v2128 = vpack.c.bf16 %v2125, %v2124
        %v2129 = vpack.c.bf16 %v2127, %v2126
        %v2138 = vunpack.c.l.b16 %v2108
        %v2139 = vunpack.c.l.b16 %v2109
        %v2140 = vunpack.c.l.b16 %v2110
        %v2141 = vunpack.c.l.b16 %v2111
        %v2142 = vunpack.c.l.b16 %v2112
        %v2143 = vunpack.c.l.b16 %v2113
        %v2144 = vunpack.c.l.b16 %v2114
        %v2145 = vunpack.c.l.b16 %v2115
        %v2146 = vpack.c.b16 %v2139, %v2138
        %v2147 = vpack.c.b16 %v2141, %v2140
        %v2148 = vpack.c.b16 %v2143, %v2142
        %v2149 = vpack.c.b16 %v2145, %v2144
        %v2151 = vsel %vm623, %v2146, 0
        %v2154 = vsel %vm623, %v2147, 0
        %v2157 = vsel %vm623, %v2148, 0
        %v2160 = vsel %vm623, %v2149, 0
        %2162 = vmatprep.subr.bf16.mxu0 0
        %2163 = vmatpush1.bf16.msra.mxu0 %v2128
        %2164 = vmatprep.subr.bf16.mxu0 0
        %2165 = vmatpush1.bf16.msra.mxu0 %v2129
        %2166 = vmatprep.subr.bf16.mxu0 0
        %2167 = vmatpush1.bf16.msra.mxu0 0
        %2168 = vmatprep.subr.bf16.mxu0 0
        %2169 = vmatpush1.bf16.msra.mxu0 0
        %2170 = vmatprep.subr.bf16.mxu0 0
        %2171 = vmatpush1.bf16.msra.mxu0 0
        %2172 = vmatprep.subr.bf16.mxu0 0
        %2173 = vmatpush1.bf16.msra.mxu0 0
        %2174 = vmatprep.subr.bf16.mxu0 0
        %2175 = vmatpush1.bf16.msra.mxu0 0
        %2176 = vmatprep.subr.bf16.mxu0 0
        %2177 = vmatpush1.bf16.msra.mxu0 0
        %2178 = vmatprep.subr.bf16.mxu0 0
        %2179 = vmatpush1.bf16.msra.mxu0 0
        %2180 = vmatprep.subr.bf16.mxu0 0
        %2181 = vmatpush1.bf16.msra.mxu0 0
        %2182 = vmatprep.subr.bf16.mxu0 0
        %2183 = vmatpush1.bf16.msra.mxu0 0
        %2184 = vmatprep.subr.bf16.mxu0 0
        %2185 = vmatpush1.bf16.msra.mxu0 0
        %2186 = vmatprep.subr.bf16.mxu0 0
        %2187 = vmatpush1.bf16.msra.mxu0 0
        %2188 = vmatprep.subr.bf16.mxu0 0
        %2189 = vmatpush1.bf16.msra.mxu0 0
        %2190 = vmatprep.subr.bf16.mxu0 0
        %2191 = vmatpush1.bf16.msra.mxu0 0
        %2192 = vmatprep.subr.bf16.mxu0 0
        %2193 = vmatpush1.bf16.msra.mxu0 0
        %2194 = vmatprep.mubr.bf16.mxu0 0
        %2195 = vmatmul.mubr.bf16.gmra.mrb[0].mxu0 %v2151
        %v2196 = vpop.f32.mrb[0].mxu0
        %v2197 = vadd.f32 0.0, %v2196
        %v2198 = vpop.f32.mrb[0].mxu0
        %v2199 = vpop.f32.mrb[0].mxu0
        %v2200 = vadd.f32 0.0, %v2199
        %v2201 = vpop.f32.mrb[0].mxu0
        %2202 = vmatprep.mubr.bf16.mxu0 0
        %2203 = vmatmul.mubr.bf16.gmra.mrb[0].mxu0 %v2154
        %v2204 = vpop.f32.mrb[0].mxu0
        %v2205 = vadd.f32 0.0, %v2204
        %v2206 = vpop.f32.mrb[0].mxu0
        %v2207 = vpop.f32.mrb[0].mxu0
        %v2208 = vadd.f32 0.0, %v2207
        %v2209 = vpop.f32.mrb[0].mxu0
        %2210 = vmatprep.mubr.bf16.mxu0 0
        %2211 = vmatmul.mubr.bf16.gmra.mrb[0].mxu0 %v2157
        %v2212 = vpop.f32.mrb[0].mxu0
        %v2213 = vadd.f32 0.0, %v2212
        %v2214 = vpop.f32.mrb[0].mxu0
        %v2215 = vpop.f32.mrb[0].mxu0
        %v2216 = vadd.f32 0.0, %v2215
        %v2217 = vpop.f32.mrb[0].mxu0
        %2218 = vmatprep.mubr.bf16.mxu0 0
        %2219 = vmatmul.mubr.bf16.gmra.mrb[0].mxu0 %v2160
        %v2220 = vpop.f32.mrb[0].mxu0
        %v2221 = vadd.f32 0.0, %v2220
        %v2222 = vpop.f32.mrb[0].mxu0
        %v2223 = vpop.f32.mrb[0].mxu0
        %v2224 = vadd.f32 0.0, %v2223
        %v2225 = vpop.f32.mrb[0].mxu0
        %2226 = vdwg.mxu0
        %v2227 = vadd.f32 %v2099, %v2197
        %v2228 = vadd.f32 %v2100, %v2200
        %v2229 = vadd.f32 %v2101, %v2205
        %v2230 = vadd.f32 %v2102, %v2208
        %v2231 = vadd.f32 %v2103, %v2213
        %v2232 = vadd.f32 %v2104, %v2216
        %v2233 = vadd.f32 %v2105, %v2221
        %v2234 = vadd.f32 %v2106, %v2224
        %v2235 = vtanh.pop %v2227
        %v2236 = vtanh.pop %v2228
        %v2237 = vtanh.pop %v2229
        %v2238 = vtanh.pop %v2230
        %v2239 = vxor.u32 %v2231, 2147483648
        %v2240 = vxor.u32 %v2232, 2147483648
        %v2241 = vxor.u32 %v2233, 2147483648
        %v2242 = vxor.u32 %v2234, 2147483648
        %v2243 = vmul.f32 %v2239, 1.442695
        %v2244 = vpow.pop %v2243
        %v2245 = vmul.f32 %v2240, 1.442695
        %v2246 = vpow.pop %v2245
        %v2247 = vmul.f32 %v2241, 1.442695
        %v2248 = vpow.pop %v2247
        %v2249 = vmul.f32 %v2242, 1.442695
        %v2250 = vpow.pop %v2249
        %v2251 = vadd.f32 %v2244, 1.0
        %v2252 = vadd.f32 %v2246, 1.0
        %v2253 = vadd.f32 %v2248, 1.0
        %v2254 = vadd.f32 %v2250, 1.0
        %v2255 = vrcp.pop %v2251
        %v2256 = vmul.f32 1.0, %v2255
        %v2257 = vrcp.pop %v2252
        %v2258 = vmul.f32 1.0, %v2257
        %v2259 = vrcp.pop %v2253
        %v2260 = vmul.f32 1.0, %v2259
        %v2261 = vrcp.pop %v2254
        %v2262 = vmul.f32 1.0, %v2261
        %v2263 = vmul.f32 %v2235, %v2256
        %v2264 = vmul.f32 %v2236, %v2258
        %v2265 = vmul.f32 %v2237, %v2260
        %v2266 = vmul.f32 %v2238, %v2262
        %v2267 = vld [vmem:[%s8] sm:$0xf]
        %v2268 = vld [vmem:[%s8 + $0x4] sm:$0xf]
        %v2269 = vld [vmem:[%s8 + $0x8] sm:$0xf]
        %v2270 = vld [vmem:[%s8 + $0xc] sm:$0xf]
        %v2271 = vpack.c.bf16 %v2264, %v2263
        %v2272 = vpack.c.bf16 %v2266, %v2265
        %v2277 = vunpack.c.l.b16 %v2267
        %v2278 = vunpack.c.l.b16 %v2268
        %v2279 = vunpack.c.l.b16 %v2269
        %v2280 = vunpack.c.l.b16 %v2270
        %v2281 = vpack.c.b16 %v2278, %v2277
        %v2282 = vpack.c.b16 %v2280, %v2279
        %v2284 = vsel %vm623, %v2281, 0
        %v2287 = vsel %vm623, %v2282, 0
        %2289 = vmatprep.subr.bf16.mxu0 0
        %2290 = vmatpush1.bf16.msra.mxu0 %v2271
        %2291 = vmatprep.subr.bf16.mxu0 0
        %2292 = vmatpush1.bf16.msra.mxu0 %v2272
        %2293 = vmatprep.subr.bf16.mxu0 0
        %2294 = vmatpush1.bf16.msra.mxu0 0
        %2295 = vmatprep.subr.bf16.mxu0 0
        %2296 = vmatpush1.bf16.msra.mxu0 0
        %2297 = vmatprep.subr.bf16.mxu0 0
        %2298 = vmatpush1.bf16.msra.mxu0 0
        %2299 = vmatprep.subr.bf16.mxu0 0
        %2300 = vmatpush1.bf16.msra.mxu0 0
        %2301 = vmatprep.subr.bf16.mxu0 0
        %2302 = vmatpush1.bf16.msra.mxu0 0
        %2303 = vmatprep.subr.bf16.mxu0 0
        %2304 = vmatpush1.bf16.msra.mxu0 0
        %2305 = vmatprep.subr.bf16.mxu0 0
        %2306 = vmatpush1.bf16.msra.mxu0 0
        %2307 = vmatprep.subr.bf16.mxu0 0
        %2308 = vmatpush1.bf16.msra.mxu0 0
        %2309 = vmatprep.subr.bf16.mxu0 0
        %2310 = vmatpush1.bf16.msra.mxu0 0
        %2311 = vmatprep.subr.bf16.mxu0 0
        %2312 = vmatpush1.bf16.msra.mxu0 0
        %2313 = vmatprep.subr.bf16.mxu0 0
        %2314 = vmatpush1.bf16.msra.mxu0 0
        %2315 = vmatprep.subr.bf16.mxu0 0
        %2316 = vmatpush1.bf16.msra.mxu0 0
        %2317 = vmatprep.subr.bf16.mxu0 0
        %2318 = vmatpush1.bf16.msra.mxu0 0
        %2319 = vmatprep.subr.bf16.mxu0 0
        %2320 = vmatpush1.bf16.msra.mxu0 0
        %2321 = vmatprep.mubr.bf16.mxu0 0
        %2322 = vmatmul.mubr.bf16.gmra.mrb[0].mxu0 %v2284
        %v2323 = vpop.f32.mrb[0].mxu0
        %v2324 = vadd.f32 0.0, %v2323
        %v2325 = vpop.f32.mrb[0].mxu0
        %v2326 = vpop.f32.mrb[0].mxu0
        %v2327 = vadd.f32 0.0, %v2326
        %v2328 = vpop.f32.mrb[0].mxu0
        %2329 = vmatprep.mubr.bf16.mxu0 0
        %2330 = vmatmul.mubr.bf16.gmra.mrb[0].mxu0 %v2287
        %v2331 = vpop.f32.mrb[0].mxu0
        %v2332 = vadd.f32 0.0, %v2331
        %v2333 = vpop.f32.mrb[0].mxu0
        %v2334 = vpop.f32.mrb[0].mxu0
        %v2335 = vadd.f32 0.0, %v2334
        %v2336 = vpop.f32.mrb[0].mxu0
        %2337 = vdwg.mxu0
        %v2338 = vadd.f32 %v1810, %v2324
        %v2339 = vadd.f32 %v1811, %v2327
        %v2340 = vadd.f32 %v1812, %v2332
        %v2341 = vadd.f32 %v1813, %v2335
        %v2342 = vld [vmem:[%s9] sm:$0xff]
        %v2343 = vld [vmem:[%s9 + $0x8] sm:$0xff]
        %v2344 = vld [vmem:[%s9 + $0x10] sm:$0xff]
        %v2345 = vld [vmem:[%s9 + $0x18] sm:$0xff]
        %2347 = vset.pattern.permute.xlu0 0
        %2348 = vperm.xlu0 %2347, %v2342
        %v2349 = vpop.permute.xlu0 %2348
        %2352 = vset.pattern.permute.xlu0 0
        %2353 = vperm.xlu0 %2352, %v2343
        %v2354 = vpop.permute.xlu0 %2353
        %2357 = vset.pattern.permute.xlu0 0
        %2358 = vperm.xlu0 %2357, %v2344
        %v2359 = vpop.permute.xlu0 %2358
        %2362 = vset.pattern.permute.xlu0 0
        %2363 = vperm.xlu0 %2362, %v2345
        %v2364 = vpop.permute.xlu0 %2363
        %v2366 = vadd.f32 %v2338, %v2349
        %v2367 = vadd.f32 %v2339, %v2354
        %v2368 = vadd.f32 %v2340, %v2359
        %v2369 = vadd.f32 %v2341, %v2364
        %v2370 = vld [vmem:[%s10] sm:$0x1]
        %v2371 = vpack.c.bf16 %v2367, %v2366
        %v2372 = vpack.c.bf16 %v2369, %v2368
        %v2373 = vld [vmem:[%s11] sm:$0x3]
        %2375 = vset.pattern.permute.xlu0 0
        %2376 = vperm.xlu0 %2375, %v2373
        %v2377 = vpop.permute.xlu0 %2376
        %v2380 = vsel %vm623, %v2370, 0
        %2382 = vmatprep.subr.bf16.mxu0 0
        %2383 = vmatpush1.bf16.msra.mxu0 %v2371
        %2384 = vmatprep.subr.bf16.mxu0 0
        %2385 = vmatpush1.bf16.msra.mxu0 %v2372
        %2386 = vmatprep.subr.bf16.mxu0 0
        %2387 = vmatpush1.bf16.msra.mxu0 0
        %2388 = vmatprep.subr.bf16.mxu0 0
        %2389 = vmatpush1.bf16.msra.mxu0 0
        %2390 = vmatprep.subr.bf16.mxu0 0
        %2391 = vmatpush1.bf16.msra.mxu0 0
        %2392 = vmatprep.subr.bf16.mxu0 0
        %2393 = vmatpush1.bf16.msra.mxu0 0
        %2394 = vmatprep.subr.bf16.mxu0 0
        %2395 = vmatpush1.bf16.msra.mxu0 0
        %2396 = vmatprep.subr.bf16.mxu0 0
        %2397 = vmatpush1.bf16.msra.mxu0 0
        %2398 = vmatprep.subr.bf16.mxu0 0
        %2399 = vmatpush1.bf16.msra.mxu0 0
        %2400 = vmatprep.subr.bf16.mxu0 0
        %2401 = vmatpush1.bf16.msra.mxu0 0
        %2402 = vmatprep.subr.bf16.mxu0 0
        %2403 = vmatpush1.bf16.msra.mxu0 0
        %2404 = vmatprep.subr.bf16.mxu0 0
        %2405 = vmatpush1.bf16.msra.mxu0 0
        %2406 = vmatprep.subr.bf16.mxu0 0
        %2407 = vmatpush1.bf16.msra.mxu0 0
        %2408 = vmatprep.subr.bf16.mxu0 0
        %2409 = vmatpush1.bf16.msra.mxu0 0
        %2410 = vmatprep.subr.bf16.mxu0 0
        %2411 = vmatpush1.bf16.msra.mxu0 0
        %2412 = vmatprep.subr.bf16.mxu0 0
        %2413 = vmatpush1.bf16.msra.mxu0 0
        %2414 = vmatprep.mubr.bf16.mxu0 0
        %2415 = vmatmul.mubr.bf16.gmra.mrb[0].mxu0 %v2380
        %v2416 = vpop.f32.mrb[0].mxu0
        %v2417 = vadd.f32 %v2377, %v2416
        %v2418 = vpop.f32.mrb[0].mxu0
        %v2419 = vpop.f32.mrb[0].mxu0
        %v2420 = vpop.f32.mrb[0].mxu0
        %2421 = vdwg.mxu0
        %v2422 = vmul.f32 %v2417, %v567
        %v2423 = vmul.f32 %v425, %v567
        %v2425 = vrot.slane %v2423, 2
        %v2427 = vadd.f32 %v2422, %v2425
        %s2428 = scalar_lea.vmem %s2, 16
        %v2429 = vld [vmem:[%s2428] sm:$0xf]
        %v2430 = vld [vmem:[%s2428 + $0x4] sm:$0xf]
        %v2431 = vld [vmem:[%s2428 + $0x8] sm:$0xf]
        %v2432 = vld [vmem:[%s2428 + $0xc] sm:$0xf]
        %v2433 = vpack.c.bf16 %v2427, %v2427
        %s2434 = scalar_lea.vmem %s3, 32
        %v2435 = vld [vmem:[%s2434] sm:$0xff]
        %v2436 = vld [vmem:[%s2434 + $0x8] sm:$0xff]
        %v2437 = vld [vmem:[%s2434 + $0x10] sm:$0xff]
        %v2438 = vld [vmem:[%s2434 + $0x18] sm:$0xff]
        %2440 = vset.pattern.permute.xlu0 0
        %2441 = vperm.xlu0 %2440, %v2435
        %v2442 = vpop.permute.xlu0 %2441
        %2445 = vset.pattern.permute.xlu0 0
        %2446 = vperm.xlu0 %2445, %v2436
        %v2447 = vpop.permute.xlu0 %2446
        %2450 = vset.pattern.permute.xlu0 0
        %2451 = vperm.xlu0 %2450, %v2437
        %v2452 = vpop.permute.xlu0 %2451
        %2455 = vset.pattern.permute.xlu0 0
        %2456 = vperm.xlu0 %2455, %v2438
        %v2457 = vpop.permute.xlu0 %2456
        %v2463 = vunpack.c.l.b16 %v2429
        %v2464 = vunpack.c.l.b16 %v2430
        %v2465 = vunpack.c.l.b16 %v2431
        %v2466 = vunpack.c.l.b16 %v2432
        %v2467 = vpack.c.b16 %v2464, %v2463
        %v2468 = vpack.c.b16 %v2466, %v2465
        %v2470 = vsel %vm503, %v2467, 0
        %v2473 = vsel %vm503, %v2468, 0
        %v2476 = vsel %vm510, %v2433, 0
        %2478 = vmatprep.subr.bf16.mxu0 0
        %2479 = vmatpush1.bf16.msra.mxu0 %v2476
        %2480 = vmatprep.subr.bf16.mxu0 0
        %2481 = vmatpush1.bf16.msra.mxu0 0
        %2482 = vmatprep.subr.bf16.mxu0 0
        %2483 = vmatpush1.bf16.msra.mxu0 0
        %2484 = vmatprep.subr.bf16.mxu0 0
        %2485 = vmatpush1.bf16.msra.mxu0 0
        %2486 = vmatprep.subr.bf16.mxu0 0
        %2487 = vmatpush1.bf16.msra.mxu0 0
        %2488 = vmatprep.subr.bf16.mxu0 0
        %2489 = vmatpush1.bf16.msra.mxu0 0
        %2490 = vmatprep.subr.bf16.mxu0 0
        %2491 = vmatpush1.bf16.msra.mxu0 0
        %2492 = vmatprep.subr.bf16.mxu0 0
        %2493 = vmatpush1.bf16.msra.mxu0 0
        %2494 = vmatprep.subr.bf16.mxu0 0
        %2495 = vmatpush1.bf16.msra.mxu0 0
        %2496 = vmatprep.subr.bf16.mxu0 0
        %2497 = vmatpush1.bf16.msra.mxu0 0
        %2498 = vmatprep.subr.bf16.mxu0 0
        %2499 = vmatpush1.bf16.msra.mxu0 0
        %2500 = vmatprep.subr.bf16.mxu0 0
        %2501 = vmatpush1.bf16.msra.mxu0 0
        %2502 = vmatprep.subr.bf16.mxu0 0
        %2503 = vmatpush1.bf16.msra.mxu0 0
        %2504 = vmatprep.subr.bf16.mxu0 0
        %2505 = vmatpush1.bf16.msra.mxu0 0
        %2506 = vmatprep.subr.bf16.mxu0 0
        %2507 = vmatpush1.bf16.msra.mxu0 0
        %2508 = vmatprep.subr.bf16.mxu0 0
        %2509 = vmatpush1.bf16.msra.mxu0 0
        %2510 = vmatprep.mubr.bf16.mxu0 0
        %2511 = vmatmul.mubr.bf16.gmra.mrb[0].mxu0 %v2470
        %v2512 = vpop.f32.mrb[0].mxu0
        %v2513 = vadd.f32 %v2442, %v2512
        %v2514 = vpop.f32.mrb[0].mxu0
        %v2515 = vpop.f32.mrb[0].mxu0
        %v2516 = vadd.f32 %v2447, %v2515
        %v2517 = vpop.f32.mrb[0].mxu0
        %2518 = vmatprep.mubr.bf16.mxu0 0
        %2519 = vmatmul.mubr.bf16.gmra.mrb[0].mxu0 %v2473
        %v2520 = vpop.f32.mrb[0].mxu0
        %v2521 = vadd.f32 %v2452, %v2520
        %v2522 = vpop.f32.mrb[0].mxu0
        %v2523 = vpop.f32.mrb[0].mxu0
        %v2524 = vadd.f32 %v2457, %v2523
        %v2525 = vpop.f32.mrb[0].mxu0
        %2526 = vdwg.mxu0
        %v2527 = vmul.f32 %v2513, %v567
        %v2528 = vmul.f32 %v2516, %v567
        %v2529 = vmul.f32 %v2521, %v567
        %v2530 = vmul.f32 %v2524, %v567
        %s2531 = scalar_lea.vmem %s5, 192
        %v2532 = vld [vmem:[%s2531] sm:$0xff]
        %v2533 = vld [vmem:[%s2531 + $0x8] sm:$0xff]
        %v2534 = vld [vmem:[%s2531 + $0x10] sm:$0xff]
        %v2535 = vld [vmem:[%s2531 + $0x18] sm:$0xff]
        %v2536 = vld [vmem:[%s2531 + $0x20] sm:$0xff]
        %v2537 = vld [vmem:[%s2531 + $0x28] sm:$0xff]
        %v2538 = vld [vmem:[%s2531 + $0x30] sm:$0xff]
        %v2539 = vld [vmem:[%s2531 + $0x38] sm:$0xff]
        %s2540 = scalar_lea.vmem %s4, 288
        %v2541 = vld [vmem:[%s2540] sm:$0xf]
        %v2542 = vld [vmem:[%s2540 + $0x4] sm:$0xf]
        %v2543 = vld [vmem:[%s2540 + $0x8] sm:$0xf]
        %v2544 = vld [vmem:[%s2540 + $0xc] sm:$0xf]
        %v2545 = vld [vmem:[%s2540 + $0x10] sm:$0xf]
        %v2546 = vld [vmem:[%s2540 + $0x14] sm:$0xf]
        %v2547 = vld [vmem:[%s2540 + $0x18] sm:$0xf]
        %v2548 = vld [vmem:[%s2540 + $0x1c] sm:$0xf]
        %2549 = vrot.lane.b32.xlu0 %v2527, 1
        %v2550 = vpop.permute.xlu0 %2549
        %2551 = vrot.lane.b32.xlu0 %v2528, 1
        %v2552 = vpop.permute.xlu0 %2551
        %2553 = vrot.lane.b32.xlu0 %v2529, 1
        %v2554 = vpop.permute.xlu0 %2553
        %2555 = vrot.lane.b32.xlu0 %v2530, 1
        %v2556 = vpop.permute.xlu0 %2555
        %v2557 = vmul.f32 %v2550, %v445
        %v2558 = vmul.f32 %v2552, %v445
        %v2559 = vmul.f32 %v2554, %v445
        %v2560 = vmul.f32 %v2556, %v445
        %v2561 = vpack.c.bf16 %v2558, %v2557
        %v2562 = vpack.c.bf16 %v2560, %v2559
        %v2571 = vunpack.c.l.b16 %v2541
        %v2572 = vunpack.c.l.b16 %v2542
        %v2573 = vunpack.c.l.b16 %v2543
        %v2574 = vunpack.c.l.b16 %v2544
        %v2575 = vunpack.c.l.b16 %v2545
        %v2576 = vunpack.c.l.b16 %v2546
        %v2577 = vunpack.c.l.b16 %v2547
        %v2578 = vunpack.c.l.b16 %v2548
        %v2579 = vpack.c.b16 %v2572, %v2571
        %v2580 = vpack.c.b16 %v2574, %v2573
        %v2581 = vpack.c.b16 %v2576, %v2575
        %v2582 = vpack.c.b16 %v2578, %v2577
        %v2584 = vsel %vm623, %v2579, 0
        %v2587 = vsel %vm623, %v2580, 0
        %v2590 = vsel %vm623, %v2581, 0
        %v2593 = vsel %vm623, %v2582, 0
        %2595 = vmatprep.subr.bf16.mxu0 0
        %2596 = vmatpush1.bf16.msra.mxu0 %v2561
        %2597 = vmatprep.subr.bf16.mxu0 0
        %2598 = vmatpush1.bf16.msra.mxu0 %v2562
        %2599 = vmatprep.subr.bf16.mxu0 0
        %2600 = vmatpush1.bf16.msra.mxu0 0
        %2601 = vmatprep.subr.bf16.mxu0 0
        %2602 = vmatpush1.bf16.msra.mxu0 0
        %2603 = vmatprep.subr.bf16.mxu0 0
        %2604 = vmatpush1.bf16.msra.mxu0 0
        %2605 = vmatprep.subr.bf16.mxu0 0
        %2606 = vmatpush1.bf16.msra.mxu0 0
        %2607 = vmatprep.subr.bf16.mxu0 0
        %2608 = vmatpush1.bf16.msra.mxu0 0
        %2609 = vmatprep.subr.bf16.mxu0 0
        %2610 = vmatpush1.bf16.msra.mxu0 0
        %2611 = vmatprep.subr.bf16.mxu0 0
        %2612 = vmatpush1.bf16.msra.mxu0 0
        %2613 = vmatprep.subr.bf16.mxu0 0
        %2614 = vmatpush1.bf16.msra.mxu0 0
        %2615 = vmatprep.subr.bf16.mxu0 0
        %2616 = vmatpush1.bf16.msra.mxu0 0
        %2617 = vmatprep.subr.bf16.mxu0 0
        %2618 = vmatpush1.bf16.msra.mxu0 0
        %2619 = vmatprep.subr.bf16.mxu0 0
        %2620 = vmatpush1.bf16.msra.mxu0 0
        %2621 = vmatprep.subr.bf16.mxu0 0
        %2622 = vmatpush1.bf16.msra.mxu0 0
        %2623 = vmatprep.subr.bf16.mxu0 0
        %2624 = vmatpush1.bf16.msra.mxu0 0
        %2625 = vmatprep.subr.bf16.mxu0 0
        %2626 = vmatpush1.bf16.msra.mxu0 0
        %2627 = vmatprep.mubr.bf16.mxu0 0
        %2628 = vmatmul.mubr.bf16.gmra.mrb[0].mxu0 %v2584
        %v2629 = vpop.f32.mrb[0].mxu0
        %v2630 = vadd.f32 0.0, %v2629
        %v2631 = vpop.f32.mrb[0].mxu0
        %v2632 = vpop.f32.mrb[0].mxu0
        %v2633 = vadd.f32 0.0, %v2632
        %v2634 = vpop.f32.mrb[0].mxu0
        %2635 = vmatprep.mubr.bf16.mxu0 0
        %2636 = vmatmul.mubr.bf16.gmra.mrb[0].mxu0 %v2587
        %v2637 = vpop.f32.mrb[0].mxu0
        %v2638 = vadd.f32 0.0, %v2637
        %v2639 = vpop.f32.mrb[0].mxu0
        %v2640 = vpop.f32.mrb[0].mxu0
        %v2641 = vadd.f32 0.0, %v2640
        %v2642 = vpop.f32.mrb[0].mxu0
        %2643 = vmatprep.mubr.bf16.mxu0 0
        %2644 = vmatmul.mubr.bf16.gmra.mrb[0].mxu0 %v2590
        %v2645 = vpop.f32.mrb[0].mxu0
        %v2646 = vadd.f32 0.0, %v2645
        %v2647 = vpop.f32.mrb[0].mxu0
        %v2648 = vpop.f32.mrb[0].mxu0
        %v2649 = vadd.f32 0.0, %v2648
        %v2650 = vpop.f32.mrb[0].mxu0
        %2651 = vmatprep.mubr.bf16.mxu0 0
        %2652 = vmatmul.mubr.bf16.gmra.mrb[0].mxu0 %v2593
        %v2653 = vpop.f32.mrb[0].mxu0
        %v2654 = vadd.f32 0.0, %v2653
        %v2655 = vpop.f32.mrb[0].mxu0
        %v2656 = vpop.f32.mrb[0].mxu0
        %v2657 = vadd.f32 0.0, %v2656
        %v2658 = vpop.f32.mrb[0].mxu0
        %2659 = vdwg.mxu0
        %2661 = vset.pattern.permute.xlu0 0
        %2662 = vperm.xlu0 %2661, %v2532
        %v2663 = vpop.permute.xlu0 %2662
        %2666 = vset.pattern.permute.xlu0 0
        %2667 = vperm.xlu0 %2666, %v2533
        %v2668 = vpop.permute.xlu0 %2667
        %2671 = vset.pattern.permute.xlu0 0
        %2672 = vperm.xlu0 %2671, %v2534
        %v2673 = vpop.permute.xlu0 %2672
        %2676 = vset.pattern.permute.xlu0 0
        %2677 = vperm.xlu0 %2676, %v2535
        %v2678 = vpop.permute.xlu0 %2677
        %2681 = vset.pattern.permute.xlu0 0
        %2682 = vperm.xlu0 %2681, %v2536
        %v2683 = vpop.permute.xlu0 %2682
        %2686 = vset.pattern.permute.xlu0 0
        %2687 = vperm.xlu0 %2686, %v2537
        %v2688 = vpop.permute.xlu0 %2687
        %2691 = vset.pattern.permute.xlu0 0
        %2692 = vperm.xlu0 %2691, %v2538
        %v2693 = vpop.permute.xlu0 %2692
        %2696 = vset.pattern.permute.xlu0 0
        %2697 = vperm.xlu0 %2696, %v2539
        %v2698 = vpop.permute.xlu0 %2697
        %v2700 = vadd.f32 %v2663, %v2630
        %v2701 = vadd.f32 %v2668, %v2633
        %v2702 = vadd.f32 %v2673, %v2638
        %v2703 = vadd.f32 %v2678, %v2641
        %v2704 = vadd.f32 %v2683, %v2646
        %v2705 = vadd.f32 %v2688, %v2649
        %v2706 = vadd.f32 %v2693, %v2654
        %v2707 = vadd.f32 %v2698, %v2657
        %s2708 = scalar_lea.vmem %s4, 320
        %v2709 = vld [vmem:[%s2708] sm:$0xf]
        %v2710 = vld [vmem:[%s2708 + $0x4] sm:$0xf]
        %v2711 = vld [vmem:[%s2708 + $0x8] sm:$0xf]
        %v2712 = vld [vmem:[%s2708 + $0xc] sm:$0xf]
        %v2713 = vld [vmem:[%s2708 + $0x10] sm:$0xf]
        %v2714 = vld [vmem:[%s2708 + $0x14] sm:$0xf]
        %v2715 = vld [vmem:[%s2708 + $0x18] sm:$0xf]
        %v2716 = vld [vmem:[%s2708 + $0x1c] sm:$0xf]
        %v2717 = vpack.c.bf16 %v2528, %v2527
        %v2718 = vpack.c.bf16 %v2530, %v2529
        %v2727 = vunpack.c.l.b16 %v2709
        %v2728 = vunpack.c.l.b16 %v2710
        %v2729 = vunpack.c.l.b16 %v2711
        %v2730 = vunpack.c.l.b16 %v2712
        %v2731 = vunpack.c.l.b16 %v2713
        %v2732 = vunpack.c.l.b16 %v2714
        %v2733 = vunpack.c.l.b16 %v2715
        %v2734 = vunpack.c.l.b16 %v2716
        %v2735 = vpack.c.b16 %v2728, %v2727
        %v2736 = vpack.c.b16 %v2730, %v2729
        %v2737 = vpack.c.b16 %v2732, %v2731
        %v2738 = vpack.c.b16 %v2734, %v2733
        %v2740 = vsel %vm623, %v2735, 0
        %v2743 = vsel %vm623, %v2736, 0
        %v2746 = vsel %vm623, %v2737, 0
        %v2749 = vsel %vm623, %v2738, 0
        %2751 = vmatprep.subr.bf16.mxu0 0
        %2752 = vmatpush1.bf16.msra.mxu0 %v2717
        %2753 = vmatprep.subr.bf16.mxu0 0
        %2754 = vmatpush1.bf16.msra.mxu0 %v2718
        %2755 = vmatprep.subr.bf16.mxu0 0
        %2756 = vmatpush1.bf16.msra.mxu0 0
        %2757 = vmatprep.subr.bf16.mxu0 0
        %2758 = vmatpush1.bf16.msra.mxu0 0
        %2759 = vmatprep.subr.bf16.mxu0 0
        %2760 = vmatpush1.bf16.msra.mxu0 0
        %2761 = vmatprep.subr.bf16.mxu0 0
        %2762 = vmatpush1.bf16.msra.mxu0 0
        %2763 = vmatprep.subr.bf16.mxu0 0
        %2764 = vmatpush1.bf16.msra.mxu0 0
        %2765 = vmatprep.subr.bf16.mxu0 0
        %2766 = vmatpush1.bf16.msra.mxu0 0
        %2767 = vmatprep.subr.bf16.mxu0 0
        %2768 = vmatpush1.bf16.msra.mxu0 0
        %2769 = vmatprep.subr.bf16.mxu0 0
        %2770 = vmatpush1.bf16.msra.mxu0 0
        %2771 = vmatprep.subr.bf16.mxu0 0
        %2772 = vmatpush1.bf16.msra.mxu0 0
        %2773 = vmatprep.subr.bf16.mxu0 0
        %2774 = vmatpush1.bf16.msra.mxu0 0
        %2775 = vmatprep.subr.bf16.mxu0 0
        %2776 = vmatpush1.bf16.msra.mxu0 0
        %2777 = vmatprep.subr.bf16.mxu0 0
        %2778 = vmatpush1.bf16.msra.mxu0 0
        %2779 = vmatprep.subr.bf16.mxu0 0
        %2780 = vmatpush1.bf16.msra.mxu0 0
        %2781 = vmatprep.subr.bf16.mxu0 0
        %2782 = vmatpush1.bf16.msra.mxu0 0
        %2783 = vmatprep.mubr.bf16.mxu0 0
        %2784 = vmatmul.mubr.bf16.gmra.mrb[0].mxu0 %v2740
        %v2785 = vpop.f32.mrb[0].mxu0
        %v2786 = vadd.f32 0.0, %v2785
        %v2787 = vpop.f32.mrb[0].mxu0
        %v2788 = vpop.f32.mrb[0].mxu0
        %v2789 = vadd.f32 0.0, %v2788
        %v2790 = vpop.f32.mrb[0].mxu0
        %2791 = vmatprep.mubr.bf16.mxu0 0
        %2792 = vmatmul.mubr.bf16.gmra.mrb[0].mxu0 %v2743
        %v2793 = vpop.f32.mrb[0].mxu0
        %v2794 = vadd.f32 0.0, %v2793
        %v2795 = vpop.f32.mrb[0].mxu0
        %v2796 = vpop.f32.mrb[0].mxu0
        %v2797 = vadd.f32 0.0, %v2796
        %v2798 = vpop.f32.mrb[0].mxu0
        %2799 = vmatprep.mubr.bf16.mxu0 0
        %2800 = vmatmul.mubr.bf16.gmra.mrb[0].mxu0 %v2746
        %v2801 = vpop.f32.mrb[0].mxu0
        %v2802 = vadd.f32 0.0, %v2801
        %v2803 = vpop.f32.mrb[0].mxu0
        %v2804 = vpop.f32.mrb[0].mxu0
        %v2805 = vadd.f32 0.0, %v2804
        %v2806 = vpop.f32.mrb[0].mxu0
        %2807 = vmatprep.mubr.bf16.mxu0 0
        %2808 = vmatmul.mubr.bf16.gmra.mrb[0].mxu0 %v2749
        %v2809 = vpop.f32.mrb[0].mxu0
        %v2810 = vadd.f32 0.0, %v2809
        %v2811 = vpop.f32.mrb[0].mxu0
        %v2812 = vpop.f32.mrb[0].mxu0
        %v2813 = vadd.f32 0.0, %v2812
        %v2814 = vpop.f32.mrb[0].mxu0
        %2815 = vdwg.mxu0
        %v2816 = vadd.f32 %v2700, %v2786
        %v2817 = vadd.f32 %v2701, %v2789
        %v2818 = vadd.f32 %v2702, %v2794
        %v2819 = vadd.f32 %v2703, %v2797
        %v2820 = vadd.f32 %v2704, %v2802
        %v2821 = vadd.f32 %v2705, %v2805
        %v2822 = vadd.f32 %v2706, %v2810
        %v2823 = vadd.f32 %v2707, %v2813
        %s2824 = scalar_lea.vmem %s4, 352
        %v2825 = vld [vmem:[%s2824] sm:$0xf]
        %v2826 = vld [vmem:[%s2824 + $0x4] sm:$0xf]
        %v2827 = vld [vmem:[%s2824 + $0x8] sm:$0xf]
        %v2828 = vld [vmem:[%s2824 + $0xc] sm:$0xf]
        %v2829 = vld [vmem:[%s2824 + $0x10] sm:$0xf]
        %v2830 = vld [vmem:[%s2824 + $0x14] sm:$0xf]
        %v2831 = vld [vmem:[%s2824 + $0x18] sm:$0xf]
        %v2832 = vld [vmem:[%s2824 + $0x1c] sm:$0xf]
        %2833 = vrot.lane.b32.xlu0 %v2527, 127
        %v2834 = vpop.permute.xlu0 %2833
        %2835 = vrot.lane.b32.xlu0 %v2528, 127
        %v2836 = vpop.permute.xlu0 %2835
        %2837 = vrot.lane.b32.xlu0 %v2529, 127
        %v2838 = vpop.permute.xlu0 %2837
        %2839 = vrot.lane.b32.xlu0 %v2530, 127
        %v2840 = vpop.permute.xlu0 %2839
        %v2841 = vmul.f32 %v2834, %v451
        %v2842 = vmul.f32 %v2836, %v451
        %v2843 = vmul.f32 %v2838, %v451
        %v2844 = vmul.f32 %v2840, %v451
        %v2845 = vpack.c.bf16 %v2842, %v2841
        %v2846 = vpack.c.bf16 %v2844, %v2843
        %v2855 = vunpack.c.l.b16 %v2825
        %v2856 = vunpack.c.l.b16 %v2826
        %v2857 = vunpack.c.l.b16 %v2827
        %v2858 = vunpack.c.l.b16 %v2828
        %v2859 = vunpack.c.l.b16 %v2829
        %v2860 = vunpack.c.l.b16 %v2830
        %v2861 = vunpack.c.l.b16 %v2831
        %v2862 = vunpack.c.l.b16 %v2832
        %v2863 = vpack.c.b16 %v2856, %v2855
        %v2864 = vpack.c.b16 %v2858, %v2857
        %v2865 = vpack.c.b16 %v2860, %v2859
        %v2866 = vpack.c.b16 %v2862, %v2861
        %v2868 = vsel %vm623, %v2863, 0
        %v2871 = vsel %vm623, %v2864, 0
        %v2874 = vsel %vm623, %v2865, 0
        %v2877 = vsel %vm623, %v2866, 0
        %2879 = vmatprep.subr.bf16.mxu0 0
        %2880 = vmatpush1.bf16.msra.mxu0 %v2845
        %2881 = vmatprep.subr.bf16.mxu0 0
        %2882 = vmatpush1.bf16.msra.mxu0 %v2846
        %2883 = vmatprep.subr.bf16.mxu0 0
        %2884 = vmatpush1.bf16.msra.mxu0 0
        %2885 = vmatprep.subr.bf16.mxu0 0
        %2886 = vmatpush1.bf16.msra.mxu0 0
        %2887 = vmatprep.subr.bf16.mxu0 0
        %2888 = vmatpush1.bf16.msra.mxu0 0
        %2889 = vmatprep.subr.bf16.mxu0 0
        %2890 = vmatpush1.bf16.msra.mxu0 0
        %2891 = vmatprep.subr.bf16.mxu0 0
        %2892 = vmatpush1.bf16.msra.mxu0 0
        %2893 = vmatprep.subr.bf16.mxu0 0
        %2894 = vmatpush1.bf16.msra.mxu0 0
        %2895 = vmatprep.subr.bf16.mxu0 0
        %2896 = vmatpush1.bf16.msra.mxu0 0
        %2897 = vmatprep.subr.bf16.mxu0 0
        %2898 = vmatpush1.bf16.msra.mxu0 0
        %2899 = vmatprep.subr.bf16.mxu0 0
        %2900 = vmatpush1.bf16.msra.mxu0 0
        %2901 = vmatprep.subr.bf16.mxu0 0
        %2902 = vmatpush1.bf16.msra.mxu0 0
        %2903 = vmatprep.subr.bf16.mxu0 0
        %2904 = vmatpush1.bf16.msra.mxu0 0
        %2905 = vmatprep.subr.bf16.mxu0 0
        %2906 = vmatpush1.bf16.msra.mxu0 0
        %2907 = vmatprep.subr.bf16.mxu0 0
        %2908 = vmatpush1.bf16.msra.mxu0 0
        %2909 = vmatprep.subr.bf16.mxu0 0
        %2910 = vmatpush1.bf16.msra.mxu0 0
        %2911 = vmatprep.mubr.bf16.mxu0 0
        %2912 = vmatmul.mubr.bf16.gmra.mrb[0].mxu0 %v2868
        %v2913 = vpop.f32.mrb[0].mxu0
        %v2914 = vadd.f32 0.0, %v2913
        %v2915 = vpop.f32.mrb[0].mxu0
        %v2916 = vpop.f32.mrb[0].mxu0
        %v2917 = vadd.f32 0.0, %v2916
        %v2918 = vpop.f32.mrb[0].mxu0
        %2919 = vmatprep.mubr.bf16.mxu0 0
        %2920 = vmatmul.mubr.bf16.gmra.mrb[0].mxu0 %v2871
        %v2921 = vpop.f32.mrb[0].mxu0
        %v2922 = vadd.f32 0.0, %v2921
        %v2923 = vpop.f32.mrb[0].mxu0
        %v2924 = vpop.f32.mrb[0].mxu0
        %v2925 = vadd.f32 0.0, %v2924
        %v2926 = vpop.f32.mrb[0].mxu0
        %2927 = vmatprep.mubr.bf16.mxu0 0
        %2928 = vmatmul.mubr.bf16.gmra.mrb[0].mxu0 %v2874
        %v2929 = vpop.f32.mrb[0].mxu0
        %v2930 = vadd.f32 0.0, %v2929
        %v2931 = vpop.f32.mrb[0].mxu0
        %v2932 = vpop.f32.mrb[0].mxu0
        %v2933 = vadd.f32 0.0, %v2932
        %v2934 = vpop.f32.mrb[0].mxu0
        %2935 = vmatprep.mubr.bf16.mxu0 0
        %2936 = vmatmul.mubr.bf16.gmra.mrb[0].mxu0 %v2877
        %v2937 = vpop.f32.mrb[0].mxu0
        %v2938 = vadd.f32 0.0, %v2937
        %v2939 = vpop.f32.mrb[0].mxu0
        %v2940 = vpop.f32.mrb[0].mxu0
        %v2941 = vadd.f32 0.0, %v2940
        %v2942 = vpop.f32.mrb[0].mxu0
        %2943 = vdwg.mxu0
        %v2944 = vadd.f32 %v2816, %v2914
        %v2945 = vadd.f32 %v2817, %v2917
        %v2946 = vadd.f32 %v2818, %v2922
        %v2947 = vadd.f32 %v2819, %v2925
        %v2948 = vadd.f32 %v2820, %v2930
        %v2949 = vadd.f32 %v2821, %v2933
        %v2950 = vadd.f32 %v2822, %v2938
        %v2951 = vadd.f32 %v2823, %v2941
        %v2952 = vtanh.pop %v2944
        %v2953 = vtanh.pop %v2945
        %v2954 = vtanh.pop %v2946
        %v2955 = vtanh.pop %v2947
        %v2956 = vxor.u32 %v2948, 2147483648
        %v2957 = vxor.u32 %v2949, 2147483648
        %v2958 = vxor.u32 %v2950, 2147483648
        %v2959 = vxor.u32 %v2951, 2147483648
        %v2960 = vmul.f32 %v2956, 1.442695
        %v2961 = vpow.pop %v2960
        %v2962 = vmul.f32 %v2957, 1.442695
        %v2963 = vpow.pop %v2962
        %v2964 = vmul.f32 %v2958, 1.442695
        %v2965 = vpow.pop %v2964
        %v2966 = vmul.f32 %v2959, 1.442695
        %v2967 = vpow.pop %v2966
        %v2968 = vadd.f32 %v2961, 1.0
        %v2969 = vadd.f32 %v2963, 1.0
        %v2970 = vadd.f32 %v2965, 1.0
        %v2971 = vadd.f32 %v2967, 1.0
        %v2972 = vrcp.pop %v2968
        %v2973 = vmul.f32 1.0, %v2972
        %v2974 = vrcp.pop %v2969
        %v2975 = vmul.f32 1.0, %v2974
        %v2976 = vrcp.pop %v2970
        %v2977 = vmul.f32 1.0, %v2976
        %v2978 = vrcp.pop %v2971
        %v2979 = vmul.f32 1.0, %v2978
        %v2980 = vmul.f32 %v2952, %v2973
        %v2981 = vmul.f32 %v2953, %v2975
        %v2982 = vmul.f32 %v2954, %v2977
        %v2983 = vmul.f32 %v2955, %v2979
        %s2984 = scalar_lea.vmem %s6, 64
        %v2985 = vld [vmem:[%s2984] sm:$0xf]
        %v2986 = vld [vmem:[%s2984 + $0x4] sm:$0xf]
        %v2987 = vld [vmem:[%s2984 + $0x8] sm:$0xf]
        %v2988 = vld [vmem:[%s2984 + $0xc] sm:$0xf]
        %v2989 = vld [vmem:[%s2984 + $0x10] sm:$0xf]
        %v2990 = vld [vmem:[%s2984 + $0x14] sm:$0xf]
        %v2991 = vld [vmem:[%s2984 + $0x18] sm:$0xf]
        %v2992 = vld [vmem:[%s2984 + $0x1c] sm:$0xf]
        %v2993 = vpack.c.bf16 %v2981, %v2980
        %v2994 = vpack.c.bf16 %v2983, %v2982
        %s2995 = scalar_lea.vmem %s7, 128
        %v2996 = vld [vmem:[%s2995] sm:$0xff]
        %v2997 = vld [vmem:[%s2995 + $0x8] sm:$0xff]
        %v2998 = vld [vmem:[%s2995 + $0x10] sm:$0xff]
        %v2999 = vld [vmem:[%s2995 + $0x18] sm:$0xff]
        %v3000 = vld [vmem:[%s2995 + $0x20] sm:$0xff]
        %v3001 = vld [vmem:[%s2995 + $0x28] sm:$0xff]
        %v3002 = vld [vmem:[%s2995 + $0x30] sm:$0xff]
        %v3003 = vld [vmem:[%s2995 + $0x38] sm:$0xff]
        %3005 = vset.pattern.permute.xlu0 0
        %3006 = vperm.xlu0 %3005, %v2996
        %v3007 = vpop.permute.xlu0 %3006
        %3010 = vset.pattern.permute.xlu0 0
        %3011 = vperm.xlu0 %3010, %v2997
        %v3012 = vpop.permute.xlu0 %3011
        %3015 = vset.pattern.permute.xlu0 0
        %3016 = vperm.xlu0 %3015, %v2998
        %v3017 = vpop.permute.xlu0 %3016
        %3020 = vset.pattern.permute.xlu0 0
        %3021 = vperm.xlu0 %3020, %v2999
        %v3022 = vpop.permute.xlu0 %3021
        %3025 = vset.pattern.permute.xlu0 0
        %3026 = vperm.xlu0 %3025, %v3000
        %v3027 = vpop.permute.xlu0 %3026
        %3030 = vset.pattern.permute.xlu0 0
        %3031 = vperm.xlu0 %3030, %v3001
        %v3032 = vpop.permute.xlu0 %3031
        %3035 = vset.pattern.permute.xlu0 0
        %3036 = vperm.xlu0 %3035, %v3002
        %v3037 = vpop.permute.xlu0 %3036
        %3040 = vset.pattern.permute.xlu0 0
        %3041 = vperm.xlu0 %3040, %v3003
        %v3042 = vpop.permute.xlu0 %3041
        %v3052 = vunpack.c.l.b16 %v2985
        %v3053 = vunpack.c.l.b16 %v2986
        %v3054 = vunpack.c.l.b16 %v2987
        %v3055 = vunpack.c.l.b16 %v2988
        %v3056 = vunpack.c.l.b16 %v2989
        %v3057 = vunpack.c.l.b16 %v2990
        %v3058 = vunpack.c.l.b16 %v2991
        %v3059 = vunpack.c.l.b16 %v2992
        %v3060 = vpack.c.b16 %v3053, %v3052
        %v3061 = vpack.c.b16 %v3055, %v3054
        %v3062 = vpack.c.b16 %v3057, %v3056
        %v3063 = vpack.c.b16 %v3059, %v3058
        %v3065 = vsel %vm623, %v3060, 0
        %v3068 = vsel %vm623, %v3061, 0
        %v3071 = vsel %vm623, %v3062, 0
        %v3074 = vsel %vm623, %v3063, 0
        %3076 = vmatprep.subr.bf16.mxu0 0
        %3077 = vmatpush1.bf16.msra.mxu0 %v2993
        %3078 = vmatprep.subr.bf16.mxu0 0
        %3079 = vmatpush1.bf16.msra.mxu0 %v2994
        %3080 = vmatprep.subr.bf16.mxu0 0
        %3081 = vmatpush1.bf16.msra.mxu0 0
        %3082 = vmatprep.subr.bf16.mxu0 0
        %3083 = vmatpush1.bf16.msra.mxu0 0
        %3084 = vmatprep.subr.bf16.mxu0 0
        %3085 = vmatpush1.bf16.msra.mxu0 0
        %3086 = vmatprep.subr.bf16.mxu0 0
        %3087 = vmatpush1.bf16.msra.mxu0 0
        %3088 = vmatprep.subr.bf16.mxu0 0
        %3089 = vmatpush1.bf16.msra.mxu0 0
        %3090 = vmatprep.subr.bf16.mxu0 0
        %3091 = vmatpush1.bf16.msra.mxu0 0
        %3092 = vmatprep.subr.bf16.mxu0 0
        %3093 = vmatpush1.bf16.msra.mxu0 0
        %3094 = vmatprep.subr.bf16.mxu0 0
        %3095 = vmatpush1.bf16.msra.mxu0 0
        %3096 = vmatprep.subr.bf16.mxu0 0
        %3097 = vmatpush1.bf16.msra.mxu0 0
        %3098 = vmatprep.subr.bf16.mxu0 0
        %3099 = vmatpush1.bf16.msra.mxu0 0
        %3100 = vmatprep.subr.bf16.mxu0 0
        %3101 = vmatpush1.bf16.msra.mxu0 0
        %3102 = vmatprep.subr.bf16.mxu0 0
        %3103 = vmatpush1.bf16.msra.mxu0 0
        %3104 = vmatprep.subr.bf16.mxu0 0
        %3105 = vmatpush1.bf16.msra.mxu0 0
        %3106 = vmatprep.subr.bf16.mxu0 0
        %3107 = vmatpush1.bf16.msra.mxu0 0
        %3108 = vmatprep.mubr.bf16.mxu0 0
        %3109 = vmatmul.mubr.bf16.gmra.mrb[0].mxu0 %v3065
        %v3110 = vpop.f32.mrb[0].mxu0
        %v3111 = vadd.f32 %v3007, %v3110
        %v3112 = vpop.f32.mrb[0].mxu0
        %v3113 = vpop.f32.mrb[0].mxu0
        %v3114 = vadd.f32 %v3012, %v3113
        %v3115 = vpop.f32.mrb[0].mxu0
        %3116 = vmatprep.mubr.bf16.mxu0 0
        %3117 = vmatmul.mubr.bf16.gmra.mrb[0].mxu0 %v3068
        %v3118 = vpop.f32.mrb[0].mxu0
        %v3119 = vadd.f32 %v3017, %v3118
        %v3120 = vpop.f32.mrb[0].mxu0
        %v3121 = vpop.f32.mrb[0].mxu0
        %v3122 = vadd.f32 %v3022, %v3121
        %v3123 = vpop.f32.mrb[0].mxu0
        %3124 = vmatprep.mubr.bf16.mxu0 0
        %3125 = vmatmul.mubr.bf16.gmra.mrb[0].mxu0 %v3071
        %v3126 = vpop.f32.mrb[0].mxu0
        %v3127 = vadd.f32 %v3027, %v3126
        %v3128 = vpop.f32.mrb[0].mxu0
        %v3129 = vpop.f32.mrb[0].mxu0
        %v3130 = vadd.f32 %v3032, %v3129
        %v3131 = vpop.f32.mrb[0].mxu0
        %3132 = vmatprep.mubr.bf16.mxu0 0
        %3133 = vmatmul.mubr.bf16.gmra.mrb[0].mxu0 %v3074
        %v3134 = vpop.f32.mrb[0].mxu0
        %v3135 = vadd.f32 %v3037, %v3134
        %v3136 = vpop.f32.mrb[0].mxu0
        %v3137 = vpop.f32.mrb[0].mxu0
        %v3138 = vadd.f32 %v3042, %v3137
        %v3139 = vpop.f32.mrb[0].mxu0
        %3140 = vdwg.mxu0
        %v3141 = vadd.f32 %v2527, %v3111
        %v3142 = vadd.f32 %v2528, %v3114
        %v3143 = vadd.f32 %v2529, %v3119
        %v3144 = vadd.f32 %v2530, %v3122
        %v3145 = vmul.f32 %v3141, %v567
        %v3146 = vmul.f32 %v3142, %v567
        %v3147 = vmul.f32 %v3143, %v567
        %v3148 = vmul.f32 %v3144, %v567
        %v3149 = vadd.f32 %v3127, 0.0
        %v3150 = vadd.f32 %v3130, 0.0
        %v3151 = vadd.f32 %v3135, 0.0
        %v3152 = vadd.f32 %v3138, 0.0
        %s3153 = scalar_lea.vmem %s5, 256
        %v3154 = vld [vmem:[%s3153] sm:$0xff]
        %v3155 = vld [vmem:[%s3153 + $0x8] sm:$0xff]
        %v3156 = vld [vmem:[%s3153 + $0x10] sm:$0xff]
        %v3157 = vld [vmem:[%s3153 + $0x18] sm:$0xff]
        %v3158 = vld [vmem:[%s3153 + $0x20] sm:$0xff]
        %v3159 = vld [vmem:[%s3153 + $0x28] sm:$0xff]
        %v3160 = vld [vmem:[%s3153 + $0x30] sm:$0xff]
        %v3161 = vld [vmem:[%s3153 + $0x38] sm:$0xff]
        %s3162 = scalar_lea.vmem %s4, 384
        %v3163 = vld [vmem:[%s3162] sm:$0xf]
        %v3164 = vld [vmem:[%s3162 + $0x4] sm:$0xf]
        %v3165 = vld [vmem:[%s3162 + $0x8] sm:$0xf]
        %v3166 = vld [vmem:[%s3162 + $0xc] sm:$0xf]
        %v3167 = vld [vmem:[%s3162 + $0x10] sm:$0xf]
        %v3168 = vld [vmem:[%s3162 + $0x14] sm:$0xf]
        %v3169 = vld [vmem:[%s3162 + $0x18] sm:$0xf]
        %v3170 = vld [vmem:[%s3162 + $0x1c] sm:$0xf]
        %3171 = vrot.lane.b32.xlu0 %v3145, 2
        %v3172 = vpop.permute.xlu0 %3171
        %3173 = vrot.lane.b32.xlu0 %v3146, 2
        %v3174 = vpop.permute.xlu0 %3173
        %3175 = vrot.lane.b32.xlu0 %v3147, 2
        %v3176 = vpop.permute.xlu0 %3175
        %3177 = vrot.lane.b32.xlu0 %v3148, 2
        %v3178 = vpop.permute.xlu0 %3177
        %v3179 = vmul.f32 %v3172, %v439
        %v3180 = vmul.f32 %v3174, %v439
        %v3181 = vmul.f32 %v3176, %v439
        %v3182 = vmul.f32 %v3178, %v439
        %v3183 = vpack.c.bf16 %v3180, %v3179
        %v3184 = vpack.c.bf16 %v3182, %v3181
        %v3193 = vunpack.c.l.b16 %v3163
        %v3194 = vunpack.c.l.b16 %v3164
        %v3195 = vunpack.c.l.b16 %v3165
        %v3196 = vunpack.c.l.b16 %v3166
        %v3197 = vunpack.c.l.b16 %v3167
        %v3198 = vunpack.c.l.b16 %v3168
        %v3199 = vunpack.c.l.b16 %v3169
        %v3200 = vunpack.c.l.b16 %v3170
        %v3201 = vpack.c.b16 %v3194, %v3193
        %v3202 = vpack.c.b16 %v3196, %v3195
        %v3203 = vpack.c.b16 %v3198, %v3197
        %v3204 = vpack.c.b16 %v3200, %v3199
        %v3206 = vsel %vm623, %v3201, 0
        %v3209 = vsel %vm623, %v3202, 0
        %v3212 = vsel %vm623, %v3203, 0
        %v3215 = vsel %vm623, %v3204, 0
        %3217 = vmatprep.subr.bf16.mxu0 0
        %3218 = vmatpush1.bf16.msra.mxu0 %v3183
        %3219 = vmatprep.subr.bf16.mxu0 0
        %3220 = vmatpush1.bf16.msra.mxu0 %v3184
        %3221 = vmatprep.subr.bf16.mxu0 0
        %3222 = vmatpush1.bf16.msra.mxu0 0
        %3223 = vmatprep.subr.bf16.mxu0 0
        %3224 = vmatpush1.bf16.msra.mxu0 0
        %3225 = vmatprep.subr.bf16.mxu0 0
        %3226 = vmatpush1.bf16.msra.mxu0 0
        %3227 = vmatprep.subr.bf16.mxu0 0
        %3228 = vmatpush1.bf16.msra.mxu0 0
        %3229 = vmatprep.subr.bf16.mxu0 0
        %3230 = vmatpush1.bf16.msra.mxu0 0
        %3231 = vmatprep.subr.bf16.mxu0 0
        %3232 = vmatpush1.bf16.msra.mxu0 0
        %3233 = vmatprep.subr.bf16.mxu0 0
        %3234 = vmatpush1.bf16.msra.mxu0 0
        %3235 = vmatprep.subr.bf16.mxu0 0
        %3236 = vmatpush1.bf16.msra.mxu0 0
        %3237 = vmatprep.subr.bf16.mxu0 0
        %3238 = vmatpush1.bf16.msra.mxu0 0
        %3239 = vmatprep.subr.bf16.mxu0 0
        %3240 = vmatpush1.bf16.msra.mxu0 0
        %3241 = vmatprep.subr.bf16.mxu0 0
        %3242 = vmatpush1.bf16.msra.mxu0 0
        %3243 = vmatprep.subr.bf16.mxu0 0
        %3244 = vmatpush1.bf16.msra.mxu0 0
        %3245 = vmatprep.subr.bf16.mxu0 0
        %3246 = vmatpush1.bf16.msra.mxu0 0
        %3247 = vmatprep.subr.bf16.mxu0 0
        %3248 = vmatpush1.bf16.msra.mxu0 0
        %3249 = vmatprep.mubr.bf16.mxu0 0
        %3250 = vmatmul.mubr.bf16.gmra.mrb[0].mxu0 %v3206
        %v3251 = vpop.f32.mrb[0].mxu0
        %v3252 = vadd.f32 0.0, %v3251
        %v3253 = vpop.f32.mrb[0].mxu0
        %v3254 = vpop.f32.mrb[0].mxu0
        %v3255 = vadd.f32 0.0, %v3254
        %v3256 = vpop.f32.mrb[0].mxu0
        %3257 = vmatprep.mubr.bf16.mxu0 0
        %3258 = vmatmul.mubr.bf16.gmra.mrb[0].mxu0 %v3209
        %v3259 = vpop.f32.mrb[0].mxu0
        %v3260 = vadd.f32 0.0, %v3259
        %v3261 = vpop.f32.mrb[0].mxu0
        %v3262 = vpop.f32.mrb[0].mxu0
        %v3263 = vadd.f32 0.0, %v3262
        %v3264 = vpop.f32.mrb[0].mxu0
        %3265 = vmatprep.mubr.bf16.mxu0 0
        %3266 = vmatmul.mubr.bf16.gmra.mrb[0].mxu0 %v3212
        %v3267 = vpop.f32.mrb[0].mxu0
        %v3268 = vadd.f32 0.0, %v3267
        %v3269 = vpop.f32.mrb[0].mxu0
        %v3270 = vpop.f32.mrb[0].mxu0
        %v3271 = vadd.f32 0.0, %v3270
        %v3272 = vpop.f32.mrb[0].mxu0
        %3273 = vmatprep.mubr.bf16.mxu0 0
        %3274 = vmatmul.mubr.bf16.gmra.mrb[0].mxu0 %v3215
        %v3275 = vpop.f32.mrb[0].mxu0
        %v3276 = vadd.f32 0.0, %v3275
        %v3277 = vpop.f32.mrb[0].mxu0
        %v3278 = vpop.f32.mrb[0].mxu0
        %v3279 = vadd.f32 0.0, %v3278
        %v3280 = vpop.f32.mrb[0].mxu0
        %3281 = vdwg.mxu0
        %3283 = vset.pattern.permute.xlu0 0
        %3284 = vperm.xlu0 %3283, %v3154
        %v3285 = vpop.permute.xlu0 %3284
        %3288 = vset.pattern.permute.xlu0 0
        %3289 = vperm.xlu0 %3288, %v3155
        %v3290 = vpop.permute.xlu0 %3289
        %3293 = vset.pattern.permute.xlu0 0
        %3294 = vperm.xlu0 %3293, %v3156
        %v3295 = vpop.permute.xlu0 %3294
        %3298 = vset.pattern.permute.xlu0 0
        %3299 = vperm.xlu0 %3298, %v3157
        %v3300 = vpop.permute.xlu0 %3299
        %3303 = vset.pattern.permute.xlu0 0
        %3304 = vperm.xlu0 %3303, %v3158
        %v3305 = vpop.permute.xlu0 %3304
        %3308 = vset.pattern.permute.xlu0 0
        %3309 = vperm.xlu0 %3308, %v3159
        %v3310 = vpop.permute.xlu0 %3309
        %3313 = vset.pattern.permute.xlu0 0
        %3314 = vperm.xlu0 %3313, %v3160
        %v3315 = vpop.permute.xlu0 %3314
        %3318 = vset.pattern.permute.xlu0 0
        %3319 = vperm.xlu0 %3318, %v3161
        %v3320 = vpop.permute.xlu0 %3319
        %v3322 = vadd.f32 %v3285, %v3252
        %v3323 = vadd.f32 %v3290, %v3255
        %v3324 = vadd.f32 %v3295, %v3260
        %v3325 = vadd.f32 %v3300, %v3263
        %v3326 = vadd.f32 %v3305, %v3268
        %v3327 = vadd.f32 %v3310, %v3271
        %v3328 = vadd.f32 %v3315, %v3276
        %v3329 = vadd.f32 %v3320, %v3279
        %s3330 = scalar_lea.vmem %s4, 416
        %v3331 = vld [vmem:[%s3330] sm:$0xf]
        %v3332 = vld [vmem:[%s3330 + $0x4] sm:$0xf]
        %v3333 = vld [vmem:[%s3330 + $0x8] sm:$0xf]
        %v3334 = vld [vmem:[%s3330 + $0xc] sm:$0xf]
        %v3335 = vld [vmem:[%s3330 + $0x10] sm:$0xf]
        %v3336 = vld [vmem:[%s3330 + $0x14] sm:$0xf]
        %v3337 = vld [vmem:[%s3330 + $0x18] sm:$0xf]
        %v3338 = vld [vmem:[%s3330 + $0x1c] sm:$0xf]
        %v3339 = vpack.c.bf16 %v3146, %v3145
        %v3340 = vpack.c.bf16 %v3148, %v3147
        %v3349 = vunpack.c.l.b16 %v3331
        %v3350 = vunpack.c.l.b16 %v3332
        %v3351 = vunpack.c.l.b16 %v3333
        %v3352 = vunpack.c.l.b16 %v3334
        %v3353 = vunpack.c.l.b16 %v3335
        %v3354 = vunpack.c.l.b16 %v3336
        %v3355 = vunpack.c.l.b16 %v3337
        %v3356 = vunpack.c.l.b16 %v3338
        %v3357 = vpack.c.b16 %v3350, %v3349
        %v3358 = vpack.c.b16 %v3352, %v3351
        %v3359 = vpack.c.b16 %v3354, %v3353
        %v3360 = vpack.c.b16 %v3356, %v3355
        %v3362 = vsel %vm623, %v3357, 0
        %v3365 = vsel %vm623, %v3358, 0
        %v3368 = vsel %vm623, %v3359, 0
        %v3371 = vsel %vm623, %v3360, 0
        %3373 = vmatprep.subr.bf16.mxu0 0
        %3374 = vmatpush1.bf16.msra.mxu0 %v3339
        %3375 = vmatprep.subr.bf16.mxu0 0
        %3376 = vmatpush1.bf16.msra.mxu0 %v3340
        %3377 = vmatprep.subr.bf16.mxu0 0
        %3378 = vmatpush1.bf16.msra.mxu0 0
        %3379 = vmatprep.subr.bf16.mxu0 0
        %3380 = vmatpush1.bf16.msra.mxu0 0
        %3381 = vmatprep.subr.bf16.mxu0 0
        %3382 = vmatpush1.bf16.msra.mxu0 0
        %3383 = vmatprep.subr.bf16.mxu0 0
        %3384 = vmatpush1.bf16.msra.mxu0 0
        %3385 = vmatprep.subr.bf16.mxu0 0
        %3386 = vmatpush1.bf16.msra.mxu0 0
        %3387 = vmatprep.subr.bf16.mxu0 0
        %3388 = vmatpush1.bf16.msra.mxu0 0
        %3389 = vmatprep.subr.bf16.mxu0 0
        %3390 = vmatpush1.bf16.msra.mxu0 0
        %3391 = vmatprep.subr.bf16.mxu0 0
        %3392 = vmatpush1.bf16.msra.mxu0 0
        %3393 = vmatprep.subr.bf16.mxu0 0
        %3394 = vmatpush1.bf16.msra.mxu0 0
        %3395 = vmatprep.subr.bf16.mxu0 0
        %3396 = vmatpush1.bf16.msra.mxu0 0
        %3397 = vmatprep.subr.bf16.mxu0 0
        %3398 = vmatpush1.bf16.msra.mxu0 0
        %3399 = vmatprep.subr.bf16.mxu0 0
        %3400 = vmatpush1.bf16.msra.mxu0 0
        %3401 = vmatprep.subr.bf16.mxu0 0
        %3402 = vmatpush1.bf16.msra.mxu0 0
        %3403 = vmatprep.subr.bf16.mxu0 0
        %3404 = vmatpush1.bf16.msra.mxu0 0
        %3405 = vmatprep.mubr.bf16.mxu0 0
        %3406 = vmatmul.mubr.bf16.gmra.mrb[0].mxu0 %v3362
        %v3407 = vpop.f32.mrb[0].mxu0
        %v3408 = vadd.f32 0.0, %v3407
        %v3409 = vpop.f32.mrb[0].mxu0
        %v3410 = vpop.f32.mrb[0].mxu0
        %v3411 = vadd.f32 0.0, %v3410
        %v3412 = vpop.f32.mrb[0].mxu0
        %3413 = vmatprep.mubr.bf16.mxu0 0
        %3414 = vmatmul.mubr.bf16.gmra.mrb[0].mxu0 %v3365
        %v3415 = vpop.f32.mrb[0].mxu0
        %v3416 = vadd.f32 0.0, %v3415
        %v3417 = vpop.f32.mrb[0].mxu0
        %v3418 = vpop.f32.mrb[0].mxu0
        %v3419 = vadd.f32 0.0, %v3418
        %v3420 = vpop.f32.mrb[0].mxu0
        %3421 = vmatprep.mubr.bf16.mxu0 0
        %3422 = vmatmul.mubr.bf16.gmra.mrb[0].mxu0 %v3368
        %v3423 = vpop.f32.mrb[0].mxu0
        %v3424 = vadd.f32 0.0, %v3423
        %v3425 = vpop.f32.mrb[0].mxu0
        %v3426 = vpop.f32.mrb[0].mxu0
        %v3427 = vadd.f32 0.0, %v3426
        %v3428 = vpop.f32.mrb[0].mxu0
        %3429 = vmatprep.mubr.bf16.mxu0 0
        %3430 = vmatmul.mubr.bf16.gmra.mrb[0].mxu0 %v3371
        %v3431 = vpop.f32.mrb[0].mxu0
        %v3432 = vadd.f32 0.0, %v3431
        %v3433 = vpop.f32.mrb[0].mxu0
        %v3434 = vpop.f32.mrb[0].mxu0
        %v3435 = vadd.f32 0.0, %v3434
        %v3436 = vpop.f32.mrb[0].mxu0
        %3437 = vdwg.mxu0
        %v3438 = vadd.f32 %v3322, %v3408
        %v3439 = vadd.f32 %v3323, %v3411
        %v3440 = vadd.f32 %v3324, %v3416
        %v3441 = vadd.f32 %v3325, %v3419
        %v3442 = vadd.f32 %v3326, %v3424
        %v3443 = vadd.f32 %v3327, %v3427
        %v3444 = vadd.f32 %v3328, %v3432
        %v3445 = vadd.f32 %v3329, %v3435
        %s3446 = scalar_lea.vmem %s4, 448
        %v3447 = vld [vmem:[%s3446] sm:$0xf]
        %v3448 = vld [vmem:[%s3446 + $0x4] sm:$0xf]
        %v3449 = vld [vmem:[%s3446 + $0x8] sm:$0xf]
        %v3450 = vld [vmem:[%s3446 + $0xc] sm:$0xf]
        %v3451 = vld [vmem:[%s3446 + $0x10] sm:$0xf]
        %v3452 = vld [vmem:[%s3446 + $0x14] sm:$0xf]
        %v3453 = vld [vmem:[%s3446 + $0x18] sm:$0xf]
        %v3454 = vld [vmem:[%s3446 + $0x1c] sm:$0xf]
        %3455 = vrot.lane.b32.xlu0 %v3145, 126
        %v3456 = vpop.permute.xlu0 %3455
        %3457 = vrot.lane.b32.xlu0 %v3146, 126
        %v3458 = vpop.permute.xlu0 %3457
        %3459 = vrot.lane.b32.xlu0 %v3147, 126
        %v3460 = vpop.permute.xlu0 %3459
        %3461 = vrot.lane.b32.xlu0 %v3148, 126
        %v3462 = vpop.permute.xlu0 %3461
        %v3463 = vmul.f32 %v3456, %v457
        %v3464 = vmul.f32 %v3458, %v457
        %v3465 = vmul.f32 %v3460, %v457
        %v3466 = vmul.f32 %v3462, %v457
        %v3467 = vpack.c.bf16 %v3464, %v3463
        %v3468 = vpack.c.bf16 %v3466, %v3465
        %v3477 = vunpack.c.l.b16 %v3447
        %v3478 = vunpack.c.l.b16 %v3448
        %v3479 = vunpack.c.l.b16 %v3449
        %v3480 = vunpack.c.l.b16 %v3450
        %v3481 = vunpack.c.l.b16 %v3451
        %v3482 = vunpack.c.l.b16 %v3452
        %v3483 = vunpack.c.l.b16 %v3453
        %v3484 = vunpack.c.l.b16 %v3454
        %v3485 = vpack.c.b16 %v3478, %v3477
        %v3486 = vpack.c.b16 %v3480, %v3479
        %v3487 = vpack.c.b16 %v3482, %v3481
        %v3488 = vpack.c.b16 %v3484, %v3483
        %v3490 = vsel %vm623, %v3485, 0
        %v3493 = vsel %vm623, %v3486, 0
        %v3496 = vsel %vm623, %v3487, 0
        %v3499 = vsel %vm623, %v3488, 0
        %3501 = vmatprep.subr.bf16.mxu0 0
        %3502 = vmatpush1.bf16.msra.mxu0 %v3467
        %3503 = vmatprep.subr.bf16.mxu0 0
        %3504 = vmatpush1.bf16.msra.mxu0 %v3468
        %3505 = vmatprep.subr.bf16.mxu0 0
        %3506 = vmatpush1.bf16.msra.mxu0 0
        %3507 = vmatprep.subr.bf16.mxu0 0
        %3508 = vmatpush1.bf16.msra.mxu0 0
        %3509 = vmatprep.subr.bf16.mxu0 0
        %3510 = vmatpush1.bf16.msra.mxu0 0
        %3511 = vmatprep.subr.bf16.mxu0 0
        %3512 = vmatpush1.bf16.msra.mxu0 0
        %3513 = vmatprep.subr.bf16.mxu0 0
        %3514 = vmatpush1.bf16.msra.mxu0 0
        %3515 = vmatprep.subr.bf16.mxu0 0
        %3516 = vmatpush1.bf16.msra.mxu0 0
        %3517 = vmatprep.subr.bf16.mxu0 0
        %3518 = vmatpush1.bf16.msra.mxu0 0
        %3519 = vmatprep.subr.bf16.mxu0 0
        %3520 = vmatpush1.bf16.msra.mxu0 0
        %3521 = vmatprep.subr.bf16.mxu0 0
        %3522 = vmatpush1.bf16.msra.mxu0 0
        %3523 = vmatprep.subr.bf16.mxu0 0
        %3524 = vmatpush1.bf16.msra.mxu0 0
        %3525 = vmatprep.subr.bf16.mxu0 0
        %3526 = vmatpush1.bf16.msra.mxu0 0
        %3527 = vmatprep.subr.bf16.mxu0 0
        %3528 = vmatpush1.bf16.msra.mxu0 0
        %3529 = vmatprep.subr.bf16.mxu0 0
        %3530 = vmatpush1.bf16.msra.mxu0 0
        %3531 = vmatprep.subr.bf16.mxu0 0
        %3532 = vmatpush1.bf16.msra.mxu0 0
        %3533 = vmatprep.mubr.bf16.mxu0 0
        %3534 = vmatmul.mubr.bf16.gmra.mrb[0].mxu0 %v3490
        %v3535 = vpop.f32.mrb[0].mxu0
        %v3536 = vadd.f32 0.0, %v3535
        %v3537 = vpop.f32.mrb[0].mxu0
        %v3538 = vpop.f32.mrb[0].mxu0
        %v3539 = vadd.f32 0.0, %v3538
        %v3540 = vpop.f32.mrb[0].mxu0
        %3541 = vmatprep.mubr.bf16.mxu0 0
        %3542 = vmatmul.mubr.bf16.gmra.mrb[0].mxu0 %v3493
        %v3543 = vpop.f32.mrb[0].mxu0
        %v3544 = vadd.f32 0.0, %v3543
        %v3545 = vpop.f32.mrb[0].mxu0
        %v3546 = vpop.f32.mrb[0].mxu0
        %v3547 = vadd.f32 0.0, %v3546
        %v3548 = vpop.f32.mrb[0].mxu0
        %3549 = vmatprep.mubr.bf16.mxu0 0
        %3550 = vmatmul.mubr.bf16.gmra.mrb[0].mxu0 %v3496
        %v3551 = vpop.f32.mrb[0].mxu0
        %v3552 = vadd.f32 0.0, %v3551
        %v3553 = vpop.f32.mrb[0].mxu0
        %v3554 = vpop.f32.mrb[0].mxu0
        %v3555 = vadd.f32 0.0, %v3554
        %v3556 = vpop.f32.mrb[0].mxu0
        %3557 = vmatprep.mubr.bf16.mxu0 0
        %3558 = vmatmul.mubr.bf16.gmra.mrb[0].mxu0 %v3499
        %v3559 = vpop.f32.mrb[0].mxu0
        %v3560 = vadd.f32 0.0, %v3559
        %v3561 = vpop.f32.mrb[0].mxu0
        %v3562 = vpop.f32.mrb[0].mxu0
        %v3563 = vadd.f32 0.0, %v3562
        %v3564 = vpop.f32.mrb[0].mxu0
        %3565 = vdwg.mxu0
        %v3566 = vadd.f32 %v3438, %v3536
        %v3567 = vadd.f32 %v3439, %v3539
        %v3568 = vadd.f32 %v3440, %v3544
        %v3569 = vadd.f32 %v3441, %v3547
        %v3570 = vadd.f32 %v3442, %v3552
        %v3571 = vadd.f32 %v3443, %v3555
        %v3572 = vadd.f32 %v3444, %v3560
        %v3573 = vadd.f32 %v3445, %v3563
        %v3574 = vtanh.pop %v3566
        %v3575 = vtanh.pop %v3567
        %v3576 = vtanh.pop %v3568
        %v3577 = vtanh.pop %v3569
        %v3578 = vxor.u32 %v3570, 2147483648
        %v3579 = vxor.u32 %v3571, 2147483648
        %v3580 = vxor.u32 %v3572, 2147483648
        %v3581 = vxor.u32 %v3573, 2147483648
        %v3582 = vmul.f32 %v3578, 1.442695
        %v3583 = vpow.pop %v3582
        %v3584 = vmul.f32 %v3579, 1.442695
        %v3585 = vpow.pop %v3584
        %v3586 = vmul.f32 %v3580, 1.442695
        %v3587 = vpow.pop %v3586
        %v3588 = vmul.f32 %v3581, 1.442695
        %v3589 = vpow.pop %v3588
        %v3590 = vadd.f32 %v3583, 1.0
        %v3591 = vadd.f32 %v3585, 1.0
        %v3592 = vadd.f32 %v3587, 1.0
        %v3593 = vadd.f32 %v3589, 1.0
        %v3594 = vrcp.pop %v3590
        %v3595 = vmul.f32 1.0, %v3594
        %v3596 = vrcp.pop %v3591
        %v3597 = vmul.f32 1.0, %v3596
        %v3598 = vrcp.pop %v3592
        %v3599 = vmul.f32 1.0, %v3598
        %v3600 = vrcp.pop %v3593
        %v3601 = vmul.f32 1.0, %v3600
        %v3602 = vmul.f32 %v3574, %v3595
        %v3603 = vmul.f32 %v3575, %v3597
        %v3604 = vmul.f32 %v3576, %v3599
        %v3605 = vmul.f32 %v3577, %v3601
        %s3606 = scalar_lea.vmem %s6, 96
        %v3607 = vld [vmem:[%s3606] sm:$0xf]
        %v3608 = vld [vmem:[%s3606 + $0x4] sm:$0xf]
        %v3609 = vld [vmem:[%s3606 + $0x8] sm:$0xf]
        %v3610 = vld [vmem:[%s3606 + $0xc] sm:$0xf]
        %v3611 = vld [vmem:[%s3606 + $0x10] sm:$0xf]
        %v3612 = vld [vmem:[%s3606 + $0x14] sm:$0xf]
        %v3613 = vld [vmem:[%s3606 + $0x18] sm:$0xf]
        %v3614 = vld [vmem:[%s3606 + $0x1c] sm:$0xf]
        %v3615 = vpack.c.bf16 %v3603, %v3602
        %v3616 = vpack.c.bf16 %v3605, %v3604
        %s3617 = scalar_lea.vmem %s7, 192
        %v3618 = vld [vmem:[%s3617] sm:$0xff]
        %v3619 = vld [vmem:[%s3617 + $0x8] sm:$0xff]
        %v3620 = vld [vmem:[%s3617 + $0x10] sm:$0xff]
        %v3621 = vld [vmem:[%s3617 + $0x18] sm:$0xff]
        %v3622 = vld [vmem:[%s3617 + $0x20] sm:$0xff]
        %v3623 = vld [vmem:[%s3617 + $0x28] sm:$0xff]
        %v3624 = vld [vmem:[%s3617 + $0x30] sm:$0xff]
        %v3625 = vld [vmem:[%s3617 + $0x38] sm:$0xff]
        %3627 = vset.pattern.permute.xlu0 0
        %3628 = vperm.xlu0 %3627, %v3618
        %v3629 = vpop.permute.xlu0 %3628
        %3632 = vset.pattern.permute.xlu0 0
        %3633 = vperm.xlu0 %3632, %v3619
        %v3634 = vpop.permute.xlu0 %3633
        %3637 = vset.pattern.permute.xlu0 0
        %3638 = vperm.xlu0 %3637, %v3620
        %v3639 = vpop.permute.xlu0 %3638
        %3642 = vset.pattern.permute.xlu0 0
        %3643 = vperm.xlu0 %3642, %v3621
        %v3644 = vpop.permute.xlu0 %3643
        %3647 = vset.pattern.permute.xlu0 0
        %3648 = vperm.xlu0 %3647, %v3622
        %v3649 = vpop.permute.xlu0 %3648
        %3652 = vset.pattern.permute.xlu0 0
        %3653 = vperm.xlu0 %3652, %v3623
        %v3654 = vpop.permute.xlu0 %3653
        %3657 = vset.pattern.permute.xlu0 0
        %3658 = vperm.xlu0 %3657, %v3624
        %v3659 = vpop.permute.xlu0 %3658
        %3662 = vset.pattern.permute.xlu0 0
        %3663 = vperm.xlu0 %3662, %v3625
        %v3664 = vpop.permute.xlu0 %3663
        %v3674 = vunpack.c.l.b16 %v3607
        %v3675 = vunpack.c.l.b16 %v3608
        %v3676 = vunpack.c.l.b16 %v3609
        %v3677 = vunpack.c.l.b16 %v3610
        %v3678 = vunpack.c.l.b16 %v3611
        %v3679 = vunpack.c.l.b16 %v3612
        %v3680 = vunpack.c.l.b16 %v3613
        %v3681 = vunpack.c.l.b16 %v3614
        %v3682 = vpack.c.b16 %v3675, %v3674
        %v3683 = vpack.c.b16 %v3677, %v3676
        %v3684 = vpack.c.b16 %v3679, %v3678
        %v3685 = vpack.c.b16 %v3681, %v3680
        %v3687 = vsel %vm623, %v3682, 0
        %v3690 = vsel %vm623, %v3683, 0
        %v3693 = vsel %vm623, %v3684, 0
        %v3696 = vsel %vm623, %v3685, 0
        %3698 = vmatprep.subr.bf16.mxu0 0
        %3699 = vmatpush1.bf16.msra.mxu0 %v3615
        %3700 = vmatprep.subr.bf16.mxu0 0
        %3701 = vmatpush1.bf16.msra.mxu0 %v3616
        %3702 = vmatprep.subr.bf16.mxu0 0
        %3703 = vmatpush1.bf16.msra.mxu0 0
        %3704 = vmatprep.subr.bf16.mxu0 0
        %3705 = vmatpush1.bf16.msra.mxu0 0
        %3706 = vmatprep.subr.bf16.mxu0 0
        %3707 = vmatpush1.bf16.msra.mxu0 0
        %3708 = vmatprep.subr.bf16.mxu0 0
        %3709 = vmatpush1.bf16.msra.mxu0 0
        %3710 = vmatprep.subr.bf16.mxu0 0
        %3711 = vmatpush1.bf16.msra.mxu0 0
        %3712 = vmatprep.subr.bf16.mxu0 0
        %3713 = vmatpush1.bf16.msra.mxu0 0
        %3714 = vmatprep.subr.bf16.mxu0 0
        %3715 = vmatpush1.bf16.msra.mxu0 0
        %3716 = vmatprep.subr.bf16.mxu0 0
        %3717 = vmatpush1.bf16.msra.mxu0 0
        %3718 = vmatprep.subr.bf16.mxu0 0
        %3719 = vmatpush1.bf16.msra.mxu0 0
        %3720 = vmatprep.subr.bf16.mxu0 0
        %3721 = vmatpush1.bf16.msra.mxu0 0
        %3722 = vmatprep.subr.bf16.mxu0 0
        %3723 = vmatpush1.bf16.msra.mxu0 0
        %3724 = vmatprep.subr.bf16.mxu0 0
        %3725 = vmatpush1.bf16.msra.mxu0 0
        %3726 = vmatprep.subr.bf16.mxu0 0
        %3727 = vmatpush1.bf16.msra.mxu0 0
        %3728 = vmatprep.subr.bf16.mxu0 0
        %3729 = vmatpush1.bf16.msra.mxu0 0
        %3730 = vmatprep.mubr.bf16.mxu0 0
        %3731 = vmatmul.mubr.bf16.gmra.mrb[0].mxu0 %v3687
        %v3732 = vpop.f32.mrb[0].mxu0
        %v3733 = vadd.f32 %v3629, %v3732
        %v3734 = vpop.f32.mrb[0].mxu0
        %v3735 = vpop.f32.mrb[0].mxu0
        %v3736 = vadd.f32 %v3634, %v3735
        %v3737 = vpop.f32.mrb[0].mxu0
        %3738 = vmatprep.mubr.bf16.mxu0 0
        %3739 = vmatmul.mubr.bf16.gmra.mrb[0].mxu0 %v3690
        %v3740 = vpop.f32.mrb[0].mxu0
        %v3741 = vadd.f32 %v3639, %v3740
        %v3742 = vpop.f32.mrb[0].mxu0
        %v3743 = vpop.f32.mrb[0].mxu0
        %v3744 = vadd.f32 %v3644, %v3743
        %v3745 = vpop.f32.mrb[0].mxu0
        %3746 = vmatprep.mubr.bf16.mxu0 0
        %3747 = vmatmul.mubr.bf16.gmra.mrb[0].mxu0 %v3693
        %v3748 = vpop.f32.mrb[0].mxu0
        %v3749 = vadd.f32 %v3649, %v3748
        %v3750 = vpop.f32.mrb[0].mxu0
        %v3751 = vpop.f32.mrb[0].mxu0
        %v3752 = vadd.f32 %v3654, %v3751
        %v3753 = vpop.f32.mrb[0].mxu0
        %3754 = vmatprep.mubr.bf16.mxu0 0
        %3755 = vmatmul.mubr.bf16.gmra.mrb[0].mxu0 %v3696
        %v3756 = vpop.f32.mrb[0].mxu0
        %v3757 = vadd.f32 %v3659, %v3756
        %v3758 = vpop.f32.mrb[0].mxu0
        %v3759 = vpop.f32.mrb[0].mxu0
        %v3760 = vadd.f32 %v3664, %v3759
        %v3761 = vpop.f32.mrb[0].mxu0
        %3762 = vdwg.mxu0
        %v3763 = vadd.f32 %v3145, %v3733
        %v3764 = vadd.f32 %v3146, %v3736
        %v3765 = vadd.f32 %v3147, %v3741
        %v3766 = vadd.f32 %v3148, %v3744
        %v3767 = vmul.f32 %v3763, %v567
        %v3768 = vmul.f32 %v3764, %v567
        %v3769 = vmul.f32 %v3765, %v567
        %v3770 = vmul.f32 %v3766, %v567
        %v3771 = vadd.f32 %v3149, %v3749
        %v3772 = vadd.f32 %v3150, %v3752
        %v3773 = vadd.f32 %v3151, %v3757
        %v3774 = vadd.f32 %v3152, %v3760
        %s3775 = scalar_lea.vmem %s5, 320
        %v3776 = vld [vmem:[%s3775] sm:$0xff]
        %v3777 = vld [vmem:[%s3775 + $0x8] sm:$0xff]
        %v3778 = vld [vmem:[%s3775 + $0x10] sm:$0xff]
        %v3779 = vld [vmem:[%s3775 + $0x18] sm:$0xff]
        %v3780 = vld [vmem:[%s3775 + $0x20] sm:$0xff]
        %v3781 = vld [vmem:[%s3775 + $0x28] sm:$0xff]
        %v3782 = vld [vmem:[%s3775 + $0x30] sm:$0xff]
        %v3783 = vld [vmem:[%s3775 + $0x38] sm:$0xff]
        %s3784 = scalar_lea.vmem %s4, 480
        %v3785 = vld [vmem:[%s3784] sm:$0xf]
        %v3786 = vld [vmem:[%s3784 + $0x4] sm:$0xf]
        %v3787 = vld [vmem:[%s3784 + $0x8] sm:$0xf]
        %v3788 = vld [vmem:[%s3784 + $0xc] sm:$0xf]
        %v3789 = vld [vmem:[%s3784 + $0x10] sm:$0xf]
        %v3790 = vld [vmem:[%s3784 + $0x14] sm:$0xf]
        %v3791 = vld [vmem:[%s3784 + $0x18] sm:$0xf]
        %v3792 = vld [vmem:[%s3784 + $0x1c] sm:$0xf]
        %3793 = vrot.lane.b32.xlu0 %v3767, 4
        %v3794 = vpop.permute.xlu0 %3793
        %3795 = vrot.lane.b32.xlu0 %v3768, 4
        %v3796 = vpop.permute.xlu0 %3795
        %3797 = vrot.lane.b32.xlu0 %v3769, 4
        %v3798 = vpop.permute.xlu0 %3797
        %3799 = vrot.lane.b32.xlu0 %v3770, 4
        %v3800 = vpop.permute.xlu0 %3799
        %v3801 = vmul.f32 %v3794, %v433
        %v3802 = vmul.f32 %v3796, %v433
        %v3803 = vmul.f32 %v3798, %v433
        %v3804 = vmul.f32 %v3800, %v433
        %v3805 = vpack.c.bf16 %v3802, %v3801
        %v3806 = vpack.c.bf16 %v3804, %v3803
        %v3815 = vunpack.c.l.b16 %v3785
        %v3816 = vunpack.c.l.b16 %v3786
        %v3817 = vunpack.c.l.b16 %v3787
        %v3818 = vunpack.c.l.b16 %v3788
        %v3819 = vunpack.c.l.b16 %v3789
        %v3820 = vunpack.c.l.b16 %v3790
        %v3821 = vunpack.c.l.b16 %v3791
        %v3822 = vunpack.c.l.b16 %v3792
        %v3823 = vpack.c.b16 %v3816, %v3815
        %v3824 = vpack.c.b16 %v3818, %v3817
        %v3825 = vpack.c.b16 %v3820, %v3819
        %v3826 = vpack.c.b16 %v3822, %v3821
        %v3828 = vsel %vm623, %v3823, 0
        %v3831 = vsel %vm623, %v3824, 0
        %v3834 = vsel %vm623, %v3825, 0
        %v3837 = vsel %vm623, %v3826, 0
        %3839 = vmatprep.subr.bf16.mxu0 0
        %3840 = vmatpush1.bf16.msra.mxu0 %v3805
        %3841 = vmatprep.subr.bf16.mxu0 0
        %3842 = vmatpush1.bf16.msra.mxu0 %v3806
        %3843 = vmatprep.subr.bf16.mxu0 0
        %3844 = vmatpush1.bf16.msra.mxu0 0
        %3845 = vmatprep.subr.bf16.mxu0 0
        %3846 = vmatpush1.bf16.msra.mxu0 0
        %3847 = vmatprep.subr.bf16.mxu0 0
        %3848 = vmatpush1.bf16.msra.mxu0 0
        %3849 = vmatprep.subr.bf16.mxu0 0
        %3850 = vmatpush1.bf16.msra.mxu0 0
        %3851 = vmatprep.subr.bf16.mxu0 0
        %3852 = vmatpush1.bf16.msra.mxu0 0
        %3853 = vmatprep.subr.bf16.mxu0 0
        %3854 = vmatpush1.bf16.msra.mxu0 0
        %3855 = vmatprep.subr.bf16.mxu0 0
        %3856 = vmatpush1.bf16.msra.mxu0 0
        %3857 = vmatprep.subr.bf16.mxu0 0
        %3858 = vmatpush1.bf16.msra.mxu0 0
        %3859 = vmatprep.subr.bf16.mxu0 0
        %3860 = vmatpush1.bf16.msra.mxu0 0
        %3861 = vmatprep.subr.bf16.mxu0 0
        %3862 = vmatpush1.bf16.msra.mxu0 0
        %3863 = vmatprep.subr.bf16.mxu0 0
        %3864 = vmatpush1.bf16.msra.mxu0 0
        %3865 = vmatprep.subr.bf16.mxu0 0
        %3866 = vmatpush1.bf16.msra.mxu0 0
        %3867 = vmatprep.subr.bf16.mxu0 0
        %3868 = vmatpush1.bf16.msra.mxu0 0
        %3869 = vmatprep.subr.bf16.mxu0 0
        %3870 = vmatpush1.bf16.msra.mxu0 0
        %3871 = vmatprep.mubr.bf16.mxu0 0
        %3872 = vmatmul.mubr.bf16.gmra.mrb[0].mxu0 %v3828
        %v3873 = vpop.f32.mrb[0].mxu0
        %v3874 = vadd.f32 0.0, %v3873
        %v3875 = vpop.f32.mrb[0].mxu0
        %v3876 = vpop.f32.mrb[0].mxu0
        %v3877 = vadd.f32 0.0, %v3876
        %v3878 = vpop.f32.mrb[0].mxu0
        %3879 = vmatprep.mubr.bf16.mxu0 0
        %3880 = vmatmul.mubr.bf16.gmra.mrb[0].mxu0 %v3831
        %v3881 = vpop.f32.mrb[0].mxu0
        %v3882 = vadd.f32 0.0, %v3881
        %v3883 = vpop.f32.mrb[0].mxu0
        %v3884 = vpop.f32.mrb[0].mxu0
        %v3885 = vadd.f32 0.0, %v3884
        %v3886 = vpop.f32.mrb[0].mxu0
        %3887 = vmatprep.mubr.bf16.mxu0 0
        %3888 = vmatmul.mubr.bf16.gmra.mrb[0].mxu0 %v3834
        %v3889 = vpop.f32.mrb[0].mxu0
        %v3890 = vadd.f32 0.0, %v3889
        %v3891 = vpop.f32.mrb[0].mxu0
        %v3892 = vpop.f32.mrb[0].mxu0
        %v3893 = vadd.f32 0.0, %v3892
        %v3894 = vpop.f32.mrb[0].mxu0
        %3895 = vmatprep.mubr.bf16.mxu0 0
        %3896 = vmatmul.mubr.bf16.gmra.mrb[0].mxu0 %v3837
        %v3897 = vpop.f32.mrb[0].mxu0
        %v3898 = vadd.f32 0.0, %v3897
        %v3899 = vpop.f32.mrb[0].mxu0
        %v3900 = vpop.f32.mrb[0].mxu0
        %v3901 = vadd.f32 0.0, %v3900
        %v3902 = vpop.f32.mrb[0].mxu0
        %3903 = vdwg.mxu0
        %3905 = vset.pattern.permute.xlu0 0
        %3906 = vperm.xlu0 %3905, %v3776
        %v3907 = vpop.permute.xlu0 %3906
        %3910 = vset.pattern.permute.xlu0 0
        %3911 = vperm.xlu0 %3910, %v3777
        %v3912 = vpop.permute.xlu0 %3911
        %3915 = vset.pattern.permute.xlu0 0
        %3916 = vperm.xlu0 %3915, %v3778
        %v3917 = vpop.permute.xlu0 %3916
        %3920 = vset.pattern.permute.xlu0 0
        %3921 = vperm.xlu0 %3920, %v3779
        %v3922 = vpop.permute.xlu0 %3921
        %3925 = vset.pattern.permute.xlu0 0
        %3926 = vperm.xlu0 %3925, %v3780
        %v3927 = vpop.permute.xlu0 %3926
        %3930 = vset.pattern.permute.xlu0 0
        %3931 = vperm.xlu0 %3930, %v3781
        %v3932 = vpop.permute.xlu0 %3931
        %3935 = vset.pattern.permute.xlu0 0
        %3936 = vperm.xlu0 %3935, %v3782
        %v3937 = vpop.permute.xlu0 %3936
        %3940 = vset.pattern.permute.xlu0 0
        %3941 = vperm.xlu0 %3940, %v3783
        %v3942 = vpop.permute.xlu0 %3941
        %v3944 = vadd.f32 %v3907, %v3874
        %v3945 = vadd.f32 %v3912, %v3877
        %v3946 = vadd.f32 %v3917, %v3882
        %v3947 = vadd.f32 %v3922, %v3885
        %v3948 = vadd.f32 %v3927, %v3890
        %v3949 = vadd.f32 %v3932, %v3893
        %v3950 = vadd.f32 %v3937, %v3898
        %v3951 = vadd.f32 %v3942, %v3901
        %s3952 = scalar_lea.vmem %s4, 512
        %v3953 = vld [vmem:[%s3952] sm:$0xf]
        %v3954 = vld [vmem:[%s3952 + $0x4] sm:$0xf]
        %v3955 = vld [vmem:[%s3952 + $0x8] sm:$0xf]
        %v3956 = vld [vmem:[%s3952 + $0xc] sm:$0xf]
        %v3957 = vld [vmem:[%s3952 + $0x10] sm:$0xf]
        %v3958 = vld [vmem:[%s3952 + $0x14] sm:$0xf]
        %v3959 = vld [vmem:[%s3952 + $0x18] sm:$0xf]
        %v3960 = vld [vmem:[%s3952 + $0x1c] sm:$0xf]
        %v3961 = vpack.c.bf16 %v3768, %v3767
        %v3962 = vpack.c.bf16 %v3770, %v3769
        %v3971 = vunpack.c.l.b16 %v3953
        %v3972 = vunpack.c.l.b16 %v3954
        %v3973 = vunpack.c.l.b16 %v3955
        %v3974 = vunpack.c.l.b16 %v3956
        %v3975 = vunpack.c.l.b16 %v3957
        %v3976 = vunpack.c.l.b16 %v3958
        %v3977 = vunpack.c.l.b16 %v3959
        %v3978 = vunpack.c.l.b16 %v3960
        %v3979 = vpack.c.b16 %v3972, %v3971
        %v3980 = vpack.c.b16 %v3974, %v3973
        %v3981 = vpack.c.b16 %v3976, %v3975
        %v3982 = vpack.c.b16 %v3978, %v3977
        %v3984 = vsel %vm623, %v3979, 0
        %v3987 = vsel %vm623, %v3980, 0
        %v3990 = vsel %vm623, %v3981, 0
        %v3993 = vsel %vm623, %v3982, 0
        %3995 = vmatprep.subr.bf16.mxu0 0
        %3996 = vmatpush1.bf16.msra.mxu0 %v3961
        %3997 = vmatprep.subr.bf16.mxu0 0
        %3998 = vmatpush1.bf16.msra.mxu0 %v3962
        %3999 = vmatprep.subr.bf16.mxu0 0
        %4000 = vmatpush1.bf16.msra.mxu0 0
        %4001 = vmatprep.subr.bf16.mxu0 0
        %4002 = vmatpush1.bf16.msra.mxu0 0
        %4003 = vmatprep.subr.bf16.mxu0 0
        %4004 = vmatpush1.bf16.msra.mxu0 0
        %4005 = vmatprep.subr.bf16.mxu0 0
        %4006 = vmatpush1.bf16.msra.mxu0 0
        %4007 = vmatprep.subr.bf16.mxu0 0
        %4008 = vmatpush1.bf16.msra.mxu0 0
        %4009 = vmatprep.subr.bf16.mxu0 0
        %4010 = vmatpush1.bf16.msra.mxu0 0
        %4011 = vmatprep.subr.bf16.mxu0 0
        %4012 = vmatpush1.bf16.msra.mxu0 0
        %4013 = vmatprep.subr.bf16.mxu0 0
        %4014 = vmatpush1.bf16.msra.mxu0 0
        %4015 = vmatprep.subr.bf16.mxu0 0
        %4016 = vmatpush1.bf16.msra.mxu0 0
        %4017 = vmatprep.subr.bf16.mxu0 0
        %4018 = vmatpush1.bf16.msra.mxu0 0
        %4019 = vmatprep.subr.bf16.mxu0 0
        %4020 = vmatpush1.bf16.msra.mxu0 0
        %4021 = vmatprep.subr.bf16.mxu0 0
        %4022 = vmatpush1.bf16.msra.mxu0 0
        %4023 = vmatprep.subr.bf16.mxu0 0
        %4024 = vmatpush1.bf16.msra.mxu0 0
        %4025 = vmatprep.subr.bf16.mxu0 0
        %4026 = vmatpush1.bf16.msra.mxu0 0
        %4027 = vmatprep.mubr.bf16.mxu0 0
        %4028 = vmatmul.mubr.bf16.gmra.mrb[0].mxu0 %v3984
        %v4029 = vpop.f32.mrb[0].mxu0
        %v4030 = vadd.f32 0.0, %v4029
        %v4031 = vpop.f32.mrb[0].mxu0
        %v4032 = vpop.f32.mrb[0].mxu0
        %v4033 = vadd.f32 0.0, %v4032
        %v4034 = vpop.f32.mrb[0].mxu0
        %4035 = vmatprep.mubr.bf16.mxu0 0
        %4036 = vmatmul.mubr.bf16.gmra.mrb[0].mxu0 %v3987
        %v4037 = vpop.f32.mrb[0].mxu0
        %v4038 = vadd.f32 0.0, %v4037
        %v4039 = vpop.f32.mrb[0].mxu0
        %v4040 = vpop.f32.mrb[0].mxu0
        %v4041 = vadd.f32 0.0, %v4040
        %v4042 = vpop.f32.mrb[0].mxu0
        %4043 = vmatprep.mubr.bf16.mxu0 0
        %4044 = vmatmul.mubr.bf16.gmra.mrb[0].mxu0 %v3990
        %v4045 = vpop.f32.mrb[0].mxu0
        %v4046 = vadd.f32 0.0, %v4045
        %v4047 = vpop.f32.mrb[0].mxu0
        %v4048 = vpop.f32.mrb[0].mxu0
        %v4049 = vadd.f32 0.0, %v4048
        %v4050 = vpop.f32.mrb[0].mxu0
        %4051 = vmatprep.mubr.bf16.mxu0 0
        %4052 = vmatmul.mubr.bf16.gmra.mrb[0].mxu0 %v3993
        %v4053 = vpop.f32.mrb[0].mxu0
        %v4054 = vadd.f32 0.0, %v4053
        %v4055 = vpop.f32.mrb[0].mxu0
        %v4056 = vpop.f32.mrb[0].mxu0
        %v4057 = vadd.f32 0.0, %v4056
        %v4058 = vpop.f32.mrb[0].mxu0
        %4059 = vdwg.mxu0
        %v4060 = vadd.f32 %v3944, %v4030
        %v4061 = vadd.f32 %v3945, %v4033
        %v4062 = vadd.f32 %v3946, %v4038
        %v4063 = vadd.f32 %v3947, %v4041
        %v4064 = vadd.f32 %v3948, %v4046
        %v4065 = vadd.f32 %v3949, %v4049
        %v4066 = vadd.f32 %v3950, %v4054
        %v4067 = vadd.f32 %v3951, %v4057
        %s4068 = scalar_lea.vmem %s4, 544
        %v4069 = vld [vmem:[%s4068] sm:$0xf]
        %v4070 = vld [vmem:[%s4068 + $0x4] sm:$0xf]
        %v4071 = vld [vmem:[%s4068 + $0x8] sm:$0xf]
        %v4072 = vld [vmem:[%s4068 + $0xc] sm:$0xf]
        %v4073 = vld [vmem:[%s4068 + $0x10] sm:$0xf]
        %v4074 = vld [vmem:[%s4068 + $0x14] sm:$0xf]
        %v4075 = vld [vmem:[%s4068 + $0x18] sm:$0xf]
        %v4076 = vld [vmem:[%s4068 + $0x1c] sm:$0xf]
        %4077 = vrot.lane.b32.xlu0 %v3767, 124
        %v4078 = vpop.permute.xlu0 %4077
        %4079 = vrot.lane.b32.xlu0 %v3768, 124
        %v4080 = vpop.permute.xlu0 %4079
        %4081 = vrot.lane.b32.xlu0 %v3769, 124
        %v4082 = vpop.permute.xlu0 %4081
        %4083 = vrot.lane.b32.xlu0 %v3770, 124
        %v4084 = vpop.permute.xlu0 %4083
        %v4085 = vmul.f32 %v4078, %v463
        %v4086 = vmul.f32 %v4080, %v463
        %v4087 = vmul.f32 %v4082, %v463
        %v4088 = vmul.f32 %v4084, %v463
        %v4089 = vpack.c.bf16 %v4086, %v4085
        %v4090 = vpack.c.bf16 %v4088, %v4087
        %v4099 = vunpack.c.l.b16 %v4069
        %v4100 = vunpack.c.l.b16 %v4070
        %v4101 = vunpack.c.l.b16 %v4071
        %v4102 = vunpack.c.l.b16 %v4072
        %v4103 = vunpack.c.l.b16 %v4073
        %v4104 = vunpack.c.l.b16 %v4074
        %v4105 = vunpack.c.l.b16 %v4075
        %v4106 = vunpack.c.l.b16 %v4076
        %v4107 = vpack.c.b16 %v4100, %v4099
        %v4108 = vpack.c.b16 %v4102, %v4101
        %v4109 = vpack.c.b16 %v4104, %v4103
        %v4110 = vpack.c.b16 %v4106, %v4105
        %v4112 = vsel %vm623, %v4107, 0
        %v4115 = vsel %vm623, %v4108, 0
        %v4118 = vsel %vm623, %v4109, 0
        %v4121 = vsel %vm623, %v4110, 0
        %4123 = vmatprep.subr.bf16.mxu0 0
        %4124 = vmatpush1.bf16.msra.mxu0 %v4089
        %4125 = vmatprep.subr.bf16.mxu0 0
        %4126 = vmatpush1.bf16.msra.mxu0 %v4090
        %4127 = vmatprep.subr.bf16.mxu0 0
        %4128 = vmatpush1.bf16.msra.mxu0 0
        %4129 = vmatprep.subr.bf16.mxu0 0
        %4130 = vmatpush1.bf16.msra.mxu0 0
        %4131 = vmatprep.subr.bf16.mxu0 0
        %4132 = vmatpush1.bf16.msra.mxu0 0
        %4133 = vmatprep.subr.bf16.mxu0 0
        %4134 = vmatpush1.bf16.msra.mxu0 0
        %4135 = vmatprep.subr.bf16.mxu0 0
        %4136 = vmatpush1.bf16.msra.mxu0 0
        %4137 = vmatprep.subr.bf16.mxu0 0
        %4138 = vmatpush1.bf16.msra.mxu0 0
        %4139 = vmatprep.subr.bf16.mxu0 0
        %4140 = vmatpush1.bf16.msra.mxu0 0
        %4141 = vmatprep.subr.bf16.mxu0 0
        %4142 = vmatpush1.bf16.msra.mxu0 0
        %4143 = vmatprep.subr.bf16.mxu0 0
        %4144 = vmatpush1.bf16.msra.mxu0 0
        %4145 = vmatprep.subr.bf16.mxu0 0
        %4146 = vmatpush1.bf16.msra.mxu0 0
        %4147 = vmatprep.subr.bf16.mxu0 0
        %4148 = vmatpush1.bf16.msra.mxu0 0
        %4149 = vmatprep.subr.bf16.mxu0 0
        %4150 = vmatpush1.bf16.msra.mxu0 0
        %4151 = vmatprep.subr.bf16.mxu0 0
        %4152 = vmatpush1.bf16.msra.mxu0 0
        %4153 = vmatprep.subr.bf16.mxu0 0
        %4154 = vmatpush1.bf16.msra.mxu0 0
        %4155 = vmatprep.mubr.bf16.mxu0 0
        %4156 = vmatmul.mubr.bf16.gmra.mrb[0].mxu0 %v4112
        %v4157 = vpop.f32.mrb[0].mxu0
        %v4158 = vadd.f32 0.0, %v4157
        %v4159 = vpop.f32.mrb[0].mxu0
        %v4160 = vpop.f32.mrb[0].mxu0
        %v4161 = vadd.f32 0.0, %v4160
        %v4162 = vpop.f32.mrb[0].mxu0
        %4163 = vmatprep.mubr.bf16.mxu0 0
        %4164 = vmatmul.mubr.bf16.gmra.mrb[0].mxu0 %v4115
        %v4165 = vpop.f32.mrb[0].mxu0
        %v4166 = vadd.f32 0.0, %v4165
        %v4167 = vpop.f32.mrb[0].mxu0
        %v4168 = vpop.f32.mrb[0].mxu0
        %v4169 = vadd.f32 0.0, %v4168
        %v4170 = vpop.f32.mrb[0].mxu0
        %4171 = vmatprep.mubr.bf16.mxu0 0
        %4172 = vmatmul.mubr.bf16.gmra.mrb[0].mxu0 %v4118
        %v4173 = vpop.f32.mrb[0].mxu0
        %v4174 = vadd.f32 0.0, %v4173
        %v4175 = vpop.f32.mrb[0].mxu0
        %v4176 = vpop.f32.mrb[0].mxu0
        %v4177 = vadd.f32 0.0, %v4176
        %v4178 = vpop.f32.mrb[0].mxu0
        %4179 = vmatprep.mubr.bf16.mxu0 0
        %4180 = vmatmul.mubr.bf16.gmra.mrb[0].mxu0 %v4121
        %v4181 = vpop.f32.mrb[0].mxu0
        %v4182 = vadd.f32 0.0, %v4181
        %v4183 = vpop.f32.mrb[0].mxu0
        %v4184 = vpop.f32.mrb[0].mxu0
        %v4185 = vadd.f32 0.0, %v4184
        %v4186 = vpop.f32.mrb[0].mxu0
        %4187 = vdwg.mxu0
        %v4188 = vadd.f32 %v4060, %v4158
        %v4189 = vadd.f32 %v4061, %v4161
        %v4190 = vadd.f32 %v4062, %v4166
        %v4191 = vadd.f32 %v4063, %v4169
        %v4192 = vadd.f32 %v4064, %v4174
        %v4193 = vadd.f32 %v4065, %v4177
        %v4194 = vadd.f32 %v4066, %v4182
        %v4195 = vadd.f32 %v4067, %v4185
        %v4196 = vtanh.pop %v4188
        %v4197 = vtanh.pop %v4189
        %v4198 = vtanh.pop %v4190
        %v4199 = vtanh.pop %v4191
        %v4200 = vxor.u32 %v4192, 2147483648
        %v4201 = vxor.u32 %v4193, 2147483648
        %v4202 = vxor.u32 %v4194, 2147483648
        %v4203 = vxor.u32 %v4195, 2147483648
        %v4204 = vmul.f32 %v4200, 1.442695
        %v4205 = vpow.pop %v4204
        %v4206 = vmul.f32 %v4201, 1.442695
        %v4207 = vpow.pop %v4206
        %v4208 = vmul.f32 %v4202, 1.442695
        %v4209 = vpow.pop %v4208
        %v4210 = vmul.f32 %v4203, 1.442695
        %v4211 = vpow.pop %v4210
        %v4212 = vadd.f32 %v4205, 1.0
        %v4213 = vadd.f32 %v4207, 1.0
        %v4214 = vadd.f32 %v4209, 1.0
        %v4215 = vadd.f32 %v4211, 1.0
        %v4216 = vrcp.pop %v4212
        %v4217 = vmul.f32 1.0, %v4216
        %v4218 = vrcp.pop %v4213
        %v4219 = vmul.f32 1.0, %v4218
        %v4220 = vrcp.pop %v4214
        %v4221 = vmul.f32 1.0, %v4220
        %v4222 = vrcp.pop %v4215
        %v4223 = vmul.f32 1.0, %v4222
        %v4224 = vmul.f32 %v4196, %v4217
        %v4225 = vmul.f32 %v4197, %v4219
        %v4226 = vmul.f32 %v4198, %v4221
        %v4227 = vmul.f32 %v4199, %v4223
        %s4228 = scalar_lea.vmem %s8, 16
        %v4229 = vld [vmem:[%s4228] sm:$0xf]
        %v4230 = vld [vmem:[%s4228 + $0x4] sm:$0xf]
        %v4231 = vld [vmem:[%s4228 + $0x8] sm:$0xf]
        %v4232 = vld [vmem:[%s4228 + $0xc] sm:$0xf]
        %v4233 = vpack.c.bf16 %v4225, %v4224
        %v4234 = vpack.c.bf16 %v4227, %v4226
        %v4239 = vunpack.c.l.b16 %v4229
        %v4240 = vunpack.c.l.b16 %v4230
        %v4241 = vunpack.c.l.b16 %v4231
        %v4242 = vunpack.c.l.b16 %v4232
        %v4243 = vpack.c.b16 %v4240, %v4239
        %v4244 = vpack.c.b16 %v4242, %v4241
        %v4246 = vsel %vm623, %v4243, 0
        %v4249 = vsel %vm623, %v4244, 0
        %4251 = vmatprep.subr.bf16.mxu0 0
        %4252 = vmatpush1.bf16.msra.mxu0 %v4233
        %4253 = vmatprep.subr.bf16.mxu0 0
        %4254 = vmatpush1.bf16.msra.mxu0 %v4234
        %4255 = vmatprep.subr.bf16.mxu0 0
        %4256 = vmatpush1.bf16.msra.mxu0 0
        %4257 = vmatprep.subr.bf16.mxu0 0
        %4258 = vmatpush1.bf16.msra.mxu0 0
        %4259 = vmatprep.subr.bf16.mxu0 0
        %4260 = vmatpush1.bf16.msra.mxu0 0
        %4261 = vmatprep.subr.bf16.mxu0 0
        %4262 = vmatpush1.bf16.msra.mxu0 0
        %4263 = vmatprep.subr.bf16.mxu0 0
        %4264 = vmatpush1.bf16.msra.mxu0 0
        %4265 = vmatprep.subr.bf16.mxu0 0
        %4266 = vmatpush1.bf16.msra.mxu0 0
        %4267 = vmatprep.subr.bf16.mxu0 0
        %4268 = vmatpush1.bf16.msra.mxu0 0
        %4269 = vmatprep.subr.bf16.mxu0 0
        %4270 = vmatpush1.bf16.msra.mxu0 0
        %4271 = vmatprep.subr.bf16.mxu0 0
        %4272 = vmatpush1.bf16.msra.mxu0 0
        %4273 = vmatprep.subr.bf16.mxu0 0
        %4274 = vmatpush1.bf16.msra.mxu0 0
        %4275 = vmatprep.subr.bf16.mxu0 0
        %4276 = vmatpush1.bf16.msra.mxu0 0
        %4277 = vmatprep.subr.bf16.mxu0 0
        %4278 = vmatpush1.bf16.msra.mxu0 0
        %4279 = vmatprep.subr.bf16.mxu0 0
        %4280 = vmatpush1.bf16.msra.mxu0 0
        %4281 = vmatprep.subr.bf16.mxu0 0
        %4282 = vmatpush1.bf16.msra.mxu0 0
        %4283 = vmatprep.mubr.bf16.mxu0 0
        %4284 = vmatmul.mubr.bf16.gmra.mrb[0].mxu0 %v4246
        %v4285 = vpop.f32.mrb[0].mxu0
        %v4286 = vadd.f32 0.0, %v4285
        %v4287 = vpop.f32.mrb[0].mxu0
        %v4288 = vpop.f32.mrb[0].mxu0
        %v4289 = vadd.f32 0.0, %v4288
        %v4290 = vpop.f32.mrb[0].mxu0
        %4291 = vmatprep.mubr.bf16.mxu0 0
        %4292 = vmatmul.mubr.bf16.gmra.mrb[0].mxu0 %v4249
        %v4293 = vpop.f32.mrb[0].mxu0
        %v4294 = vadd.f32 0.0, %v4293
        %v4295 = vpop.f32.mrb[0].mxu0
        %v4296 = vpop.f32.mrb[0].mxu0
        %v4297 = vadd.f32 0.0, %v4296
        %v4298 = vpop.f32.mrb[0].mxu0
        %4299 = vdwg.mxu0
        %v4300 = vadd.f32 %v3771, %v4286
        %v4301 = vadd.f32 %v3772, %v4289
        %v4302 = vadd.f32 %v3773, %v4294
        %v4303 = vadd.f32 %v3774, %v4297
        %s4304 = scalar_lea.vmem %s9, 32
        %v4305 = vld [vmem:[%s4304] sm:$0xff]
        %v4306 = vld [vmem:[%s4304 + $0x8] sm:$0xff]
        %v4307 = vld [vmem:[%s4304 + $0x10] sm:$0xff]
        %v4308 = vld [vmem:[%s4304 + $0x18] sm:$0xff]
        %4310 = vset.pattern.permute.xlu0 0
        %4311 = vperm.xlu0 %4310, %v4305
        %v4312 = vpop.permute.xlu0 %4311
        %4315 = vset.pattern.permute.xlu0 0
        %4316 = vperm.xlu0 %4315, %v4306
        %v4317 = vpop.permute.xlu0 %4316
        %4320 = vset.pattern.permute.xlu0 0
        %4321 = vperm.xlu0 %4320, %v4307
        %v4322 = vpop.permute.xlu0 %4321
        %4325 = vset.pattern.permute.xlu0 0
        %4326 = vperm.xlu0 %4325, %v4308
        %v4327 = vpop.permute.xlu0 %4326
        %v4329 = vadd.f32 %v4300, %v4312
        %v4330 = vadd.f32 %v4301, %v4317
        %v4331 = vadd.f32 %v4302, %v4322
        %v4332 = vadd.f32 %v4303, %v4327
        %s4333 = scalar_lea.vmem %s10, 1
        %v4334 = vld [vmem:[%s4333] sm:$0x1]
        %v4335 = vpack.c.bf16 %v4330, %v4329
        %v4336 = vpack.c.bf16 %v4332, %v4331
        %s4337 = scalar_lea.vmem %s11, 2
        %v4338 = vld [vmem:[%s4337] sm:$0x3]
        %4340 = vset.pattern.permute.xlu0 0
        %4341 = vperm.xlu0 %4340, %v4338
        %v4342 = vpop.permute.xlu0 %4341
        %v4345 = vsel %vm623, %v4334, 0
        %4347 = vmatprep.subr.bf16.mxu0 0
        %4348 = vmatpush1.bf16.msra.mxu0 %v4335
        %4349 = vmatprep.subr.bf16.mxu0 0
        %4350 = vmatpush1.bf16.msra.mxu0 %v4336
        %4351 = vmatprep.subr.bf16.mxu0 0
        %4352 = vmatpush1.bf16.msra.mxu0 0
        %4353 = vmatprep.subr.bf16.mxu0 0
        %4354 = vmatpush1.bf16.msra.mxu0 0
        %4355 = vmatprep.subr.bf16.mxu0 0
        %4356 = vmatpush1.bf16.msra.mxu0 0
        %4357 = vmatprep.subr.bf16.mxu0 0
        %4358 = vmatpush1.bf16.msra.mxu0 0
        %4359 = vmatprep.subr.bf16.mxu0 0
        %4360 = vmatpush1.bf16.msra.mxu0 0
        %4361 = vmatprep.subr.bf16.mxu0 0
        %4362 = vmatpush1.bf16.msra.mxu0 0
        %4363 = vmatprep.subr.bf16.mxu0 0
        %4364 = vmatpush1.bf16.msra.mxu0 0
        %4365 = vmatprep.subr.bf16.mxu0 0
        %4366 = vmatpush1.bf16.msra.mxu0 0
        %4367 = vmatprep.subr.bf16.mxu0 0
        %4368 = vmatpush1.bf16.msra.mxu0 0
        %4369 = vmatprep.subr.bf16.mxu0 0
        %4370 = vmatpush1.bf16.msra.mxu0 0
        %4371 = vmatprep.subr.bf16.mxu0 0
        %4372 = vmatpush1.bf16.msra.mxu0 0
        %4373 = vmatprep.subr.bf16.mxu0 0
        %4374 = vmatpush1.bf16.msra.mxu0 0
        %4375 = vmatprep.subr.bf16.mxu0 0
        %4376 = vmatpush1.bf16.msra.mxu0 0
        %4377 = vmatprep.subr.bf16.mxu0 0
        %4378 = vmatpush1.bf16.msra.mxu0 0
        %4379 = vmatprep.mubr.bf16.mxu0 0
        %4380 = vmatmul.mubr.bf16.gmra.mrb[0].mxu0 %v4345
        %v4381 = vpop.f32.mrb[0].mxu0
        %v4382 = vadd.f32 %v4342, %v4381
        %v4383 = vpop.f32.mrb[0].mxu0
        %v4384 = vpop.f32.mrb[0].mxu0
        %v4385 = vpop.f32.mrb[0].mxu0
        %4386 = vdwg.mxu0
        %v4387 = vmul.f32 %v4382, %v567
        %v4388 = vadd.f32 %v4387, %v2423
        %s4389 = scalar_lea.vmem %s2, 32
        %v4390 = vld [vmem:[%s4389] sm:$0xf]
        %v4391 = vld [vmem:[%s4389 + $0x4] sm:$0xf]
        %v4392 = vld [vmem:[%s4389 + $0x8] sm:$0xf]
        %v4393 = vld [vmem:[%s4389 + $0xc] sm:$0xf]
        %v4394 = vpack.c.bf16 %v4388, %v4388
        %s4395 = scalar_lea.vmem %s3, 64
        %v4396 = vld [vmem:[%s4395] sm:$0xff]
        %v4397 = vld [vmem:[%s4395 + $0x8] sm:$0xff]
        %v4398 = vld [vmem:[%s4395 + $0x10] sm:$0xff]
        %v4399 = vld [vmem:[%s4395 + $0x18] sm:$0xff]
        %4401 = vset.pattern.permute.xlu0 0
        %4402 = vperm.xlu0 %4401, %v4396
        %v4403 = vpop.permute.xlu0 %4402
        %4406 = vset.pattern.permute.xlu0 0
        %4407 = vperm.xlu0 %4406, %v4397
        %v4408 = vpop.permute.xlu0 %4407
        %4411 = vset.pattern.permute.xlu0 0
        %4412 = vperm.xlu0 %4411, %v4398
        %v4413 = vpop.permute.xlu0 %4412
        %4416 = vset.pattern.permute.xlu0 0
        %4417 = vperm.xlu0 %4416, %v4399
        %v4418 = vpop.permute.xlu0 %4417
        %v4424 = vunpack.c.l.b16 %v4390
        %v4425 = vunpack.c.l.b16 %v4391
        %v4426 = vunpack.c.l.b16 %v4392
        %v4427 = vunpack.c.l.b16 %v4393
        %v4428 = vpack.c.b16 %v4425, %v4424
        %v4429 = vpack.c.b16 %v4427, %v4426
        %v4431 = vsel %vm503, %v4428, 0
        %v4434 = vsel %vm503, %v4429, 0
        %v4437 = vsel %vm510, %v4394, 0
        %4439 = vmatprep.subr.bf16.mxu0 0
        %4440 = vmatpush1.bf16.msra.mxu0 %v4437
        %4441 = vmatprep.subr.bf16.mxu0 0
        %4442 = vmatpush1.bf16.msra.mxu0 0
        %4443 = vmatprep.subr.bf16.mxu0 0
        %4444 = vmatpush1.bf16.msra.mxu0 0
        %4445 = vmatprep.subr.bf16.mxu0 0
        %4446 = vmatpush1.bf16.msra.mxu0 0
        %4447 = vmatprep.subr.bf16.mxu0 0
        %4448 = vmatpush1.bf16.msra.mxu0 0
        %4449 = vmatprep.subr.bf16.mxu0 0
        %4450 = vmatpush1.bf16.msra.mxu0 0
        %4451 = vmatprep.subr.bf16.mxu0 0
        %4452 = vmatpush1.bf16.msra.mxu0 0
        %4453 = vmatprep.subr.bf16.mxu0 0
        %4454 = vmatpush1.bf16.msra.mxu0 0
        %4455 = vmatprep.subr.bf16.mxu0 0
        %4456 = vmatpush1.bf16.msra.mxu0 0
        %4457 = vmatprep.subr.bf16.mxu0 0
        %4458 = vmatpush1.bf16.msra.mxu0 0
        %4459 = vmatprep.subr.bf16.mxu0 0
        %4460 = vmatpush1.bf16.msra.mxu0 0
        %4461 = vmatprep.subr.bf16.mxu0 0
        %4462 = vmatpush1.bf16.msra.mxu0 0
        %4463 = vmatprep.subr.bf16.mxu0 0
        %4464 = vmatpush1.bf16.msra.mxu0 0
        %4465 = vmatprep.subr.bf16.mxu0 0
        %4466 = vmatpush1.bf16.msra.mxu0 0
        %4467 = vmatprep.subr.bf16.mxu0 0
        %4468 = vmatpush1.bf16.msra.mxu0 0
        %4469 = vmatprep.subr.bf16.mxu0 0
        %4470 = vmatpush1.bf16.msra.mxu0 0
        %4471 = vmatprep.mubr.bf16.mxu0 0
        %4472 = vmatmul.mubr.bf16.gmra.mrb[0].mxu0 %v4431
        %v4473 = vpop.f32.mrb[0].mxu0
        %v4474 = vadd.f32 %v4403, %v4473
        %v4475 = vpop.f32.mrb[0].mxu0
        %v4476 = vpop.f32.mrb[0].mxu0
        %v4477 = vadd.f32 %v4408, %v4476
        %v4478 = vpop.f32.mrb[0].mxu0
        %4479 = vmatprep.mubr.bf16.mxu0 0
        %4480 = vmatmul.mubr.bf16.gmra.mrb[0].mxu0 %v4434
        %v4481 = vpop.f32.mrb[0].mxu0
        %v4482 = vadd.f32 %v4413, %v4481
        %v4483 = vpop.f32.mrb[0].mxu0
        %v4484 = vpop.f32.mrb[0].mxu0
        %v4485 = vadd.f32 %v4418, %v4484
        %v4486 = vpop.f32.mrb[0].mxu0
        %4487 = vdwg.mxu0
        %v4488 = vmul.f32 %v4474, %v567
        %v4489 = vmul.f32 %v4477, %v567
        %v4490 = vmul.f32 %v4482, %v567
        %v4491 = vmul.f32 %v4485, %v567
        %s4492 = scalar_lea.vmem %s5, 384
        %v4493 = vld [vmem:[%s4492] sm:$0xff]
        %v4494 = vld [vmem:[%s4492 + $0x8] sm:$0xff]
        %v4495 = vld [vmem:[%s4492 + $0x10] sm:$0xff]
        %v4496 = vld [vmem:[%s4492 + $0x18] sm:$0xff]
        %v4497 = vld [vmem:[%s4492 + $0x20] sm:$0xff]
        %v4498 = vld [vmem:[%s4492 + $0x28] sm:$0xff]
        %v4499 = vld [vmem:[%s4492 + $0x30] sm:$0xff]
        %v4500 = vld [vmem:[%s4492 + $0x38] sm:$0xff]
        %s4501 = scalar_lea.vmem %s4, 576
        %v4502 = vld [vmem:[%s4501] sm:$0xf]
        %v4503 = vld [vmem:[%s4501 + $0x4] sm:$0xf]
        %v4504 = vld [vmem:[%s4501 + $0x8] sm:$0xf]
        %v4505 = vld [vmem:[%s4501 + $0xc] sm:$0xf]
        %v4506 = vld [vmem:[%s4501 + $0x10] sm:$0xf]
        %v4507 = vld [vmem:[%s4501 + $0x14] sm:$0xf]
        %v4508 = vld [vmem:[%s4501 + $0x18] sm:$0xf]
        %v4509 = vld [vmem:[%s4501 + $0x1c] sm:$0xf]
        %4510 = vrot.lane.b32.xlu0 %v4488, 1
        %v4511 = vpop.permute.xlu0 %4510
        %4512 = vrot.lane.b32.xlu0 %v4489, 1
        %v4513 = vpop.permute.xlu0 %4512
        %4514 = vrot.lane.b32.xlu0 %v4490, 1
        %v4515 = vpop.permute.xlu0 %4514
        %4516 = vrot.lane.b32.xlu0 %v4491, 1
        %v4517 = vpop.permute.xlu0 %4516
        %v4518 = vmul.f32 %v4511, %v445
        %v4519 = vmul.f32 %v4513, %v445
        %v4520 = vmul.f32 %v4515, %v445
        %v4521 = vmul.f32 %v4517, %v445
        %v4522 = vpack.c.bf16 %v4519, %v4518
        %v4523 = vpack.c.bf16 %v4521, %v4520
        %v4532 = vunpack.c.l.b16 %v4502
        %v4533 = vunpack.c.l.b16 %v4503
        %v4534 = vunpack.c.l.b16 %v4504
        %v4535 = vunpack.c.l.b16 %v4505
        %v4536 = vunpack.c.l.b16 %v4506
        %v4537 = vunpack.c.l.b16 %v4507
        %v4538 = vunpack.c.l.b16 %v4508
        %v4539 = vunpack.c.l.b16 %v4509
        %v4540 = vpack.c.b16 %v4533, %v4532
        %v4541 = vpack.c.b16 %v4535, %v4534
        %v4542 = vpack.c.b16 %v4537, %v4536
        %v4543 = vpack.c.b16 %v4539, %v4538
        %v4545 = vsel %vm623, %v4540, 0
        %v4548 = vsel %vm623, %v4541, 0
        %v4551 = vsel %vm623, %v4542, 0
        %v4554 = vsel %vm623, %v4543, 0
        %4556 = vmatprep.subr.bf16.mxu0 0
        %4557 = vmatpush1.bf16.msra.mxu0 %v4522
        %4558 = vmatprep.subr.bf16.mxu0 0
        %4559 = vmatpush1.bf16.msra.mxu0 %v4523
        %4560 = vmatprep.subr.bf16.mxu0 0
        %4561 = vmatpush1.bf16.msra.mxu0 0
        %4562 = vmatprep.subr.bf16.mxu0 0
        %4563 = vmatpush1.bf16.msra.mxu0 0
        %4564 = vmatprep.subr.bf16.mxu0 0
        %4565 = vmatpush1.bf16.msra.mxu0 0
        %4566 = vmatprep.subr.bf16.mxu0 0
        %4567 = vmatpush1.bf16.msra.mxu0 0
        %4568 = vmatprep.subr.bf16.mxu0 0
        %4569 = vmatpush1.bf16.msra.mxu0 0
        %4570 = vmatprep.subr.bf16.mxu0 0
        %4571 = vmatpush1.bf16.msra.mxu0 0
        %4572 = vmatprep.subr.bf16.mxu0 0
        %4573 = vmatpush1.bf16.msra.mxu0 0
        %4574 = vmatprep.subr.bf16.mxu0 0
        %4575 = vmatpush1.bf16.msra.mxu0 0
        %4576 = vmatprep.subr.bf16.mxu0 0
        %4577 = vmatpush1.bf16.msra.mxu0 0
        %4578 = vmatprep.subr.bf16.mxu0 0
        %4579 = vmatpush1.bf16.msra.mxu0 0
        %4580 = vmatprep.subr.bf16.mxu0 0
        %4581 = vmatpush1.bf16.msra.mxu0 0
        %4582 = vmatprep.subr.bf16.mxu0 0
        %4583 = vmatpush1.bf16.msra.mxu0 0
        %4584 = vmatprep.subr.bf16.mxu0 0
        %4585 = vmatpush1.bf16.msra.mxu0 0
        %4586 = vmatprep.subr.bf16.mxu0 0
        %4587 = vmatpush1.bf16.msra.mxu0 0
        %4588 = vmatprep.mubr.bf16.mxu0 0
        %4589 = vmatmul.mubr.bf16.gmra.mrb[0].mxu0 %v4545
        %v4590 = vpop.f32.mrb[0].mxu0
        %v4591 = vadd.f32 0.0, %v4590
        %v4592 = vpop.f32.mrb[0].mxu0
        %v4593 = vpop.f32.mrb[0].mxu0
        %v4594 = vadd.f32 0.0, %v4593
        %v4595 = vpop.f32.mrb[0].mxu0
        %4596 = vmatprep.mubr.bf16.mxu0 0
        %4597 = vmatmul.mubr.bf16.gmra.mrb[0].mxu0 %v4548
        %v4598 = vpop.f32.mrb[0].mxu0
        %v4599 = vadd.f32 0.0, %v4598
        %v4600 = vpop.f32.mrb[0].mxu0
        %v4601 = vpop.f32.mrb[0].mxu0
        %v4602 = vadd.f32 0.0, %v4601
        %v4603 = vpop.f32.mrb[0].mxu0
        %4604 = vmatprep.mubr.bf16.mxu0 0
        %4605 = vmatmul.mubr.bf16.gmra.mrb[0].mxu0 %v4551
        %v4606 = vpop.f32.mrb[0].mxu0
        %v4607 = vadd.f32 0.0, %v4606
        %v4608 = vpop.f32.mrb[0].mxu0
        %v4609 = vpop.f32.mrb[0].mxu0
        %v4610 = vadd.f32 0.0, %v4609
        %v4611 = vpop.f32.mrb[0].mxu0
        %4612 = vmatprep.mubr.bf16.mxu0 0
        %4613 = vmatmul.mubr.bf16.gmra.mrb[0].mxu0 %v4554
        %v4614 = vpop.f32.mrb[0].mxu0
        %v4615 = vadd.f32 0.0, %v4614
        %v4616 = vpop.f32.mrb[0].mxu0
        %v4617 = vpop.f32.mrb[0].mxu0
        %v4618 = vadd.f32 0.0, %v4617
        %v4619 = vpop.f32.mrb[0].mxu0
        %4620 = vdwg.mxu0
        %4622 = vset.pattern.permute.xlu0 0
        %4623 = vperm.xlu0 %4622, %v4493
        %v4624 = vpop.permute.xlu0 %4623
        %4627 = vset.pattern.permute.xlu0 0
        %4628 = vperm.xlu0 %4627, %v4494
        %v4629 = vpop.permute.xlu0 %4628
        %4632 = vset.pattern.permute.xlu0 0
        %4633 = vperm.xlu0 %4632, %v4495
        %v4634 = vpop.permute.xlu0 %4633
        %4637 = vset.pattern.permute.xlu0 0
        %4638 = vperm.xlu0 %4637, %v4496
        %v4639 = vpop.permute.xlu0 %4638
        %4642 = vset.pattern.permute.xlu0 0
        %4643 = vperm.xlu0 %4642, %v4497
        %v4644 = vpop.permute.xlu0 %4643
        %4647 = vset.pattern.permute.xlu0 0
        %4648 = vperm.xlu0 %4647, %v4498
        %v4649 = vpop.permute.xlu0 %4648
        %4652 = vset.pattern.permute.xlu0 0
        %4653 = vperm.xlu0 %4652, %v4499
        %v4654 = vpop.permute.xlu0 %4653
        %4657 = vset.pattern.permute.xlu0 0
        %4658 = vperm.xlu0 %4657, %v4500
        %v4659 = vpop.permute.xlu0 %4658
        %v4661 = vadd.f32 %v4624, %v4591
        %v4662 = vadd.f32 %v4629, %v4594
        %v4663 = vadd.f32 %v4634, %v4599
        %v4664 = vadd.f32 %v4639, %v4602
        %v4665 = vadd.f32 %v4644, %v4607
        %v4666 = vadd.f32 %v4649, %v4610
        %v4667 = vadd.f32 %v4654, %v4615
        %v4668 = vadd.f32 %v4659, %v4618
        %s4669 = scalar_lea.vmem %s4, 608
        %v4670 = vld [vmem:[%s4669] sm:$0xf]
        %v4671 = vld [vmem:[%s4669 + $0x4] sm:$0xf]
        %v4672 = vld [vmem:[%s4669 + $0x8] sm:$0xf]
        %v4673 = vld [vmem:[%s4669 + $0xc] sm:$0xf]
        %v4674 = vld [vmem:[%s4669 + $0x10] sm:$0xf]
        %v4675 = vld [vmem:[%s4669 + $0x14] sm:$0xf]
        %v4676 = vld [vmem:[%s4669 + $0x18] sm:$0xf]
        %v4677 = vld [vmem:[%s4669 + $0x1c] sm:$0xf]
        %v4678 = vpack.c.bf16 %v4489, %v4488
        %v4679 = vpack.c.bf16 %v4491, %v4490
        %v4688 = vunpack.c.l.b16 %v4670
        %v4689 = vunpack.c.l.b16 %v4671
        %v4690 = vunpack.c.l.b16 %v4672
        %v4691 = vunpack.c.l.b16 %v4673
        %v4692 = vunpack.c.l.b16 %v4674
        %v4693 = vunpack.c.l.b16 %v4675
        %v4694 = vunpack.c.l.b16 %v4676
        %v4695 = vunpack.c.l.b16 %v4677
        %v4696 = vpack.c.b16 %v4689, %v4688
        %v4697 = vpack.c.b16 %v4691, %v4690
        %v4698 = vpack.c.b16 %v4693, %v4692
        %v4699 = vpack.c.b16 %v4695, %v4694
        %v4701 = vsel %vm623, %v4696, 0
        %v4704 = vsel %vm623, %v4697, 0
        %v4707 = vsel %vm623, %v4698, 0
        %v4710 = vsel %vm623, %v4699, 0
        %4712 = vmatprep.subr.bf16.mxu0 0
        %4713 = vmatpush1.bf16.msra.mxu0 %v4678
        %4714 = vmatprep.subr.bf16.mxu0 0
        %4715 = vmatpush1.bf16.msra.mxu0 %v4679
        %4716 = vmatprep.subr.bf16.mxu0 0
        %4717 = vmatpush1.bf16.msra.mxu0 0
        %4718 = vmatprep.subr.bf16.mxu0 0
        %4719 = vmatpush1.bf16.msra.mxu0 0
        %4720 = vmatprep.subr.bf16.mxu0 0
        %4721 = vmatpush1.bf16.msra.mxu0 0
        %4722 = vmatprep.subr.bf16.mxu0 0
        %4723 = vmatpush1.bf16.msra.mxu0 0
        %4724 = vmatprep.subr.bf16.mxu0 0
        %4725 = vmatpush1.bf16.msra.mxu0 0
        %4726 = vmatprep.subr.bf16.mxu0 0
        %4727 = vmatpush1.bf16.msra.mxu0 0
        %4728 = vmatprep.subr.bf16.mxu0 0
        %4729 = vmatpush1.bf16.msra.mxu0 0
        %4730 = vmatprep.subr.bf16.mxu0 0
        %4731 = vmatpush1.bf16.msra.mxu0 0
        %4732 = vmatprep.subr.bf16.mxu0 0
        %4733 = vmatpush1.bf16.msra.mxu0 0
        %4734 = vmatprep.subr.bf16.mxu0 0
        %4735 = vmatpush1.bf16.msra.mxu0 0
        %4736 = vmatprep.subr.bf16.mxu0 0
        %4737 = vmatpush1.bf16.msra.mxu0 0
        %4738 = vmatprep.subr.bf16.mxu0 0
        %4739 = vmatpush1.bf16.msra.mxu0 0
        %4740 = vmatprep.subr.bf16.mxu0 0
        %4741 = vmatpush1.bf16.msra.mxu0 0
        %4742 = vmatprep.subr.bf16.mxu0 0
        %4743 = vmatpush1.bf16.msra.mxu0 0
        %4744 = vmatprep.mubr.bf16.mxu0 0
        %4745 = vmatmul.mubr.bf16.gmra.mrb[0].mxu0 %v4701
        %v4746 = vpop.f32.mrb[0].mxu0
        %v4747 = vadd.f32 0.0, %v4746
        %v4748 = vpop.f32.mrb[0].mxu0
        %v4749 = vpop.f32.mrb[0].mxu0
        %v4750 = vadd.f32 0.0, %v4749
        %v4751 = vpop.f32.mrb[0].mxu0
        %4752 = vmatprep.mubr.bf16.mxu0 0
        %4753 = vmatmul.mubr.bf16.gmra.mrb[0].mxu0 %v4704
        %v4754 = vpop.f32.mrb[0].mxu0
        %v4755 = vadd.f32 0.0, %v4754
        %v4756 = vpop.f32.mrb[0].mxu0
        %v4757 = vpop.f32.mrb[0].mxu0
        %v4758 = vadd.f32 0.0, %v4757
        %v4759 = vpop.f32.mrb[0].mxu0
        %4760 = vmatprep.mubr.bf16.mxu0 0
        %4761 = vmatmul.mubr.bf16.gmra.mrb[0].mxu0 %v4707
        %v4762 = vpop.f32.mrb[0].mxu0
        %v4763 = vadd.f32 0.0, %v4762
        %v4764 = vpop.f32.mrb[0].mxu0
        %v4765 = vpop.f32.mrb[0].mxu0
        %v4766 = vadd.f32 0.0, %v4765
        %v4767 = vpop.f32.mrb[0].mxu0
        %4768 = vmatprep.mubr.bf16.mxu0 0
        %4769 = vmatmul.mubr.bf16.gmra.mrb[0].mxu0 %v4710
        %v4770 = vpop.f32.mrb[0].mxu0
        %v4771 = vadd.f32 0.0, %v4770
        %v4772 = vpop.f32.mrb[0].mxu0
        %v4773 = vpop.f32.mrb[0].mxu0
        %v4774 = vadd.f32 0.0, %v4773
        %v4775 = vpop.f32.mrb[0].mxu0
        %4776 = vdwg.mxu0
        %v4777 = vadd.f32 %v4661, %v4747
        %v4778 = vadd.f32 %v4662, %v4750
        %v4779 = vadd.f32 %v4663, %v4755
        %v4780 = vadd.f32 %v4664, %v4758
        %v4781 = vadd.f32 %v4665, %v4763
        %v4782 = vadd.f32 %v4666, %v4766
        %v4783 = vadd.f32 %v4667, %v4771
        %v4784 = vadd.f32 %v4668, %v4774
        %s4785 = scalar_lea.vmem %s4, 640
        %v4786 = vld [vmem:[%s4785] sm:$0xf]
        %v4787 = vld [vmem:[%s4785 + $0x4] sm:$0xf]
        %v4788 = vld [vmem:[%s4785 + $0x8] sm:$0xf]
        %v4789 = vld [vmem:[%s4785 + $0xc] sm:$0xf]
        %v4790 = vld [vmem:[%s4785 + $0x10] sm:$0xf]
        %v4791 = vld [vmem:[%s4785 + $0x14] sm:$0xf]
        %v4792 = vld [vmem:[%s4785 + $0x18] sm:$0xf]
        %v4793 = vld [vmem:[%s4785 + $0x1c] sm:$0xf]
        %4794 = vrot.lane.b32.xlu0 %v4488, 127
        %v4795 = vpop.permute.xlu0 %4794
        %4796 = vrot.lane.b32.xlu0 %v4489, 127
        %v4797 = vpop.permute.xlu0 %4796
        %4798 = vrot.lane.b32.xlu0 %v4490, 127
        %v4799 = vpop.permute.xlu0 %4798
        %4800 = vrot.lane.b32.xlu0 %v4491, 127
        %v4801 = vpop.permute.xlu0 %4800
        %v4802 = vmul.f32 %v4795, %v451
        %v4803 = vmul.f32 %v4797, %v451
        %v4804 = vmul.f32 %v4799, %v451
        %v4805 = vmul.f32 %v4801, %v451
        %v4806 = vpack.c.bf16 %v4803, %v4802
        %v4807 = vpack.c.bf16 %v4805, %v4804
        %v4816 = vunpack.c.l.b16 %v4786
        %v4817 = vunpack.c.l.b16 %v4787
        %v4818 = vunpack.c.l.b16 %v4788
        %v4819 = vunpack.c.l.b16 %v4789
        %v4820 = vunpack.c.l.b16 %v4790
        %v4821 = vunpack.c.l.b16 %v4791
        %v4822 = vunpack.c.l.b16 %v4792
        %v4823 = vunpack.c.l.b16 %v4793
        %v4824 = vpack.c.b16 %v4817, %v4816
        %v4825 = vpack.c.b16 %v4819, %v4818
        %v4826 = vpack.c.b16 %v4821, %v4820
        %v4827 = vpack.c.b16 %v4823, %v4822
        %v4829 = vsel %vm623, %v4824, 0
        %v4832 = vsel %vm623, %v4825, 0
        %v4835 = vsel %vm623, %v4826, 0
        %v4838 = vsel %vm623, %v4827, 0
        %4840 = vmatprep.subr.bf16.mxu0 0
        %4841 = vmatpush1.bf16.msra.mxu0 %v4806
        %4842 = vmatprep.subr.bf16.mxu0 0
        %4843 = vmatpush1.bf16.msra.mxu0 %v4807
        %4844 = vmatprep.subr.bf16.mxu0 0
        %4845 = vmatpush1.bf16.msra.mxu0 0
        %4846 = vmatprep.subr.bf16.mxu0 0
        %4847 = vmatpush1.bf16.msra.mxu0 0
        %4848 = vmatprep.subr.bf16.mxu0 0
        %4849 = vmatpush1.bf16.msra.mxu0 0
        %4850 = vmatprep.subr.bf16.mxu0 0
        %4851 = vmatpush1.bf16.msra.mxu0 0
        %4852 = vmatprep.subr.bf16.mxu0 0
        %4853 = vmatpush1.bf16.msra.mxu0 0
        %4854 = vmatprep.subr.bf16.mxu0 0
        %4855 = vmatpush1.bf16.msra.mxu0 0
        %4856 = vmatprep.subr.bf16.mxu0 0
        %4857 = vmatpush1.bf16.msra.mxu0 0
        %4858 = vmatprep.subr.bf16.mxu0 0
        %4859 = vmatpush1.bf16.msra.mxu0 0
        %4860 = vmatprep.subr.bf16.mxu0 0
        %4861 = vmatpush1.bf16.msra.mxu0 0
        %4862 = vmatprep.subr.bf16.mxu0 0
        %4863 = vmatpush1.bf16.msra.mxu0 0
        %4864 = vmatprep.subr.bf16.mxu0 0
        %4865 = vmatpush1.bf16.msra.mxu0 0
        %4866 = vmatprep.subr.bf16.mxu0 0
        %4867 = vmatpush1.bf16.msra.mxu0 0
        %4868 = vmatprep.subr.bf16.mxu0 0
        %4869 = vmatpush1.bf16.msra.mxu0 0
        %4870 = vmatprep.subr.bf16.mxu0 0
        %4871 = vmatpush1.bf16.msra.mxu0 0
        %4872 = vmatprep.mubr.bf16.mxu0 0
        %4873 = vmatmul.mubr.bf16.gmra.mrb[0].mxu0 %v4829
        %v4874 = vpop.f32.mrb[0].mxu0
        %v4875 = vadd.f32 0.0, %v4874
        %v4876 = vpop.f32.mrb[0].mxu0
        %v4877 = vpop.f32.mrb[0].mxu0
        %v4878 = vadd.f32 0.0, %v4877
        %v4879 = vpop.f32.mrb[0].mxu0
        %4880 = vmatprep.mubr.bf16.mxu0 0
        %4881 = vmatmul.mubr.bf16.gmra.mrb[0].mxu0 %v4832
        %v4882 = vpop.f32.mrb[0].mxu0
        %v4883 = vadd.f32 0.0, %v4882
        %v4884 = vpop.f32.mrb[0].mxu0
        %v4885 = vpop.f32.mrb[0].mxu0
        %v4886 = vadd.f32 0.0, %v4885
        %v4887 = vpop.f32.mrb[0].mxu0
        %4888 = vmatprep.mubr.bf16.mxu0 0
        %4889 = vmatmul.mubr.bf16.gmra.mrb[0].mxu0 %v4835
        %v4890 = vpop.f32.mrb[0].mxu0
        %v4891 = vadd.f32 0.0, %v4890
        %v4892 = vpop.f32.mrb[0].mxu0
        %v4893 = vpop.f32.mrb[0].mxu0
        %v4894 = vadd.f32 0.0, %v4893
        %v4895 = vpop.f32.mrb[0].mxu0
        %4896 = vmatprep.mubr.bf16.mxu0 0
        %4897 = vmatmul.mubr.bf16.gmra.mrb[0].mxu0 %v4838
        %v4898 = vpop.f32.mrb[0].mxu0
        %v4899 = vadd.f32 0.0, %v4898
        %v4900 = vpop.f32.mrb[0].mxu0
        %v4901 = vpop.f32.mrb[0].mxu0
        %v4902 = vadd.f32 0.0, %v4901
        %v4903 = vpop.f32.mrb[0].mxu0
        %4904 = vdwg.mxu0
        %v4905 = vadd.f32 %v4777, %v4875
        %v4906 = vadd.f32 %v4778, %v4878
        %v4907 = vadd.f32 %v4779, %v4883
        %v4908 = vadd.f32 %v4780, %v4886
        %v4909 = vadd.f32 %v4781, %v4891
        %v4910 = vadd.f32 %v4782, %v4894
        %v4911 = vadd.f32 %v4783, %v4899
        %v4912 = vadd.f32 %v4784, %v4902
        %v4913 = vtanh.pop %v4905
        %v4914 = vtanh.pop %v4906
        %v4915 = vtanh.pop %v4907
        %v4916 = vtanh.pop %v4908
        %v4917 = vxor.u32 %v4909, 2147483648
        %v4918 = vxor.u32 %v4910, 2147483648
        %v4919 = vxor.u32 %v4911, 2147483648
        %v4920 = vxor.u32 %v4912, 2147483648
        %v4921 = vmul.f32 %v4917, 1.442695
        %v4922 = vpow.pop %v4921
        %v4923 = vmul.f32 %v4918, 1.442695
        %v4924 = vpow.pop %v4923
        %v4925 = vmul.f32 %v4919, 1.442695
        %v4926 = vpow.pop %v4925
        %v4927 = vmul.f32 %v4920, 1.442695
        %v4928 = vpow.pop %v4927
        %v4929 = vadd.f32 %v4922, 1.0
        %v4930 = vadd.f32 %v4924, 1.0
        %v4931 = vadd.f32 %v4926, 1.0
        %v4932 = vadd.f32 %v4928, 1.0
        %v4933 = vrcp.pop %v4929
        %v4934 = vmul.f32 1.0, %v4933
        %v4935 = vrcp.pop %v4930
        %v4936 = vmul.f32 1.0, %v4935
        %v4937 = vrcp.pop %v4931
        %v4938 = vmul.f32 1.0, %v4937
        %v4939 = vrcp.pop %v4932
        %v4940 = vmul.f32 1.0, %v4939
        %v4941 = vmul.f32 %v4913, %v4934
        %v4942 = vmul.f32 %v4914, %v4936
        %v4943 = vmul.f32 %v4915, %v4938
        %v4944 = vmul.f32 %v4916, %v4940
        %s4945 = scalar_lea.vmem %s6, 128
        %v4946 = vld [vmem:[%s4945] sm:$0xf]
        %v4947 = vld [vmem:[%s4945 + $0x4] sm:$0xf]
        %v4948 = vld [vmem:[%s4945 + $0x8] sm:$0xf]
        %v4949 = vld [vmem:[%s4945 + $0xc] sm:$0xf]
        %v4950 = vld [vmem:[%s4945 + $0x10] sm:$0xf]
        %v4951 = vld [vmem:[%s4945 + $0x14] sm:$0xf]
        %v4952 = vld [vmem:[%s4945 + $0x18] sm:$0xf]
        %v4953 = vld [vmem:[%s4945 + $0x1c] sm:$0xf]
        %v4954 = vpack.c.bf16 %v4942, %v4941
        %v4955 = vpack.c.bf16 %v4944, %v4943
        %s4956 = scalar_lea.vmem %s7, 256
        %v4957 = vld [vmem:[%s4956] sm:$0xff]
        %v4958 = vld [vmem:[%s4956 + $0x8] sm:$0xff]
        %v4959 = vld [vmem:[%s4956 + $0x10] sm:$0xff]
        %v4960 = vld [vmem:[%s4956 + $0x18] sm:$0xff]
        %v4961 = vld [vmem:[%s4956 + $0x20] sm:$0xff]
        %v4962 = vld [vmem:[%s4956 + $0x28] sm:$0xff]
        %v4963 = vld [vmem:[%s4956 + $0x30] sm:$0xff]
        %v4964 = vld [vmem:[%s4956 + $0x38] sm:$0xff]
        %4966 = vset.pattern.permute.xlu0 0
        %4967 = vperm.xlu0 %4966, %v4957
        %v4968 = vpop.permute.xlu0 %4967
        %4971 = vset.pattern.permute.xlu0 0
        %4972 = vperm.xlu0 %4971, %v4958
        %v4973 = vpop.permute.xlu0 %4972
        %4976 = vset.pattern.permute.xlu0 0
        %4977 = vperm.xlu0 %4976, %v4959
        %v4978 = vpop.permute.xlu0 %4977
        %4981 = vset.pattern.permute.xlu0 0
        %4982 = vperm.xlu0 %4981, %v4960
        %v4983 = vpop.permute.xlu0 %4982
        %4986 = vset.pattern.permute.xlu0 0
        %4987 = vperm.xlu0 %4986, %v4961
        %v4988 = vpop.permute.xlu0 %4987
        %4991 = vset.pattern.permute.xlu0 0
        %4992 = vperm.xlu0 %4991, %v4962
        %v4993 = vpop.permute.xlu0 %4992
        %4996 = vset.pattern.permute.xlu0 0
        %4997 = vperm.xlu0 %4996, %v4963
        %v4998 = vpop.permute.xlu0 %4997
        %5001 = vset.pattern.permute.xlu0 0
        %5002 = vperm.xlu0 %5001, %v4964
        %v5003 = vpop.permute.xlu0 %5002
        %v5013 = vunpack.c.l.b16 %v4946
        %v5014 = vunpack.c.l.b16 %v4947
        %v5015 = vunpack.c.l.b16 %v4948
        %v5016 = vunpack.c.l.b16 %v4949
        %v5017 = vunpack.c.l.b16 %v4950
        %v5018 = vunpack.c.l.b16 %v4951
        %v5019 = vunpack.c.l.b16 %v4952
        %v5020 = vunpack.c.l.b16 %v4953
        %v5021 = vpack.c.b16 %v5014, %v5013
        %v5022 = vpack.c.b16 %v5016, %v5015
        %v5023 = vpack.c.b16 %v5018, %v5017
        %v5024 = vpack.c.b16 %v5020, %v5019
        %v5026 = vsel %vm623, %v5021, 0
        %v5029 = vsel %vm623, %v5022, 0
        %v5032 = vsel %vm623, %v5023, 0
        %v5035 = vsel %vm623, %v5024, 0
        %5037 = vmatprep.subr.bf16.mxu0 0
        %5038 = vmatpush1.bf16.msra.mxu0 %v4954
        %5039 = vmatprep.subr.bf16.mxu0 0
        %5040 = vmatpush1.bf16.msra.mxu0 %v4955
        %5041 = vmatprep.subr.bf16.mxu0 0
        %5042 = vmatpush1.bf16.msra.mxu0 0
        %5043 = vmatprep.subr.bf16.mxu0 0
        %5044 = vmatpush1.bf16.msra.mxu0 0
        %5045 = vmatprep.subr.bf16.mxu0 0
        %5046 = vmatpush1.bf16.msra.mxu0 0
        %5047 = vmatprep.subr.bf16.mxu0 0
        %5048 = vmatpush1.bf16.msra.mxu0 0
        %5049 = vmatprep.subr.bf16.mxu0 0
        %5050 = vmatpush1.bf16.msra.mxu0 0
        %5051 = vmatprep.subr.bf16.mxu0 0
        %5052 = vmatpush1.bf16.msra.mxu0 0
        %5053 = vmatprep.subr.bf16.mxu0 0
        %5054 = vmatpush1.bf16.msra.mxu0 0
        %5055 = vmatprep.subr.bf16.mxu0 0
        %5056 = vmatpush1.bf16.msra.mxu0 0
        %5057 = vmatprep.subr.bf16.mxu0 0
        %5058 = vmatpush1.bf16.msra.mxu0 0
        %5059 = vmatprep.subr.bf16.mxu0 0
        %5060 = vmatpush1.bf16.msra.mxu0 0
        %5061 = vmatprep.subr.bf16.mxu0 0
        %5062 = vmatpush1.bf16.msra.mxu0 0
        %5063 = vmatprep.subr.bf16.mxu0 0
        %5064 = vmatpush1.bf16.msra.mxu0 0
        %5065 = vmatprep.subr.bf16.mxu0 0
        %5066 = vmatpush1.bf16.msra.mxu0 0
        %5067 = vmatprep.subr.bf16.mxu0 0
        %5068 = vmatpush1.bf16.msra.mxu0 0
        %5069 = vmatprep.mubr.bf16.mxu0 0
        %5070 = vmatmul.mubr.bf16.gmra.mrb[0].mxu0 %v5026
        %v5071 = vpop.f32.mrb[0].mxu0
        %v5072 = vadd.f32 %v4968, %v5071
        %v5073 = vpop.f32.mrb[0].mxu0
        %v5074 = vpop.f32.mrb[0].mxu0
        %v5075 = vadd.f32 %v4973, %v5074
        %v5076 = vpop.f32.mrb[0].mxu0
        %5077 = vmatprep.mubr.bf16.mxu0 0
        %5078 = vmatmul.mubr.bf16.gmra.mrb[0].mxu0 %v5029
        %v5079 = vpop.f32.mrb[0].mxu0
        %v5080 = vadd.f32 %v4978, %v5079
        %v5081 = vpop.f32.mrb[0].mxu0
        %v5082 = vpop.f32.mrb[0].mxu0
        %v5083 = vadd.f32 %v4983, %v5082
        %v5084 = vpop.f32.mrb[0].mxu0
        %5085 = vmatprep.mubr.bf16.mxu0 0
        %5086 = vmatmul.mubr.bf16.gmra.mrb[0].mxu0 %v5032
        %v5087 = vpop.f32.mrb[0].mxu0
        %v5088 = vadd.f32 %v4988, %v5087
        %v5089 = vpop.f32.mrb[0].mxu0
        %v5090 = vpop.f32.mrb[0].mxu0
        %v5091 = vadd.f32 %v4993, %v5090
        %v5092 = vpop.f32.mrb[0].mxu0
        %5093 = vmatprep.mubr.bf16.mxu0 0
        %5094 = vmatmul.mubr.bf16.gmra.mrb[0].mxu0 %v5035
        %v5095 = vpop.f32.mrb[0].mxu0
        %v5096 = vadd.f32 %v4998, %v5095
        %v5097 = vpop.f32.mrb[0].mxu0
        %v5098 = vpop.f32.mrb[0].mxu0
        %v5099 = vadd.f32 %v5003, %v5098
        %v5100 = vpop.f32.mrb[0].mxu0
        %5101 = vdwg.mxu0
        %v5102 = vadd.f32 %v4488, %v5072
        %v5103 = vadd.f32 %v4489, %v5075
        %v5104 = vadd.f32 %v4490, %v5080
        %v5105 = vadd.f32 %v4491, %v5083
        %v5106 = vmul.f32 %v5102, %v567
        %v5107 = vmul.f32 %v5103, %v567
        %v5108 = vmul.f32 %v5104, %v567
        %v5109 = vmul.f32 %v5105, %v567
        %v5110 = vadd.f32 %v5088, 0.0
        %v5111 = vadd.f32 %v5091, 0.0
        %v5112 = vadd.f32 %v5096, 0.0
        %v5113 = vadd.f32 %v5099, 0.0
        %s5114 = scalar_lea.vmem %s5, 448
        %v5115 = vld [vmem:[%s5114] sm:$0xff]
        %v5116 = vld [vmem:[%s5114 + $0x8] sm:$0xff]
        %v5117 = vld [vmem:[%s5114 + $0x10] sm:$0xff]
        %v5118 = vld [vmem:[%s5114 + $0x18] sm:$0xff]
        %v5119 = vld [vmem:[%s5114 + $0x20] sm:$0xff]
        %v5120 = vld [vmem:[%s5114 + $0x28] sm:$0xff]
        %v5121 = vld [vmem:[%s5114 + $0x30] sm:$0xff]
        %v5122 = vld [vmem:[%s5114 + $0x38] sm:$0xff]
        %s5123 = scalar_lea.vmem %s4, 672
        %v5124 = vld [vmem:[%s5123] sm:$0xf]
        %v5125 = vld [vmem:[%s5123 + $0x4] sm:$0xf]
        %v5126 = vld [vmem:[%s5123 + $0x8] sm:$0xf]
        %v5127 = vld [vmem:[%s5123 + $0xc] sm:$0xf]
        %v5128 = vld [vmem:[%s5123 + $0x10] sm:$0xf]
        %v5129 = vld [vmem:[%s5123 + $0x14] sm:$0xf]
        %v5130 = vld [vmem:[%s5123 + $0x18] sm:$0xf]
        %v5131 = vld [vmem:[%s5123 + $0x1c] sm:$0xf]
        %5132 = vrot.lane.b32.xlu0 %v5106, 2
        %v5133 = vpop.permute.xlu0 %5132
        %5134 = vrot.lane.b32.xlu0 %v5107, 2
        %v5135 = vpop.permute.xlu0 %5134
        %5136 = vrot.lane.b32.xlu0 %v5108, 2
        %v5137 = vpop.permute.xlu0 %5136
        %5138 = vrot.lane.b32.xlu0 %v5109, 2
        %v5139 = vpop.permute.xlu0 %5138
        %v5140 = vmul.f32 %v5133, %v439
        %v5141 = vmul.f32 %v5135, %v439
        %v5142 = vmul.f32 %v5137, %v439
        %v5143 = vmul.f32 %v5139, %v439
        %v5144 = vpack.c.bf16 %v5141, %v5140
        %v5145 = vpack.c.bf16 %v5143, %v5142
        %v5154 = vunpack.c.l.b16 %v5124
        %v5155 = vunpack.c.l.b16 %v5125
        %v5156 = vunpack.c.l.b16 %v5126
        %v5157 = vunpack.c.l.b16 %v5127
        %v5158 = vunpack.c.l.b16 %v5128
        %v5159 = vunpack.c.l.b16 %v5129
        %v5160 = vunpack.c.l.b16 %v5130
        %v5161 = vunpack.c.l.b16 %v5131
        %v5162 = vpack.c.b16 %v5155, %v5154
        %v5163 = vpack.c.b16 %v5157, %v5156
        %v5164 = vpack.c.b16 %v5159, %v5158
        %v5165 = vpack.c.b16 %v5161, %v5160
        %v5167 = vsel %vm623, %v5162, 0
        %v5170 = vsel %vm623, %v5163, 0
        %v5173 = vsel %vm623, %v5164, 0
        %v5176 = vsel %vm623, %v5165, 0
        %5178 = vmatprep.subr.bf16.mxu0 0
        %5179 = vmatpush1.bf16.msra.mxu0 %v5144
        %5180 = vmatprep.subr.bf16.mxu0 0
        %5181 = vmatpush1.bf16.msra.mxu0 %v5145
        %5182 = vmatprep.subr.bf16.mxu0 0
        %5183 = vmatpush1.bf16.msra.mxu0 0
        %5184 = vmatprep.subr.bf16.mxu0 0
        %5185 = vmatpush1.bf16.msra.mxu0 0
        %5186 = vmatprep.subr.bf16.mxu0 0
        %5187 = vmatpush1.bf16.msra.mxu0 0
        %5188 = vmatprep.subr.bf16.mxu0 0
        %5189 = vmatpush1.bf16.msra.mxu0 0
        %5190 = vmatprep.subr.bf16.mxu0 0
        %5191 = vmatpush1.bf16.msra.mxu0 0
        %5192 = vmatprep.subr.bf16.mxu0 0
        %5193 = vmatpush1.bf16.msra.mxu0 0
        %5194 = vmatprep.subr.bf16.mxu0 0
        %5195 = vmatpush1.bf16.msra.mxu0 0
        %5196 = vmatprep.subr.bf16.mxu0 0
        %5197 = vmatpush1.bf16.msra.mxu0 0
        %5198 = vmatprep.subr.bf16.mxu0 0
        %5199 = vmatpush1.bf16.msra.mxu0 0
        %5200 = vmatprep.subr.bf16.mxu0 0
        %5201 = vmatpush1.bf16.msra.mxu0 0
        %5202 = vmatprep.subr.bf16.mxu0 0
        %5203 = vmatpush1.bf16.msra.mxu0 0
        %5204 = vmatprep.subr.bf16.mxu0 0
        %5205 = vmatpush1.bf16.msra.mxu0 0
        %5206 = vmatprep.subr.bf16.mxu0 0
        %5207 = vmatpush1.bf16.msra.mxu0 0
        %5208 = vmatprep.subr.bf16.mxu0 0
        %5209 = vmatpush1.bf16.msra.mxu0 0
        %5210 = vmatprep.mubr.bf16.mxu0 0
        %5211 = vmatmul.mubr.bf16.gmra.mrb[0].mxu0 %v5167
        %v5212 = vpop.f32.mrb[0].mxu0
        %v5213 = vadd.f32 0.0, %v5212
        %v5214 = vpop.f32.mrb[0].mxu0
        %v5215 = vpop.f32.mrb[0].mxu0
        %v5216 = vadd.f32 0.0, %v5215
        %v5217 = vpop.f32.mrb[0].mxu0
        %5218 = vmatprep.mubr.bf16.mxu0 0
        %5219 = vmatmul.mubr.bf16.gmra.mrb[0].mxu0 %v5170
        %v5220 = vpop.f32.mrb[0].mxu0
        %v5221 = vadd.f32 0.0, %v5220
        %v5222 = vpop.f32.mrb[0].mxu0
        %v5223 = vpop.f32.mrb[0].mxu0
        %v5224 = vadd.f32 0.0, %v5223
        %v5225 = vpop.f32.mrb[0].mxu0
        %5226 = vmatprep.mubr.bf16.mxu0 0
        %5227 = vmatmul.mubr.bf16.gmra.mrb[0].mxu0 %v5173
        %v5228 = vpop.f32.mrb[0].mxu0
        %v5229 = vadd.f32 0.0, %v5228
        %v5230 = vpop.f32.mrb[0].mxu0
        %v5231 = vpop.f32.mrb[0].mxu0
        %v5232 = vadd.f32 0.0, %v5231
        %v5233 = vpop.f32.mrb[0].mxu0
        %5234 = vmatprep.mubr.bf16.mxu0 0
        %5235 = vmatmul.mubr.bf16.gmra.mrb[0].mxu0 %v5176
        %v5236 = vpop.f32.mrb[0].mxu0
        %v5237 = vadd.f32 0.0, %v5236
        %v5238 = vpop.f32.mrb[0].mxu0
        %v5239 = vpop.f32.mrb[0].mxu0
        %v5240 = vadd.f32 0.0, %v5239
        %v5241 = vpop.f32.mrb[0].mxu0
        %5242 = vdwg.mxu0
        %5244 = vset.pattern.permute.xlu0 0
        %5245 = vperm.xlu0 %5244, %v5115
        %v5246 = vpop.permute.xlu0 %5245
        %5249 = vset.pattern.permute.xlu0 0
        %5250 = vperm.xlu0 %5249, %v5116
        %v5251 = vpop.permute.xlu0 %5250
        %5254 = vset.pattern.permute.xlu0 0
        %5255 = vperm.xlu0 %5254, %v5117
        %v5256 = vpop.permute.xlu0 %5255
        %5259 = vset.pattern.permute.xlu0 0
        %5260 = vperm.xlu0 %5259, %v5118
        %v5261 = vpop.permute.xlu0 %5260
        %5264 = vset.pattern.permute.xlu0 0
        %5265 = vperm.xlu0 %5264, %v5119
        %v5266 = vpop.permute.xlu0 %5265
        %5269 = vset.pattern.permute.xlu0 0
        %5270 = vperm.xlu0 %5269, %v5120
        %v5271 = vpop.permute.xlu0 %5270
        %5274 = vset.pattern.permute.xlu0 0
        %5275 = vperm.xlu0 %5274, %v5121
        %v5276 = vpop.permute.xlu0 %5275
        %5279 = vset.pattern.permute.xlu0 0
        %5280 = vperm.xlu0 %5279, %v5122
        %v5281 = vpop.permute.xlu0 %5280
        %v5283 = vadd.f32 %v5246, %v5213
        %v5284 = vadd.f32 %v5251, %v5216
        %v5285 = vadd.f32 %v5256, %v5221
        %v5286 = vadd.f32 %v5261, %v5224
        %v5287 = vadd.f32 %v5266, %v5229
        %v5288 = vadd.f32 %v5271, %v5232
        %v5289 = vadd.f32 %v5276, %v5237
        %v5290 = vadd.f32 %v5281, %v5240
        %s5291 = scalar_lea.vmem %s4, 704
        %v5292 = vld [vmem:[%s5291] sm:$0xf]
        %v5293 = vld [vmem:[%s5291 + $0x4] sm:$0xf]
        %v5294 = vld [vmem:[%s5291 + $0x8] sm:$0xf]
        %v5295 = vld [vmem:[%s5291 + $0xc] sm:$0xf]
        %v5296 = vld [vmem:[%s5291 + $0x10] sm:$0xf]
        %v5297 = vld [vmem:[%s5291 + $0x14] sm:$0xf]
        %v5298 = vld [vmem:[%s5291 + $0x18] sm:$0xf]
        %v5299 = vld [vmem:[%s5291 + $0x1c] sm:$0xf]
        %v5300 = vpack.c.bf16 %v5107, %v5106
        %v5301 = vpack.c.bf16 %v5109, %v5108
        %v5310 = vunpack.c.l.b16 %v5292
        %v5311 = vunpack.c.l.b16 %v5293
        %v5312 = vunpack.c.l.b16 %v5294
        %v5313 = vunpack.c.l.b16 %v5295
        %v5314 = vunpack.c.l.b16 %v5296
        %v5315 = vunpack.c.l.b16 %v5297
        %v5316 = vunpack.c.l.b16 %v5298
        %v5317 = vunpack.c.l.b16 %v5299
        %v5318 = vpack.c.b16 %v5311, %v5310
        %v5319 = vpack.c.b16 %v5313, %v5312
        %v5320 = vpack.c.b16 %v5315, %v5314
        %v5321 = vpack.c.b16 %v5317, %v5316
        %v5323 = vsel %vm623, %v5318, 0
        %v5326 = vsel %vm623, %v5319, 0
        %v5329 = vsel %vm623, %v5320, 0
        %v5332 = vsel %vm623, %v5321, 0
        %5334 = vmatprep.subr.bf16.mxu0 0
        %5335 = vmatpush1.bf16.msra.mxu0 %v5300
        %5336 = vmatprep.subr.bf16.mxu0 0
        %5337 = vmatpush1.bf16.msra.mxu0 %v5301
        %5338 = vmatprep.subr.bf16.mxu0 0
        %5339 = vmatpush1.bf16.msra.mxu0 0
        %5340 = vmatprep.subr.bf16.mxu0 0
        %5341 = vmatpush1.bf16.msra.mxu0 0
        %5342 = vmatprep.subr.bf16.mxu0 0
        %5343 = vmatpush1.bf16.msra.mxu0 0
        %5344 = vmatprep.subr.bf16.mxu0 0
        %5345 = vmatpush1.bf16.msra.mxu0 0
        %5346 = vmatprep.subr.bf16.mxu0 0
        %5347 = vmatpush1.bf16.msra.mxu0 0
        %5348 = vmatprep.subr.bf16.mxu0 0
        %5349 = vmatpush1.bf16.msra.mxu0 0
        %5350 = vmatprep.subr.bf16.mxu0 0
        %5351 = vmatpush1.bf16.msra.mxu0 0
        %5352 = vmatprep.subr.bf16.mxu0 0
        %5353 = vmatpush1.bf16.msra.mxu0 0
        %5354 = vmatprep.subr.bf16.mxu0 0
        %5355 = vmatpush1.bf16.msra.mxu0 0
        %5356 = vmatprep.subr.bf16.mxu0 0
        %5357 = vmatpush1.bf16.msra.mxu0 0
        %5358 = vmatprep.subr.bf16.mxu0 0
        %5359 = vmatpush1.bf16.msra.mxu0 0
        %5360 = vmatprep.subr.bf16.mxu0 0
        %5361 = vmatpush1.bf16.msra.mxu0 0
        %5362 = vmatprep.subr.bf16.mxu0 0
        %5363 = vmatpush1.bf16.msra.mxu0 0
        %5364 = vmatprep.subr.bf16.mxu0 0
        %5365 = vmatpush1.bf16.msra.mxu0 0
        %5366 = vmatprep.mubr.bf16.mxu0 0
        %5367 = vmatmul.mubr.bf16.gmra.mrb[0].mxu0 %v5323
        %v5368 = vpop.f32.mrb[0].mxu0
        %v5369 = vadd.f32 0.0, %v5368
        %v5370 = vpop.f32.mrb[0].mxu0
        %v5371 = vpop.f32.mrb[0].mxu0
        %v5372 = vadd.f32 0.0, %v5371
        %v5373 = vpop.f32.mrb[0].mxu0
        %5374 = vmatprep.mubr.bf16.mxu0 0
        %5375 = vmatmul.mubr.bf16.gmra.mrb[0].mxu0 %v5326
        %v5376 = vpop.f32.mrb[0].mxu0
        %v5377 = vadd.f32 0.0, %v5376
        %v5378 = vpop.f32.mrb[0].mxu0
        %v5379 = vpop.f32.mrb[0].mxu0
        %v5380 = vadd.f32 0.0, %v5379
        %v5381 = vpop.f32.mrb[0].mxu0
        %5382 = vmatprep.mubr.bf16.mxu0 0
        %5383 = vmatmul.mubr.bf16.gmra.mrb[0].mxu0 %v5329
        %v5384 = vpop.f32.mrb[0].mxu0
        %v5385 = vadd.f32 0.0, %v5384
        %v5386 = vpop.f32.mrb[0].mxu0
        %v5387 = vpop.f32.mrb[0].mxu0
        %v5388 = vadd.f32 0.0, %v5387
        %v5389 = vpop.f32.mrb[0].mxu0
        %5390 = vmatprep.mubr.bf16.mxu0 0
        %5391 = vmatmul.mubr.bf16.gmra.mrb[0].mxu0 %v5332
        %v5392 = vpop.f32.mrb[0].mxu0
        %v5393 = vadd.f32 0.0, %v5392
        %v5394 = vpop.f32.mrb[0].mxu0
        %v5395 = vpop.f32.mrb[0].mxu0
        %v5396 = vadd.f32 0.0, %v5395
        %v5397 = vpop.f32.mrb[0].mxu0
        %5398 = vdwg.mxu0
        %v5399 = vadd.f32 %v5283, %v5369
        %v5400 = vadd.f32 %v5284, %v5372
        %v5401 = vadd.f32 %v5285, %v5377
        %v5402 = vadd.f32 %v5286, %v5380
        %v5403 = vadd.f32 %v5287, %v5385
        %v5404 = vadd.f32 %v5288, %v5388
        %v5405 = vadd.f32 %v5289, %v5393
        %v5406 = vadd.f32 %v5290, %v5396
        %s5407 = scalar_lea.vmem %s4, 736
        %v5408 = vld [vmem:[%s5407] sm:$0xf]
        %v5409 = vld [vmem:[%s5407 + $0x4] sm:$0xf]
        %v5410 = vld [vmem:[%s5407 + $0x8] sm:$0xf]
        %v5411 = vld [vmem:[%s5407 + $0xc] sm:$0xf]
        %v5412 = vld [vmem:[%s5407 + $0x10] sm:$0xf]
        %v5413 = vld [vmem:[%s5407 + $0x14] sm:$0xf]
        %v5414 = vld [vmem:[%s5407 + $0x18] sm:$0xf]
        %v5415 = vld [vmem:[%s5407 + $0x1c] sm:$0xf]
        %5416 = vrot.lane.b32.xlu0 %v5106, 126
        %v5417 = vpop.permute.xlu0 %5416
        %5418 = vrot.lane.b32.xlu0 %v5107, 126
        %v5419 = vpop.permute.xlu0 %5418
        %5420 = vrot.lane.b32.xlu0 %v5108, 126
        %v5421 = vpop.permute.xlu0 %5420
        %5422 = vrot.lane.b32.xlu0 %v5109, 126
        %v5423 = vpop.permute.xlu0 %5422
        %v5424 = vmul.f32 %v5417, %v457
        %v5425 = vmul.f32 %v5419, %v457
        %v5426 = vmul.f32 %v5421, %v457
        %v5427 = vmul.f32 %v5423, %v457
        %v5428 = vpack.c.bf16 %v5425, %v5424
        %v5429 = vpack.c.bf16 %v5427, %v5426
        %v5438 = vunpack.c.l.b16 %v5408
        %v5439 = vunpack.c.l.b16 %v5409
        %v5440 = vunpack.c.l.b16 %v5410
        %v5441 = vunpack.c.l.b16 %v5411
        %v5442 = vunpack.c.l.b16 %v5412
        %v5443 = vunpack.c.l.b16 %v5413
        %v5444 = vunpack.c.l.b16 %v5414
        %v5445 = vunpack.c.l.b16 %v5415
        %v5446 = vpack.c.b16 %v5439, %v5438
        %v5447 = vpack.c.b16 %v5441, %v5440
        %v5448 = vpack.c.b16 %v5443, %v5442
        %v5449 = vpack.c.b16 %v5445, %v5444
        %v5451 = vsel %vm623, %v5446, 0
        %v5454 = vsel %vm623, %v5447, 0
        %v5457 = vsel %vm623, %v5448, 0
        %v5460 = vsel %vm623, %v5449, 0
        %5462 = vmatprep.subr.bf16.mxu0 0
        %5463 = vmatpush1.bf16.msra.mxu0 %v5428
        %5464 = vmatprep.subr.bf16.mxu0 0
        %5465 = vmatpush1.bf16.msra.mxu0 %v5429
        %5466 = vmatprep.subr.bf16.mxu0 0
        %5467 = vmatpush1.bf16.msra.mxu0 0
        %5468 = vmatprep.subr.bf16.mxu0 0
        %5469 = vmatpush1.bf16.msra.mxu0 0
        %5470 = vmatprep.subr.bf16.mxu0 0
        %5471 = vmatpush1.bf16.msra.mxu0 0
        %5472 = vmatprep.subr.bf16.mxu0 0
        %5473 = vmatpush1.bf16.msra.mxu0 0
        %5474 = vmatprep.subr.bf16.mxu0 0
        %5475 = vmatpush1.bf16.msra.mxu0 0
        %5476 = vmatprep.subr.bf16.mxu0 0
        %5477 = vmatpush1.bf16.msra.mxu0 0
        %5478 = vmatprep.subr.bf16.mxu0 0
        %5479 = vmatpush1.bf16.msra.mxu0 0
        %5480 = vmatprep.subr.bf16.mxu0 0
        %5481 = vmatpush1.bf16.msra.mxu0 0
        %5482 = vmatprep.subr.bf16.mxu0 0
        %5483 = vmatpush1.bf16.msra.mxu0 0
        %5484 = vmatprep.subr.bf16.mxu0 0
        %5485 = vmatpush1.bf16.msra.mxu0 0
        %5486 = vmatprep.subr.bf16.mxu0 0
        %5487 = vmatpush1.bf16.msra.mxu0 0
        %5488 = vmatprep.subr.bf16.mxu0 0
        %5489 = vmatpush1.bf16.msra.mxu0 0
        %5490 = vmatprep.subr.bf16.mxu0 0
        %5491 = vmatpush1.bf16.msra.mxu0 0
        %5492 = vmatprep.subr.bf16.mxu0 0
        %5493 = vmatpush1.bf16.msra.mxu0 0
        %5494 = vmatprep.mubr.bf16.mxu0 0
        %5495 = vmatmul.mubr.bf16.gmra.mrb[0].mxu0 %v5451
        %v5496 = vpop.f32.mrb[0].mxu0
        %v5497 = vadd.f32 0.0, %v5496
        %v5498 = vpop.f32.mrb[0].mxu0
        %v5499 = vpop.f32.mrb[0].mxu0
        %v5500 = vadd.f32 0.0, %v5499
        %v5501 = vpop.f32.mrb[0].mxu0
        %5502 = vmatprep.mubr.bf16.mxu0 0
        %5503 = vmatmul.mubr.bf16.gmra.mrb[0].mxu0 %v5454
        %v5504 = vpop.f32.mrb[0].mxu0
        %v5505 = vadd.f32 0.0, %v5504
        %v5506 = vpop.f32.mrb[0].mxu0
        %v5507 = vpop.f32.mrb[0].mxu0
        %v5508 = vadd.f32 0.0, %v5507
        %v5509 = vpop.f32.mrb[0].mxu0
        %5510 = vmatprep.mubr.bf16.mxu0 0
        %5511 = vmatmul.mubr.bf16.gmra.mrb[0].mxu0 %v5457
        %v5512 = vpop.f32.mrb[0].mxu0
        %v5513 = vadd.f32 0.0, %v5512
        %v5514 = vpop.f32.mrb[0].mxu0
        %v5515 = vpop.f32.mrb[0].mxu0
        %v5516 = vadd.f32 0.0, %v5515
        %v5517 = vpop.f32.mrb[0].mxu0
        %5518 = vmatprep.mubr.bf16.mxu0 0
        %5519 = vmatmul.mubr.bf16.gmra.mrb[0].mxu0 %v5460
        %v5520 = vpop.f32.mrb[0].mxu0
        %v5521 = vadd.f32 0.0, %v5520
        %v5522 = vpop.f32.mrb[0].mxu0
        %v5523 = vpop.f32.mrb[0].mxu0
        %v5524 = vadd.f32 0.0, %v5523
        %v5525 = vpop.f32.mrb[0].mxu0
        %5526 = vdwg.mxu0
        %v5527 = vadd.f32 %v5399, %v5497
        %v5528 = vadd.f32 %v5400, %v5500
        %v5529 = vadd.f32 %v5401, %v5505
        %v5530 = vadd.f32 %v5402, %v5508
        %v5531 = vadd.f32 %v5403, %v5513
        %v5532 = vadd.f32 %v5404, %v5516
        %v5533 = vadd.f32 %v5405, %v5521
        %v5534 = vadd.f32 %v5406, %v5524
        %v5535 = vtanh.pop %v5527
        %v5536 = vtanh.pop %v5528
        %v5537 = vtanh.pop %v5529
        %v5538 = vtanh.pop %v5530
        %v5539 = vxor.u32 %v5531, 2147483648
        %v5540 = vxor.u32 %v5532, 2147483648
        %v5541 = vxor.u32 %v5533, 2147483648
        %v5542 = vxor.u32 %v5534, 2147483648
        %v5543 = vmul.f32 %v5539, 1.442695
        %v5544 = vpow.pop %v5543
        %v5545 = vmul.f32 %v5540, 1.442695
        %v5546 = vpow.pop %v5545
        %v5547 = vmul.f32 %v5541, 1.442695
        %v5548 = vpow.pop %v5547
        %v5549 = vmul.f32 %v5542, 1.442695
        %v5550 = vpow.pop %v5549
        %v5551 = vadd.f32 %v5544, 1.0
        %v5552 = vadd.f32 %v5546, 1.0
        %v5553 = vadd.f32 %v5548, 1.0
        %v5554 = vadd.f32 %v5550, 1.0
        %v5555 = vrcp.pop %v5551
        %v5556 = vmul.f32 1.0, %v5555
        %v5557 = vrcp.pop %v5552
        %v5558 = vmul.f32 1.0, %v5557
        %v5559 = vrcp.pop %v5553
        %v5560 = vmul.f32 1.0, %v5559
        %v5561 = vrcp.pop %v5554
        %v5562 = vmul.f32 1.0, %v5561
        %v5563 = vmul.f32 %v5535, %v5556
        %v5564 = vmul.f32 %v5536, %v5558
        %v5565 = vmul.f32 %v5537, %v5560
        %v5566 = vmul.f32 %v5538, %v5562
        %s5567 = scalar_lea.vmem %s6, 160
        %v5568 = vld [vmem:[%s5567] sm:$0xf]
        %v5569 = vld [vmem:[%s5567 + $0x4] sm:$0xf]
        %v5570 = vld [vmem:[%s5567 + $0x8] sm:$0xf]
        %v5571 = vld [vmem:[%s5567 + $0xc] sm:$0xf]
        %v5572 = vld [vmem:[%s5567 + $0x10] sm:$0xf]
        %v5573 = vld [vmem:[%s5567 + $0x14] sm:$0xf]
        %v5574 = vld [vmem:[%s5567 + $0x18] sm:$0xf]
        %v5575 = vld [vmem:[%s5567 + $0x1c] sm:$0xf]
        %v5576 = vpack.c.bf16 %v5564, %v5563
        %v5577 = vpack.c.bf16 %v5566, %v5565
        %s5578 = scalar_lea.vmem %s7, 320
        %v5579 = vld [vmem:[%s5578] sm:$0xff]
        %v5580 = vld [vmem:[%s5578 + $0x8] sm:$0xff]
        %v5581 = vld [vmem:[%s5578 + $0x10] sm:$0xff]
        %v5582 = vld [vmem:[%s5578 + $0x18] sm:$0xff]
        %v5583 = vld [vmem:[%s5578 + $0x20] sm:$0xff]
        %v5584 = vld [vmem:[%s5578 + $0x28] sm:$0xff]
        %v5585 = vld [vmem:[%s5578 + $0x30] sm:$0xff]
        %v5586 = vld [vmem:[%s5578 + $0x38] sm:$0xff]
        %5588 = vset.pattern.permute.xlu0 0
        %5589 = vperm.xlu0 %5588, %v5579
        %v5590 = vpop.permute.xlu0 %5589
        %5593 = vset.pattern.permute.xlu0 0
        %5594 = vperm.xlu0 %5593, %v5580
        %v5595 = vpop.permute.xlu0 %5594
        %5598 = vset.pattern.permute.xlu0 0
        %5599 = vperm.xlu0 %5598, %v5581
        %v5600 = vpop.permute.xlu0 %5599
        %5603 = vset.pattern.permute.xlu0 0
        %5604 = vperm.xlu0 %5603, %v5582
        %v5605 = vpop.permute.xlu0 %5604
        %5608 = vset.pattern.permute.xlu0 0
        %5609 = vperm.xlu0 %5608, %v5583
        %v5610 = vpop.permute.xlu0 %5609
        %5613 = vset.pattern.permute.xlu0 0
        %5614 = vperm.xlu0 %5613, %v5584
        %v5615 = vpop.permute.xlu0 %5614
        %5618 = vset.pattern.permute.xlu0 0
        %5619 = vperm.xlu0 %5618, %v5585
        %v5620 = vpop.permute.xlu0 %5619
        %5623 = vset.pattern.permute.xlu0 0
        %5624 = vperm.xlu0 %5623, %v5586
        %v5625 = vpop.permute.xlu0 %5624
        %v5635 = vunpack.c.l.b16 %v5568
        %v5636 = vunpack.c.l.b16 %v5569
        %v5637 = vunpack.c.l.b16 %v5570
        %v5638 = vunpack.c.l.b16 %v5571
        %v5639 = vunpack.c.l.b16 %v5572
        %v5640 = vunpack.c.l.b16 %v5573
        %v5641 = vunpack.c.l.b16 %v5574
        %v5642 = vunpack.c.l.b16 %v5575
        %v5643 = vpack.c.b16 %v5636, %v5635
        %v5644 = vpack.c.b16 %v5638, %v5637
        %v5645 = vpack.c.b16 %v5640, %v5639
        %v5646 = vpack.c.b16 %v5642, %v5641
        %v5648 = vsel %vm623, %v5643, 0
        %v5651 = vsel %vm623, %v5644, 0
        %v5654 = vsel %vm623, %v5645, 0
        %v5657 = vsel %vm623, %v5646, 0
        %5659 = vmatprep.subr.bf16.mxu0 0
        %5660 = vmatpush1.bf16.msra.mxu0 %v5576
        %5661 = vmatprep.subr.bf16.mxu0 0
        %5662 = vmatpush1.bf16.msra.mxu0 %v5577
        %5663 = vmatprep.subr.bf16.mxu0 0
        %5664 = vmatpush1.bf16.msra.mxu0 0
        %5665 = vmatprep.subr.bf16.mxu0 0
        %5666 = vmatpush1.bf16.msra.mxu0 0
        %5667 = vmatprep.subr.bf16.mxu0 0
        %5668 = vmatpush1.bf16.msra.mxu0 0
        %5669 = vmatprep.subr.bf16.mxu0 0
        %5670 = vmatpush1.bf16.msra.mxu0 0
        %5671 = vmatprep.subr.bf16.mxu0 0
        %5672 = vmatpush1.bf16.msra.mxu0 0
        %5673 = vmatprep.subr.bf16.mxu0 0
        %5674 = vmatpush1.bf16.msra.mxu0 0
        %5675 = vmatprep.subr.bf16.mxu0 0
        %5676 = vmatpush1.bf16.msra.mxu0 0
        %5677 = vmatprep.subr.bf16.mxu0 0
        %5678 = vmatpush1.bf16.msra.mxu0 0
        %5679 = vmatprep.subr.bf16.mxu0 0
        %5680 = vmatpush1.bf16.msra.mxu0 0
        %5681 = vmatprep.subr.bf16.mxu0 0
        %5682 = vmatpush1.bf16.msra.mxu0 0
        %5683 = vmatprep.subr.bf16.mxu0 0
        %5684 = vmatpush1.bf16.msra.mxu0 0
        %5685 = vmatprep.subr.bf16.mxu0 0
        %5686 = vmatpush1.bf16.msra.mxu0 0
        %5687 = vmatprep.subr.bf16.mxu0 0
        %5688 = vmatpush1.bf16.msra.mxu0 0
        %5689 = vmatprep.subr.bf16.mxu0 0
        %5690 = vmatpush1.bf16.msra.mxu0 0
        %5691 = vmatprep.mubr.bf16.mxu0 0
        %5692 = vmatmul.mubr.bf16.gmra.mrb[0].mxu0 %v5648
        %v5693 = vpop.f32.mrb[0].mxu0
        %v5694 = vadd.f32 %v5590, %v5693
        %v5695 = vpop.f32.mrb[0].mxu0
        %v5696 = vpop.f32.mrb[0].mxu0
        %v5697 = vadd.f32 %v5595, %v5696
        %v5698 = vpop.f32.mrb[0].mxu0
        %5699 = vmatprep.mubr.bf16.mxu0 0
        %5700 = vmatmul.mubr.bf16.gmra.mrb[0].mxu0 %v5651
        %v5701 = vpop.f32.mrb[0].mxu0
        %v5702 = vadd.f32 %v5600, %v5701
        %v5703 = vpop.f32.mrb[0].mxu0
        %v5704 = vpop.f32.mrb[0].mxu0
        %v5705 = vadd.f32 %v5605, %v5704
        %v5706 = vpop.f32.mrb[0].mxu0
        %5707 = vmatprep.mubr.bf16.mxu0 0
        %5708 = vmatmul.mubr.bf16.gmra.mrb[0].mxu0 %v5654
        %v5709 = vpop.f32.mrb[0].mxu0
        %v5710 = vadd.f32 %v5610, %v5709
        %v5711 = vpop.f32.mrb[0].mxu0
        %v5712 = vpop.f32.mrb[0].mxu0
        %v5713 = vadd.f32 %v5615, %v5712
        %v5714 = vpop.f32.mrb[0].mxu0
        %5715 = vmatprep.mubr.bf16.mxu0 0
        %5716 = vmatmul.mubr.bf16.gmra.mrb[0].mxu0 %v5657
        %v5717 = vpop.f32.mrb[0].mxu0
        %v5718 = vadd.f32 %v5620, %v5717
        %v5719 = vpop.f32.mrb[0].mxu0
        %v5720 = vpop.f32.mrb[0].mxu0
        %v5721 = vadd.f32 %v5625, %v5720
        %v5722 = vpop.f32.mrb[0].mxu0
        %5723 = vdwg.mxu0
        %v5724 = vadd.f32 %v5106, %v5694
        %v5725 = vadd.f32 %v5107, %v5697
        %v5726 = vadd.f32 %v5108, %v5702
        %v5727 = vadd.f32 %v5109, %v5705
        %v5728 = vmul.f32 %v5724, %v567
        %v5729 = vmul.f32 %v5725, %v567
        %v5730 = vmul.f32 %v5726, %v567
        %v5731 = vmul.f32 %v5727, %v567
        %v5732 = vadd.f32 %v5110, %v5710
        %v5733 = vadd.f32 %v5111, %v5713
        %v5734 = vadd.f32 %v5112, %v5718
        %v5735 = vadd.f32 %v5113, %v5721
        %s5736 = scalar_lea.vmem %s5, 512
        %v5737 = vld [vmem:[%s5736] sm:$0xff]
        %v5738 = vld [vmem:[%s5736 + $0x8] sm:$0xff]
        %v5739 = vld [vmem:[%s5736 + $0x10] sm:$0xff]
        %v5740 = vld [vmem:[%s5736 + $0x18] sm:$0xff]
        %v5741 = vld [vmem:[%s5736 + $0x20] sm:$0xff]
        %v5742 = vld [vmem:[%s5736 + $0x28] sm:$0xff]
        %v5743 = vld [vmem:[%s5736 + $0x30] sm:$0xff]
        %v5744 = vld [vmem:[%s5736 + $0x38] sm:$0xff]
        %s5745 = scalar_lea.vmem %s4, 768
        %v5746 = vld [vmem:[%s5745] sm:$0xf]
        %v5747 = vld [vmem:[%s5745 + $0x4] sm:$0xf]
        %v5748 = vld [vmem:[%s5745 + $0x8] sm:$0xf]
        %v5749 = vld [vmem:[%s5745 + $0xc] sm:$0xf]
        %v5750 = vld [vmem:[%s5745 + $0x10] sm:$0xf]
        %v5751 = vld [vmem:[%s5745 + $0x14] sm:$0xf]
        %v5752 = vld [vmem:[%s5745 + $0x18] sm:$0xf]
        %v5753 = vld [vmem:[%s5745 + $0x1c] sm:$0xf]
        %5754 = vrot.lane.b32.xlu0 %v5728, 4
        %v5755 = vpop.permute.xlu0 %5754
        %5756 = vrot.lane.b32.xlu0 %v5729, 4
        %v5757 = vpop.permute.xlu0 %5756
        %5758 = vrot.lane.b32.xlu0 %v5730, 4
        %v5759 = vpop.permute.xlu0 %5758
        %5760 = vrot.lane.b32.xlu0 %v5731, 4
        %v5761 = vpop.permute.xlu0 %5760
        %v5762 = vmul.f32 %v5755, %v433
        %v5763 = vmul.f32 %v5757, %v433
        %v5764 = vmul.f32 %v5759, %v433
        %v5765 = vmul.f32 %v5761, %v433
        %v5766 = vpack.c.bf16 %v5763, %v5762
        %v5767 = vpack.c.bf16 %v5765, %v5764
        %v5776 = vunpack.c.l.b16 %v5746
        %v5777 = vunpack.c.l.b16 %v5747
        %v5778 = vunpack.c.l.b16 %v5748
        %v5779 = vunpack.c.l.b16 %v5749
        %v5780 = vunpack.c.l.b16 %v5750
        %v5781 = vunpack.c.l.b16 %v5751
        %v5782 = vunpack.c.l.b16 %v5752
        %v5783 = vunpack.c.l.b16 %v5753
        %v5784 = vpack.c.b16 %v5777, %v5776
        %v5785 = vpack.c.b16 %v5779, %v5778
        %v5786 = vpack.c.b16 %v5781, %v5780
        %v5787 = vpack.c.b16 %v5783, %v5782
        %v5789 = vsel %vm623, %v5784, 0
        %v5792 = vsel %vm623, %v5785, 0
        %v5795 = vsel %vm623, %v5786, 0
        %v5798 = vsel %vm623, %v5787, 0
        %5800 = vmatprep.subr.bf16.mxu0 0
        %5801 = vmatpush1.bf16.msra.mxu0 %v5766
        %5802 = vmatprep.subr.bf16.mxu0 0
        %5803 = vmatpush1.bf16.msra.mxu0 %v5767
        %5804 = vmatprep.subr.bf16.mxu0 0
        %5805 = vmatpush1.bf16.msra.mxu0 0
        %5806 = vmatprep.subr.bf16.mxu0 0
        %5807 = vmatpush1.bf16.msra.mxu0 0
        %5808 = vmatprep.subr.bf16.mxu0 0
        %5809 = vmatpush1.bf16.msra.mxu0 0
        %5810 = vmatprep.subr.bf16.mxu0 0
        %5811 = vmatpush1.bf16.msra.mxu0 0
        %5812 = vmatprep.subr.bf16.mxu0 0
        %5813 = vmatpush1.bf16.msra.mxu0 0
        %5814 = vmatprep.subr.bf16.mxu0 0
        %5815 = vmatpush1.bf16.msra.mxu0 0
        %5816 = vmatprep.subr.bf16.mxu0 0
        %5817 = vmatpush1.bf16.msra.mxu0 0
        %5818 = vmatprep.subr.bf16.mxu0 0
        %5819 = vmatpush1.bf16.msra.mxu0 0
        %5820 = vmatprep.subr.bf16.mxu0 0
        %5821 = vmatpush1.bf16.msra.mxu0 0
        %5822 = vmatprep.subr.bf16.mxu0 0
        %5823 = vmatpush1.bf16.msra.mxu0 0
        %5824 = vmatprep.subr.bf16.mxu0 0
        %5825 = vmatpush1.bf16.msra.mxu0 0
        %5826 = vmatprep.subr.bf16.mxu0 0
        %5827 = vmatpush1.bf16.msra.mxu0 0
        %5828 = vmatprep.subr.bf16.mxu0 0
        %5829 = vmatpush1.bf16.msra.mxu0 0
        %5830 = vmatprep.subr.bf16.mxu0 0
        %5831 = vmatpush1.bf16.msra.mxu0 0
        %5832 = vmatprep.mubr.bf16.mxu0 0
        %5833 = vmatmul.mubr.bf16.gmra.mrb[0].mxu0 %v5789
        %v5834 = vpop.f32.mrb[0].mxu0
        %v5835 = vadd.f32 0.0, %v5834
        %v5836 = vpop.f32.mrb[0].mxu0
        %v5837 = vpop.f32.mrb[0].mxu0
        %v5838 = vadd.f32 0.0, %v5837
        %v5839 = vpop.f32.mrb[0].mxu0
        %5840 = vmatprep.mubr.bf16.mxu0 0
        %5841 = vmatmul.mubr.bf16.gmra.mrb[0].mxu0 %v5792
        %v5842 = vpop.f32.mrb[0].mxu0
        %v5843 = vadd.f32 0.0, %v5842
        %v5844 = vpop.f32.mrb[0].mxu0
        %v5845 = vpop.f32.mrb[0].mxu0
        %v5846 = vadd.f32 0.0, %v5845
        %v5847 = vpop.f32.mrb[0].mxu0
        %5848 = vmatprep.mubr.bf16.mxu0 0
        %5849 = vmatmul.mubr.bf16.gmra.mrb[0].mxu0 %v5795
        %v5850 = vpop.f32.mrb[0].mxu0
        %v5851 = vadd.f32 0.0, %v5850
        %v5852 = vpop.f32.mrb[0].mxu0
        %v5853 = vpop.f32.mrb[0].mxu0
        %v5854 = vadd.f32 0.0, %v5853
        %v5855 = vpop.f32.mrb[0].mxu0
        %5856 = vmatprep.mubr.bf16.mxu0 0
        %5857 = vmatmul.mubr.bf16.gmra.mrb[0].mxu0 %v5798
        %v5858 = vpop.f32.mrb[0].mxu0
        %v5859 = vadd.f32 0.0, %v5858
        %v5860 = vpop.f32.mrb[0].mxu0
        %v5861 = vpop.f32.mrb[0].mxu0
        %v5862 = vadd.f32 0.0, %v5861
        %v5863 = vpop.f32.mrb[0].mxu0
        %5864 = vdwg.mxu0
        %5866 = vset.pattern.permute.xlu0 0
        %5867 = vperm.xlu0 %5866, %v5737
        %v5868 = vpop.permute.xlu0 %5867
        %5871 = vset.pattern.permute.xlu0 0
        %5872 = vperm.xlu0 %5871, %v5738
        %v5873 = vpop.permute.xlu0 %5872
        %5876 = vset.pattern.permute.xlu0 0
        %5877 = vperm.xlu0 %5876, %v5739
        %v5878 = vpop.permute.xlu0 %5877
        %5881 = vset.pattern.permute.xlu0 0
        %5882 = vperm.xlu0 %5881, %v5740
        %v5883 = vpop.permute.xlu0 %5882
        %5886 = vset.pattern.permute.xlu0 0
        %5887 = vperm.xlu0 %5886, %v5741
        %v5888 = vpop.permute.xlu0 %5887
        %5891 = vset.pattern.permute.xlu0 0
        %5892 = vperm.xlu0 %5891, %v5742
        %v5893 = vpop.permute.xlu0 %5892
        %5896 = vset.pattern.permute.xlu0 0
        %5897 = vperm.xlu0 %5896, %v5743
        %v5898 = vpop.permute.xlu0 %5897
        %5901 = vset.pattern.permute.xlu0 0
        %5902 = vperm.xlu0 %5901, %v5744
        %v5903 = vpop.permute.xlu0 %5902
        %v5905 = vadd.f32 %v5868, %v5835
        %v5906 = vadd.f32 %v5873, %v5838
        %v5907 = vadd.f32 %v5878, %v5843
        %v5908 = vadd.f32 %v5883, %v5846
        %v5909 = vadd.f32 %v5888, %v5851
        %v5910 = vadd.f32 %v5893, %v5854
        %v5911 = vadd.f32 %v5898, %v5859
        %v5912 = vadd.f32 %v5903, %v5862
        %s5913 = scalar_lea.vmem %s4, 800
        %v5914 = vld [vmem:[%s5913] sm:$0xf]
        %v5915 = vld [vmem:[%s5913 + $0x4] sm:$0xf]
        %v5916 = vld [vmem:[%s5913 + $0x8] sm:$0xf]
        %v5917 = vld [vmem:[%s5913 + $0xc] sm:$0xf]
        %v5918 = vld [vmem:[%s5913 + $0x10] sm:$0xf]
        %v5919 = vld [vmem:[%s5913 + $0x14] sm:$0xf]
        %v5920 = vld [vmem:[%s5913 + $0x18] sm:$0xf]
        %v5921 = vld [vmem:[%s5913 + $0x1c] sm:$0xf]
        %v5922 = vpack.c.bf16 %v5729, %v5728
        %v5923 = vpack.c.bf16 %v5731, %v5730
        %v5932 = vunpack.c.l.b16 %v5914
        %v5933 = vunpack.c.l.b16 %v5915
        %v5934 = vunpack.c.l.b16 %v5916
        %v5935 = vunpack.c.l.b16 %v5917
        %v5936 = vunpack.c.l.b16 %v5918
        %v5937 = vunpack.c.l.b16 %v5919
        %v5938 = vunpack.c.l.b16 %v5920
        %v5939 = vunpack.c.l.b16 %v5921
        %v5940 = vpack.c.b16 %v5933, %v5932
        %v5941 = vpack.c.b16 %v5935, %v5934
        %v5942 = vpack.c.b16 %v5937, %v5936
        %v5943 = vpack.c.b16 %v5939, %v5938
        %v5945 = vsel %vm623, %v5940, 0
        %v5948 = vsel %vm623, %v5941, 0
        %v5951 = vsel %vm623, %v5942, 0
        %v5954 = vsel %vm623, %v5943, 0
        %5956 = vmatprep.subr.bf16.mxu0 0
        %5957 = vmatpush1.bf16.msra.mxu0 %v5922
        %5958 = vmatprep.subr.bf16.mxu0 0
        %5959 = vmatpush1.bf16.msra.mxu0 %v5923
        %5960 = vmatprep.subr.bf16.mxu0 0
        %5961 = vmatpush1.bf16.msra.mxu0 0
        %5962 = vmatprep.subr.bf16.mxu0 0
        %5963 = vmatpush1.bf16.msra.mxu0 0
        %5964 = vmatprep.subr.bf16.mxu0 0
        %5965 = vmatpush1.bf16.msra.mxu0 0
        %5966 = vmatprep.subr.bf16.mxu0 0
        %5967 = vmatpush1.bf16.msra.mxu0 0
        %5968 = vmatprep.subr.bf16.mxu0 0
        %5969 = vmatpush1.bf16.msra.mxu0 0
        %5970 = vmatprep.subr.bf16.mxu0 0
        %5971 = vmatpush1.bf16.msra.mxu0 0
        %5972 = vmatprep.subr.bf16.mxu0 0
        %5973 = vmatpush1.bf16.msra.mxu0 0
        %5974 = vmatprep.subr.bf16.mxu0 0
        %5975 = vmatpush1.bf16.msra.mxu0 0
        %5976 = vmatprep.subr.bf16.mxu0 0
        %5977 = vmatpush1.bf16.msra.mxu0 0
        %5978 = vmatprep.subr.bf16.mxu0 0
        %5979 = vmatpush1.bf16.msra.mxu0 0
        %5980 = vmatprep.subr.bf16.mxu0 0
        %5981 = vmatpush1.bf16.msra.mxu0 0
        %5982 = vmatprep.subr.bf16.mxu0 0
        %5983 = vmatpush1.bf16.msra.mxu0 0
        %5984 = vmatprep.subr.bf16.mxu0 0
        %5985 = vmatpush1.bf16.msra.mxu0 0
        %5986 = vmatprep.subr.bf16.mxu0 0
        %5987 = vmatpush1.bf16.msra.mxu0 0
        %5988 = vmatprep.mubr.bf16.mxu0 0
        %5989 = vmatmul.mubr.bf16.gmra.mrb[0].mxu0 %v5945
        %v5990 = vpop.f32.mrb[0].mxu0
        %v5991 = vadd.f32 0.0, %v5990
        %v5992 = vpop.f32.mrb[0].mxu0
        %v5993 = vpop.f32.mrb[0].mxu0
        %v5994 = vadd.f32 0.0, %v5993
        %v5995 = vpop.f32.mrb[0].mxu0
        %5996 = vmatprep.mubr.bf16.mxu0 0
        %5997 = vmatmul.mubr.bf16.gmra.mrb[0].mxu0 %v5948
        %v5998 = vpop.f32.mrb[0].mxu0
        %v5999 = vadd.f32 0.0, %v5998
        %v6000 = vpop.f32.mrb[0].mxu0
        %v6001 = vpop.f32.mrb[0].mxu0
        %v6002 = vadd.f32 0.0, %v6001
        %v6003 = vpop.f32.mrb[0].mxu0
        %6004 = vmatprep.mubr.bf16.mxu0 0
        %6005 = vmatmul.mubr.bf16.gmra.mrb[0].mxu0 %v5951
        %v6006 = vpop.f32.mrb[0].mxu0
        %v6007 = vadd.f32 0.0, %v6006
        %v6008 = vpop.f32.mrb[0].mxu0
        %v6009 = vpop.f32.mrb[0].mxu0
        %v6010 = vadd.f32 0.0, %v6009
        %v6011 = vpop.f32.mrb[0].mxu0
        %6012 = vmatprep.mubr.bf16.mxu0 0
        %6013 = vmatmul.mubr.bf16.gmra.mrb[0].mxu0 %v5954
        %v6014 = vpop.f32.mrb[0].mxu0
        %v6015 = vadd.f32 0.0, %v6014
        %v6016 = vpop.f32.mrb[0].mxu0
        %v6017 = vpop.f32.mrb[0].mxu0
        %v6018 = vadd.f32 0.0, %v6017
        %v6019 = vpop.f32.mrb[0].mxu0
        %6020 = vdwg.mxu0
        %v6021 = vadd.f32 %v5905, %v5991
        %v6022 = vadd.f32 %v5906, %v5994
        %v6023 = vadd.f32 %v5907, %v5999
        %v6024 = vadd.f32 %v5908, %v6002
        %v6025 = vadd.f32 %v5909, %v6007
        %v6026 = vadd.f32 %v5910, %v6010
        %v6027 = vadd.f32 %v5911, %v6015
        %v6028 = vadd.f32 %v5912, %v6018
        %s6029 = scalar_lea.vmem %s4, 832
        %v6030 = vld [vmem:[%s6029] sm:$0xf]
        %v6031 = vld [vmem:[%s6029 + $0x4] sm:$0xf]
        %v6032 = vld [vmem:[%s6029 + $0x8] sm:$0xf]
        %v6033 = vld [vmem:[%s6029 + $0xc] sm:$0xf]
        %v6034 = vld [vmem:[%s6029 + $0x10] sm:$0xf]
        %v6035 = vld [vmem:[%s6029 + $0x14] sm:$0xf]
        %v6036 = vld [vmem:[%s6029 + $0x18] sm:$0xf]
        %v6037 = vld [vmem:[%s6029 + $0x1c] sm:$0xf]
        %6038 = vrot.lane.b32.xlu0 %v5728, 124
        %v6039 = vpop.permute.xlu0 %6038
        %6040 = vrot.lane.b32.xlu0 %v5729, 124
        %v6041 = vpop.permute.xlu0 %6040
        %6042 = vrot.lane.b32.xlu0 %v5730, 124
        %v6043 = vpop.permute.xlu0 %6042
        %6044 = vrot.lane.b32.xlu0 %v5731, 124
        %v6045 = vpop.permute.xlu0 %6044
        %v6046 = vmul.f32 %v6039, %v463
        %v6047 = vmul.f32 %v6041, %v463
        %v6048 = vmul.f32 %v6043, %v463
        %v6049 = vmul.f32 %v6045, %v463
        %v6050 = vpack.c.bf16 %v6047, %v6046
        %v6051 = vpack.c.bf16 %v6049, %v6048
        %v6060 = vunpack.c.l.b16 %v6030
        %v6061 = vunpack.c.l.b16 %v6031
        %v6062 = vunpack.c.l.b16 %v6032
        %v6063 = vunpack.c.l.b16 %v6033
        %v6064 = vunpack.c.l.b16 %v6034
        %v6065 = vunpack.c.l.b16 %v6035
        %v6066 = vunpack.c.l.b16 %v6036
        %v6067 = vunpack.c.l.b16 %v6037
        %v6068 = vpack.c.b16 %v6061, %v6060
        %v6069 = vpack.c.b16 %v6063, %v6062
        %v6070 = vpack.c.b16 %v6065, %v6064
        %v6071 = vpack.c.b16 %v6067, %v6066
        %v6073 = vsel %vm623, %v6068, 0
        %v6076 = vsel %vm623, %v6069, 0
        %v6079 = vsel %vm623, %v6070, 0
        %v6082 = vsel %vm623, %v6071, 0
        %6084 = vmatprep.subr.bf16.mxu0 0
        %6085 = vmatpush1.bf16.msra.mxu0 %v6050
        %6086 = vmatprep.subr.bf16.mxu0 0
        %6087 = vmatpush1.bf16.msra.mxu0 %v6051
        %6088 = vmatprep.subr.bf16.mxu0 0
        %6089 = vmatpush1.bf16.msra.mxu0 0
        %6090 = vmatprep.subr.bf16.mxu0 0
        %6091 = vmatpush1.bf16.msra.mxu0 0
        %6092 = vmatprep.subr.bf16.mxu0 0
        %6093 = vmatpush1.bf16.msra.mxu0 0
        %6094 = vmatprep.subr.bf16.mxu0 0
        %6095 = vmatpush1.bf16.msra.mxu0 0
        %6096 = vmatprep.subr.bf16.mxu0 0
        %6097 = vmatpush1.bf16.msra.mxu0 0
        %6098 = vmatprep.subr.bf16.mxu0 0
        %6099 = vmatpush1.bf16.msra.mxu0 0
        %6100 = vmatprep.subr.bf16.mxu0 0
        %6101 = vmatpush1.bf16.msra.mxu0 0
        %6102 = vmatprep.subr.bf16.mxu0 0
        %6103 = vmatpush1.bf16.msra.mxu0 0
        %6104 = vmatprep.subr.bf16.mxu0 0
        %6105 = vmatpush1.bf16.msra.mxu0 0
        %6106 = vmatprep.subr.bf16.mxu0 0
        %6107 = vmatpush1.bf16.msra.mxu0 0
        %6108 = vmatprep.subr.bf16.mxu0 0
        %6109 = vmatpush1.bf16.msra.mxu0 0
        %6110 = vmatprep.subr.bf16.mxu0 0
        %6111 = vmatpush1.bf16.msra.mxu0 0
        %6112 = vmatprep.subr.bf16.mxu0 0
        %6113 = vmatpush1.bf16.msra.mxu0 0
        %6114 = vmatprep.subr.bf16.mxu0 0
        %6115 = vmatpush1.bf16.msra.mxu0 0
        %6116 = vmatprep.mubr.bf16.mxu0 0
        %6117 = vmatmul.mubr.bf16.gmra.mrb[0].mxu0 %v6073
        %v6118 = vpop.f32.mrb[0].mxu0
        %v6119 = vadd.f32 0.0, %v6118
        %v6120 = vpop.f32.mrb[0].mxu0
        %v6121 = vpop.f32.mrb[0].mxu0
        %v6122 = vadd.f32 0.0, %v6121
        %v6123 = vpop.f32.mrb[0].mxu0
        %6124 = vmatprep.mubr.bf16.mxu0 0
        %6125 = vmatmul.mubr.bf16.gmra.mrb[0].mxu0 %v6076
        %v6126 = vpop.f32.mrb[0].mxu0
        %v6127 = vadd.f32 0.0, %v6126
        %v6128 = vpop.f32.mrb[0].mxu0
        %v6129 = vpop.f32.mrb[0].mxu0
        %v6130 = vadd.f32 0.0, %v6129
        %v6131 = vpop.f32.mrb[0].mxu0
        %6132 = vmatprep.mubr.bf16.mxu0 0
        %6133 = vmatmul.mubr.bf16.gmra.mrb[0].mxu0 %v6079
        %v6134 = vpop.f32.mrb[0].mxu0
        %v6135 = vadd.f32 0.0, %v6134
        %v6136 = vpop.f32.mrb[0].mxu0
        %v6137 = vpop.f32.mrb[0].mxu0
        %v6138 = vadd.f32 0.0, %v6137
        %v6139 = vpop.f32.mrb[0].mxu0
        %6140 = vmatprep.mubr.bf16.mxu0 0
        %6141 = vmatmul.mubr.bf16.gmra.mrb[0].mxu0 %v6082
        %v6142 = vpop.f32.mrb[0].mxu0
        %v6143 = vadd.f32 0.0, %v6142
        %v6144 = vpop.f32.mrb[0].mxu0
        %v6145 = vpop.f32.mrb[0].mxu0
        %v6146 = vadd.f32 0.0, %v6145
        %v6147 = vpop.f32.mrb[0].mxu0
        %6148 = vdwg.mxu0
        %v6149 = vadd.f32 %v6021, %v6119
        %v6150 = vadd.f32 %v6022, %v6122
        %v6151 = vadd.f32 %v6023, %v6127
        %v6152 = vadd.f32 %v6024, %v6130
        %v6153 = vadd.f32 %v6025, %v6135
        %v6154 = vadd.f32 %v6026, %v6138
        %v6155 = vadd.f32 %v6027, %v6143
        %v6156 = vadd.f32 %v6028, %v6146
        %v6157 = vtanh.pop %v6149
        %v6158 = vtanh.pop %v6150
        %v6159 = vtanh.pop %v6151
        %v6160 = vtanh.pop %v6152
        %v6161 = vxor.u32 %v6153, 2147483648
        %v6162 = vxor.u32 %v6154, 2147483648
        %v6163 = vxor.u32 %v6155, 2147483648
        %v6164 = vxor.u32 %v6156, 2147483648
        %v6165 = vmul.f32 %v6161, 1.442695
        %v6166 = vpow.pop %v6165
        %v6167 = vmul.f32 %v6162, 1.442695
        %v6168 = vpow.pop %v6167
        %v6169 = vmul.f32 %v6163, 1.442695
        %v6170 = vpow.pop %v6169
        %v6171 = vmul.f32 %v6164, 1.442695
        %v6172 = vpow.pop %v6171
        %v6173 = vadd.f32 %v6166, 1.0
        %v6174 = vadd.f32 %v6168, 1.0
        %v6175 = vadd.f32 %v6170, 1.0
        %v6176 = vadd.f32 %v6172, 1.0
        %v6177 = vrcp.pop %v6173
        %v6178 = vmul.f32 1.0, %v6177
        %v6179 = vrcp.pop %v6174
        %v6180 = vmul.f32 1.0, %v6179
        %v6181 = vrcp.pop %v6175
        %v6182 = vmul.f32 1.0, %v6181
        %v6183 = vrcp.pop %v6176
        %v6184 = vmul.f32 1.0, %v6183
        %v6185 = vmul.f32 %v6157, %v6178
        %v6186 = vmul.f32 %v6158, %v6180
        %v6187 = vmul.f32 %v6159, %v6182
        %v6188 = vmul.f32 %v6160, %v6184
        %s6189 = scalar_lea.vmem %s8, 32
        %v6190 = vld [vmem:[%s6189] sm:$0xf]
        %v6191 = vld [vmem:[%s6189 + $0x4] sm:$0xf]
        %v6192 = vld [vmem:[%s6189 + $0x8] sm:$0xf]
        %v6193 = vld [vmem:[%s6189 + $0xc] sm:$0xf]
        %v6194 = vpack.c.bf16 %v6186, %v6185
        %v6195 = vpack.c.bf16 %v6188, %v6187
        %v6200 = vunpack.c.l.b16 %v6190
        %v6201 = vunpack.c.l.b16 %v6191
        %v6202 = vunpack.c.l.b16 %v6192
        %v6203 = vunpack.c.l.b16 %v6193
        %v6204 = vpack.c.b16 %v6201, %v6200
        %v6205 = vpack.c.b16 %v6203, %v6202
        %v6207 = vsel %vm623, %v6204, 0
        %v6210 = vsel %vm623, %v6205, 0
        %6212 = vmatprep.subr.bf16.mxu0 0
        %6213 = vmatpush1.bf16.msra.mxu0 %v6194
        %6214 = vmatprep.subr.bf16.mxu0 0
        %6215 = vmatpush1.bf16.msra.mxu0 %v6195
        %6216 = vmatprep.subr.bf16.mxu0 0
        %6217 = vmatpush1.bf16.msra.mxu0 0
        %6218 = vmatprep.subr.bf16.mxu0 0
        %6219 = vmatpush1.bf16.msra.mxu0 0
        %6220 = vmatprep.subr.bf16.mxu0 0
        %6221 = vmatpush1.bf16.msra.mxu0 0
        %6222 = vmatprep.subr.bf16.mxu0 0
        %6223 = vmatpush1.bf16.msra.mxu0 0
        %6224 = vmatprep.subr.bf16.mxu0 0
        %6225 = vmatpush1.bf16.msra.mxu0 0
        %6226 = vmatprep.subr.bf16.mxu0 0
        %6227 = vmatpush1.bf16.msra.mxu0 0
        %6228 = vmatprep.subr.bf16.mxu0 0
        %6229 = vmatpush1.bf16.msra.mxu0 0
        %6230 = vmatprep.subr.bf16.mxu0 0
        %6231 = vmatpush1.bf16.msra.mxu0 0
        %6232 = vmatprep.subr.bf16.mxu0 0
        %6233 = vmatpush1.bf16.msra.mxu0 0
        %6234 = vmatprep.subr.bf16.mxu0 0
        %6235 = vmatpush1.bf16.msra.mxu0 0
        %6236 = vmatprep.subr.bf16.mxu0 0
        %6237 = vmatpush1.bf16.msra.mxu0 0
        %6238 = vmatprep.subr.bf16.mxu0 0
        %6239 = vmatpush1.bf16.msra.mxu0 0
        %6240 = vmatprep.subr.bf16.mxu0 0
        %6241 = vmatpush1.bf16.msra.mxu0 0
        %6242 = vmatprep.subr.bf16.mxu0 0
        %6243 = vmatpush1.bf16.msra.mxu0 0
        %6244 = vmatprep.mubr.bf16.mxu0 0
        %6245 = vmatmul.mubr.bf16.gmra.mrb[0].mxu0 %v6207
        %v6246 = vpop.f32.mrb[0].mxu0
        %v6247 = vadd.f32 0.0, %v6246
        %v6248 = vpop.f32.mrb[0].mxu0
        %v6249 = vpop.f32.mrb[0].mxu0
        %v6250 = vadd.f32 0.0, %v6249
        %v6251 = vpop.f32.mrb[0].mxu0
        %6252 = vmatprep.mubr.bf16.mxu0 0
        %6253 = vmatmul.mubr.bf16.gmra.mrb[0].mxu0 %v6210
        %v6254 = vpop.f32.mrb[0].mxu0
        %v6255 = vadd.f32 0.0, %v6254
        %v6256 = vpop.f32.mrb[0].mxu0
        %v6257 = vpop.f32.mrb[0].mxu0
        %v6258 = vadd.f32 0.0, %v6257
        %v6259 = vpop.f32.mrb[0].mxu0
        %6260 = vdwg.mxu0
        %v6261 = vadd.f32 %v5732, %v6247
        %v6262 = vadd.f32 %v5733, %v6250
        %v6263 = vadd.f32 %v5734, %v6255
        %v6264 = vadd.f32 %v5735, %v6258
        %s6265 = scalar_lea.vmem %s9, 64
        %v6266 = vld [vmem:[%s6265] sm:$0xff]
        %v6267 = vld [vmem:[%s6265 + $0x8] sm:$0xff]
        %v6268 = vld [vmem:[%s6265 + $0x10] sm:$0xff]
        %v6269 = vld [vmem:[%s6265 + $0x18] sm:$0xff]
        %6271 = vset.pattern.permute.xlu0 0
        %6272 = vperm.xlu0 %6271, %v6266
        %v6273 = vpop.permute.xlu0 %6272
        %6276 = vset.pattern.permute.xlu0 0
        %6277 = vperm.xlu0 %6276, %v6267
        %v6278 = vpop.permute.xlu0 %6277
        %6281 = vset.pattern.permute.xlu0 0
        %6282 = vperm.xlu0 %6281, %v6268
        %v6283 = vpop.permute.xlu0 %6282
        %6286 = vset.pattern.permute.xlu0 0
        %6287 = vperm.xlu0 %6286, %v6269
        %v6288 = vpop.permute.xlu0 %6287
        %v6290 = vadd.f32 %v6261, %v6273
        %v6291 = vadd.f32 %v6262, %v6278
        %v6292 = vadd.f32 %v6263, %v6283
        %v6293 = vadd.f32 %v6264, %v6288
        %s6294 = scalar_lea.vmem %s10, 2
        %v6295 = vld [vmem:[%s6294] sm:$0x1]
        %v6296 = vpack.c.bf16 %v6291, %v6290
        %v6297 = vpack.c.bf16 %v6293, %v6292
        %s6298 = scalar_lea.vmem %s11, 4
        %v6299 = vld [vmem:[%s6298] sm:$0x3]
        %6301 = vset.pattern.permute.xlu0 0
        %6302 = vperm.xlu0 %6301, %v6299
        %v6303 = vpop.permute.xlu0 %6302
        %v6306 = vsel %vm623, %v6295, 0
        %6308 = vmatprep.subr.bf16.mxu0 0
        %6309 = vmatpush1.bf16.msra.mxu0 %v6296
        %6310 = vmatprep.subr.bf16.mxu0 0
        %6311 = vmatpush1.bf16.msra.mxu0 %v6297
        %6312 = vmatprep.subr.bf16.mxu0 0
        %6313 = vmatpush1.bf16.msra.mxu0 0
        %6314 = vmatprep.subr.bf16.mxu0 0
        %6315 = vmatpush1.bf16.msra.mxu0 0
        %6316 = vmatprep.subr.bf16.mxu0 0
        %6317 = vmatpush1.bf16.msra.mxu0 0
        %6318 = vmatprep.subr.bf16.mxu0 0
        %6319 = vmatpush1.bf16.msra.mxu0 0
        %6320 = vmatprep.subr.bf16.mxu0 0
        %6321 = vmatpush1.bf16.msra.mxu0 0
        %6322 = vmatprep.subr.bf16.mxu0 0
        %6323 = vmatpush1.bf16.msra.mxu0 0
        %6324 = vmatprep.subr.bf16.mxu0 0
        %6325 = vmatpush1.bf16.msra.mxu0 0
        %6326 = vmatprep.subr.bf16.mxu0 0
        %6327 = vmatpush1.bf16.msra.mxu0 0
        %6328 = vmatprep.subr.bf16.mxu0 0
        %6329 = vmatpush1.bf16.msra.mxu0 0
        %6330 = vmatprep.subr.bf16.mxu0 0
        %6331 = vmatpush1.bf16.msra.mxu0 0
        %6332 = vmatprep.subr.bf16.mxu0 0
        %6333 = vmatpush1.bf16.msra.mxu0 0
        %6334 = vmatprep.subr.bf16.mxu0 0
        %6335 = vmatpush1.bf16.msra.mxu0 0
        %6336 = vmatprep.subr.bf16.mxu0 0
        %6337 = vmatpush1.bf16.msra.mxu0 0
        %6338 = vmatprep.subr.bf16.mxu0 0
        %6339 = vmatpush1.bf16.msra.mxu0 0
        %6340 = vmatprep.mubr.bf16.mxu0 0
        %6341 = vmatmul.mubr.bf16.gmra.mrb[0].mxu0 %v6306
        %v6342 = vpop.f32.mrb[0].mxu0
        %v6343 = vadd.f32 %v6303, %v6342
        %v6344 = vpop.f32.mrb[0].mxu0
        %v6345 = vpop.f32.mrb[0].mxu0
        %v6346 = vpop.f32.mrb[0].mxu0
        %6347 = vdwg.mxu0
        %v6348 = vmul.f32 %v6343, %v567
        %v6349 = vmul.f32 %v2427, %v567
        %v6350 = vadd.f32 %v6348, %v6349
        %s6351 = scalar_lea.vmem %s2, 48
        %v6352 = vld [vmem:[%s6351] sm:$0xf]
        %v6353 = vld [vmem:[%s6351 + $0x4] sm:$0xf]
        %v6354 = vld [vmem:[%s6351 + $0x8] sm:$0xf]
        %v6355 = vld [vmem:[%s6351 + $0xc] sm:$0xf]
        %v6356 = vpack.c.bf16 %v6350, %v6350
        %s6357 = scalar_lea.vmem %s3, 96
        %v6358 = vld [vmem:[%s6357] sm:$0xff]
        %v6359 = vld [vmem:[%s6357 + $0x8] sm:$0xff]
        %v6360 = vld [vmem:[%s6357 + $0x10] sm:$0xff]
        %v6361 = vld [vmem:[%s6357 + $0x18] sm:$0xff]
        %6363 = vset.pattern.permute.xlu0 0
        %6364 = vperm.xlu0 %6363, %v6358
        %v6365 = vpop.permute.xlu0 %6364
        %6368 = vset.pattern.permute.xlu0 0
        %6369 = vperm.xlu0 %6368, %v6359
        %v6370 = vpop.permute.xlu0 %6369
        %6373 = vset.pattern.permute.xlu0 0
        %6374 = vperm.xlu0 %6373, %v6360
        %v6375 = vpop.permute.xlu0 %6374
        %6378 = vset.pattern.permute.xlu0 0
        %6379 = vperm.xlu0 %6378, %v6361
        %v6380 = vpop.permute.xlu0 %6379
        %v6386 = vunpack.c.l.b16 %v6352
        %v6387 = vunpack.c.l.b16 %v6353
        %v6388 = vunpack.c.l.b16 %v6354
        %v6389 = vunpack.c.l.b16 %v6355
        %v6390 = vpack.c.b16 %v6387, %v6386
        %v6391 = vpack.c.b16 %v6389, %v6388
        %v6393 = vsel %vm503, %v6390, 0
        %v6396 = vsel %vm503, %v6391, 0
        %v6399 = vsel %vm510, %v6356, 0
        %6401 = vmatprep.subr.bf16.mxu0 0
        %6402 = vmatpush1.bf16.msra.mxu0 %v6399
        %6403 = vmatprep.subr.bf16.mxu0 0
        %6404 = vmatpush1.bf16.msra.mxu0 0
        %6405 = vmatprep.subr.bf16.mxu0 0
        %6406 = vmatpush1.bf16.msra.mxu0 0
        %6407 = vmatprep.subr.bf16.mxu0 0
        %6408 = vmatpush1.bf16.msra.mxu0 0
        %6409 = vmatprep.subr.bf16.mxu0 0
        %6410 = vmatpush1.bf16.msra.mxu0 0
        %6411 = vmatprep.subr.bf16.mxu0 0
        %6412 = vmatpush1.bf16.msra.mxu0 0
        %6413 = vmatprep.subr.bf16.mxu0 0
        %6414 = vmatpush1.bf16.msra.mxu0 0
        %6415 = vmatprep.subr.bf16.mxu0 0
        %6416 = vmatpush1.bf16.msra.mxu0 0
        %6417 = vmatprep.subr.bf16.mxu0 0
        %6418 = vmatpush1.bf16.msra.mxu0 0
        %6419 = vmatprep.subr.bf16.mxu0 0
        %6420 = vmatpush1.bf16.msra.mxu0 0
        %6421 = vmatprep.subr.bf16.mxu0 0
        %6422 = vmatpush1.bf16.msra.mxu0 0
        %6423 = vmatprep.subr.bf16.mxu0 0
        %6424 = vmatpush1.bf16.msra.mxu0 0
        %6425 = vmatprep.subr.bf16.mxu0 0
        %6426 = vmatpush1.bf16.msra.mxu0 0
        %6427 = vmatprep.subr.bf16.mxu0 0
        %6428 = vmatpush1.bf16.msra.mxu0 0
        %6429 = vmatprep.subr.bf16.mxu0 0
        %6430 = vmatpush1.bf16.msra.mxu0 0
        %6431 = vmatprep.subr.bf16.mxu0 0
        %6432 = vmatpush1.bf16.msra.mxu0 0
        %6433 = vmatprep.mubr.bf16.mxu0 0
        %6434 = vmatmul.mubr.bf16.gmra.mrb[0].mxu0 %v6393
        %v6435 = vpop.f32.mrb[0].mxu0
        %v6436 = vadd.f32 %v6365, %v6435
        %v6437 = vpop.f32.mrb[0].mxu0
        %v6438 = vpop.f32.mrb[0].mxu0
        %v6439 = vadd.f32 %v6370, %v6438
        %v6440 = vpop.f32.mrb[0].mxu0
        %6441 = vmatprep.mubr.bf16.mxu0 0
        %6442 = vmatmul.mubr.bf16.gmra.mrb[0].mxu0 %v6396
        %v6443 = vpop.f32.mrb[0].mxu0
        %v6444 = vadd.f32 %v6375, %v6443
        %v6445 = vpop.f32.mrb[0].mxu0
        %v6446 = vpop.f32.mrb[0].mxu0
        %v6447 = vadd.f32 %v6380, %v6446
        %v6448 = vpop.f32.mrb[0].mxu0
        %6449 = vdwg.mxu0
        %v6450 = vmul.f32 %v6436, %v567
        %v6451 = vmul.f32 %v6439, %v567
        %v6452 = vmul.f32 %v6444, %v567
        %v6453 = vmul.f32 %v6447, %v567
        %s6454 = scalar_lea.vmem %s5, 576
        %v6455 = vld [vmem:[%s6454] sm:$0xff]
        %v6456 = vld [vmem:[%s6454 + $0x8] sm:$0xff]
        %v6457 = vld [vmem:[%s6454 + $0x10] sm:$0xff]
        %v6458 = vld [vmem:[%s6454 + $0x18] sm:$0xff]
        %v6459 = vld [vmem:[%s6454 + $0x20] sm:$0xff]
        %v6460 = vld [vmem:[%s6454 + $0x28] sm:$0xff]
        %v6461 = vld [vmem:[%s6454 + $0x30] sm:$0xff]
        %v6462 = vld [vmem:[%s6454 + $0x38] sm:$0xff]
        %s6463 = scalar_lea.vmem %s4, 864
        %v6464 = vld [vmem:[%s6463] sm:$0xf]
        %v6465 = vld [vmem:[%s6463 + $0x4] sm:$0xf]
        %v6466 = vld [vmem:[%s6463 + $0x8] sm:$0xf]
        %v6467 = vld [vmem:[%s6463 + $0xc] sm:$0xf]
        %v6468 = vld [vmem:[%s6463 + $0x10] sm:$0xf]
        %v6469 = vld [vmem:[%s6463 + $0x14] sm:$0xf]
        %v6470 = vld [vmem:[%s6463 + $0x18] sm:$0xf]
        %v6471 = vld [vmem:[%s6463 + $0x1c] sm:$0xf]
        %6472 = vrot.lane.b32.xlu0 %v6450, 1
        %v6473 = vpop.permute.xlu0 %6472
        %6474 = vrot.lane.b32.xlu0 %v6451, 1
        %v6475 = vpop.permute.xlu0 %6474
        %6476 = vrot.lane.b32.xlu0 %v6452, 1
        %v6477 = vpop.permute.xlu0 %6476
        %6478 = vrot.lane.b32.xlu0 %v6453, 1
        %v6479 = vpop.permute.xlu0 %6478
        %v6480 = vmul.f32 %v6473, %v445
        %v6481 = vmul.f32 %v6475, %v445
        %v6482 = vmul.f32 %v6477, %v445
        %v6483 = vmul.f32 %v6479, %v445
        %v6484 = vpack.c.bf16 %v6481, %v6480
        %v6485 = vpack.c.bf16 %v6483, %v6482
        %v6494 = vunpack.c.l.b16 %v6464
        %v6495 = vunpack.c.l.b16 %v6465
        %v6496 = vunpack.c.l.b16 %v6466
        %v6497 = vunpack.c.l.b16 %v6467
        %v6498 = vunpack.c.l.b16 %v6468
        %v6499 = vunpack.c.l.b16 %v6469
        %v6500 = vunpack.c.l.b16 %v6470
        %v6501 = vunpack.c.l.b16 %v6471
        %v6502 = vpack.c.b16 %v6495, %v6494
        %v6503 = vpack.c.b16 %v6497, %v6496
        %v6504 = vpack.c.b16 %v6499, %v6498
        %v6505 = vpack.c.b16 %v6501, %v6500
        %v6507 = vsel %vm623, %v6502, 0
        %v6510 = vsel %vm623, %v6503, 0
        %v6513 = vsel %vm623, %v6504, 0
        %v6516 = vsel %vm623, %v6505, 0
        %6518 = vmatprep.subr.bf16.mxu0 0
        %6519 = vmatpush1.bf16.msra.mxu0 %v6484
        %6520 = vmatprep.subr.bf16.mxu0 0
        %6521 = vmatpush1.bf16.msra.mxu0 %v6485
        %6522 = vmatprep.subr.bf16.mxu0 0
        %6523 = vmatpush1.bf16.msra.mxu0 0
        %6524 = vmatprep.subr.bf16.mxu0 0
        %6525 = vmatpush1.bf16.msra.mxu0 0
        %6526 = vmatprep.subr.bf16.mxu0 0
        %6527 = vmatpush1.bf16.msra.mxu0 0
        %6528 = vmatprep.subr.bf16.mxu0 0
        %6529 = vmatpush1.bf16.msra.mxu0 0
        %6530 = vmatprep.subr.bf16.mxu0 0
        %6531 = vmatpush1.bf16.msra.mxu0 0
        %6532 = vmatprep.subr.bf16.mxu0 0
        %6533 = vmatpush1.bf16.msra.mxu0 0
        %6534 = vmatprep.subr.bf16.mxu0 0
        %6535 = vmatpush1.bf16.msra.mxu0 0
        %6536 = vmatprep.subr.bf16.mxu0 0
        %6537 = vmatpush1.bf16.msra.mxu0 0
        %6538 = vmatprep.subr.bf16.mxu0 0
        %6539 = vmatpush1.bf16.msra.mxu0 0
        %6540 = vmatprep.subr.bf16.mxu0 0
        %6541 = vmatpush1.bf16.msra.mxu0 0
        %6542 = vmatprep.subr.bf16.mxu0 0
        %6543 = vmatpush1.bf16.msra.mxu0 0
        %6544 = vmatprep.subr.bf16.mxu0 0
        %6545 = vmatpush1.bf16.msra.mxu0 0
        %6546 = vmatprep.subr.bf16.mxu0 0
        %6547 = vmatpush1.bf16.msra.mxu0 0
        %6548 = vmatprep.subr.bf16.mxu0 0
        %6549 = vmatpush1.bf16.msra.mxu0 0
        %6550 = vmatprep.mubr.bf16.mxu0 0
        %6551 = vmatmul.mubr.bf16.gmra.mrb[0].mxu0 %v6507
        %v6552 = vpop.f32.mrb[0].mxu0
        %v6553 = vadd.f32 0.0, %v6552
        %v6554 = vpop.f32.mrb[0].mxu0
        %v6555 = vpop.f32.mrb[0].mxu0
        %v6556 = vadd.f32 0.0, %v6555
        %v6557 = vpop.f32.mrb[0].mxu0
        %6558 = vmatprep.mubr.bf16.mxu0 0
        %6559 = vmatmul.mubr.bf16.gmra.mrb[0].mxu0 %v6510
        %v6560 = vpop.f32.mrb[0].mxu0
        %v6561 = vadd.f32 0.0, %v6560
        %v6562 = vpop.f32.mrb[0].mxu0
        %v6563 = vpop.f32.mrb[0].mxu0
        %v6564 = vadd.f32 0.0, %v6563
        %v6565 = vpop.f32.mrb[0].mxu0
        %6566 = vmatprep.mubr.bf16.mxu0 0
        %6567 = vmatmul.mubr.bf16.gmra.mrb[0].mxu0 %v6513
        %v6568 = vpop.f32.mrb[0].mxu0
        %v6569 = vadd.f32 0.0, %v6568
        %v6570 = vpop.f32.mrb[0].mxu0
        %v6571 = vpop.f32.mrb[0].mxu0
        %v6572 = vadd.f32 0.0, %v6571
        %v6573 = vpop.f32.mrb[0].mxu0
        %6574 = vmatprep.mubr.bf16.mxu0 0
        %6575 = vmatmul.mubr.bf16.gmra.mrb[0].mxu0 %v6516
        %v6576 = vpop.f32.mrb[0].mxu0
        %v6577 = vadd.f32 0.0, %v6576
        %v6578 = vpop.f32.mrb[0].mxu0
        %v6579 = vpop.f32.mrb[0].mxu0
        %v6580 = vadd.f32 0.0, %v6579
        %v6581 = vpop.f32.mrb[0].mxu0
        %6582 = vdwg.mxu0
        %6584 = vset.pattern.permute.xlu0 0
        %6585 = vperm.xlu0 %6584, %v6455
        %v6586 = vpop.permute.xlu0 %6585
        %6589 = vset.pattern.permute.xlu0 0
        %6590 = vperm.xlu0 %6589, %v6456
        %v6591 = vpop.permute.xlu0 %6590
        %6594 = vset.pattern.permute.xlu0 0
        %6595 = vperm.xlu0 %6594, %v6457
        %v6596 = vpop.permute.xlu0 %6595
        %6599 = vset.pattern.permute.xlu0 0
        %6600 = vperm.xlu0 %6599, %v6458
        %v6601 = vpop.permute.xlu0 %6600
        %6604 = vset.pattern.permute.xlu0 0
        %6605 = vperm.xlu0 %6604, %v6459
        %v6606 = vpop.permute.xlu0 %6605
        %6609 = vset.pattern.permute.xlu0 0
        %6610 = vperm.xlu0 %6609, %v6460
        %v6611 = vpop.permute.xlu0 %6610
        %6614 = vset.pattern.permute.xlu0 0
        %6615 = vperm.xlu0 %6614, %v6461
        %v6616 = vpop.permute.xlu0 %6615
        %6619 = vset.pattern.permute.xlu0 0
        %6620 = vperm.xlu0 %6619, %v6462
        %v6621 = vpop.permute.xlu0 %6620
        %v6623 = vadd.f32 %v6586, %v6553
        %v6624 = vadd.f32 %v6591, %v6556
        %v6625 = vadd.f32 %v6596, %v6561
        %v6626 = vadd.f32 %v6601, %v6564
        %v6627 = vadd.f32 %v6606, %v6569
        %v6628 = vadd.f32 %v6611, %v6572
        %v6629 = vadd.f32 %v6616, %v6577
        %v6630 = vadd.f32 %v6621, %v6580
        %s6631 = scalar_lea.vmem %s4, 896
        %v6632 = vld [vmem:[%s6631] sm:$0xf]
        %v6633 = vld [vmem:[%s6631 + $0x4] sm:$0xf]
        %v6634 = vld [vmem:[%s6631 + $0x8] sm:$0xf]
        %v6635 = vld [vmem:[%s6631 + $0xc] sm:$0xf]
        %v6636 = vld [vmem:[%s6631 + $0x10] sm:$0xf]
        %v6637 = vld [vmem:[%s6631 + $0x14] sm:$0xf]
        %v6638 = vld [vmem:[%s6631 + $0x18] sm:$0xf]
        %v6639 = vld [vmem:[%s6631 + $0x1c] sm:$0xf]
        %v6640 = vpack.c.bf16 %v6451, %v6450
        %v6641 = vpack.c.bf16 %v6453, %v6452
        %v6650 = vunpack.c.l.b16 %v6632
        %v6651 = vunpack.c.l.b16 %v6633
        %v6652 = vunpack.c.l.b16 %v6634
        %v6653 = vunpack.c.l.b16 %v6635
        %v6654 = vunpack.c.l.b16 %v6636
        %v6655 = vunpack.c.l.b16 %v6637
        %v6656 = vunpack.c.l.b16 %v6638
        %v6657 = vunpack.c.l.b16 %v6639
        %v6658 = vpack.c.b16 %v6651, %v6650
        %v6659 = vpack.c.b16 %v6653, %v6652
        %v6660 = vpack.c.b16 %v6655, %v6654
        %v6661 = vpack.c.b16 %v6657, %v6656
        %v6663 = vsel %vm623, %v6658, 0
        %v6666 = vsel %vm623, %v6659, 0
        %v6669 = vsel %vm623, %v6660, 0
        %v6672 = vsel %vm623, %v6661, 0
        %6674 = vmatprep.subr.bf16.mxu0 0
        %6675 = vmatpush1.bf16.msra.mxu0 %v6640
        %6676 = vmatprep.subr.bf16.mxu0 0
        %6677 = vmatpush1.bf16.msra.mxu0 %v6641
        %6678 = vmatprep.subr.bf16.mxu0 0
        %6679 = vmatpush1.bf16.msra.mxu0 0
        %6680 = vmatprep.subr.bf16.mxu0 0
        %6681 = vmatpush1.bf16.msra.mxu0 0
        %6682 = vmatprep.subr.bf16.mxu0 0
        %6683 = vmatpush1.bf16.msra.mxu0 0
        %6684 = vmatprep.subr.bf16.mxu0 0
        %6685 = vmatpush1.bf16.msra.mxu0 0
        %6686 = vmatprep.subr.bf16.mxu0 0
        %6687 = vmatpush1.bf16.msra.mxu0 0
        %6688 = vmatprep.subr.bf16.mxu0 0
        %6689 = vmatpush1.bf16.msra.mxu0 0
        %6690 = vmatprep.subr.bf16.mxu0 0
        %6691 = vmatpush1.bf16.msra.mxu0 0
        %6692 = vmatprep.subr.bf16.mxu0 0
        %6693 = vmatpush1.bf16.msra.mxu0 0
        %6694 = vmatprep.subr.bf16.mxu0 0
        %6695 = vmatpush1.bf16.msra.mxu0 0
        %6696 = vmatprep.subr.bf16.mxu0 0
        %6697 = vmatpush1.bf16.msra.mxu0 0
        %6698 = vmatprep.subr.bf16.mxu0 0
        %6699 = vmatpush1.bf16.msra.mxu0 0
        %6700 = vmatprep.subr.bf16.mxu0 0
        %6701 = vmatpush1.bf16.msra.mxu0 0
        %6702 = vmatprep.subr.bf16.mxu0 0
        %6703 = vmatpush1.bf16.msra.mxu0 0
        %6704 = vmatprep.subr.bf16.mxu0 0
        %6705 = vmatpush1.bf16.msra.mxu0 0
        %6706 = vmatprep.mubr.bf16.mxu0 0
        %6707 = vmatmul.mubr.bf16.gmra.mrb[0].mxu0 %v6663
        %v6708 = vpop.f32.mrb[0].mxu0
        %v6709 = vadd.f32 0.0, %v6708
        %v6710 = vpop.f32.mrb[0].mxu0
        %v6711 = vpop.f32.mrb[0].mxu0
        %v6712 = vadd.f32 0.0, %v6711
        %v6713 = vpop.f32.mrb[0].mxu0
        %6714 = vmatprep.mubr.bf16.mxu0 0
        %6715 = vmatmul.mubr.bf16.gmra.mrb[0].mxu0 %v6666
        %v6716 = vpop.f32.mrb[0].mxu0
        %v6717 = vadd.f32 0.0, %v6716
        %v6718 = vpop.f32.mrb[0].mxu0
        %v6719 = vpop.f32.mrb[0].mxu0
        %v6720 = vadd.f32 0.0, %v6719
        %v6721 = vpop.f32.mrb[0].mxu0
        %6722 = vmatprep.mubr.bf16.mxu0 0
        %6723 = vmatmul.mubr.bf16.gmra.mrb[0].mxu0 %v6669
        %v6724 = vpop.f32.mrb[0].mxu0
        %v6725 = vadd.f32 0.0, %v6724
        %v6726 = vpop.f32.mrb[0].mxu0
        %v6727 = vpop.f32.mrb[0].mxu0
        %v6728 = vadd.f32 0.0, %v6727
        %v6729 = vpop.f32.mrb[0].mxu0
        %6730 = vmatprep.mubr.bf16.mxu0 0
        %6731 = vmatmul.mubr.bf16.gmra.mrb[0].mxu0 %v6672
        %v6732 = vpop.f32.mrb[0].mxu0
        %v6733 = vadd.f32 0.0, %v6732
        %v6734 = vpop.f32.mrb[0].mxu0
        %v6735 = vpop.f32.mrb[0].mxu0
        %v6736 = vadd.f32 0.0, %v6735
        %v6737 = vpop.f32.mrb[0].mxu0
        %6738 = vdwg.mxu0
        %v6739 = vadd.f32 %v6623, %v6709
        %v6740 = vadd.f32 %v6624, %v6712
        %v6741 = vadd.f32 %v6625, %v6717
        %v6742 = vadd.f32 %v6626, %v6720
        %v6743 = vadd.f32 %v6627, %v6725
        %v6744 = vadd.f32 %v6628, %v6728
        %v6745 = vadd.f32 %v6629, %v6733
        %v6746 = vadd.f32 %v6630, %v6736
        %s6747 = scalar_lea.vmem %s4, 928
        %v6748 = vld [vmem:[%s6747] sm:$0xf]
        %v6749 = vld [vmem:[%s6747 + $0x4] sm:$0xf]
        %v6750 = vld [vmem:[%s6747 + $0x8] sm:$0xf]
        %v6751 = vld [vmem:[%s6747 + $0xc] sm:$0xf]
        %v6752 = vld [vmem:[%s6747 + $0x10] sm:$0xf]
        %v6753 = vld [vmem:[%s6747 + $0x14] sm:$0xf]
        %v6754 = vld [vmem:[%s6747 + $0x18] sm:$0xf]
        %v6755 = vld [vmem:[%s6747 + $0x1c] sm:$0xf]
        %6756 = vrot.lane.b32.xlu0 %v6450, 127
        %v6757 = vpop.permute.xlu0 %6756
        %6758 = vrot.lane.b32.xlu0 %v6451, 127
        %v6759 = vpop.permute.xlu0 %6758
        %6760 = vrot.lane.b32.xlu0 %v6452, 127
        %v6761 = vpop.permute.xlu0 %6760
        %6762 = vrot.lane.b32.xlu0 %v6453, 127
        %v6763 = vpop.permute.xlu0 %6762
        %v6764 = vmul.f32 %v6757, %v451
        %v6765 = vmul.f32 %v6759, %v451
        %v6766 = vmul.f32 %v6761, %v451
        %v6767 = vmul.f32 %v6763, %v451
        %v6768 = vpack.c.bf16 %v6765, %v6764
        %v6769 = vpack.c.bf16 %v6767, %v6766
        %v6778 = vunpack.c.l.b16 %v6748
        %v6779 = vunpack.c.l.b16 %v6749
        %v6780 = vunpack.c.l.b16 %v6750
        %v6781 = vunpack.c.l.b16 %v6751
        %v6782 = vunpack.c.l.b16 %v6752
        %v6783 = vunpack.c.l.b16 %v6753
        %v6784 = vunpack.c.l.b16 %v6754
        %v6785 = vunpack.c.l.b16 %v6755
        %v6786 = vpack.c.b16 %v6779, %v6778
        %v6787 = vpack.c.b16 %v6781, %v6780
        %v6788 = vpack.c.b16 %v6783, %v6782
        %v6789 = vpack.c.b16 %v6785, %v6784
        %v6791 = vsel %vm623, %v6786, 0
        %v6794 = vsel %vm623, %v6787, 0
        %v6797 = vsel %vm623, %v6788, 0
        %v6800 = vsel %vm623, %v6789, 0
        %6802 = vmatprep.subr.bf16.mxu0 0
        %6803 = vmatpush1.bf16.msra.mxu0 %v6768
        %6804 = vmatprep.subr.bf16.mxu0 0
        %6805 = vmatpush1.bf16.msra.mxu0 %v6769
        %6806 = vmatprep.subr.bf16.mxu0 0
        %6807 = vmatpush1.bf16.msra.mxu0 0
        %6808 = vmatprep.subr.bf16.mxu0 0
        %6809 = vmatpush1.bf16.msra.mxu0 0
        %6810 = vmatprep.subr.bf16.mxu0 0
        %6811 = vmatpush1.bf16.msra.mxu0 0
        %6812 = vmatprep.subr.bf16.mxu0 0
        %6813 = vmatpush1.bf16.msra.mxu0 0
        %6814 = vmatprep.subr.bf16.mxu0 0
        %6815 = vmatpush1.bf16.msra.mxu0 0
        %6816 = vmatprep.subr.bf16.mxu0 0
        %6817 = vmatpush1.bf16.msra.mxu0 0
        %6818 = vmatprep.subr.bf16.mxu0 0
        %6819 = vmatpush1.bf16.msra.mxu0 0
        %6820 = vmatprep.subr.bf16.mxu0 0
        %6821 = vmatpush1.bf16.msra.mxu0 0
        %6822 = vmatprep.subr.bf16.mxu0 0
        %6823 = vmatpush1.bf16.msra.mxu0 0
        %6824 = vmatprep.subr.bf16.mxu0 0
        %6825 = vmatpush1.bf16.msra.mxu0 0
        %6826 = vmatprep.subr.bf16.mxu0 0
        %6827 = vmatpush1.bf16.msra.mxu0 0
        %6828 = vmatprep.subr.bf16.mxu0 0
        %6829 = vmatpush1.bf16.msra.mxu0 0
        %6830 = vmatprep.subr.bf16.mxu0 0
        %6831 = vmatpush1.bf16.msra.mxu0 0
        %6832 = vmatprep.subr.bf16.mxu0 0
        %6833 = vmatpush1.bf16.msra.mxu0 0
        %6834 = vmatprep.mubr.bf16.mxu0 0
        %6835 = vmatmul.mubr.bf16.gmra.mrb[0].mxu0 %v6791
        %v6836 = vpop.f32.mrb[0].mxu0
        %v6837 = vadd.f32 0.0, %v6836
        %v6838 = vpop.f32.mrb[0].mxu0
        %v6839 = vpop.f32.mrb[0].mxu0
        %v6840 = vadd.f32 0.0, %v6839
        %v6841 = vpop.f32.mrb[0].mxu0
        %6842 = vmatprep.mubr.bf16.mxu0 0
        %6843 = vmatmul.mubr.bf16.gmra.mrb[0].mxu0 %v6794
        %v6844 = vpop.f32.mrb[0].mxu0
        %v6845 = vadd.f32 0.0, %v6844
        %v6846 = vpop.f32.mrb[0].mxu0
        %v6847 = vpop.f32.mrb[0].mxu0
        %v6848 = vadd.f32 0.0, %v6847
        %v6849 = vpop.f32.mrb[0].mxu0
        %6850 = vmatprep.mubr.bf16.mxu0 0
        %6851 = vmatmul.mubr.bf16.gmra.mrb[0].mxu0 %v6797
        %v6852 = vpop.f32.mrb[0].mxu0
        %v6853 = vadd.f32 0.0, %v6852
        %v6854 = vpop.f32.mrb[0].mxu0
        %v6855 = vpop.f32.mrb[0].mxu0
        %v6856 = vadd.f32 0.0, %v6855
        %v6857 = vpop.f32.mrb[0].mxu0
        %6858 = vmatprep.mubr.bf16.mxu0 0
        %6859 = vmatmul.mubr.bf16.gmra.mrb[0].mxu0 %v6800
        %v6860 = vpop.f32.mrb[0].mxu0
        %v6861 = vadd.f32 0.0, %v6860
        %v6862 = vpop.f32.mrb[0].mxu0
        %v6863 = vpop.f32.mrb[0].mxu0
        %v6864 = vadd.f32 0.0, %v6863
        %v6865 = vpop.f32.mrb[0].mxu0
        %6866 = vdwg.mxu0
        %v6867 = vadd.f32 %v6739, %v6837
        %v6868 = vadd.f32 %v6740, %v6840
        %v6869 = vadd.f32 %v6741, %v6845
        %v6870 = vadd.f32 %v6742, %v6848
        %v6871 = vadd.f32 %v6743, %v6853
        %v6872 = vadd.f32 %v6744, %v6856
        %v6873 = vadd.f32 %v6745, %v6861
        %v6874 = vadd.f32 %v6746, %v6864
        %v6875 = vtanh.pop %v6867
        %v6876 = vtanh.pop %v6868
        %v6877 = vtanh.pop %v6869
        %v6878 = vtanh.pop %v6870
        %v6879 = vxor.u32 %v6871, 2147483648
        %v6880 = vxor.u32 %v6872, 2147483648
        %v6881 = vxor.u32 %v6873, 2147483648
        %v6882 = vxor.u32 %v6874, 2147483648
        %v6883 = vmul.f32 %v6879, 1.442695
        %v6884 = vpow.pop %v6883
        %v6885 = vmul.f32 %v6880, 1.442695
        %v6886 = vpow.pop %v6885
        %v6887 = vmul.f32 %v6881, 1.442695
        %v6888 = vpow.pop %v6887
        %v6889 = vmul.f32 %v6882, 1.442695
        %v6890 = vpow.pop %v6889
        %v6891 = vadd.f32 %v6884, 1.0
        %v6892 = vadd.f32 %v6886, 1.0
        %v6893 = vadd.f32 %v6888, 1.0
        %v6894 = vadd.f32 %v6890, 1.0
        %v6895 = vrcp.pop %v6891
        %v6896 = vmul.f32 1.0, %v6895
        %v6897 = vrcp.pop %v6892
        %v6898 = vmul.f32 1.0, %v6897
        %v6899 = vrcp.pop %v6893
        %v6900 = vmul.f32 1.0, %v6899
        %v6901 = vrcp.pop %v6894
        %v6902 = vmul.f32 1.0, %v6901
        %v6903 = vmul.f32 %v6875, %v6896
        %v6904 = vmul.f32 %v6876, %v6898
        %v6905 = vmul.f32 %v6877, %v6900
        %v6906 = vmul.f32 %v6878, %v6902
        %s6907 = scalar_lea.vmem %s6, 192
        %v6908 = vld [vmem:[%s6907] sm:$0xf]
        %v6909 = vld [vmem:[%s6907 + $0x4] sm:$0xf]
        %v6910 = vld [vmem:[%s6907 + $0x8] sm:$0xf]
        %v6911 = vld [vmem:[%s6907 + $0xc] sm:$0xf]
        %v6912 = vld [vmem:[%s6907 + $0x10] sm:$0xf]
        %v6913 = vld [vmem:[%s6907 + $0x14] sm:$0xf]
        %v6914 = vld [vmem:[%s6907 + $0x18] sm:$0xf]
        %v6915 = vld [vmem:[%s6907 + $0x1c] sm:$0xf]
        %v6916 = vpack.c.bf16 %v6904, %v6903
        %v6917 = vpack.c.bf16 %v6906, %v6905
        %s6918 = scalar_lea.vmem %s7, 384
        %v6919 = vld [vmem:[%s6918] sm:$0xff]
        %v6920 = vld [vmem:[%s6918 + $0x8] sm:$0xff]
        %v6921 = vld [vmem:[%s6918 + $0x10] sm:$0xff]
        %v6922 = vld [vmem:[%s6918 + $0x18] sm:$0xff]
        %v6923 = vld [vmem:[%s6918 + $0x20] sm:$0xff]
        %v6924 = vld [vmem:[%s6918 + $0x28] sm:$0xff]
        %v6925 = vld [vmem:[%s6918 + $0x30] sm:$0xff]
        %v6926 = vld [vmem:[%s6918 + $0x38] sm:$0xff]
        %6928 = vset.pattern.permute.xlu0 0
        %6929 = vperm.xlu0 %6928, %v6919
        %v6930 = vpop.permute.xlu0 %6929
        %6933 = vset.pattern.permute.xlu0 0
        %6934 = vperm.xlu0 %6933, %v6920
        %v6935 = vpop.permute.xlu0 %6934
        %6938 = vset.pattern.permute.xlu0 0
        %6939 = vperm.xlu0 %6938, %v6921
        %v6940 = vpop.permute.xlu0 %6939
        %6943 = vset.pattern.permute.xlu0 0
        %6944 = vperm.xlu0 %6943, %v6922
        %v6945 = vpop.permute.xlu0 %6944
        %6948 = vset.pattern.permute.xlu0 0
        %6949 = vperm.xlu0 %6948, %v6923
        %v6950 = vpop.permute.xlu0 %6949
        %6953 = vset.pattern.permute.xlu0 0
        %6954 = vperm.xlu0 %6953, %v6924
        %v6955 = vpop.permute.xlu0 %6954
        %6958 = vset.pattern.permute.xlu0 0
        %6959 = vperm.xlu0 %6958, %v6925
        %v6960 = vpop.permute.xlu0 %6959
        %6963 = vset.pattern.permute.xlu0 0
        %6964 = vperm.xlu0 %6963, %v6926
        %v6965 = vpop.permute.xlu0 %6964
        %v6975 = vunpack.c.l.b16 %v6908
        %v6976 = vunpack.c.l.b16 %v6909
        %v6977 = vunpack.c.l.b16 %v6910
        %v6978 = vunpack.c.l.b16 %v6911
        %v6979 = vunpack.c.l.b16 %v6912
        %v6980 = vunpack.c.l.b16 %v6913
        %v6981 = vunpack.c.l.b16 %v6914
        %v6982 = vunpack.c.l.b16 %v6915
        %v6983 = vpack.c.b16 %v6976, %v6975
        %v6984 = vpack.c.b16 %v6978, %v6977
        %v6985 = vpack.c.b16 %v6980, %v6979
        %v6986 = vpack.c.b16 %v6982, %v6981
        %v6988 = vsel %vm623, %v6983, 0
        %v6991 = vsel %vm623, %v6984, 0
        %v6994 = vsel %vm623, %v6985, 0
        %v6997 = vsel %vm623, %v6986, 0
        %6999 = vmatprep.subr.bf16.mxu0 0
        %7000 = vmatpush1.bf16.msra.mxu0 %v6916
        %7001 = vmatprep.subr.bf16.mxu0 0
        %7002 = vmatpush1.bf16.msra.mxu0 %v6917
        %7003 = vmatprep.subr.bf16.mxu0 0
        %7004 = vmatpush1.bf16.msra.mxu0 0
        %7005 = vmatprep.subr.bf16.mxu0 0
        %7006 = vmatpush1.bf16.msra.mxu0 0
        %7007 = vmatprep.subr.bf16.mxu0 0
        %7008 = vmatpush1.bf16.msra.mxu0 0
        %7009 = vmatprep.subr.bf16.mxu0 0
        %7010 = vmatpush1.bf16.msra.mxu0 0
        %7011 = vmatprep.subr.bf16.mxu0 0
        %7012 = vmatpush1.bf16.msra.mxu0 0
        %7013 = vmatprep.subr.bf16.mxu0 0
        %7014 = vmatpush1.bf16.msra.mxu0 0
        %7015 = vmatprep.subr.bf16.mxu0 0
        %7016 = vmatpush1.bf16.msra.mxu0 0
        %7017 = vmatprep.subr.bf16.mxu0 0
        %7018 = vmatpush1.bf16.msra.mxu0 0
        %7019 = vmatprep.subr.bf16.mxu0 0
        %7020 = vmatpush1.bf16.msra.mxu0 0
        %7021 = vmatprep.subr.bf16.mxu0 0
        %7022 = vmatpush1.bf16.msra.mxu0 0
        %7023 = vmatprep.subr.bf16.mxu0 0
        %7024 = vmatpush1.bf16.msra.mxu0 0
        %7025 = vmatprep.subr.bf16.mxu0 0
        %7026 = vmatpush1.bf16.msra.mxu0 0
        %7027 = vmatprep.subr.bf16.mxu0 0
        %7028 = vmatpush1.bf16.msra.mxu0 0
        %7029 = vmatprep.subr.bf16.mxu0 0
        %7030 = vmatpush1.bf16.msra.mxu0 0
        %7031 = vmatprep.mubr.bf16.mxu0 0
        %7032 = vmatmul.mubr.bf16.gmra.mrb[0].mxu0 %v6988
        %v7033 = vpop.f32.mrb[0].mxu0
        %v7034 = vadd.f32 %v6930, %v7033
        %v7035 = vpop.f32.mrb[0].mxu0
        %v7036 = vpop.f32.mrb[0].mxu0
        %v7037 = vadd.f32 %v6935, %v7036
        %v7038 = vpop.f32.mrb[0].mxu0
        %7039 = vmatprep.mubr.bf16.mxu0 0
        %7040 = vmatmul.mubr.bf16.gmra.mrb[0].mxu0 %v6991
        %v7041 = vpop.f32.mrb[0].mxu0
        %v7042 = vadd.f32 %v6940, %v7041
        %v7043 = vpop.f32.mrb[0].mxu0
        %v7044 = vpop.f32.mrb[0].mxu0
        %v7045 = vadd.f32 %v6945, %v7044
        %v7046 = vpop.f32.mrb[0].mxu0
        %7047 = vmatprep.mubr.bf16.mxu0 0
        %7048 = vmatmul.mubr.bf16.gmra.mrb[0].mxu0 %v6994
        %v7049 = vpop.f32.mrb[0].mxu0
        %v7050 = vadd.f32 %v6950, %v7049
        %v7051 = vpop.f32.mrb[0].mxu0
        %v7052 = vpop.f32.mrb[0].mxu0
        %v7053 = vadd.f32 %v6955, %v7052
        %v7054 = vpop.f32.mrb[0].mxu0
        %7055 = vmatprep.mubr.bf16.mxu0 0
        %7056 = vmatmul.mubr.bf16.gmra.mrb[0].mxu0 %v6997
        %v7057 = vpop.f32.mrb[0].mxu0
        %v7058 = vadd.f32 %v6960, %v7057
        %v7059 = vpop.f32.mrb[0].mxu0
        %v7060 = vpop.f32.mrb[0].mxu0
        %v7061 = vadd.f32 %v6965, %v7060
        %v7062 = vpop.f32.mrb[0].mxu0
        %7063 = vdwg.mxu0
        %v7064 = vadd.f32 %v6450, %v7034
        %v7065 = vadd.f32 %v6451, %v7037
        %v7066 = vadd.f32 %v6452, %v7042
        %v7067 = vadd.f32 %v6453, %v7045
        %v7068 = vmul.f32 %v7064, %v567
        %v7069 = vmul.f32 %v7065, %v567
        %v7070 = vmul.f32 %v7066, %v567
        %v7071 = vmul.f32 %v7067, %v567
        %v7072 = vadd.f32 %v7050, 0.0
        %v7073 = vadd.f32 %v7053, 0.0
        %v7074 = vadd.f32 %v7058, 0.0
        %v7075 = vadd.f32 %v7061, 0.0
        %s7076 = scalar_lea.vmem %s5, 640
        %v7077 = vld [vmem:[%s7076] sm:$0xff]
        %v7078 = vld [vmem:[%s7076 + $0x8] sm:$0xff]
        %v7079 = vld [vmem:[%s7076 + $0x10] sm:$0xff]
        %v7080 = vld [vmem:[%s7076 + $0x18] sm:$0xff]
        %v7081 = vld [vmem:[%s7076 + $0x20] sm:$0xff]
        %v7082 = vld [vmem:[%s7076 + $0x28] sm:$0xff]
        %v7083 = vld [vmem:[%s7076 + $0x30] sm:$0xff]
        %v7084 = vld [vmem:[%s7076 + $0x38] sm:$0xff]
        %s7085 = scalar_lea.vmem %s4, 960
        %v7086 = vld [vmem:[%s7085] sm:$0xf]
        %v7087 = vld [vmem:[%s7085 + $0x4] sm:$0xf]
        %v7088 = vld [vmem:[%s7085 + $0x8] sm:$0xf]
        %v7089 = vld [vmem:[%s7085 + $0xc] sm:$0xf]
        %v7090 = vld [vmem:[%s7085 + $0x10] sm:$0xf]
        %v7091 = vld [vmem:[%s7085 + $0x14] sm:$0xf]
        %v7092 = vld [vmem:[%s7085 + $0x18] sm:$0xf]
        %v7093 = vld [vmem:[%s7085 + $0x1c] sm:$0xf]
        %7094 = vrot.lane.b32.xlu0 %v7068, 2
        %v7095 = vpop.permute.xlu0 %7094
        %7096 = vrot.lane.b32.xlu0 %v7069, 2
        %v7097 = vpop.permute.xlu0 %7096
        %7098 = vrot.lane.b32.xlu0 %v7070, 2
        %v7099 = vpop.permute.xlu0 %7098
        %7100 = vrot.lane.b32.xlu0 %v7071, 2
        %v7101 = vpop.permute.xlu0 %7100
        %v7102 = vmul.f32 %v7095, %v439
        %v7103 = vmul.f32 %v7097, %v439
        %v7104 = vmul.f32 %v7099, %v439
        %v7105 = vmul.f32 %v7101, %v439
        %v7106 = vpack.c.bf16 %v7103, %v7102
        %v7107 = vpack.c.bf16 %v7105, %v7104
        %v7116 = vunpack.c.l.b16 %v7086
        %v7117 = vunpack.c.l.b16 %v7087
        %v7118 = vunpack.c.l.b16 %v7088
        %v7119 = vunpack.c.l.b16 %v7089
        %v7120 = vunpack.c.l.b16 %v7090
        %v7121 = vunpack.c.l.b16 %v7091
        %v7122 = vunpack.c.l.b16 %v7092
        %v7123 = vunpack.c.l.b16 %v7093
        %v7124 = vpack.c.b16 %v7117, %v7116
        %v7125 = vpack.c.b16 %v7119, %v7118
        %v7126 = vpack.c.b16 %v7121, %v7120
        %v7127 = vpack.c.b16 %v7123, %v7122
        %v7129 = vsel %vm623, %v7124, 0
        %v7132 = vsel %vm623, %v7125, 0
        %v7135 = vsel %vm623, %v7126, 0
        %v7138 = vsel %vm623, %v7127, 0
        %7140 = vmatprep.subr.bf16.mxu0 0
        %7141 = vmatpush1.bf16.msra.mxu0 %v7106
        %7142 = vmatprep.subr.bf16.mxu0 0
        %7143 = vmatpush1.bf16.msra.mxu0 %v7107
        %7144 = vmatprep.subr.bf16.mxu0 0
        %7145 = vmatpush1.bf16.msra.mxu0 0
        %7146 = vmatprep.subr.bf16.mxu0 0
        %7147 = vmatpush1.bf16.msra.mxu0 0
        %7148 = vmatprep.subr.bf16.mxu0 0
        %7149 = vmatpush1.bf16.msra.mxu0 0
        %7150 = vmatprep.subr.bf16.mxu0 0
        %7151 = vmatpush1.bf16.msra.mxu0 0
        %7152 = vmatprep.subr.bf16.mxu0 0
        %7153 = vmatpush1.bf16.msra.mxu0 0
        %7154 = vmatprep.subr.bf16.mxu0 0
        %7155 = vmatpush1.bf16.msra.mxu0 0
        %7156 = vmatprep.subr.bf16.mxu0 0
        %7157 = vmatpush1.bf16.msra.mxu0 0
        %7158 = vmatprep.subr.bf16.mxu0 0
        %7159 = vmatpush1.bf16.msra.mxu0 0
        %7160 = vmatprep.subr.bf16.mxu0 0
        %7161 = vmatpush1.bf16.msra.mxu0 0
        %7162 = vmatprep.subr.bf16.mxu0 0
        %7163 = vmatpush1.bf16.msra.mxu0 0
        %7164 = vmatprep.subr.bf16.mxu0 0
        %7165 = vmatpush1.bf16.msra.mxu0 0
        %7166 = vmatprep.subr.bf16.mxu0 0
        %7167 = vmatpush1.bf16.msra.mxu0 0
        %7168 = vmatprep.subr.bf16.mxu0 0
        %7169 = vmatpush1.bf16.msra.mxu0 0
        %7170 = vmatprep.subr.bf16.mxu0 0
        %7171 = vmatpush1.bf16.msra.mxu0 0
        %7172 = vmatprep.mubr.bf16.mxu0 0
        %7173 = vmatmul.mubr.bf16.gmra.mrb[0].mxu0 %v7129
        %v7174 = vpop.f32.mrb[0].mxu0
        %v7175 = vadd.f32 0.0, %v7174
        %v7176 = vpop.f32.mrb[0].mxu0
        %v7177 = vpop.f32.mrb[0].mxu0
        %v7178 = vadd.f32 0.0, %v7177
        %v7179 = vpop.f32.mrb[0].mxu0
        %7180 = vmatprep.mubr.bf16.mxu0 0
        %7181 = vmatmul.mubr.bf16.gmra.mrb[0].mxu0 %v7132
        %v7182 = vpop.f32.mrb[0].mxu0
        %v7183 = vadd.f32 0.0, %v7182
        %v7184 = vpop.f32.mrb[0].mxu0
        %v7185 = vpop.f32.mrb[0].mxu0
        %v7186 = vadd.f32 0.0, %v7185
        %v7187 = vpop.f32.mrb[0].mxu0
        %7188 = vmatprep.mubr.bf16.mxu0 0
        %7189 = vmatmul.mubr.bf16.gmra.mrb[0].mxu0 %v7135
        %v7190 = vpop.f32.mrb[0].mxu0
        %v7191 = vadd.f32 0.0, %v7190
        %v7192 = vpop.f32.mrb[0].mxu0
        %v7193 = vpop.f32.mrb[0].mxu0
        %v7194 = vadd.f32 0.0, %v7193
        %v7195 = vpop.f32.mrb[0].mxu0
        %7196 = vmatprep.mubr.bf16.mxu0 0
        %7197 = vmatmul.mubr.bf16.gmra.mrb[0].mxu0 %v7138
        %v7198 = vpop.f32.mrb[0].mxu0
        %v7199 = vadd.f32 0.0, %v7198
        %v7200 = vpop.f32.mrb[0].mxu0
        %v7201 = vpop.f32.mrb[0].mxu0
        %v7202 = vadd.f32 0.0, %v7201
        %v7203 = vpop.f32.mrb[0].mxu0
        %7204 = vdwg.mxu0
        %7206 = vset.pattern.permute.xlu0 0
        %7207 = vperm.xlu0 %7206, %v7077
        %v7208 = vpop.permute.xlu0 %7207
        %7211 = vset.pattern.permute.xlu0 0
        %7212 = vperm.xlu0 %7211, %v7078
        %v7213 = vpop.permute.xlu0 %7212
        %7216 = vset.pattern.permute.xlu0 0
        %7217 = vperm.xlu0 %7216, %v7079
        %v7218 = vpop.permute.xlu0 %7217
        %7221 = vset.pattern.permute.xlu0 0
        %7222 = vperm.xlu0 %7221, %v7080
        %v7223 = vpop.permute.xlu0 %7222
        %7226 = vset.pattern.permute.xlu0 0
        %7227 = vperm.xlu0 %7226, %v7081
        %v7228 = vpop.permute.xlu0 %7227
        %7231 = vset.pattern.permute.xlu0 0
        %7232 = vperm.xlu0 %7231, %v7082
        %v7233 = vpop.permute.xlu0 %7232
        %7236 = vset.pattern.permute.xlu0 0
        %7237 = vperm.xlu0 %7236, %v7083
        %v7238 = vpop.permute.xlu0 %7237
        %7241 = vset.pattern.permute.xlu0 0
        %7242 = vperm.xlu0 %7241, %v7084
        %v7243 = vpop.permute.xlu0 %7242
        %v7245 = vadd.f32 %v7208, %v7175
        %v7246 = vadd.f32 %v7213, %v7178
        %v7247 = vadd.f32 %v7218, %v7183
        %v7248 = vadd.f32 %v7223, %v7186
        %v7249 = vadd.f32 %v7228, %v7191
        %v7250 = vadd.f32 %v7233, %v7194
        %v7251 = vadd.f32 %v7238, %v7199
        %v7252 = vadd.f32 %v7243, %v7202
        %s7253 = scalar_lea.vmem %s4, 992
        %v7254 = vld [vmem:[%s7253] sm:$0xf]
        %v7255 = vld [vmem:[%s7253 + $0x4] sm:$0xf]
        %v7256 = vld [vmem:[%s7253 + $0x8] sm:$0xf]
        %v7257 = vld [vmem:[%s7253 + $0xc] sm:$0xf]
        %v7258 = vld [vmem:[%s7253 + $0x10] sm:$0xf]
        %v7259 = vld [vmem:[%s7253 + $0x14] sm:$0xf]
        %v7260 = vld [vmem:[%s7253 + $0x18] sm:$0xf]
        %v7261 = vld [vmem:[%s7253 + $0x1c] sm:$0xf]
        %v7262 = vpack.c.bf16 %v7069, %v7068
        %v7263 = vpack.c.bf16 %v7071, %v7070
        %v7272 = vunpack.c.l.b16 %v7254
        %v7273 = vunpack.c.l.b16 %v7255
        %v7274 = vunpack.c.l.b16 %v7256
        %v7275 = vunpack.c.l.b16 %v7257
        %v7276 = vunpack.c.l.b16 %v7258
        %v7277 = vunpack.c.l.b16 %v7259
        %v7278 = vunpack.c.l.b16 %v7260
        %v7279 = vunpack.c.l.b16 %v7261
        %v7280 = vpack.c.b16 %v7273, %v7272
        %v7281 = vpack.c.b16 %v7275, %v7274
        %v7282 = vpack.c.b16 %v7277, %v7276
        %v7283 = vpack.c.b16 %v7279, %v7278
        %v7285 = vsel %vm623, %v7280, 0
        %v7288 = vsel %vm623, %v7281, 0
        %v7291 = vsel %vm623, %v7282, 0
        %v7294 = vsel %vm623, %v7283, 0
        %7296 = vmatprep.subr.bf16.mxu0 0
        %7297 = vmatpush1.bf16.msra.mxu0 %v7262
        %7298 = vmatprep.subr.bf16.mxu0 0
        %7299 = vmatpush1.bf16.msra.mxu0 %v7263
        %7300 = vmatprep.subr.bf16.mxu0 0
        %7301 = vmatpush1.bf16.msra.mxu0 0
        %7302 = vmatprep.subr.bf16.mxu0 0
        %7303 = vmatpush1.bf16.msra.mxu0 0
        %7304 = vmatprep.subr.bf16.mxu0 0
        %7305 = vmatpush1.bf16.msra.mxu0 0
        %7306 = vmatprep.subr.bf16.mxu0 0
        %7307 = vmatpush1.bf16.msra.mxu0 0
        %7308 = vmatprep.subr.bf16.mxu0 0
        %7309 = vmatpush1.bf16.msra.mxu0 0
        %7310 = vmatprep.subr.bf16.mxu0 0
        %7311 = vmatpush1.bf16.msra.mxu0 0
        %7312 = vmatprep.subr.bf16.mxu0 0
        %7313 = vmatpush1.bf16.msra.mxu0 0
        %7314 = vmatprep.subr.bf16.mxu0 0
        %7315 = vmatpush1.bf16.msra.mxu0 0
        %7316 = vmatprep.subr.bf16.mxu0 0
        %7317 = vmatpush1.bf16.msra.mxu0 0
        %7318 = vmatprep.subr.bf16.mxu0 0
        %7319 = vmatpush1.bf16.msra.mxu0 0
        %7320 = vmatprep.subr.bf16.mxu0 0
        %7321 = vmatpush1.bf16.msra.mxu0 0
        %7322 = vmatprep.subr.bf16.mxu0 0
        %7323 = vmatpush1.bf16.msra.mxu0 0
        %7324 = vmatprep.subr.bf16.mxu0 0
        %7325 = vmatpush1.bf16.msra.mxu0 0
        %7326 = vmatprep.subr.bf16.mxu0 0
        %7327 = vmatpush1.bf16.msra.mxu0 0
        %7328 = vmatprep.mubr.bf16.mxu0 0
        %7329 = vmatmul.mubr.bf16.gmra.mrb[0].mxu0 %v7285
        %v7330 = vpop.f32.mrb[0].mxu0
        %v7331 = vadd.f32 0.0, %v7330
        %v7332 = vpop.f32.mrb[0].mxu0
        %v7333 = vpop.f32.mrb[0].mxu0
        %v7334 = vadd.f32 0.0, %v7333
        %v7335 = vpop.f32.mrb[0].mxu0
        %7336 = vmatprep.mubr.bf16.mxu0 0
        %7337 = vmatmul.mubr.bf16.gmra.mrb[0].mxu0 %v7288
        %v7338 = vpop.f32.mrb[0].mxu0
        %v7339 = vadd.f32 0.0, %v7338
        %v7340 = vpop.f32.mrb[0].mxu0
        %v7341 = vpop.f32.mrb[0].mxu0
        %v7342 = vadd.f32 0.0, %v7341
        %v7343 = vpop.f32.mrb[0].mxu0
        %7344 = vmatprep.mubr.bf16.mxu0 0
        %7345 = vmatmul.mubr.bf16.gmra.mrb[0].mxu0 %v7291
        %v7346 = vpop.f32.mrb[0].mxu0
        %v7347 = vadd.f32 0.0, %v7346
        %v7348 = vpop.f32.mrb[0].mxu0
        %v7349 = vpop.f32.mrb[0].mxu0
        %v7350 = vadd.f32 0.0, %v7349
        %v7351 = vpop.f32.mrb[0].mxu0
        %7352 = vmatprep.mubr.bf16.mxu0 0
        %7353 = vmatmul.mubr.bf16.gmra.mrb[0].mxu0 %v7294
        %v7354 = vpop.f32.mrb[0].mxu0
        %v7355 = vadd.f32 0.0, %v7354
        %v7356 = vpop.f32.mrb[0].mxu0
        %v7357 = vpop.f32.mrb[0].mxu0
        %v7358 = vadd.f32 0.0, %v7357
        %v7359 = vpop.f32.mrb[0].mxu0
        %7360 = vdwg.mxu0
        %v7361 = vadd.f32 %v7245, %v7331
        %v7362 = vadd.f32 %v7246, %v7334
        %v7363 = vadd.f32 %v7247, %v7339
        %v7364 = vadd.f32 %v7248, %v7342
        %v7365 = vadd.f32 %v7249, %v7347
        %v7366 = vadd.f32 %v7250, %v7350
        %v7367 = vadd.f32 %v7251, %v7355
        %v7368 = vadd.f32 %v7252, %v7358
        %s7369 = scalar_lea.vmem %s4, 1024
        %v7370 = vld [vmem:[%s7369] sm:$0xf]
        %v7371 = vld [vmem:[%s7369 + $0x4] sm:$0xf]
        %v7372 = vld [vmem:[%s7369 + $0x8] sm:$0xf]
        %v7373 = vld [vmem:[%s7369 + $0xc] sm:$0xf]
        %v7374 = vld [vmem:[%s7369 + $0x10] sm:$0xf]
        %v7375 = vld [vmem:[%s7369 + $0x14] sm:$0xf]
        %v7376 = vld [vmem:[%s7369 + $0x18] sm:$0xf]
        %v7377 = vld [vmem:[%s7369 + $0x1c] sm:$0xf]
        %7378 = vrot.lane.b32.xlu0 %v7068, 126
        %v7379 = vpop.permute.xlu0 %7378
        %7380 = vrot.lane.b32.xlu0 %v7069, 126
        %v7381 = vpop.permute.xlu0 %7380
        %7382 = vrot.lane.b32.xlu0 %v7070, 126
        %v7383 = vpop.permute.xlu0 %7382
        %7384 = vrot.lane.b32.xlu0 %v7071, 126
        %v7385 = vpop.permute.xlu0 %7384
        %v7386 = vmul.f32 %v7379, %v457
        %v7387 = vmul.f32 %v7381, %v457
        %v7388 = vmul.f32 %v7383, %v457
        %v7389 = vmul.f32 %v7385, %v457
        %v7390 = vpack.c.bf16 %v7387, %v7386
        %v7391 = vpack.c.bf16 %v7389, %v7388
        %v7400 = vunpack.c.l.b16 %v7370
        %v7401 = vunpack.c.l.b16 %v7371
        %v7402 = vunpack.c.l.b16 %v7372
        %v7403 = vunpack.c.l.b16 %v7373
        %v7404 = vunpack.c.l.b16 %v7374
        %v7405 = vunpack.c.l.b16 %v7375
        %v7406 = vunpack.c.l.b16 %v7376
        %v7407 = vunpack.c.l.b16 %v7377
        %v7408 = vpack.c.b16 %v7401, %v7400
        %v7409 = vpack.c.b16 %v7403, %v7402
        %v7410 = vpack.c.b16 %v7405, %v7404
        %v7411 = vpack.c.b16 %v7407, %v7406
        %v7413 = vsel %vm623, %v7408, 0
        %v7416 = vsel %vm623, %v7409, 0
        %v7419 = vsel %vm623, %v7410, 0
        %v7422 = vsel %vm623, %v7411, 0
        %7424 = vmatprep.subr.bf16.mxu0 0
        %7425 = vmatpush1.bf16.msra.mxu0 %v7390
        %7426 = vmatprep.subr.bf16.mxu0 0
        %7427 = vmatpush1.bf16.msra.mxu0 %v7391
        %7428 = vmatprep.subr.bf16.mxu0 0
        %7429 = vmatpush1.bf16.msra.mxu0 0
        %7430 = vmatprep.subr.bf16.mxu0 0
        %7431 = vmatpush1.bf16.msra.mxu0 0
        %7432 = vmatprep.subr.bf16.mxu0 0
        %7433 = vmatpush1.bf16.msra.mxu0 0
        %7434 = vmatprep.subr.bf16.mxu0 0
        %7435 = vmatpush1.bf16.msra.mxu0 0
        %7436 = vmatprep.subr.bf16.mxu0 0
        %7437 = vmatpush1.bf16.msra.mxu0 0
        %7438 = vmatprep.subr.bf16.mxu0 0
        %7439 = vmatpush1.bf16.msra.mxu0 0
        %7440 = vmatprep.subr.bf16.mxu0 0
        %7441 = vmatpush1.bf16.msra.mxu0 0
        %7442 = vmatprep.subr.bf16.mxu0 0
        %7443 = vmatpush1.bf16.msra.mxu0 0
        %7444 = vmatprep.subr.bf16.mxu0 0
        %7445 = vmatpush1.bf16.msra.mxu0 0
        %7446 = vmatprep.subr.bf16.mxu0 0
        %7447 = vmatpush1.bf16.msra.mxu0 0
        %7448 = vmatprep.subr.bf16.mxu0 0
        %7449 = vmatpush1.bf16.msra.mxu0 0
        %7450 = vmatprep.subr.bf16.mxu0 0
        %7451 = vmatpush1.bf16.msra.mxu0 0
        %7452 = vmatprep.subr.bf16.mxu0 0
        %7453 = vmatpush1.bf16.msra.mxu0 0
        %7454 = vmatprep.subr.bf16.mxu0 0
        %7455 = vmatpush1.bf16.msra.mxu0 0
        %7456 = vmatprep.mubr.bf16.mxu0 0
        %7457 = vmatmul.mubr.bf16.gmra.mrb[0].mxu0 %v7413
        %v7458 = vpop.f32.mrb[0].mxu0
        %v7459 = vadd.f32 0.0, %v7458
        %v7460 = vpop.f32.mrb[0].mxu0
        %v7461 = vpop.f32.mrb[0].mxu0
        %v7462 = vadd.f32 0.0, %v7461
        %v7463 = vpop.f32.mrb[0].mxu0
        %7464 = vmatprep.mubr.bf16.mxu0 0
        %7465 = vmatmul.mubr.bf16.gmra.mrb[0].mxu0 %v7416
        %v7466 = vpop.f32.mrb[0].mxu0
        %v7467 = vadd.f32 0.0, %v7466
        %v7468 = vpop.f32.mrb[0].mxu0
        %v7469 = vpop.f32.mrb[0].mxu0
        %v7470 = vadd.f32 0.0, %v7469
        %v7471 = vpop.f32.mrb[0].mxu0
        %7472 = vmatprep.mubr.bf16.mxu0 0
        %7473 = vmatmul.mubr.bf16.gmra.mrb[0].mxu0 %v7419
        %v7474 = vpop.f32.mrb[0].mxu0
        %v7475 = vadd.f32 0.0, %v7474
        %v7476 = vpop.f32.mrb[0].mxu0
        %v7477 = vpop.f32.mrb[0].mxu0
        %v7478 = vadd.f32 0.0, %v7477
        %v7479 = vpop.f32.mrb[0].mxu0
        %7480 = vmatprep.mubr.bf16.mxu0 0
        %7481 = vmatmul.mubr.bf16.gmra.mrb[0].mxu0 %v7422
        %v7482 = vpop.f32.mrb[0].mxu0
        %v7483 = vadd.f32 0.0, %v7482
        %v7484 = vpop.f32.mrb[0].mxu0
        %v7485 = vpop.f32.mrb[0].mxu0
        %v7486 = vadd.f32 0.0, %v7485
        %v7487 = vpop.f32.mrb[0].mxu0
        %7488 = vdwg.mxu0
        %v7489 = vadd.f32 %v7361, %v7459
        %v7490 = vadd.f32 %v7362, %v7462
        %v7491 = vadd.f32 %v7363, %v7467
        %v7492 = vadd.f32 %v7364, %v7470
        %v7493 = vadd.f32 %v7365, %v7475
        %v7494 = vadd.f32 %v7366, %v7478
        %v7495 = vadd.f32 %v7367, %v7483
        %v7496 = vadd.f32 %v7368, %v7486
        %v7497 = vtanh.pop %v7489
        %v7498 = vtanh.pop %v7490
        %v7499 = vtanh.pop %v7491
        %v7500 = vtanh.pop %v7492
        %v7501 = vxor.u32 %v7493, 2147483648
        %v7502 = vxor.u32 %v7494, 2147483648
        %v7503 = vxor.u32 %v7495, 2147483648
        %v7504 = vxor.u32 %v7496, 2147483648
        %v7505 = vmul.f32 %v7501, 1.442695
        %v7506 = vpow.pop %v7505
        %v7507 = vmul.f32 %v7502, 1.442695
        %v7508 = vpow.pop %v7507
        %v7509 = vmul.f32 %v7503, 1.442695
        %v7510 = vpow.pop %v7509
        %v7511 = vmul.f32 %v7504, 1.442695
        %v7512 = vpow.pop %v7511
        %v7513 = vadd.f32 %v7506, 1.0
        %v7514 = vadd.f32 %v7508, 1.0
        %v7515 = vadd.f32 %v7510, 1.0
        %v7516 = vadd.f32 %v7512, 1.0
        %v7517 = vrcp.pop %v7513
        %v7518 = vmul.f32 1.0, %v7517
        %v7519 = vrcp.pop %v7514
        %v7520 = vmul.f32 1.0, %v7519
        %v7521 = vrcp.pop %v7515
        %v7522 = vmul.f32 1.0, %v7521
        %v7523 = vrcp.pop %v7516
        %v7524 = vmul.f32 1.0, %v7523
        %v7525 = vmul.f32 %v7497, %v7518
        %v7526 = vmul.f32 %v7498, %v7520
        %v7527 = vmul.f32 %v7499, %v7522
        %v7528 = vmul.f32 %v7500, %v7524
        %s7529 = scalar_lea.vmem %s6, 224
        %v7530 = vld [vmem:[%s7529] sm:$0xf]
        %v7531 = vld [vmem:[%s7529 + $0x4] sm:$0xf]
        %v7532 = vld [vmem:[%s7529 + $0x8] sm:$0xf]
        %v7533 = vld [vmem:[%s7529 + $0xc] sm:$0xf]
        %v7534 = vld [vmem:[%s7529 + $0x10] sm:$0xf]
        %v7535 = vld [vmem:[%s7529 + $0x14] sm:$0xf]
        %v7536 = vld [vmem:[%s7529 + $0x18] sm:$0xf]
        %v7537 = vld [vmem:[%s7529 + $0x1c] sm:$0xf]
        %v7538 = vpack.c.bf16 %v7526, %v7525
        %v7539 = vpack.c.bf16 %v7528, %v7527
        %s7540 = scalar_lea.vmem %s7, 448
        %v7541 = vld [vmem:[%s7540] sm:$0xff]
        %v7542 = vld [vmem:[%s7540 + $0x8] sm:$0xff]
        %v7543 = vld [vmem:[%s7540 + $0x10] sm:$0xff]
        %v7544 = vld [vmem:[%s7540 + $0x18] sm:$0xff]
        %v7545 = vld [vmem:[%s7540 + $0x20] sm:$0xff]
        %v7546 = vld [vmem:[%s7540 + $0x28] sm:$0xff]
        %v7547 = vld [vmem:[%s7540 + $0x30] sm:$0xff]
        %v7548 = vld [vmem:[%s7540 + $0x38] sm:$0xff]
        %7550 = vset.pattern.permute.xlu0 0
        %7551 = vperm.xlu0 %7550, %v7541
        %v7552 = vpop.permute.xlu0 %7551
        %7555 = vset.pattern.permute.xlu0 0
        %7556 = vperm.xlu0 %7555, %v7542
        %v7557 = vpop.permute.xlu0 %7556
        %7560 = vset.pattern.permute.xlu0 0
        %7561 = vperm.xlu0 %7560, %v7543
        %v7562 = vpop.permute.xlu0 %7561
        %7565 = vset.pattern.permute.xlu0 0
        %7566 = vperm.xlu0 %7565, %v7544
        %v7567 = vpop.permute.xlu0 %7566
        %7570 = vset.pattern.permute.xlu0 0
        %7571 = vperm.xlu0 %7570, %v7545
        %v7572 = vpop.permute.xlu0 %7571
        %7575 = vset.pattern.permute.xlu0 0
        %7576 = vperm.xlu0 %7575, %v7546
        %v7577 = vpop.permute.xlu0 %7576
        %7580 = vset.pattern.permute.xlu0 0
        %7581 = vperm.xlu0 %7580, %v7547
        %v7582 = vpop.permute.xlu0 %7581
        %7585 = vset.pattern.permute.xlu0 0
        %7586 = vperm.xlu0 %7585, %v7548
        %v7587 = vpop.permute.xlu0 %7586
        %v7597 = vunpack.c.l.b16 %v7530
        %v7598 = vunpack.c.l.b16 %v7531
        %v7599 = vunpack.c.l.b16 %v7532
        %v7600 = vunpack.c.l.b16 %v7533
        %v7601 = vunpack.c.l.b16 %v7534
        %v7602 = vunpack.c.l.b16 %v7535
        %v7603 = vunpack.c.l.b16 %v7536
        %v7604 = vunpack.c.l.b16 %v7537
        %v7605 = vpack.c.b16 %v7598, %v7597
        %v7606 = vpack.c.b16 %v7600, %v7599
        %v7607 = vpack.c.b16 %v7602, %v7601
        %v7608 = vpack.c.b16 %v7604, %v7603
        %v7610 = vsel %vm623, %v7605, 0
        %v7613 = vsel %vm623, %v7606, 0
        %v7616 = vsel %vm623, %v7607, 0
        %v7619 = vsel %vm623, %v7608, 0
        %7621 = vmatprep.subr.bf16.mxu0 0
        %7622 = vmatpush1.bf16.msra.mxu0 %v7538
        %7623 = vmatprep.subr.bf16.mxu0 0
        %7624 = vmatpush1.bf16.msra.mxu0 %v7539
        %7625 = vmatprep.subr.bf16.mxu0 0
        %7626 = vmatpush1.bf16.msra.mxu0 0
        %7627 = vmatprep.subr.bf16.mxu0 0
        %7628 = vmatpush1.bf16.msra.mxu0 0
        %7629 = vmatprep.subr.bf16.mxu0 0
        %7630 = vmatpush1.bf16.msra.mxu0 0
        %7631 = vmatprep.subr.bf16.mxu0 0
        %7632 = vmatpush1.bf16.msra.mxu0 0
        %7633 = vmatprep.subr.bf16.mxu0 0
        %7634 = vmatpush1.bf16.msra.mxu0 0
        %7635 = vmatprep.subr.bf16.mxu0 0
        %7636 = vmatpush1.bf16.msra.mxu0 0
        %7637 = vmatprep.subr.bf16.mxu0 0
        %7638 = vmatpush1.bf16.msra.mxu0 0
        %7639 = vmatprep.subr.bf16.mxu0 0
        %7640 = vmatpush1.bf16.msra.mxu0 0
        %7641 = vmatprep.subr.bf16.mxu0 0
        %7642 = vmatpush1.bf16.msra.mxu0 0
        %7643 = vmatprep.subr.bf16.mxu0 0
        %7644 = vmatpush1.bf16.msra.mxu0 0
        %7645 = vmatprep.subr.bf16.mxu0 0
        %7646 = vmatpush1.bf16.msra.mxu0 0
        %7647 = vmatprep.subr.bf16.mxu0 0
        %7648 = vmatpush1.bf16.msra.mxu0 0
        %7649 = vmatprep.subr.bf16.mxu0 0
        %7650 = vmatpush1.bf16.msra.mxu0 0
        %7651 = vmatprep.subr.bf16.mxu0 0
        %7652 = vmatpush1.bf16.msra.mxu0 0
        %7653 = vmatprep.mubr.bf16.mxu0 0
        %7654 = vmatmul.mubr.bf16.gmra.mrb[0].mxu0 %v7610
        %v7655 = vpop.f32.mrb[0].mxu0
        %v7656 = vadd.f32 %v7552, %v7655
        %v7657 = vpop.f32.mrb[0].mxu0
        %v7658 = vpop.f32.mrb[0].mxu0
        %v7659 = vadd.f32 %v7557, %v7658
        %v7660 = vpop.f32.mrb[0].mxu0
        %7661 = vmatprep.mubr.bf16.mxu0 0
        %7662 = vmatmul.mubr.bf16.gmra.mrb[0].mxu0 %v7613
        %v7663 = vpop.f32.mrb[0].mxu0
        %v7664 = vadd.f32 %v7562, %v7663
        %v7665 = vpop.f32.mrb[0].mxu0
        %v7666 = vpop.f32.mrb[0].mxu0
        %v7667 = vadd.f32 %v7567, %v7666
        %v7668 = vpop.f32.mrb[0].mxu0
        %7669 = vmatprep.mubr.bf16.mxu0 0
        %7670 = vmatmul.mubr.bf16.gmra.mrb[0].mxu0 %v7616
        %v7671 = vpop.f32.mrb[0].mxu0
        %v7672 = vadd.f32 %v7572, %v7671
        %v7673 = vpop.f32.mrb[0].mxu0
        %v7674 = vpop.f32.mrb[0].mxu0
        %v7675 = vadd.f32 %v7577, %v7674
        %v7676 = vpop.f32.mrb[0].mxu0
        %7677 = vmatprep.mubr.bf16.mxu0 0
        %7678 = vmatmul.mubr.bf16.gmra.mrb[0].mxu0 %v7619
        %v7679 = vpop.f32.mrb[0].mxu0
        %v7680 = vadd.f32 %v7582, %v7679
        %v7681 = vpop.f32.mrb[0].mxu0
        %v7682 = vpop.f32.mrb[0].mxu0
        %v7683 = vadd.f32 %v7587, %v7682
        %v7684 = vpop.f32.mrb[0].mxu0
        %7685 = vdwg.mxu0
        %v7686 = vadd.f32 %v7068, %v7656
        %v7687 = vadd.f32 %v7069, %v7659
        %v7688 = vadd.f32 %v7070, %v7664
        %v7689 = vadd.f32 %v7071, %v7667
        %v7690 = vmul.f32 %v7686, %v567
        %v7691 = vmul.f32 %v7687, %v567
        %v7692 = vmul.f32 %v7688, %v567
        %v7693 = vmul.f32 %v7689, %v567
        %v7694 = vadd.f32 %v7072, %v7672
        %v7695 = vadd.f32 %v7073, %v7675
        %v7696 = vadd.f32 %v7074, %v7680
        %v7697 = vadd.f32 %v7075, %v7683
        %s7698 = scalar_lea.vmem %s5, 704
        %v7699 = vld [vmem:[%s7698] sm:$0xff]
        %v7700 = vld [vmem:[%s7698 + $0x8] sm:$0xff]
        %v7701 = vld [vmem:[%s7698 + $0x10] sm:$0xff]
        %v7702 = vld [vmem:[%s7698 + $0x18] sm:$0xff]
        %v7703 = vld [vmem:[%s7698 + $0x20] sm:$0xff]
        %v7704 = vld [vmem:[%s7698 + $0x28] sm:$0xff]
        %v7705 = vld [vmem:[%s7698 + $0x30] sm:$0xff]
        %v7706 = vld [vmem:[%s7698 + $0x38] sm:$0xff]
        %s7707 = scalar_lea.vmem %s4, 1056
        %v7708 = vld [vmem:[%s7707] sm:$0xf]
        %v7709 = vld [vmem:[%s7707 + $0x4] sm:$0xf]
        %v7710 = vld [vmem:[%s7707 + $0x8] sm:$0xf]
        %v7711 = vld [vmem:[%s7707 + $0xc] sm:$0xf]
        %v7712 = vld [vmem:[%s7707 + $0x10] sm:$0xf]
        %v7713 = vld [vmem:[%s7707 + $0x14] sm:$0xf]
        %v7714 = vld [vmem:[%s7707 + $0x18] sm:$0xf]
        %v7715 = vld [vmem:[%s7707 + $0x1c] sm:$0xf]
        %7716 = vrot.lane.b32.xlu0 %v7690, 4
        %v7717 = vpop.permute.xlu0 %7716
        %7718 = vrot.lane.b32.xlu0 %v7691, 4
        %v7719 = vpop.permute.xlu0 %7718
        %7720 = vrot.lane.b32.xlu0 %v7692, 4
        %v7721 = vpop.permute.xlu0 %7720
        %7722 = vrot.lane.b32.xlu0 %v7693, 4
        %v7723 = vpop.permute.xlu0 %7722
        %v7724 = vmul.f32 %v7717, %v433
        %v7725 = vmul.f32 %v7719, %v433
        %v7726 = vmul.f32 %v7721, %v433
        %v7727 = vmul.f32 %v7723, %v433
        %v7728 = vpack.c.bf16 %v7725, %v7724
        %v7729 = vpack.c.bf16 %v7727, %v7726
        %v7738 = vunpack.c.l.b16 %v7708
        %v7739 = vunpack.c.l.b16 %v7709
        %v7740 = vunpack.c.l.b16 %v7710
        %v7741 = vunpack.c.l.b16 %v7711
        %v7742 = vunpack.c.l.b16 %v7712
        %v7743 = vunpack.c.l.b16 %v7713
        %v7744 = vunpack.c.l.b16 %v7714
        %v7745 = vunpack.c.l.b16 %v7715
        %v7746 = vpack.c.b16 %v7739, %v7738
        %v7747 = vpack.c.b16 %v7741, %v7740
        %v7748 = vpack.c.b16 %v7743, %v7742
        %v7749 = vpack.c.b16 %v7745, %v7744
        %v7751 = vsel %vm623, %v7746, 0
        %v7754 = vsel %vm623, %v7747, 0
        %v7757 = vsel %vm623, %v7748, 0
        %v7760 = vsel %vm623, %v7749, 0
        %7762 = vmatprep.subr.bf16.mxu0 0
        %7763 = vmatpush1.bf16.msra.mxu0 %v7728
        %7764 = vmatprep.subr.bf16.mxu0 0
        %7765 = vmatpush1.bf16.msra.mxu0 %v7729
        %7766 = vmatprep.subr.bf16.mxu0 0
        %7767 = vmatpush1.bf16.msra.mxu0 0
        %7768 = vmatprep.subr.bf16.mxu0 0
        %7769 = vmatpush1.bf16.msra.mxu0 0
        %7770 = vmatprep.subr.bf16.mxu0 0
        %7771 = vmatpush1.bf16.msra.mxu0 0
        %7772 = vmatprep.subr.bf16.mxu0 0
        %7773 = vmatpush1.bf16.msra.mxu0 0
        %7774 = vmatprep.subr.bf16.mxu0 0
        %7775 = vmatpush1.bf16.msra.mxu0 0
        %7776 = vmatprep.subr.bf16.mxu0 0
        %7777 = vmatpush1.bf16.msra.mxu0 0
        %7778 = vmatprep.subr.bf16.mxu0 0
        %7779 = vmatpush1.bf16.msra.mxu0 0
        %7780 = vmatprep.subr.bf16.mxu0 0
        %7781 = vmatpush1.bf16.msra.mxu0 0
        %7782 = vmatprep.subr.bf16.mxu0 0
        %7783 = vmatpush1.bf16.msra.mxu0 0
        %7784 = vmatprep.subr.bf16.mxu0 0
        %7785 = vmatpush1.bf16.msra.mxu0 0
        %7786 = vmatprep.subr.bf16.mxu0 0
        %7787 = vmatpush1.bf16.msra.mxu0 0
        %7788 = vmatprep.subr.bf16.mxu0 0
        %7789 = vmatpush1.bf16.msra.mxu0 0
        %7790 = vmatprep.subr.bf16.mxu0 0
        %7791 = vmatpush1.bf16.msra.mxu0 0
        %7792 = vmatprep.subr.bf16.mxu0 0
        %7793 = vmatpush1.bf16.msra.mxu0 0
        %7794 = vmatprep.mubr.bf16.mxu0 0
        %7795 = vmatmul.mubr.bf16.gmra.mrb[0].mxu0 %v7751
        %v7796 = vpop.f32.mrb[0].mxu0
        %v7797 = vadd.f32 0.0, %v7796
        %v7798 = vpop.f32.mrb[0].mxu0
        %v7799 = vpop.f32.mrb[0].mxu0
        %v7800 = vadd.f32 0.0, %v7799
        %v7801 = vpop.f32.mrb[0].mxu0
        %7802 = vmatprep.mubr.bf16.mxu0 0
        %7803 = vmatmul.mubr.bf16.gmra.mrb[0].mxu0 %v7754
        %v7804 = vpop.f32.mrb[0].mxu0
        %v7805 = vadd.f32 0.0, %v7804
        %v7806 = vpop.f32.mrb[0].mxu0
        %v7807 = vpop.f32.mrb[0].mxu0
        %v7808 = vadd.f32 0.0, %v7807
        %v7809 = vpop.f32.mrb[0].mxu0
        %7810 = vmatprep.mubr.bf16.mxu0 0
        %7811 = vmatmul.mubr.bf16.gmra.mrb[0].mxu0 %v7757
        %v7812 = vpop.f32.mrb[0].mxu0
        %v7813 = vadd.f32 0.0, %v7812
        %v7814 = vpop.f32.mrb[0].mxu0
        %v7815 = vpop.f32.mrb[0].mxu0
        %v7816 = vadd.f32 0.0, %v7815
        %v7817 = vpop.f32.mrb[0].mxu0
        %7818 = vmatprep.mubr.bf16.mxu0 0
        %7819 = vmatmul.mubr.bf16.gmra.mrb[0].mxu0 %v7760
        %v7820 = vpop.f32.mrb[0].mxu0
        %v7821 = vadd.f32 0.0, %v7820
        %v7822 = vpop.f32.mrb[0].mxu0
        %v7823 = vpop.f32.mrb[0].mxu0
        %v7824 = vadd.f32 0.0, %v7823
        %v7825 = vpop.f32.mrb[0].mxu0
        %7826 = vdwg.mxu0
        %7828 = vset.pattern.permute.xlu0 0
        %7829 = vperm.xlu0 %7828, %v7699
        %v7830 = vpop.permute.xlu0 %7829
        %7833 = vset.pattern.permute.xlu0 0
        %7834 = vperm.xlu0 %7833, %v7700
        %v7835 = vpop.permute.xlu0 %7834
        %7838 = vset.pattern.permute.xlu0 0
        %7839 = vperm.xlu0 %7838, %v7701
        %v7840 = vpop.permute.xlu0 %7839
        %7843 = vset.pattern.permute.xlu0 0
        %7844 = vperm.xlu0 %7843, %v7702
        %v7845 = vpop.permute.xlu0 %7844
        %7848 = vset.pattern.permute.xlu0 0
        %7849 = vperm.xlu0 %7848, %v7703
        %v7850 = vpop.permute.xlu0 %7849
        %7853 = vset.pattern.permute.xlu0 0
        %7854 = vperm.xlu0 %7853, %v7704
        %v7855 = vpop.permute.xlu0 %7854
        %7858 = vset.pattern.permute.xlu0 0
        %7859 = vperm.xlu0 %7858, %v7705
        %v7860 = vpop.permute.xlu0 %7859
        %7863 = vset.pattern.permute.xlu0 0
        %7864 = vperm.xlu0 %7863, %v7706
        %v7865 = vpop.permute.xlu0 %7864
        %v7867 = vadd.f32 %v7830, %v7797
        %v7868 = vadd.f32 %v7835, %v7800
        %v7869 = vadd.f32 %v7840, %v7805
        %v7870 = vadd.f32 %v7845, %v7808
        %v7871 = vadd.f32 %v7850, %v7813
        %v7872 = vadd.f32 %v7855, %v7816
        %v7873 = vadd.f32 %v7860, %v7821
        %v7874 = vadd.f32 %v7865, %v7824
        %s7875 = scalar_lea.vmem %s4, 1088
        %v7876 = vld [vmem:[%s7875] sm:$0xf]
        %v7877 = vld [vmem:[%s7875 + $0x4] sm:$0xf]
        %v7878 = vld [vmem:[%s7875 + $0x8] sm:$0xf]
        %v7879 = vld [vmem:[%s7875 + $0xc] sm:$0xf]
        %v7880 = vld [vmem:[%s7875 + $0x10] sm:$0xf]
        %v7881 = vld [vmem:[%s7875 + $0x14] sm:$0xf]
        %v7882 = vld [vmem:[%s7875 + $0x18] sm:$0xf]
        %v7883 = vld [vmem:[%s7875 + $0x1c] sm:$0xf]
        %v7884 = vpack.c.bf16 %v7691, %v7690
        %v7885 = vpack.c.bf16 %v7693, %v7692
        %v7894 = vunpack.c.l.b16 %v7876
        %v7895 = vunpack.c.l.b16 %v7877
        %v7896 = vunpack.c.l.b16 %v7878
        %v7897 = vunpack.c.l.b16 %v7879
        %v7898 = vunpack.c.l.b16 %v7880
        %v7899 = vunpack.c.l.b16 %v7881
        %v7900 = vunpack.c.l.b16 %v7882
        %v7901 = vunpack.c.l.b16 %v7883
        %v7902 = vpack.c.b16 %v7895, %v7894
        %v7903 = vpack.c.b16 %v7897, %v7896
        %v7904 = vpack.c.b16 %v7899, %v7898
        %v7905 = vpack.c.b16 %v7901, %v7900
        %v7907 = vsel %vm623, %v7902, 0
        %v7910 = vsel %vm623, %v7903, 0
        %v7913 = vsel %vm623, %v7904, 0
        %v7916 = vsel %vm623, %v7905, 0
        %7918 = vmatprep.subr.bf16.mxu0 0
        %7919 = vmatpush1.bf16.msra.mxu0 %v7884
        %7920 = vmatprep.subr.bf16.mxu0 0
        %7921 = vmatpush1.bf16.msra.mxu0 %v7885
        %7922 = vmatprep.subr.bf16.mxu0 0
        %7923 = vmatpush1.bf16.msra.mxu0 0
        %7924 = vmatprep.subr.bf16.mxu0 0
        %7925 = vmatpush1.bf16.msra.mxu0 0
        %7926 = vmatprep.subr.bf16.mxu0 0
        %7927 = vmatpush1.bf16.msra.mxu0 0
        %7928 = vmatprep.subr.bf16.mxu0 0
        %7929 = vmatpush1.bf16.msra.mxu0 0
        %7930 = vmatprep.subr.bf16.mxu0 0
        %7931 = vmatpush1.bf16.msra.mxu0 0
        %7932 = vmatprep.subr.bf16.mxu0 0
        %7933 = vmatpush1.bf16.msra.mxu0 0
        %7934 = vmatprep.subr.bf16.mxu0 0
        %7935 = vmatpush1.bf16.msra.mxu0 0
        %7936 = vmatprep.subr.bf16.mxu0 0
        %7937 = vmatpush1.bf16.msra.mxu0 0
        %7938 = vmatprep.subr.bf16.mxu0 0
        %7939 = vmatpush1.bf16.msra.mxu0 0
        %7940 = vmatprep.subr.bf16.mxu0 0
        %7941 = vmatpush1.bf16.msra.mxu0 0
        %7942 = vmatprep.subr.bf16.mxu0 0
        %7943 = vmatpush1.bf16.msra.mxu0 0
        %7944 = vmatprep.subr.bf16.mxu0 0
        %7945 = vmatpush1.bf16.msra.mxu0 0
        %7946 = vmatprep.subr.bf16.mxu0 0
        %7947 = vmatpush1.bf16.msra.mxu0 0
        %7948 = vmatprep.subr.bf16.mxu0 0
        %7949 = vmatpush1.bf16.msra.mxu0 0
        %7950 = vmatprep.mubr.bf16.mxu0 0
        %7951 = vmatmul.mubr.bf16.gmra.mrb[0].mxu0 %v7907
        %v7952 = vpop.f32.mrb[0].mxu0
        %v7953 = vadd.f32 0.0, %v7952
        %v7954 = vpop.f32.mrb[0].mxu0
        %v7955 = vpop.f32.mrb[0].mxu0
        %v7956 = vadd.f32 0.0, %v7955
        %v7957 = vpop.f32.mrb[0].mxu0
        %7958 = vmatprep.mubr.bf16.mxu0 0
        %7959 = vmatmul.mubr.bf16.gmra.mrb[0].mxu0 %v7910
        %v7960 = vpop.f32.mrb[0].mxu0
        %v7961 = vadd.f32 0.0, %v7960
        %v7962 = vpop.f32.mrb[0].mxu0
        %v7963 = vpop.f32.mrb[0].mxu0
        %v7964 = vadd.f32 0.0, %v7963
        %v7965 = vpop.f32.mrb[0].mxu0
        %7966 = vmatprep.mubr.bf16.mxu0 0
        %7967 = vmatmul.mubr.bf16.gmra.mrb[0].mxu0 %v7913
        %v7968 = vpop.f32.mrb[0].mxu0
        %v7969 = vadd.f32 0.0, %v7968
        %v7970 = vpop.f32.mrb[0].mxu0
        %v7971 = vpop.f32.mrb[0].mxu0
        %v7972 = vadd.f32 0.0, %v7971
        %v7973 = vpop.f32.mrb[0].mxu0
        %7974 = vmatprep.mubr.bf16.mxu0 0
        %7975 = vmatmul.mubr.bf16.gmra.mrb[0].mxu0 %v7916
        %v7976 = vpop.f32.mrb[0].mxu0
        %v7977 = vadd.f32 0.0, %v7976
        %v7978 = vpop.f32.mrb[0].mxu0
        %v7979 = vpop.f32.mrb[0].mxu0
        %v7980 = vadd.f32 0.0, %v7979
        %v7981 = vpop.f32.mrb[0].mxu0
        %7982 = vdwg.mxu0
        %v7983 = vadd.f32 %v7867, %v7953
        %v7984 = vadd.f32 %v7868, %v7956
        %v7985 = vadd.f32 %v7869, %v7961
        %v7986 = vadd.f32 %v7870, %v7964
        %v7987 = vadd.f32 %v7871, %v7969
        %v7988 = vadd.f32 %v7872, %v7972
        %v7989 = vadd.f32 %v7873, %v7977
        %v7990 = vadd.f32 %v7874, %v7980
        %s7991 = scalar_lea.vmem %s4, 1120
        %v7992 = vld [vmem:[%s7991] sm:$0xf]
        %v7993 = vld [vmem:[%s7991 + $0x4] sm:$0xf]
        %v7994 = vld [vmem:[%s7991 + $0x8] sm:$0xf]
        %v7995 = vld [vmem:[%s7991 + $0xc] sm:$0xf]
        %v7996 = vld [vmem:[%s7991 + $0x10] sm:$0xf]
        %v7997 = vld [vmem:[%s7991 + $0x14] sm:$0xf]
        %v7998 = vld [vmem:[%s7991 + $0x18] sm:$0xf]
        %v7999 = vld [vmem:[%s7991 + $0x1c] sm:$0xf]
        %8000 = vrot.lane.b32.xlu0 %v7690, 124
        %v8001 = vpop.permute.xlu0 %8000
        %8002 = vrot.lane.b32.xlu0 %v7691, 124
        %v8003 = vpop.permute.xlu0 %8002
        %8004 = vrot.lane.b32.xlu0 %v7692, 124
        %v8005 = vpop.permute.xlu0 %8004
        %8006 = vrot.lane.b32.xlu0 %v7693, 124
        %v8007 = vpop.permute.xlu0 %8006
        %v8008 = vmul.f32 %v8001, %v463
        %v8009 = vmul.f32 %v8003, %v463
        %v8010 = vmul.f32 %v8005, %v463
        %v8011 = vmul.f32 %v8007, %v463
        %v8012 = vpack.c.bf16 %v8009, %v8008
        %v8013 = vpack.c.bf16 %v8011, %v8010
        %v8022 = vunpack.c.l.b16 %v7992
        %v8023 = vunpack.c.l.b16 %v7993
        %v8024 = vunpack.c.l.b16 %v7994
        %v8025 = vunpack.c.l.b16 %v7995
        %v8026 = vunpack.c.l.b16 %v7996
        %v8027 = vunpack.c.l.b16 %v7997
        %v8028 = vunpack.c.l.b16 %v7998
        %v8029 = vunpack.c.l.b16 %v7999
        %v8030 = vpack.c.b16 %v8023, %v8022
        %v8031 = vpack.c.b16 %v8025, %v8024
        %v8032 = vpack.c.b16 %v8027, %v8026
        %v8033 = vpack.c.b16 %v8029, %v8028
        %v8035 = vsel %vm623, %v8030, 0
        %v8038 = vsel %vm623, %v8031, 0
        %v8041 = vsel %vm623, %v8032, 0
        %v8044 = vsel %vm623, %v8033, 0
        %8046 = vmatprep.subr.bf16.mxu0 0
        %8047 = vmatpush1.bf16.msra.mxu0 %v8012
        %8048 = vmatprep.subr.bf16.mxu0 0
        %8049 = vmatpush1.bf16.msra.mxu0 %v8013
        %8050 = vmatprep.subr.bf16.mxu0 0
        %8051 = vmatpush1.bf16.msra.mxu0 0
        %8052 = vmatprep.subr.bf16.mxu0 0
        %8053 = vmatpush1.bf16.msra.mxu0 0
        %8054 = vmatprep.subr.bf16.mxu0 0
        %8055 = vmatpush1.bf16.msra.mxu0 0
        %8056 = vmatprep.subr.bf16.mxu0 0
        %8057 = vmatpush1.bf16.msra.mxu0 0
        %8058 = vmatprep.subr.bf16.mxu0 0
        %8059 = vmatpush1.bf16.msra.mxu0 0
        %8060 = vmatprep.subr.bf16.mxu0 0
        %8061 = vmatpush1.bf16.msra.mxu0 0
        %8062 = vmatprep.subr.bf16.mxu0 0
        %8063 = vmatpush1.bf16.msra.mxu0 0
        %8064 = vmatprep.subr.bf16.mxu0 0
        %8065 = vmatpush1.bf16.msra.mxu0 0
        %8066 = vmatprep.subr.bf16.mxu0 0
        %8067 = vmatpush1.bf16.msra.mxu0 0
        %8068 = vmatprep.subr.bf16.mxu0 0
        %8069 = vmatpush1.bf16.msra.mxu0 0
        %8070 = vmatprep.subr.bf16.mxu0 0
        %8071 = vmatpush1.bf16.msra.mxu0 0
        %8072 = vmatprep.subr.bf16.mxu0 0
        %8073 = vmatpush1.bf16.msra.mxu0 0
        %8074 = vmatprep.subr.bf16.mxu0 0
        %8075 = vmatpush1.bf16.msra.mxu0 0
        %8076 = vmatprep.subr.bf16.mxu0 0
        %8077 = vmatpush1.bf16.msra.mxu0 0
        %8078 = vmatprep.mubr.bf16.mxu0 0
        %8079 = vmatmul.mubr.bf16.gmra.mrb[0].mxu0 %v8035
        %v8080 = vpop.f32.mrb[0].mxu0
        %v8081 = vadd.f32 0.0, %v8080
        %v8082 = vpop.f32.mrb[0].mxu0
        %v8083 = vpop.f32.mrb[0].mxu0
        %v8084 = vadd.f32 0.0, %v8083
        %v8085 = vpop.f32.mrb[0].mxu0
        %8086 = vmatprep.mubr.bf16.mxu0 0
        %8087 = vmatmul.mubr.bf16.gmra.mrb[0].mxu0 %v8038
        %v8088 = vpop.f32.mrb[0].mxu0
        %v8089 = vadd.f32 0.0, %v8088
        %v8090 = vpop.f32.mrb[0].mxu0
        %v8091 = vpop.f32.mrb[0].mxu0
        %v8092 = vadd.f32 0.0, %v8091
        %v8093 = vpop.f32.mrb[0].mxu0
        %8094 = vmatprep.mubr.bf16.mxu0 0
        %8095 = vmatmul.mubr.bf16.gmra.mrb[0].mxu0 %v8041
        %v8096 = vpop.f32.mrb[0].mxu0
        %v8097 = vadd.f32 0.0, %v8096
        %v8098 = vpop.f32.mrb[0].mxu0
        %v8099 = vpop.f32.mrb[0].mxu0
        %v8100 = vadd.f32 0.0, %v8099
        %v8101 = vpop.f32.mrb[0].mxu0
        %8102 = vmatprep.mubr.bf16.mxu0 0
        %8103 = vmatmul.mubr.bf16.gmra.mrb[0].mxu0 %v8044
        %v8104 = vpop.f32.mrb[0].mxu0
        %v8105 = vadd.f32 0.0, %v8104
        %v8106 = vpop.f32.mrb[0].mxu0
        %v8107 = vpop.f32.mrb[0].mxu0
        %v8108 = vadd.f32 0.0, %v8107
        %v8109 = vpop.f32.mrb[0].mxu0
        %8110 = vdwg.mxu0
        %v8111 = vadd.f32 %v7983, %v8081
        %v8112 = vadd.f32 %v7984, %v8084
        %v8113 = vadd.f32 %v7985, %v8089
        %v8114 = vadd.f32 %v7986, %v8092
        %v8115 = vadd.f32 %v7987, %v8097
        %v8116 = vadd.f32 %v7988, %v8100
        %v8117 = vadd.f32 %v7989, %v8105
        %v8118 = vadd.f32 %v7990, %v8108
        %v8119 = vtanh.pop %v8111
        %v8120 = vtanh.pop %v8112
        %v8121 = vtanh.pop %v8113
        %v8122 = vtanh.pop %v8114
        %v8123 = vxor.u32 %v8115, 2147483648
        %v8124 = vxor.u32 %v8116, 2147483648
        %v8125 = vxor.u32 %v8117, 2147483648
        %v8126 = vxor.u32 %v8118, 2147483648
        %v8127 = vmul.f32 %v8123, 1.442695
        %v8128 = vpow.pop %v8127
        %v8129 = vmul.f32 %v8124, 1.442695
        %v8130 = vpow.pop %v8129
        %v8131 = vmul.f32 %v8125, 1.442695
        %v8132 = vpow.pop %v8131
        %v8133 = vmul.f32 %v8126, 1.442695
        %v8134 = vpow.pop %v8133
        %v8135 = vadd.f32 %v8128, 1.0
        %v8136 = vadd.f32 %v8130, 1.0
        %v8137 = vadd.f32 %v8132, 1.0
        %v8138 = vadd.f32 %v8134, 1.0
        %v8139 = vrcp.pop %v8135
        %v8140 = vmul.f32 1.0, %v8139
        %v8141 = vrcp.pop %v8136
        %v8142 = vmul.f32 1.0, %v8141
        %v8143 = vrcp.pop %v8137
        %v8144 = vmul.f32 1.0, %v8143
        %v8145 = vrcp.pop %v8138
        %v8146 = vmul.f32 1.0, %v8145
        %v8147 = vmul.f32 %v8119, %v8140
        %v8148 = vmul.f32 %v8120, %v8142
        %v8149 = vmul.f32 %v8121, %v8144
        %v8150 = vmul.f32 %v8122, %v8146
        %s8151 = scalar_lea.vmem %s8, 48
        %v8152 = vld [vmem:[%s8151] sm:$0xf]
        %v8153 = vld [vmem:[%s8151 + $0x4] sm:$0xf]
        %v8154 = vld [vmem:[%s8151 + $0x8] sm:$0xf]
        %v8155 = vld [vmem:[%s8151 + $0xc] sm:$0xf]
        %v8156 = vpack.c.bf16 %v8148, %v8147
        %v8157 = vpack.c.bf16 %v8150, %v8149
        %v8162 = vunpack.c.l.b16 %v8152
        %v8163 = vunpack.c.l.b16 %v8153
        %v8164 = vunpack.c.l.b16 %v8154
        %v8165 = vunpack.c.l.b16 %v8155
        %v8166 = vpack.c.b16 %v8163, %v8162
        %v8167 = vpack.c.b16 %v8165, %v8164
        %v8169 = vsel %vm623, %v8166, 0
        %v8172 = vsel %vm623, %v8167, 0
        %8174 = vmatprep.subr.bf16.mxu0 0
        %8175 = vmatpush1.bf16.msra.mxu0 %v8156
        %8176 = vmatprep.subr.bf16.mxu0 0
        %8177 = vmatpush1.bf16.msra.mxu0 %v8157
        %8178 = vmatprep.subr.bf16.mxu0 0
        %8179 = vmatpush1.bf16.msra.mxu0 0
        %8180 = vmatprep.subr.bf16.mxu0 0
        %8181 = vmatpush1.bf16.msra.mxu0 0
        %8182 = vmatprep.subr.bf16.mxu0 0
        %8183 = vmatpush1.bf16.msra.mxu0 0
        %8184 = vmatprep.subr.bf16.mxu0 0
        %8185 = vmatpush1.bf16.msra.mxu0 0
        %8186 = vmatprep.subr.bf16.mxu0 0
        %8187 = vmatpush1.bf16.msra.mxu0 0
        %8188 = vmatprep.subr.bf16.mxu0 0
        %8189 = vmatpush1.bf16.msra.mxu0 0
        %8190 = vmatprep.subr.bf16.mxu0 0
        %8191 = vmatpush1.bf16.msra.mxu0 0
        %8192 = vmatprep.subr.bf16.mxu0 0
        %8193 = vmatpush1.bf16.msra.mxu0 0
        %8194 = vmatprep.subr.bf16.mxu0 0
        %8195 = vmatpush1.bf16.msra.mxu0 0
        %8196 = vmatprep.subr.bf16.mxu0 0
        %8197 = vmatpush1.bf16.msra.mxu0 0
        %8198 = vmatprep.subr.bf16.mxu0 0
        %8199 = vmatpush1.bf16.msra.mxu0 0
        %8200 = vmatprep.subr.bf16.mxu0 0
        %8201 = vmatpush1.bf16.msra.mxu0 0
        %8202 = vmatprep.subr.bf16.mxu0 0
        %8203 = vmatpush1.bf16.msra.mxu0 0
        %8204 = vmatprep.subr.bf16.mxu0 0
        %8205 = vmatpush1.bf16.msra.mxu0 0
        %8206 = vmatprep.mubr.bf16.mxu0 0
        %8207 = vmatmul.mubr.bf16.gmra.mrb[0].mxu0 %v8169
        %v8208 = vpop.f32.mrb[0].mxu0
        %v8209 = vadd.f32 0.0, %v8208
        %v8210 = vpop.f32.mrb[0].mxu0
        %v8211 = vpop.f32.mrb[0].mxu0
        %v8212 = vadd.f32 0.0, %v8211
        %v8213 = vpop.f32.mrb[0].mxu0
        %8214 = vmatprep.mubr.bf16.mxu0 0
        %8215 = vmatmul.mubr.bf16.gmra.mrb[0].mxu0 %v8172
        %v8216 = vpop.f32.mrb[0].mxu0
        %v8217 = vadd.f32 0.0, %v8216
        %v8218 = vpop.f32.mrb[0].mxu0
        %v8219 = vpop.f32.mrb[0].mxu0
        %v8220 = vadd.f32 0.0, %v8219
        %v8221 = vpop.f32.mrb[0].mxu0
        %8222 = vdwg.mxu0
        %v8223 = vadd.f32 %v7694, %v8209
        %v8224 = vadd.f32 %v7695, %v8212
        %v8225 = vadd.f32 %v7696, %v8217
        %v8226 = vadd.f32 %v7697, %v8220
        %s8227 = scalar_lea.vmem %s9, 96
        %v8228 = vld [vmem:[%s8227] sm:$0xff]
        %v8229 = vld [vmem:[%s8227 + $0x8] sm:$0xff]
        %v8230 = vld [vmem:[%s8227 + $0x10] sm:$0xff]
        %v8231 = vld [vmem:[%s8227 + $0x18] sm:$0xff]
        %8233 = vset.pattern.permute.xlu0 0
        %8234 = vperm.xlu0 %8233, %v8228
        %v8235 = vpop.permute.xlu0 %8234
        %8238 = vset.pattern.permute.xlu0 0
        %8239 = vperm.xlu0 %8238, %v8229
        %v8240 = vpop.permute.xlu0 %8239
        %8243 = vset.pattern.permute.xlu0 0
        %8244 = vperm.xlu0 %8243, %v8230
        %v8245 = vpop.permute.xlu0 %8244
        %8248 = vset.pattern.permute.xlu0 0
        %8249 = vperm.xlu0 %8248, %v8231
        %v8250 = vpop.permute.xlu0 %8249
        %v8252 = vadd.f32 %v8223, %v8235
        %v8253 = vadd.f32 %v8224, %v8240
        %v8254 = vadd.f32 %v8225, %v8245
        %v8255 = vadd.f32 %v8226, %v8250
        %s8256 = scalar_lea.vmem %s10, 3
        %v8257 = vld [vmem:[%s8256] sm:$0x1]
        %v8258 = vpack.c.bf16 %v8253, %v8252
        %v8259 = vpack.c.bf16 %v8255, %v8254
        %s8260 = scalar_lea.vmem %s11, 6
        %v8261 = vld [vmem:[%s8260] sm:$0x3]
        %8263 = vset.pattern.permute.xlu0 0
        %8264 = vperm.xlu0 %8263, %v8261
        %v8265 = vpop.permute.xlu0 %8264
        %v8268 = vsel %vm623, %v8257, 0
        %8270 = vmatprep.subr.bf16.mxu0 0
        %8271 = vmatpush1.bf16.msra.mxu0 %v8258
        %8272 = vmatprep.subr.bf16.mxu0 0
        %8273 = vmatpush1.bf16.msra.mxu0 %v8259
        %8274 = vmatprep.subr.bf16.mxu0 0
        %8275 = vmatpush1.bf16.msra.mxu0 0
        %8276 = vmatprep.subr.bf16.mxu0 0
        %8277 = vmatpush1.bf16.msra.mxu0 0
        %8278 = vmatprep.subr.bf16.mxu0 0
        %8279 = vmatpush1.bf16.msra.mxu0 0
        %8280 = vmatprep.subr.bf16.mxu0 0
        %8281 = vmatpush1.bf16.msra.mxu0 0
        %8282 = vmatprep.subr.bf16.mxu0 0
        %8283 = vmatpush1.bf16.msra.mxu0 0
        %8284 = vmatprep.subr.bf16.mxu0 0
        %8285 = vmatpush1.bf16.msra.mxu0 0
        %8286 = vmatprep.subr.bf16.mxu0 0
        %8287 = vmatpush1.bf16.msra.mxu0 0
        %8288 = vmatprep.subr.bf16.mxu0 0
        %8289 = vmatpush1.bf16.msra.mxu0 0
        %8290 = vmatprep.subr.bf16.mxu0 0
        %8291 = vmatpush1.bf16.msra.mxu0 0
        %8292 = vmatprep.subr.bf16.mxu0 0
        %8293 = vmatpush1.bf16.msra.mxu0 0
        %8294 = vmatprep.subr.bf16.mxu0 0
        %8295 = vmatpush1.bf16.msra.mxu0 0
        %8296 = vmatprep.subr.bf16.mxu0 0
        %8297 = vmatpush1.bf16.msra.mxu0 0
        %8298 = vmatprep.subr.bf16.mxu0 0
        %8299 = vmatpush1.bf16.msra.mxu0 0
        %8300 = vmatprep.subr.bf16.mxu0 0
        %8301 = vmatpush1.bf16.msra.mxu0 0
        %8302 = vmatprep.mubr.bf16.mxu0 0
        %8303 = vmatmul.mubr.bf16.gmra.mrb[0].mxu0 %v8268
        %v8304 = vpop.f32.mrb[0].mxu0
        %v8305 = vadd.f32 %v8265, %v8304
        %v8306 = vpop.f32.mrb[0].mxu0
        %v8307 = vpop.f32.mrb[0].mxu0
        %v8308 = vpop.f32.mrb[0].mxu0
        %8309 = vdwg.mxu0
        %v8310 = vmul.f32 %v8305, %v567
        %v8311 = vmul.f32 %v4388, %v567
        %v8312 = vadd.f32 %v8310, %v8311
        %v8314 = vrot.slane %v6350, 6
        %vm8316 = vcmask 1041408
        %v8317 = vsel %vm8316, %v8312, %v8314
        %8318 = vst [vmem:[%s415] sm:$0xf] %v8317
        %s8319 = sand.u32 %s296, 1
        %s8320 = scalar_lea.sflag [#allocation3], %s8319
        %s8321 = sand.u32 %s296, 1
        %s8322 = smul.addr %s8321, 4
        %s8323 = scalar_lea.vmem [#allocation2], %s8322
        // Predicated region
        $region69: #{_lambda_.1} parent=67 // pred_check
          %p8324 = pneg %p306
        $region70: #{_lambda_.1} parent=67 // pred_check_branch
          %8326 = sbr.rel (%p8324) target = $region72
        $region71: #{_lambda_.1} parent=67 // pred_region
          %s8328 = ssub.s32 64, 64
          %8329 = vsyncadd %s8320, %s8328
          %s8330 = smul.addr %s26, 64
          %s8331 = scalar_lea.hbm %s12, %s8330
          %s8333 = sshll.u32 %s8323, 4
          %s8334 = int_to_ptr.vmem [resolvable:$true] %s8333
          %8336 = dma.vmem_to_hbm [thread:$0]  %s8334, 64, %s8331, %s8320
        $region72: #{_lambda_.1} parent=67 // pred_fallthru
          _
      $region68: #{_lambda_.1} parent=5 // pred_fallthru
        _
      %p8337 = scmp.le.s32.totalorder 2, %s21
      // Predicated region
      $region73: #{_lambda_.1} parent=5 // pred_check
        %p8338 = pneg %p8337
      $region74: #{_lambda_.1} parent=5 // pred_check_branch
        %8340 = sbr.rel (%p8338) target = $region76
      $region75: #{_lambda_.1} parent=5 // pred_region
        %s8341 = ssub.s32 %s21, 2
        // Predicated region
        $region77: #{_lambda_.1} parent=75 // pred_check
          %p8342 = pneg %p312
        $region78: #{_lambda_.1} parent=75 // pred_check_branch
          %8344 = sbr.rel (%p8342) target = $region80
        $region79: #{_lambda_.1} parent=75 // pred_region
          %s8345 = sand.u32 %s297, 1
          %s8346 = scalar_lea.sflag [#allocation3], %s8345
          %s8347 = sand.u32 %s297, 1
          %s8348 = smul.addr %s8347, 4
          %s8349 = scalar_lea.vmem [#allocation2], %s8348
          %8350 = dma.done %s8346, 64
        $region80: #{_lambda_.1} parent=75 // pred_fallthru
          _
      $region76: #{_lambda_.1} parent=5 // pred_fallthru
        _
    $region6: #{_lambda_.1} parent=1 // loop_footer
      %s25 = sadd.s32 1, %s21
    $region7: #{_lambda_.1} parent=1 // loop_footer_branch
      %20 = sbr.rel target = $region3
    $region8: #{_lambda_.1} parent=1 // loop_exit
      _
    %8351 = vsyncpa [#allocation3], 1
    %s8352 = scalar_lea.sflag [#allocation3], 1
    %8353 = vsyncpa %s8352, 1

</llo_original>
